<compile_context>
chip_gen: v7x
topology: tpu7x:2x2x1
jax: 0.10.0
libtpu: 0.0.40
codegen_flags: <defaults>
</compile_context>

<pallas_src>
import math
from functools import partial

import jax
import jax.numpy as jnp
from jax.experimental import pallas as pl
from jax.experimental.pallas import tpu as pltpu

# > v5e's 16 MiB default scoped VMEM; still leaves headroom on v7x's 64 MiB physical VMEM.
_VMEM_LIMIT = 32 * 1024 * 1024


# =============================================================================
# fused encoder STACK kernel (one grid step = b_blk batch elements, ALL layers)
# =============================================================================
def _encoder_stack_kernel(x_ref, bias_ref, rep_ref,
                          ln1g_ref, ln1b_ref, wqkv_ref, bqkv_ref, wo_ref, bo_ref,
                          ln2g_ref, ln2b_ref, w1_ref, b1_ref, w2_ref, b2_ref,
                          o_ref, *, depth, num_heads, b_blk, eps):
    f32, bf16 = jnp.float32, jnp.bfloat16
    dn_nn = (((1,), (0,)), ((), ()))   # A @ B
    dn_nt = (((1,), (1,)), ((), ()))   # A @ B^T without an explicit transpose

    rep = rep_ref[...]                                    # [L, V+1] bf16 0/1 (exact)
    l, vp1 = rep.shape
    d = x_ref.shape[2]
    dh = d // num_heads

    # ---- rebuild tile(B)=R@B@R^T once per batch element; reused by every layer (bf16 MXU) ----
    # bias_ref: [b_blk, V+1, H*(V+1)] bf16 (pre-permuted in the wrapper) -> H+1 matmuls/elem.
    b_full = []
    for b in range(b_blk):
        rows = jax.lax.dot_general(rep, bias_ref[b], dn_nn,
                                   preferred_element_type=f32)          # [L, H*(V+1)]
        b_full.append([
            jax.lax.dot_general(rows[:, h * vp1:(h + 1) * vp1].astype(bf16), rep, dn_nt,
                                preferred_element_type=f32)             # [L, L]
            for h in range(num_heads)
        ])

    def layernorm(z, g, bb):
        mu = jnp.mean(z, axis=-1, keepdims=True)
        var = jnp.mean((z - mu) ** 2, axis=-1, keepdims=True)
        return (z - mu) * jax.lax.rsqrt(var + eps) * g + bb

    # token stream stays resident across all layers (single HBM read / write per step)
    if b_blk == 1:
        x = x_ref[0].astype(f32)                                        # [L, D]
    else:
        x = x_ref[...].reshape(b_blk * l, d).astype(f32)                # [B*L, D]

    # depth is a static Python int -> unrolled; all per-layer weights are VMEM-resident.
    # TODO(synk): for large depth/D switch to pltpu.emit_pipeline over the layer axis.
    for layer in range(depth):
        # ---- attention block (pre-LN) --------------------------------------------------------
        h = layernorm(x, ln1g_ref[layer], ln1b_ref[layer])
        # fused QKV projection (1/sqrt(dh) pre-folded into Wq/bq), bf16 operands, f32 accum
        qkv = jax.lax.dot_general(h.astype(bf16), wqkv_ref[layer], dn_nn,
                                  preferred_element_type=f32) + bqkv_ref[layer]   # [B*L, 3D]
        qkv_b = qkv.astype(bf16)                           # single cast, sliced per head below

        o_rows = []                                        # per-element concat-of-heads (bf16)
        for b in range(b_blk):
            qb = qkv_b[b * l:(b + 1) * l, :]
            outs = []
            for hd in range(num_heads):
                q = qb[:, hd * dh:(hd + 1) * dh]                            # [L, dh]
                k = qb[:, d + hd * dh:d + (hd + 1) * dh]
                v = qb[:, 2 * d + hd * dh:2 * d + (hd + 1) * dh]
                s = jax.lax.dot_general(q, k, dn_nt,
                                        preferred_element_type=f32) + b_full[b][hd]   # [L, L]
                m = jnp.max(s, axis=-1, keepdims=True)
                p = jnp.exp(s - m)
                p = p * pl.reciprocal(jnp.sum(p, axis=-1, keepdims=True), approx=True)
                outs.append(jax.lax.dot_general(p.astype(bf16), v, dn_nn,
                                                preferred_element_type=f32))          # [L, dh]
            o_rows.append(jnp.concatenate(outs, axis=-1).astype(bf16))                # [L, D]
        o_cat = o_rows[0] if b_blk == 1 else jnp.concatenate(o_rows, axis=0)          # [B*L, D]

        # merged output projection: one [B*L,D]@[D,D] bf16 matmul instead of H tiny (dh=8) ones
        attn = jax.lax.dot_general(o_cat, wo_ref[layer], dn_nn,
                                   preferred_element_type=f32) + bo_ref[layer]
        x = x + attn

        # ---- FFN block (pre-LN) ----------------------------------------------------------------
        h2 = layernorm(x, ln2g_ref[layer], ln2b_ref[layer])
        ff = jax.lax.dot_general(h2.astype(bf16), w1_ref[layer], dn_nn,
                                 preferred_element_type=f32) + b1_ref[layer]
        ff = jax.nn.gelu(ff, approximate=True)     # TODO(synk): exact erf GELU in PyTorch
        ff = jax.lax.dot_general(ff.astype(bf16), w2_ref[layer], dn_nn,
                                 preferred_element_type=f32) + b2_ref[layer]
        x = x + ff

    if b_blk == 1:
        o_ref[0] = x.astype(o_ref.dtype)
    else:
        o_ref[...] = x.reshape(b_blk, l, d).astype(o_ref.dtype)


def _pick_batch_block(n, l, num_heads):
    """Largest divisor of N per grid step that (a) keeps >= 2 grid steps when N >= 2 so both
    v7x TensorCores get work, and (b) keeps the resident f32 [L,L] bias tiles + attention
    intermediates well inside scoped VMEM (conservative 8 MiB budget)."""
    best = 1
    for b in range(1, n + 1):
        if n % b != 0:
            continue
        if n >= 2 and (n // b) < 2:
            continue
        if b * (num_heads + 3) * l * l * 4 > 8 * 1024 * 1024:
            continue
        best = b
    return best


def encoder_stack_fused(x, bias_t, rep, p, num_heads, b_blk):
    """x: [N, L, D]; bias_t: [N, V+1, H*(V+1)] bf16; rep: [L, V+1] bf16; p: prepped params."""
    n, l, d = x.shape
    depth = p["wqkv"].shape[0]
    vp1 = rep.shape[1]
    hvp1 = bias_t.shape[2]
    f = p["w1"].shape[2]

    def w_spec(shape):
        nd = len(shape)
        return pl.BlockSpec(shape, lambda i, _nd=nd: (0,) * _nd)   # full block, VMEM-resident

    return pl.pallas_call(
        partial(_encoder_stack_kernel, depth=depth, num_heads=num_heads, b_blk=b_blk, eps=1e-5),
        out_shape=jax.ShapeDtypeStruct((n, l, d), x.dtype),
        grid=(n // b_blk,),
        in_specs=[
            pl.BlockSpec((b_blk, l, d), lambda i: (i, 0, 0)),          # token stream
            pl.BlockSpec((b_blk, vp1, hvp1), lambda i: (i, 0, 0)),     # small bias (bf16)
            w_spec((l, vp1)),                                          # replication matrix R
            w_spec((depth, 1, d)), w_spec((depth, 1, d)),              # ln1 g/b
            w_spec((depth, d, 3 * d)), w_spec((depth, 1, 3 * d)),      # wqkv / bqkv
            w_spec((depth, d, d)), w_spec((depth, 1, d)),              # wo / bo
            w_spec((depth, 1, d)), w_spec((depth, 1, d)),              # ln2 g/b
            w_spec((depth, d, f)), w_spec((depth, 1, f)),              # w1 / b1
            w_spec((depth, f, d)), w_spec((depth, 1, d)),              # w2 / b2
        ],
        out_specs=pl.BlockSpec((b_blk, l, d), lambda i: (i, 0, 0)),
        compiler_params=pltpu.CompilerParams(
            dimension_semantics=("parallel",),       # grid >= 2 keeps both v7x TCs busy
            vmem_limit_bytes=_VMEM_LIMIT,
        ),
    )(x, bias_t, rep,
      p["ln1_g"], p["ln1_b"], p["wqkv"], p["bqkv"], p["wo"], p["bo"],
      p["ln2_g"], p["ln2_b"], p["w1"], p["b1"], p["w2"], p["b2"])


# =============================================================================
# fused prediction head: final LayerNorm + end_conv_1 + BN(eval) + GELU + end_conv_2
# (output emitted transposed -> lane-dense stores on M = T*V)
# =============================================================================
def _pred_head_kernel(x_ref, ng_ref, nb_ref, w1_ref, sc_ref, sh_ref, w2t_ref, b2_ref,
                      o_ref, *, eps):
    f32, bf16 = jnp.float32, jnp.bfloat16
    dn_nn = (((1,), (0,)), ((), ()))
    dn_nt = (((1,), (1,)), ((), ()))

    x = x_ref[0].astype(f32)                               # [M, D]
    mu = jnp.mean(x, axis=-1, keepdims=True)
    var = jnp.mean((x - mu) ** 2, axis=-1, keepdims=True)
    ln = (x - mu) * jax.lax.rsqrt(var + eps) * ng_ref[...] + nb_ref[...]

    h = jax.lax.dot_general(ln.astype(bf16), w1_ref[...], dn_nn,
                            preferred_element_type=f32)    # end_conv_1 (bias=False), [M, C]
    h = h * sc_ref[...] + sh_ref[...]                      # eval-mode BatchNorm2d
    h = jax.nn.gelu(h, approximate=True)                   # TODO(synk): exact erf GELU in torch
    # end_conv_2 computed transposed ([P, M]) so the store is lane-dense on M
    out_t = jax.lax.dot_general(w2t_ref[...], h.astype(bf16), dn_nt,
                                preferred_element_type=f32) + b2_ref[...]   # [P, M]
    o_ref[0] = out_t.astype(o_ref.dtype)


def pred_head_fused(latent, p):
    """latent: [N, T*V, D] -> [N, T*V, pred_dim] (computed transposed, re-laid out by XLA)."""
    n, m, d = latent.shape
    c = p["conv1_w"].shape[1]
    pr = p["conv2_wt"].shape[0]

    out_t = pl.pallas_call(
        partial(_pred_head_kernel, eps=1e-5),
        out_shape=jax.ShapeDtypeStruct((n, pr, m), latent.dtype),
        grid=(n,),
        in_specs=[
            pl.BlockSpec((1, m, d), lambda i: (i, 0, 0)),
            pl.BlockSpec((1, d), lambda i: (0, 0)), pl.BlockSpec((1, d), lambda i: (0, 0)),
            pl.BlockSpec((d, c), lambda i: (0, 0)),
            pl.BlockSpec((1, c), lambda i: (0, 0)), pl.BlockSpec((1, c), lambda i: (0, 0)),
            pl.BlockSpec((pr, c), lambda i: (0, 0)), pl.BlockSpec((pr, 1), lambda i: (0, 0)),
        ],
        out_specs=pl.BlockSpec((1, pr, m), lambda i: (i, 0, 0)),
        compiler_params=pltpu.CompilerParams(
            dimension_semantics=("parallel",), vmem_limit_bytes=_VMEM_LIMIT),
    )(latent, p["norm_g"], p["norm_b"], p["conv1_w"], p["bn_scale"], p["bn_shift"],
      p["conv2_wt"], p["conv2_b"])
    return jnp.transpose(out_t, (0, 2, 1))                 # [N, M, P] (trivial when P == 1)


# =============================================================================
# one-time parameter preparation (outside jit): stacking, folding, bf16 casts
# =============================================================================
def prepare_params(params):
    d = params["norm_g"].shape[0]
    num_heads = params["graph_token_virtual_distance"].shape[1]
    scale = (d // num_heads) ** -0.5
    layers = params["layers"]
    bf16 = jnp.bfloat16

    def stack(fn):
        return jnp.stack([fn(lp) for lp in layers], axis=0)

    bn_scale = params["bn_gamma"] * jax.lax.rsqrt(params["bn_var"] + 1e-5)
    bn_shift = params["bn_beta"] - params["bn_mean"] * bn_scale

    return {
        # prologue (pass-through)
        "graph_token_embed": params["graph_token_embed"],
        "graph_token_virtual_distance": params["graph_token_virtual_distance"],
        "pos_embed_time": params["pos_embed_time"],
        "pos_embed_space": params["pos_embed_space"],
        "pos_embed_cls": params["pos_embed_cls"],
        # encoder stack (layer axis leading; matmul weights pre-cast to bf16; scale folded)
        "ln1_g": stack(lambda lp: lp["ln1_g"].reshape(1, d)),
        "ln1_b": stack(lambda lp: lp["ln1_b"].reshape(1, d)),
        "wqkv": stack(lambda lp: jnp.concatenate(
            [lp["wq"] * scale, lp["wk"], lp["wv"]], axis=1)).astype(bf16),
        "bqkv": stack(lambda lp: jnp.concatenate(
            [lp["bq"] * scale, lp["bk"], lp["bv"]]).reshape(1, 3 * d)),
        "wo": stack(lambda lp: lp["wo"]).astype(bf16),
        "bo": stack(lambda lp: lp["bo"].reshape(1, d)),
        "ln2_g": stack(lambda lp: lp["ln2_g"].reshape(1, d)),
        "ln2_b": stack(lambda lp: lp["ln2_b"].reshape(1, d)),
        "w1": stack(lambda lp: lp["w1"]).astype(bf16),
        "b1": stack(lambda lp: lp["b1"].reshape(1, -1)),
        "w2": stack(lambda lp: lp["w2"]).astype(bf16),
        "b2": stack(lambda lp: lp["b2"].reshape(1, d)),
        # prediction head
        "norm_g": params["norm_g"].reshape(1, d),
        "norm_b": params["norm_b"].reshape(1, d),
        "conv1_w": params["conv1_w"].astype(bf16),
        "bn_scale": bn_scale.reshape(1, -1),
        "bn_shift": bn_shift.reshape(1, -1),
        "conv2_wt": params["conv2_w"].T.astype(bf16),       # [P, C]
        "conv2_b": params["conv2_b"].reshape(-1, 1),        # [P, 1]
    }


# =============================================================================
# model glue (forward_encoder + forward_pred), expects prepare_params output
# =============================================================================
def graph_encoder_pred_forward(p, x, attn_bias):
    """
    x         : [N, T, V, D]  node embeddings (output of blocks.compute_mods, see TODO above)
    attn_bias : [N, H, V+1, V+1]  graph attention bias (graph-token slot included)
    returns   : [N, 12*V, pred_node_dim]
    """
    n, t, v, d = x.shape
    num_heads = attn_bias.shape[1]
    vp1 = v + 1
    l = t * vp1

    # ---- forward_encoder prologue (tiny one-time ops; left to XLA) --------------------------
    gt = jnp.broadcast_to(p["graph_token_embed"], (n, t, 1, d))
    xx = jnp.concatenate([gt, x], axis=2).reshape(n, l, d)            # [N, T*(V+1), D]

    # add_token_distance on the *small* bias; the T*T tiling happens in-kernel (never in HBM)
    tok = p["graph_token_virtual_distance"].reshape(1, num_heads, 1)
    ab = attn_bias
    ab = ab.at[:, :, 1:, 0].add(tok)
    ab = ab.at[:, :, 0, :].add(tok)
    # pre-permute so the kernel needs only H+1 matmuls per batch element for the rebuild
    bias_t = jnp.transpose(ab, (0, 2, 1, 3)).reshape(
        n, vp1, num_heads * vp1).astype(jnp.bfloat16)

    # separable positional embedding (+ graph-token pos embed)
    pe = jnp.tile(p["pos_embed_space"], (1, t, 1)) + jnp.repeat(p["pos_embed_time"], v, axis=1)
    pe = jnp.broadcast_to(pe, (n, t * v, d)).reshape(n, t, v, d)
    pe_cls = jnp.broadcast_to(p["pos_embed_cls"], (n, t, 1, d))
    pe = jnp.concatenate([pe_cls, pe], axis=2).reshape(n, l, d)
    xx = xx + pe

    # 0/1 replication matrix used in-kernel to rebuild the tiled bias on the MXU (bf16 = exact)
    rep = (jnp.arange(l)[:, None] % vp1 == jnp.arange(vp1)[None, :]).astype(jnp.bfloat16)

    # ---- whole encoder (all layers) in ONE fused Pallas kernel -------------------------------
    b_blk = _pick_batch_block(n, l, num_heads)
    xx = encoder_stack_fused(xx, bias_t, rep, p, num_heads, b_blk)

    # get_graph_rep: drop graph token
    latent = xx.reshape(n, t, vp1, d)[:, :, 1:, :].reshape(n, t * v, d)

    # ---- forward_pred (use_conv path, n_pred <= n_hist): fused head kernel -------------------
    pred = pred_head_fused(latent, p)                                  # [N, T*V, pred_dim]
    pred_dim = pred.shape[-1]
    assert t == 12, "forward_pred's final view hard-codes 12 prediction steps (T must be 12)"
    return pred.reshape(n, 12 * v, pred_dim)


# =============================================================================
# raw (PyTorch-layout) parameters
# =============================================================================
def init_params(key, *, d, num_heads, t, v, depth, end_channel, pred_dim, ffn_mult=4):
    keys = list(jax.random.split(key, 16 + depth * 8))
    it = iter(keys)

    def nrm(shape, std=0.02):
        return std * jax.random.normal(next(it), shape, jnp.float32)

    def xavier(fan_in, fan_out):
        s = math.sqrt(2.0 / (fan_in + fan_out))
        return s * jax.random.normal(next(it), (fan_in, fan_out), jnp.float32)

    params = {
        "graph_token_embed": nrm((1, 1, 1, d)),
        "graph_token_virtual_distance": nrm((1, num_heads)),
        "pos_embed_time": nrm((1, t, d)),
        "pos_embed_space": nrm((1, v, d)),
        "pos_embed_cls": nrm((1, 1, d)),
        "norm_g": jnp.ones((d,), jnp.float32),
        "norm_b": jnp.zeros((d,), jnp.float32),
        # prediction head (end_conv_1: bias=False since batch_norm=True; end_conv_2: bias=True)
        "conv1_w": xavier(d, end_channel),
        "bn_gamma": jnp.ones((end_channel,), jnp.float32),
        "bn_beta": jnp.zeros((end_channel,), jnp.float32),
        "bn_mean": jnp.zeros((end_channel,), jnp.float32),
        "bn_var": jnp.ones((end_channel,), jnp.float32),
        "conv2_w": xavier(end_channel, pred_dim),
        "conv2_b": jnp.zeros((pred_dim,), jnp.float32),
        "layers": [],
    }
    for _ in range(depth):
        params["layers"].append(
            {
                "ln1_g": jnp.ones((d,), jnp.float32), "ln1_b": jnp.zeros((d,), jnp.float32),
                "wq": xavier(d, d), "bq": jnp.zeros((d,), jnp.float32),
                "wk": xavier(d, d), "bk": jnp.zeros((d,), jnp.float32),
                "wv": xavier(d, d), "bv": jnp.zeros((d,), jnp.float32),
                "wo": xavier(d, d), "bo": jnp.zeros((d,), jnp.float32),
                "ln2_g": jnp.ones((d,), jnp.float32), "ln2_b": jnp.zeros((d,), jnp.float32),
                "w1": xavier(d, ffn_mult * d), "b1": jnp.zeros((ffn_mult * d,), jnp.float32),
                "w2": xavier(ffn_mult * d, d), "b2": jnp.zeros((d,), jnp.float32),
            }
        )
    return params


# =============================================================================
# main
# =============================================================================
if __name__ == "__main__":
    # small shapes consistent with the module:
    #   N=2 graphs, T=12 history steps (final view hard-codes 12), V=8 nodes, D=32 embed dim,
    #   4 heads, 2 encoder layers, end_channel=16, pred_node_dim=1
    N, T, V, D = 2, 12, 8, 32
    NUM_HEADS, DEPTH, END_CH, PRED_DIM = 4, 2, 16, 1

    key = jax.random.PRNGKey(0)
    k_params, k_x, k_bias = jax.random.split(key, 3)

    raw_params = init_params(
        k_params, d=D, num_heads=NUM_HEADS, t=T, v=V,
        depth=DEPTH, end_channel=END_CH, pred_dim=PRED_DIM,
    )
    params = prepare_params(raw_params)          # one-time weight prep, outside jit
    x = jax.random.normal(k_x, (N, T, V, D), jnp.float32)
    attn_bias = 0.1 * jax.random.normal(k_bias, (N, NUM_HEADS, V + 1, V + 1), jnp.float32)

    fwd = jax.jit(graph_encoder_pred_forward)
    pred = fwd(params, x, attn_bias)
    jax.block_until_ready(pred)

    assert pred.shape == (N, 12 * V, PRED_DIM), pred.shape
    assert bool(jnp.all(jnp.isfinite(pred)))
    print("KERNEL_OK")
</pallas_src>

<mosaic_0001>
module attributes {stable_mosaic.version = 11 : i64} {
  func.func @_pred_head_kernel(%arg0: i32, %arg1: memref<1x96x32xf32, #tpu.memory_space<vmem>>, %arg2: memref<1x32xf32, #tpu.memory_space<vmem>>, %arg3: memref<1x32xf32, #tpu.memory_space<vmem>>, %arg4: memref<32x16xbf16, #tpu.memory_space<vmem>>, %arg5: memref<1x16xf32, #tpu.memory_space<vmem>>, %arg6: memref<1x16xf32, #tpu.memory_space<vmem>>, %arg7: memref<1x16xbf16, #tpu.memory_space<vmem>>, %arg8: memref<1x1xf32, #tpu.memory_space<vmem>>, %arg9: memref<1x1x96xf32, #tpu.memory_space<vmem>>) attributes {dimension_semantics = [#tpu.dimension_semantics<parallel>], iteration_bounds = array<i64: 2>, scalar_prefetch = 0 : i64, scratch_operands = 0 : i64, tpu.core_type = #tpu.core_type<tc>, window_params = [{transform_indices = @transform_0, window_bounds = array<i64: 1, 96, 32>}, {pipeline_mode = #tpu.pipeline_mode<synchronous>, transform_indices = @transform_1, window_bounds = array<i64: 1, 32>}, {pipeline_mode = #tpu.pipeline_mode<synchronous>, transform_indices = @transform_2, window_bounds = array<i64: 1, 32>}, {pipeline_mode = #tpu.pipeline_mode<synchronous>, transform_indices = @transform_3, window_bounds = array<i64: 32, 16>}, {pipeline_mode = #tpu.pipeline_mode<synchronous>, transform_indices = @transform_4, window_bounds = array<i64: 1, 16>}, {pipeline_mode = #tpu.pipeline_mode<synchronous>, transform_indices = @transform_5, window_bounds = array<i64: 1, 16>}, {pipeline_mode = #tpu.pipeline_mode<synchronous>, transform_indices = @transform_6, window_bounds = array<i64: 1, 16>}, {pipeline_mode = #tpu.pipeline_mode<synchronous>, transform_indices = @transform_7, window_bounds = array<i64: 1, 1>}, {transform_indices = @transform_8, window_bounds = array<i64: 1, 1, 96>}]} {
    %c0 = arith.constant 0 : index
    %c0_0 = arith.constant 0 : index
    %c0_1 = arith.constant 0 : index
    %0 = vector.load %arg1[%c0, %c0_0, %c0_1] : memref<1x96x32xf32, #tpu.memory_space<vmem>>, vector<1x96x32xf32>
    %1 = vector.shape_cast %0 : vector<1x96x32xf32> to vector<96x32xf32>
    %cst = arith.constant dense<0.000000e+00> : vector<96xf32>
    %2 = vector.multi_reduction <add>, %1, %cst [1] : vector<96x32xf32> to vector<96xf32>
    %3 = vector.shape_cast %2 : vector<96xf32> to vector<96x1xf32>
    %cst_2 = arith.constant 3.200000e+01 : f32
    %4 = vector.broadcast %cst_2 : f32 to vector<96x1xf32>
    %5 = arith.divf %3, %4 : vector<96x1xf32>
    %6 = vector.broadcast %5 : vector<96x1xf32> to vector<96x32xf32>
    %7 = arith.subf %1, %6 : vector<96x32xf32>
    %8 = arith.mulf %7, %7 : vector<96x32xf32>
    %cst_3 = arith.constant dense<0.000000e+00> : vector<96xf32>
    %9 = vector.multi_reduction <add>, %8, %cst_3 [1] : vector<96x32xf32> to vector<96xf32>
    %10 = vector.shape_cast %9 : vector<96xf32> to vector<96x1xf32>
    %cst_4 = arith.constant 3.200000e+01 : f32
    %11 = vector.broadcast %cst_4 : f32 to vector<96x1xf32>
    %12 = arith.divf %10, %11 : vector<96x1xf32>
    %13 = vector.broadcast %5 : vector<96x1xf32> to vector<96x32xf32>
    %14 = arith.subf %1, %13 : vector<96x32xf32>
    %cst_5 = arith.constant 9.99999974E-6 : f32
    %15 = vector.broadcast %cst_5 : f32 to vector<96x1xf32>
    %16 = arith.addf %12, %15 : vector<96x1xf32>
    %17 = math.rsqrt %16 : vector<96x1xf32>
    %18 = vector.broadcast %17 : vector<96x1xf32> to vector<96x32xf32>
    %19 = arith.mulf %14, %18 : vector<96x32xf32>
    %c0_6 = arith.constant 0 : index
    %c0_7 = arith.constant 0 : index
    %20 = vector.load %arg2[%c0_6, %c0_7] : memref<1x32xf32, #tpu.memory_space<vmem>>, vector<1x32xf32>
    %21 = vector.broadcast %20 : vector<1x32xf32> to vector<96x32xf32>
    %22 = arith.mulf %19, %21 : vector<96x32xf32>
    %c0_8 = arith.constant 0 : index
    %c0_9 = arith.constant 0 : index
    %23 = vector.load %arg3[%c0_8, %c0_9] : memref<1x32xf32, #tpu.memory_space<vmem>>, vector<1x32xf32>
    %24 = vector.broadcast %23 : vector<1x32xf32> to vector<96x32xf32>
    %25 = arith.addf %22, %24 : vector<96x32xf32>
    %26 = arith.truncf %25 : vector<96x32xf32> to vector<96x32xbf16>
    %c0_10 = arith.constant 0 : index
    %c0_11 = arith.constant 0 : index
    %27 = vector.load %arg4[%c0_10, %c0_11] : memref<32x16xbf16, #tpu.memory_space<vmem>>, vector<32x16xbf16>
    %cst_12 = arith.constant dense<0.000000e+00> : vector<96x16xf32>
    %28 = tpu.matmul %26, %27, %cst_12 {dimension_numbers = #tpu.dot_dimension_numbers<[1], [0], [0], [1], [0, 0, 1, 1], [], []>} : vector<96x32xbf16>, vector<32x16xbf16>, vector<96x16xf32> -> vector<96x16xf32>
    %c0_13 = arith.constant 0 : index
    %c0_14 = arith.constant 0 : index
    %29 = vector.load %arg5[%c0_13, %c0_14] : memref<1x16xf32, #tpu.memory_space<vmem>>, vector<1x16xf32>
    %30 = vector.broadcast %29 : vector<1x16xf32> to vector<96x16xf32>
    %31 = arith.mulf %28, %30 : vector<96x16xf32>
    %c0_15 = arith.constant 0 : index
    %c0_16 = arith.constant 0 : index
    %32 = vector.load %arg6[%c0_15, %c0_16] : memref<1x16xf32, #tpu.memory_space<vmem>>, vector<1x16xf32>
    %33 = vector.broadcast %32 : vector<1x16xf32> to vector<96x16xf32>
    %34 = arith.addf %31, %33 : vector<96x16xf32>
    %35 = arith.mulf %34, %34 : vector<96x16xf32>
    %36 = arith.mulf %34, %35 : vector<96x16xf32>
    %cst_17 = arith.constant 4.471500e-02 : f32
    %37 = vector.broadcast %cst_17 : f32 to vector<96x16xf32>
    %38 = arith.mulf %37, %36 : vector<96x16xf32>
    %39 = arith.addf %34, %38 : vector<96x16xf32>
    %cst_18 = arith.constant 0.797884583 : f32
    %40 = vector.broadcast %cst_18 : f32 to vector<96x16xf32>
    %41 = arith.mulf %40, %39 : vector<96x16xf32>
    %42 = math.tanh %41 : vector<96x16xf32>
    %cst_19 = arith.constant 1.000000e+00 : f32
    %43 = vector.broadcast %cst_19 : f32 to vector<96x16xf32>
    %44 = arith.addf %43, %42 : vector<96x16xf32>
    %cst_20 = arith.constant 5.000000e-01 : f32
    %45 = vector.broadcast %cst_20 : f32 to vector<96x16xf32>
    %46 = arith.mulf %45, %44 : vector<96x16xf32>
    %47 = arith.mulf %34, %46 : vector<96x16xf32>
    %c0_21 = arith.constant 0 : index
    %c0_22 = arith.constant 0 : index
    %48 = vector.load %arg7[%c0_21, %c0_22] : memref<1x16xbf16, #tpu.memory_space<vmem>>, vector<1x16xbf16>
    %49 = arith.truncf %47 : vector<96x16xf32> to vector<96x16xbf16>
    %cst_23 = arith.constant dense<0.000000e+00> : vector<1x96xf32>
    %50 = tpu.matmul %48, %49, %cst_23 {dimension_numbers = #tpu.dot_dimension_numbers<[1], [1], [0], [0], [0, 0, 1, 0], [], []>} : vector<1x16xbf16>, vector<96x16xbf16>, vector<1x96xf32> -> vector<1x96xf32>
    %c0_24 = arith.constant 0 : index
    %c0_25 = arith.constant 0 : index
    %51 = vector.load %arg8[%c0_24, %c0_25] : memref<1x1xf32, #tpu.memory_space<vmem>>, vector<1x1xf32>
    %52 = vector.broadcast %51 : vector<1x1xf32> to vector<1x96xf32>
    %53 = arith.addf %50, %52 : vector<1x96xf32>
    %c0_26 = arith.constant 0 : index
    %c0_27 = arith.constant 0 : index
    %c0_28 = arith.constant 0 : index
    %54 = vector.load %arg9[%c0_26, %c0_27, %c0_28] : memref<1x1x96xf32, #tpu.memory_space<vmem>>, vector<1x1x96xf32>
    %55 = vector.shape_cast %54 : vector<1x1x96xf32> to vector<1x96xf32>
    %56 = vector.shape_cast %53 : vector<1x96xf32> to vector<1x1x96xf32>
    tpu.vector_store %arg9[%c0_26, %c0_27, %c0_28], %56 {strides = array<i32>} : memref<1x1x96xf32, #tpu.memory_space<vmem>>, vector<1x1x96xf32>,
    return
  }
  func.func @transform_0(%arg0: i32) -> (i32, i32, i32) {
    %c0_i32 = arith.constant 0 : i32
    %c0_i32_0 = arith.constant 0 : i32
    %c0_i32_1 = arith.constant 0 : i32
    return %arg0, %c0_i32, %c0_i32_0 : i32, i32, i32
  }
  func.func @transform_1(%arg0: i32) -> (i32, i32) {
    %c0_i32 = arith.constant 0 : i32
    %c0_i32_0 = arith.constant 0 : i32
    %c0_i32_1 = arith.constant 0 : i32
    return %c0_i32, %c0_i32_0 : i32, i32
  }
  func.func @transform_2(%arg0: i32) -> (i32, i32) {
    %c0_i32 = arith.constant 0 : i32
    %c0_i32_0 = arith.constant 0 : i32
    %c0_i32_1 = arith.constant 0 : i32
    return %c0_i32, %c0_i32_0 : i32, i32
  }
  func.func @transform_3(%arg0: i32) -> (i32, i32) {
    %c0_i32 = arith.constant 0 : i32
    %c0_i32_0 = arith.constant 0 : i32
    %c0_i32_1 = arith.constant 0 : i32
    return %c0_i32, %c0_i32_0 : i32, i32
  }
  func.func @transform_4(%arg0: i32) -> (i32, i32) {
    %c0_i32 = arith.constant 0 : i32
    %c0_i32_0 = arith.constant 0 : i32
    %c0_i32_1 = arith.constant 0 : i32
    return %c0_i32, %c0_i32_0 : i32, i32
  }
  func.func @transform_5(%arg0: i32) -> (i32, i32) {
    %c0_i32 = arith.constant 0 : i32
    %c0_i32_0 = arith.constant 0 : i32
    %c0_i32_1 = arith.constant 0 : i32
    return %c0_i32, %c0_i32_0 : i32, i32
  }
  func.func @transform_6(%arg0: i32) -> (i32, i32) {
    %c0_i32 = arith.constant 0 : i32
    %c0_i32_0 = arith.constant 0 : i32
    %c0_i32_1 = arith.constant 0 : i32
    return %c0_i32, %c0_i32_0 : i32, i32
  }
  func.func @transform_7(%arg0: i32) -> (i32, i32) {
    %c0_i32 = arith.constant 0 : i32
    %c0_i32_0 = arith.constant 0 : i32
    %c0_i32_1 = arith.constant 0 : i32
    return %c0_i32, %c0_i32_0 : i32, i32
  }
  func.func @transform_8(%arg0: i32) -> (i32, i32, i32) {
    %c0_i32 = arith.constant 0 : i32
    %c0_i32_0 = arith.constant 0 : i32
    %c0_i32_1 = arith.constant 0 : i32
    return %arg0, %c0_i32, %c0_i32_0 : i32, i32, i32
  }
}

module attributes {stable_mosaic.version = 11 : i64} {
  func.func @_encoder_stack_kernel(%arg0: i32, %arg1: memref<1x108x32xf32, #tpu.memory_space<vmem>>, %arg2: memref<1x9x36xbf16, #tpu.memory_space<vmem>>, %arg3: memref<108x9xbf16, #tpu.memory_space<vmem>>, %arg4: memref<2x1x32xf32, #tpu.memory_space<vmem>>, %arg5: memref<2x1x32xf32, #tpu.memory_space<vmem>>, %arg6: memref<2x32x96xbf16, #tpu.memory_space<vmem>>, %arg7: memref<2x1x96xf32, #tpu.memory_space<vmem>>, %arg8: memref<2x32x32xbf16, #tpu.memory_space<vmem>>, %arg9: memref<2x1x32xf32, #tpu.memory_space<vmem>>, %arg10: memref<2x1x32xf32, #tpu.memory_space<vmem>>, %arg11: memref<2x1x32xf32, #tpu.memory_space<vmem>>, %arg12: memref<2x32x128xbf16, #tpu.memory_space<vmem>>, %arg13: memref<2x1x128xf32, #tpu.memory_space<vmem>>, %arg14: memref<2x128x32xbf16, #tpu.memory_space<vmem>>, %arg15: memref<2x1x32xf32, #tpu.memory_space<vmem>>, %arg16: memref<1x108x32xf32, #tpu.memory_space<vmem>>) attributes {dimension_semantics = [#tpu.dimension_semantics<parallel>], iteration_bounds = array<i64: 2>, scalar_prefetch = 0 : i64, scratch_operands = 0 : i64, tpu.core_type = #tpu.core_type<tc>, window_params = [{transform_indices = @transform_0, window_bounds = array<i64: 1, 108, 32>}, {transform_indices = @transform_1, window_bounds = array<i64: 1, 9, 36>}, {pipeline_mode = #tpu.pipeline_mode<synchronous>, transform_indices = @transform_2, window_bounds = array<i64: 108, 9>}, {pipeline_mode = #tpu.pipeline_mode<synchronous>, transform_indices = @transform_3, window_bounds = array<i64: 2, 1, 32>}, {pipeline_mode = #tpu.pipeline_mode<synchronous>, transform_indices = @transform_4, window_bounds = array<i64: 2, 1, 32>}, {pipeline_mode = #tpu.pipeline_mode<synchronous>, transform_indices = @transform_5, window_bounds = array<i64: 2, 32, 96>}, {pipeline_mode = #tpu.pipeline_mode<synchronous>, transform_indices = @transform_6, window_bounds = array<i64: 2, 1, 96>}, {pipeline_mode = #tpu.pipeline_mode<synchronous>, transform_indices = @transform_7, window_bounds = array<i64: 2, 32, 32>}, {pipeline_mode = #tpu.pipeline_mode<synchronous>, transform_indices = @transform_8, window_bounds = array<i64: 2, 1, 32>}, {pipeline_mode = #tpu.pipeline_mode<synchronous>, transform_indices = @transform_9, window_bounds = array<i64: 2, 1, 32>}, {pipeline_mode = #tpu.pipeline_mode<synchronous>, transform_indices = @transform_10, window_bounds = array<i64: 2, 1, 32>}, {pipeline_mode = #tpu.pipeline_mode<synchronous>, transform_indices = @transform_11, window_bounds = array<i64: 2, 32, 128>}, {pipeline_mode = #tpu.pipeline_mode<synchronous>, transform_indices = @transform_12, window_bounds = array<i64: 2, 1, 128>}, {pipeline_mode = #tpu.pipeline_mode<synchronous>, transform_indices = @transform_13, window_bounds = array<i64: 2, 128, 32>}, {pipeline_mode = #tpu.pipeline_mode<synchronous>, transform_indices = @transform_14, window_bounds = array<i64: 2, 1, 32>}, {transform_indices = @transform_15, window_bounds = array<i64: 1, 108, 32>}]} {
    %c0 = arith.constant 0 : index
    %c0_0 = arith.constant 0 : index
    %0 = vector.load %arg3[%c0, %c0_0] : memref<108x9xbf16, #tpu.memory_space<vmem>>, vector<108x9xbf16>
    %c0_1 = arith.constant 0 : index
    %c0_2 = arith.constant 0 : index
    %c0_3 = arith.constant 0 : index
    %1 = vector.load %arg2[%c0_1, %c0_2, %c0_3] : memref<1x9x36xbf16, #tpu.memory_space<vmem>>, vector<1x9x36xbf16>
    %2 = vector.shape_cast %1 : vector<1x9x36xbf16> to vector<9x36xbf16>
    %cst = arith.constant dense<0.000000e+00> : vector<108x36xf32>
    %3 = tpu.matmul %0, %2, %cst {dimension_numbers = #tpu.dot_dimension_numbers<[1], [0], [0], [1], [0, 0, 1, 1], [], []>} : vector<108x9xbf16>, vector<9x36xbf16>, vector<108x36xf32> -> vector<108x36xf32>
    %4 = vector.extract_strided_slice %3 {offsets = [0, 0], sizes = [108, 9], strides = [1, 1]} : vector<108x36xf32> to vector<108x9xf32>
    %5 = arith.truncf %4 : vector<108x9xf32> to vector<108x9xbf16>
    %cst_4 = arith.constant dense<0.000000e+00> : vector<108x108xf32>
    %6 = tpu.matmul %5, %0, %cst_4 {dimension_numbers = #tpu.dot_dimension_numbers<[1], [1], [0], [0], [0, 0, 1, 0], [], []>} : vector<108x9xbf16>, vector<108x9xbf16>, vector<108x108xf32> -> vector<108x108xf32>
    %7 = vector.extract_strided_slice %3 {offsets = [0, 9], sizes = [108, 9], strides = [1, 1]} : vector<108x36xf32> to vector<108x9xf32>
    %8 = arith.truncf %7 : vector<108x9xf32> to vector<108x9xbf16>
    %cst_5 = arith.constant dense<0.000000e+00> : vector<108x108xf32>
    %9 = tpu.matmul %8, %0, %cst_5 {dimension_numbers = #tpu.dot_dimension_numbers<[1], [1], [0], [0], [0, 0, 1, 0], [], []>} : vector<108x9xbf16>, vector<108x9xbf16>, vector<108x108xf32> -> vector<108x108xf32>
    %10 = vector.extract_strided_slice %3 {offsets = [0, 18], sizes = [108, 9], strides = [1, 1]} : vector<108x36xf32> to vector<108x9xf32>
    %11 = arith.truncf %10 : vector<108x9xf32> to vector<108x9xbf16>
    %cst_6 = arith.constant dense<0.000000e+00> : vector<108x108xf32>
    %12 = tpu.matmul %11, %0, %cst_6 {dimension_numbers = #tpu.dot_dimension_numbers<[1], [1], [0], [0], [0, 0, 1, 0], [], []>} : vector<108x9xbf16>, vector<108x9xbf16>, vector<108x108xf32> -> vector<108x108xf32>
    %13 = vector.extract_strided_slice %3 {offsets = [0, 27], sizes = [108, 9], strides = [1, 1]} : vector<108x36xf32> to vector<108x9xf32>
    %14 = arith.truncf %13 : vector<108x9xf32> to vector<108x9xbf16>
    %cst_7 = arith.constant dense<0.000000e+00> : vector<108x108xf32>
    %15 = tpu.matmul %14, %0, %cst_7 {dimension_numbers = #tpu.dot_dimension_numbers<[1], [1], [0], [0], [0, 0, 1, 0], [], []>} : vector<108x9xbf16>, vector<108x9xbf16>, vector<108x108xf32> -> vector<108x108xf32>
    %c0_8 = arith.constant 0 : index
    %c0_9 = arith.constant 0 : index
    %c0_10 = arith.constant 0 : index
    %16 = vector.load %arg1[%c0_8, %c0_9, %c0_10] : memref<1x108x32xf32, #tpu.memory_space<vmem>>, vector<1x108x32xf32>
    %17 = vector.shape_cast %16 : vector<1x108x32xf32> to vector<108x32xf32>
    %c0_11 = arith.constant 0 : index
    %c0_12 = arith.constant 0 : index
    %c0_13 = arith.constant 0 : index
    %18 = vector.load %arg4[%c0_11, %c0_12, %c0_13] : memref<2x1x32xf32, #tpu.memory_space<vmem>>, vector<1x1x32xf32>
    %19 = vector.shape_cast %18 : vector<1x1x32xf32> to vector<1x32xf32>
    %c0_14 = arith.constant 0 : index
    %c0_15 = arith.constant 0 : index
    %c0_16 = arith.constant 0 : index
    %20 = vector.load %arg5[%c0_14, %c0_15, %c0_16] : memref<2x1x32xf32, #tpu.memory_space<vmem>>, vector<1x1x32xf32>
    %21 = vector.shape_cast %20 : vector<1x1x32xf32> to vector<1x32xf32>
    %cst_17 = arith.constant dense<0.000000e+00> : vector<108xf32>
    %22 = vector.multi_reduction <add>, %17, %cst_17 [1] : vector<108x32xf32> to vector<108xf32>
    %23 = vector.shape_cast %22 : vector<108xf32> to vector<108x1xf32>
    %cst_18 = arith.constant 3.200000e+01 : f32
    %24 = vector.broadcast %cst_18 : f32 to vector<108x1xf32>
    %25 = arith.divf %23, %24 : vector<108x1xf32>
    %26 = vector.broadcast %25 : vector<108x1xf32> to vector<108x32xf32>
    %27 = arith.subf %17, %26 : vector<108x32xf32>
    %28 = arith.mulf %27, %27 : vector<108x32xf32>
    %cst_19 = arith.constant dense<0.000000e+00> : vector<108xf32>
    %29 = vector.multi_reduction <add>, %28, %cst_19 [1] : vector<108x32xf32> to vector<108xf32>
    %30 = vector.shape_cast %29 : vector<108xf32> to vector<108x1xf32>
    %cst_20 = arith.constant 3.200000e+01 : f32
    %31 = vector.broadcast %cst_20 : f32 to vector<108x1xf32>
    %32 = arith.divf %30, %31 : vector<108x1xf32>
    %33 = vector.broadcast %25 : vector<108x1xf32> to vector<108x32xf32>
    %34 = arith.subf %17, %33 : vector<108x32xf32>
    %cst_21 = arith.constant 9.99999974E-6 : f32
    %35 = vector.broadcast %cst_21 : f32 to vector<108x1xf32>
    %36 = arith.addf %32, %35 : vector<108x1xf32>
    %37 = math.rsqrt %36 : vector<108x1xf32>
    %38 = vector.broadcast %37 : vector<108x1xf32> to vector<108x32xf32>
    %39 = arith.mulf %34, %38 : vector<108x32xf32>
    %40 = vector.broadcast %19 : vector<1x32xf32> to vector<108x32xf32>
    %41 = arith.mulf %39, %40 : vector<108x32xf32>
    %42 = vector.broadcast %21 : vector<1x32xf32> to vector<108x32xf32>
    %43 = arith.addf %41, %42 : vector<108x32xf32>
    %44 = arith.truncf %43 : vector<108x32xf32> to vector<108x32xbf16>
    %c0_22 = arith.constant 0 : index
    %c0_23 = arith.constant 0 : index
    %c0_24 = arith.constant 0 : index
    %45 = vector.load %arg6[%c0_22, %c0_23, %c0_24] : memref<2x32x96xbf16, #tpu.memory_space<vmem>>, vector<1x32x96xbf16>
    %46 = vector.shape_cast %45 : vector<1x32x96xbf16> to vector<32x96xbf16>
    %cst_25 = arith.constant dense<0.000000e+00> : vector<108x96xf32>
    %47 = tpu.matmul %44, %46, %cst_25 {dimension_numbers = #tpu.dot_dimension_numbers<[1], [0], [0], [1], [0, 0, 1, 1], [], []>} : vector<108x32xbf16>, vector<32x96xbf16>, vector<108x96xf32> -> vector<108x96xf32>
    %c0_26 = arith.constant 0 : index
    %c0_27 = arith.constant 0 : index
    %c0_28 = arith.constant 0 : index
    %48 = vector.load %arg7[%c0_26, %c0_27, %c0_28] : memref<2x1x96xf32, #tpu.memory_space<vmem>>, vector<1x1x96xf32>
    %49 = vector.shape_cast %48 : vector<1x1x96xf32> to vector<1x96xf32>
    %50 = vector.broadcast %49 : vector<1x96xf32> to vector<108x96xf32>
    %51 = arith.addf %47, %50 : vector<108x96xf32>
    %52 = arith.truncf %51 : vector<108x96xf32> to vector<108x96xbf16>
    %53 = vector.extract_strided_slice %52 {offsets = [0, 0], sizes = [108, 8], strides = [1, 1]} : vector<108x96xbf16> to vector<108x8xbf16>
    %54 = vector.extract_strided_slice %52 {offsets = [0, 32], sizes = [108, 8], strides = [1, 1]} : vector<108x96xbf16> to vector<108x8xbf16>
    %55 = vector.extract_strided_slice %52 {offsets = [0, 64], sizes = [108, 8], strides = [1, 1]} : vector<108x96xbf16> to vector<108x8xbf16>
    %cst_29 = arith.constant dense<0.000000e+00> : vector<108x108xf32>
    %56 = tpu.matmul %53, %54, %cst_29 {dimension_numbers = #tpu.dot_dimension_numbers<[1], [1], [0], [0], [0, 0, 1, 0], [], []>} : vector<108x8xbf16>, vector<108x8xbf16>, vector<108x108xf32> -> vector<108x108xf32>
    %57 = arith.addf %56, %6 : vector<108x108xf32>
    %cst_30 = arith.constant dense<0xFF800000> : vector<108xf32>
    %58 = vector.multi_reduction <maximumf>, %57, %cst_30 [1] : vector<108x108xf32> to vector<108xf32>
    %59 = vector.shape_cast %58 : vector<108xf32> to vector<108x1xf32>
    %60 = vector.broadcast %59 : vector<108x1xf32> to vector<108x108xf32>
    %61 = arith.subf %57, %60 : vector<108x108xf32>
    %62 = math.exp %61 : vector<108x108xf32>
    %cst_31 = arith.constant dense<0.000000e+00> : vector<108xf32>
    %63 = vector.multi_reduction <add>, %62, %cst_31 [1] : vector<108x108xf32> to vector<108xf32>
    %64 = vector.shape_cast %63 : vector<108xf32> to vector<108x1xf32>
    %65 = tpu.reciprocal %64 {approx = true} : vector<108x1xf32> -> vector<108x1xf32>
    %66 = vector.broadcast %65 : vector<108x1xf32> to vector<108x108xf32>
    %67 = arith.mulf %62, %66 : vector<108x108xf32>
    %68 = arith.truncf %67 : vector<108x108xf32> to vector<108x108xbf16>
    %cst_32 = arith.constant dense<0.000000e+00> : vector<108x8xf32>
    %69 = tpu.matmul %68, %55, %cst_32 {dimension_numbers = #tpu.dot_dimension_numbers<[1], [0], [0], [1], [0, 0, 1, 1], [], []>} : vector<108x108xbf16>, vector<108x8xbf16>, vector<108x8xf32> -> vector<108x8xf32>
    %70 = vector.extract_strided_slice %52 {offsets = [0, 8], sizes = [108, 8], strides = [1, 1]} : vector<108x96xbf16> to vector<108x8xbf16>
    %71 = vector.extract_strided_slice %52 {offsets = [0, 40], sizes = [108, 8], strides = [1, 1]} : vector<108x96xbf16> to vector<108x8xbf16>
    %72 = vector.extract_strided_slice %52 {offsets = [0, 72], sizes = [108, 8], strides = [1, 1]} : vector<108x96xbf16> to vector<108x8xbf16>
    %cst_33 = arith.constant dense<0.000000e+00> : vector<108x108xf32>
    %73 = tpu.matmul %70, %71, %cst_33 {dimension_numbers = #tpu.dot_dimension_numbers<[1], [1], [0], [0], [0, 0, 1, 0], [], []>} : vector<108x8xbf16>, vector<108x8xbf16>, vector<108x108xf32> -> vector<108x108xf32>
    %74 = arith.addf %73, %9 : vector<108x108xf32>
    %cst_34 = arith.constant dense<0xFF800000> : vector<108xf32>
    %75 = vector.multi_reduction <maximumf>, %74, %cst_34 [1] : vector<108x108xf32> to vector<108xf32>
    %76 = vector.shape_cast %75 : vector<108xf32> to vector<108x1xf32>
    %77 = vector.broadcast %76 : vector<108x1xf32> to vector<108x108xf32>
    %78 = arith.subf %74, %77 : vector<108x108xf32>
    %79 = math.exp %78 : vector<108x108xf32>
    %cst_35 = arith.constant dense<0.000000e+00> : vector<108xf32>
    %80 = vector.multi_reduction <add>, %79, %cst_35 [1] : vector<108x108xf32> to vector<108xf32>
    %81 = vector.shape_cast %80 : vector<108xf32> to vector<108x1xf32>
    %82 = tpu.reciprocal %81 {approx = true} : vector<108x1xf32> -> vector<108x1xf32>
    %83 = vector.broadcast %82 : vector<108x1xf32> to vector<108x108xf32>
    %84 = arith.mulf %79, %83 : vector<108x108xf32>
    %85 = arith.truncf %84 : vector<108x108xf32> to vector<108x108xbf16>
    %cst_36 = arith.constant dense<0.000000e+00> : vector<108x8xf32>
    %86 = tpu.matmul %85, %72, %cst_36 {dimension_numbers = #tpu.dot_dimension_numbers<[1], [0], [0], [1], [0, 0, 1, 1], [], []>} : vector<108x108xbf16>, vector<108x8xbf16>, vector<108x8xf32> -> vector<108x8xf32>
    %87 = vector.extract_strided_slice %52 {offsets = [0, 16], sizes = [108, 8], strides = [1, 1]} : vector<108x96xbf16> to vector<108x8xbf16>
    %88 = vector.extract_strided_slice %52 {offsets = [0, 48], sizes = [108, 8], strides = [1, 1]} : vector<108x96xbf16> to vector<108x8xbf16>
    %89 = vector.extract_strided_slice %52 {offsets = [0, 80], sizes = [108, 8], strides = [1, 1]} : vector<108x96xbf16> to vector<108x8xbf16>
    %cst_37 = arith.constant dense<0.000000e+00> : vector<108x108xf32>
    %90 = tpu.matmul %87, %88, %cst_37 {dimension_numbers = #tpu.dot_dimension_numbers<[1], [1], [0], [0], [0, 0, 1, 0], [], []>} : vector<108x8xbf16>, vector<108x8xbf16>, vector<108x108xf32> -> vector<108x108xf32>
    %91 = arith.addf %90, %12 : vector<108x108xf32>
    %cst_38 = arith.constant dense<0xFF800000> : vector<108xf32>
    %92 = vector.multi_reduction <maximumf>, %91, %cst_38 [1] : vector<108x108xf32> to vector<108xf32>
    %93 = vector.shape_cast %92 : vector<108xf32> to vector<108x1xf32>
    %94 = vector.broadcast %93 : vector<108x1xf32> to vector<108x108xf32>
    %95 = arith.subf %91, %94 : vector<108x108xf32>
    %96 = math.exp %95 : vector<108x108xf32>
    %cst_39 = arith.constant dense<0.000000e+00> : vector<108xf32>
    %97 = vector.multi_reduction <add>, %96, %cst_39 [1] : vector<108x108xf32> to vector<108xf32>
    %98 = vector.shape_cast %97 : vector<108xf32> to vector<108x1xf32>
    %99 = tpu.reciprocal %98 {approx = true} : vector<108x1xf32> -> vector<108x1xf32>
    %100 = vector.broadcast %99 : vector<108x1xf32> to vector<108x108xf32>
    %101 = arith.mulf %96, %100 : vector<108x108xf32>
    %102 = arith.truncf %101 : vector<108x108xf32> to vector<108x108xbf16>
    %cst_40 = arith.constant dense<0.000000e+00> : vector<108x8xf32>
    %103 = tpu.matmul %102, %89, %cst_40 {dimension_numbers = #tpu.dot_dimension_numbers<[1], [0], [0], [1], [0, 0, 1, 1], [], []>} : vector<108x108xbf16>, vector<108x8xbf16>, vector<108x8xf32> -> vector<108x8xf32>
    %104 = vector.extract_strided_slice %52 {offsets = [0, 24], sizes = [108, 8], strides = [1, 1]} : vector<108x96xbf16> to vector<108x8xbf16>
    %105 = vector.extract_strided_slice %52 {offsets = [0, 56], sizes = [108, 8], strides = [1, 1]} : vector<108x96xbf16> to vector<108x8xbf16>
    %106 = vector.extract_strided_slice %52 {offsets = [0, 88], sizes = [108, 8], strides = [1, 1]} : vector<108x96xbf16> to vector<108x8xbf16>
    %cst_41 = arith.constant dense<0.000000e+00> : vector<108x108xf32>
    %107 = tpu.matmul %104, %105, %cst_41 {dimension_numbers = #tpu.dot_dimension_numbers<[1], [1], [0], [0], [0, 0, 1, 0], [], []>} : vector<108x8xbf16>, vector<108x8xbf16>, vector<108x108xf32> -> vector<108x108xf32>
    %108 = arith.addf %107, %15 : vector<108x108xf32>
    %cst_42 = arith.constant dense<0xFF800000> : vector<108xf32>
    %109 = vector.multi_reduction <maximumf>, %108, %cst_42 [1] : vector<108x108xf32> to vector<108xf32>
    %110 = vector.shape_cast %109 : vector<108xf32> to vector<108x1xf32>
    %111 = vector.broadcast %110 : vector<108x1xf32> to vector<108x108xf32>
    %112 = arith.subf %108, %111 : vector<108x108xf32>
    %113 = math.exp %112 : vector<108x108xf32>
    %cst_43 = arith.constant dense<0.000000e+00> : vector<108xf32>
    %114 = vector.multi_reduction <add>, %113, %cst_43 [1] : vector<108x108xf32> to vector<108xf32>
    %115 = vector.shape_cast %114 : vector<108xf32> to vector<108x1xf32>
    %116 = tpu.reciprocal %115 {approx = true} : vector<108x1xf32> -> vector<108x1xf32>
    %117 = vector.broadcast %116 : vector<108x1xf32> to vector<108x108xf32>
    %118 = arith.mulf %113, %117 : vector<108x108xf32>
    %119 = arith.truncf %118 : vector<108x108xf32> to vector<108x108xbf16>
    %cst_44 = arith.constant dense<0.000000e+00> : vector<108x8xf32>
    %120 = tpu.matmul %119, %106, %cst_44 {dimension_numbers = #tpu.dot_dimension_numbers<[1], [0], [0], [1], [0, 0, 1, 1], [], []>} : vector<108x108xbf16>, vector<108x8xbf16>, vector<108x8xf32> -> vector<108x8xf32>
    %121 = tpu.concatenate %69, %86, %103, %120 in 1 : vector<108x8xf32>, vector<108x8xf32>, vector<108x8xf32>, vector<108x8xf32> -> vector<108x32xf32>
    %122 = arith.truncf %121 : vector<108x32xf32> to vector<108x32xbf16>
    %c0_45 = arith.constant 0 : index
    %c0_46 = arith.constant 0 : index
    %c0_47 = arith.constant 0 : index
    %123 = vector.load %arg8[%c0_45, %c0_46, %c0_47] : memref<2x32x32xbf16, #tpu.memory_space<vmem>>, vector<1x32x32xbf16>
    %124 = vector.shape_cast %123 : vector<1x32x32xbf16> to vector<32x32xbf16>
    %cst_48 = arith.constant dense<0.000000e+00> : vector<108x32xf32>
    %125 = tpu.matmul %122, %124, %cst_48 {dimension_numbers = #tpu.dot_dimension_numbers<[1], [0], [0], [1], [0, 0, 1, 1], [], []>} : vector<108x32xbf16>, vector<32x32xbf16>, vector<108x32xf32> -> vector<108x32xf32>
    %c0_49 = arith.constant 0 : index
    %c0_50 = arith.constant 0 : index
    %c0_51 = arith.constant 0 : index
    %126 = vector.load %arg9[%c0_49, %c0_50, %c0_51] : memref<2x1x32xf32, #tpu.memory_space<vmem>>, vector<1x1x32xf32>
    %127 = vector.shape_cast %126 : vector<1x1x32xf32> to vector<1x32xf32>
    %128 = vector.broadcast %127 : vector<1x32xf32> to vector<108x32xf32>
    %129 = arith.addf %125, %128 : vector<108x32xf32>
    %130 = arith.addf %17, %129 : vector<108x32xf32>
    %c0_52 = arith.constant 0 : index
    %c0_53 = arith.constant 0 : index
    %c0_54 = arith.constant 0 : index
    %131 = vector.load %arg10[%c0_52, %c0_53, %c0_54] : memref<2x1x32xf32, #tpu.memory_space<vmem>>, vector<1x1x32xf32>
    %132 = vector.shape_cast %131 : vector<1x1x32xf32> to vector<1x32xf32>
    %c0_55 = arith.constant 0 : index
    %c0_56 = arith.constant 0 : index
    %c0_57 = arith.constant 0 : index
    %133 = vector.load %arg11[%c0_55, %c0_56, %c0_57] : memref<2x1x32xf32, #tpu.memory_space<vmem>>, vector<1x1x32xf32>
    %134 = vector.shape_cast %133 : vector<1x1x32xf32> to vector<1x32xf32>
    %cst_58 = arith.constant dense<0.000000e+00> : vector<108xf32>
    %135 = vector.multi_reduction <add>, %130, %cst_58 [1] : vector<108x32xf32> to vector<108xf32>
    %136 = vector.shape_cast %135 : vector<108xf32> to vector<108x1xf32>
    %cst_59 = arith.constant 3.200000e+01 : f32
    %137 = vector.broadcast %cst_59 : f32 to vector<108x1xf32>
    %138 = arith.divf %136, %137 : vector<108x1xf32>
    %139 = vector.broadcast %138 : vector<108x1xf32> to vector<108x32xf32>
    %140 = arith.subf %130, %139 : vector<108x32xf32>
    %141 = arith.mulf %140, %140 : vector<108x32xf32>
    %cst_60 = arith.constant dense<0.000000e+00> : vector<108xf32>
    %142 = vector.multi_reduction <add>, %141, %cst_60 [1] : vector<108x32xf32> to vector<108xf32>
    %143 = vector.shape_cast %142 : vector<108xf32> to vector<108x1xf32>
    %cst_61 = arith.constant 3.200000e+01 : f32
    %144 = vector.broadcast %cst_61 : f32 to vector<108x1xf32>
    %145 = arith.divf %143, %144 : vector<108x1xf32>
    %146 = vector.broadcast %138 : vector<108x1xf32> to vector<108x32xf32>
    %147 = arith.subf %130, %146 : vector<108x32xf32>
    %cst_62 = arith.constant 9.99999974E-6 : f32
    %148 = vector.broadcast %cst_62 : f32 to vector<108x1xf32>
    %149 = arith.addf %145, %148 : vector<108x1xf32>
    %150 = math.rsqrt %149 : vector<108x1xf32>
    %151 = vector.broadcast %150 : vector<108x1xf32> to vector<108x32xf32>
    %152 = arith.mulf %147, %151 : vector<108x32xf32>
    %153 = vector.broadcast %132 : vector<1x32xf32> to vector<108x32xf32>
    %154 = arith.mulf %152, %153 : vector<108x32xf32>
    %155 = vector.broadcast %134 : vector<1x32xf32> to vector<108x32xf32>
    %156 = arith.addf %154, %155 : vector<108x32xf32>
    %157 = arith.truncf %156 : vector<108x32xf32> to vector<108x32xbf16>
    %c0_63 = arith.constant 0 : index
    %c0_64 = arith.constant 0 : index
    %c0_65 = arith.constant 0 : index
    %158 = vector.load %arg12[%c0_63, %c0_64, %c0_65] : memref<2x32x128xbf16, #tpu.memory_space<vmem>>, vector<1x32x128xbf16>
    %159 = vector.shape_cast %158 : vector<1x32x128xbf16> to vector<32x128xbf16>
    %cst_66 = arith.constant dense<0.000000e+00> : vector<108x128xf32>
    %160 = tpu.matmul %157, %159, %cst_66 {dimension_numbers = #tpu.dot_dimension_numbers<[1], [0], [0], [1], [0, 0, 1, 1], [], []>} : vector<108x32xbf16>, vector<32x128xbf16>, vector<108x128xf32> -> vector<108x128xf32>
    %c0_67 = arith.constant 0 : index
    %c0_68 = arith.constant 0 : index
    %c0_69 = arith.constant 0 : index
    %161 = vector.load %arg13[%c0_67, %c0_68, %c0_69] : memref<2x1x128xf32, #tpu.memory_space<vmem>>, vector<1x1x128xf32>
    %162 = vector.shape_cast %161 : vector<1x1x128xf32> to vector<1x128xf32>
    %163 = vector.broadcast %162 : vector<1x128xf32> to vector<108x128xf32>
    %164 = arith.addf %160, %163 : vector<108x128xf32>
    %165 = arith.mulf %164, %164 : vector<108x128xf32>
    %166 = arith.mulf %164, %165 : vector<108x128xf32>
    %cst_70 = arith.constant 4.471500e-02 : f32
    %167 = vector.broadcast %cst_70 : f32 to vector<108x128xf32>
    %168 = arith.mulf %167, %166 : vector<108x128xf32>
    %169 = arith.addf %164, %168 : vector<108x128xf32>
    %cst_71 = arith.constant 0.797884583 : f32
    %170 = vector.broadcast %cst_71 : f32 to vector<108x128xf32>
    %171 = arith.mulf %170, %169 : vector<108x128xf32>
    %172 = math.tanh %171 : vector<108x128xf32>
    %cst_72 = arith.constant 1.000000e+00 : f32
    %173 = vector.broadcast %cst_72 : f32 to vector<108x128xf32>
    %174 = arith.addf %173, %172 : vector<108x128xf32>
    %cst_73 = arith.constant 5.000000e-01 : f32
    %175 = vector.broadcast %cst_73 : f32 to vector<108x128xf32>
    %176 = arith.mulf %175, %174 : vector<108x128xf32>
    %177 = arith.mulf %164, %176 : vector<108x128xf32>
    %178 = arith.truncf %177 : vector<108x128xf32> to vector<108x128xbf16>
    %c0_74 = arith.constant 0 : index
    %c0_75 = arith.constant 0 : index
    %c0_76 = arith.constant 0 : index
    %179 = vector.load %arg14[%c0_74, %c0_75, %c0_76] : memref<2x128x32xbf16, #tpu.memory_space<vmem>>, vector<1x128x32xbf16>
    %180 = vector.shape_cast %179 : vector<1x128x32xbf16> to vector<128x32xbf16>
    %cst_77 = arith.constant dense<0.000000e+00> : vector<108x32xf32>
    %181 = tpu.matmul %178, %180, %cst_77 {dimension_numbers = #tpu.dot_dimension_numbers<[1], [0], [0], [1], [0, 0, 1, 1], [], []>} : vector<108x128xbf16>, vector<128x32xbf16>, vector<108x32xf32> -> vector<108x32xf32>
    %c0_78 = arith.constant 0 : index
    %c0_79 = arith.constant 0 : index
    %c0_80 = arith.constant 0 : index
    %182 = vector.load %arg15[%c0_78, %c0_79, %c0_80] : memref<2x1x32xf32, #tpu.memory_space<vmem>>, vector<1x1x32xf32>
    %183 = vector.shape_cast %182 : vector<1x1x32xf32> to vector<1x32xf32>
    %184 = vector.broadcast %183 : vector<1x32xf32> to vector<108x32xf32>
    %185 = arith.addf %181, %184 : vector<108x32xf32>
    %186 = arith.addf %130, %185 : vector<108x32xf32>
    %c1 = arith.constant 1 : index
    %c0_81 = arith.constant 0 : index
    %c0_82 = arith.constant 0 : index
    %187 = vector.load %arg4[%c1, %c0_81, %c0_82] : memref<2x1x32xf32, #tpu.memory_space<vmem>>, vector<1x1x32xf32>
    %188 = vector.shape_cast %187 : vector<1x1x32xf32> to vector<1x32xf32>
    %c1_83 = arith.constant 1 : index
    %c0_84 = arith.constant 0 : index
    %c0_85 = arith.constant 0 : index
    %189 = vector.load %arg5[%c1_83, %c0_84, %c0_85] : memref<2x1x32xf32, #tpu.memory_space<vmem>>, vector<1x1x32xf32>
    %190 = vector.shape_cast %189 : vector<1x1x32xf32> to vector<1x32xf32>
    %cst_86 = arith.constant dense<0.000000e+00> : vector<108xf32>
    %191 = vector.multi_reduction <add>, %186, %cst_86 [1] : vector<108x32xf32> to vector<108xf32>
    %192 = vector.shape_cast %191 : vector<108xf32> to vector<108x1xf32>
    %cst_87 = arith.constant 3.200000e+01 : f32
    %193 = vector.broadcast %cst_87 : f32 to vector<108x1xf32>
    %194 = arith.divf %192, %193 : vector<108x1xf32>
    %195 = vector.broadcast %194 : vector<108x1xf32> to vector<108x32xf32>
    %196 = arith.subf %186, %195 : vector<108x32xf32>
    %197 = arith.mulf %196, %196 : vector<108x32xf32>
    %cst_88 = arith.constant dense<0.000000e+00> : vector<108xf32>
    %198 = vector.multi_reduction <add>, %197, %cst_88 [1] : vector<108x32xf32> to vector<108xf32>
    %199 = vector.shape_cast %198 : vector<108xf32> to vector<108x1xf32>
    %cst_89 = arith.constant 3.200000e+01 : f32
    %200 = vector.broadcast %cst_89 : f32 to vector<108x1xf32>
    %201 = arith.divf %199, %200 : vector<108x1xf32>
    %202 = vector.broadcast %194 : vector<108x1xf32> to vector<108x32xf32>
    %203 = arith.subf %186, %202 : vector<108x32xf32>
    %cst_90 = arith.constant 9.99999974E-6 : f32
    %204 = vector.broadcast %cst_90 : f32 to vector<108x1xf32>
    %205 = arith.addf %201, %204 : vector<108x1xf32>
    %206 = math.rsqrt %205 : vector<108x1xf32>
    %207 = vector.broadcast %206 : vector<108x1xf32> to vector<108x32xf32>
    %208 = arith.mulf %203, %207 : vector<108x32xf32>
    %209 = vector.broadcast %188 : vector<1x32xf32> to vector<108x32xf32>
    %210 = arith.mulf %208, %209 : vector<108x32xf32>
    %211 = vector.broadcast %190 : vector<1x32xf32> to vector<108x32xf32>
    %212 = arith.addf %210, %211 : vector<108x32xf32>
    %213 = arith.truncf %212 : vector<108x32xf32> to vector<108x32xbf16>
    %c1_91 = arith.constant 1 : index
    %c0_92 = arith.constant 0 : index
    %c0_93 = arith.constant 0 : index
    %214 = vector.load %arg6[%c1_91, %c0_92, %c0_93] : memref<2x32x96xbf16, #tpu.memory_space<vmem>>, vector<1x32x96xbf16>
    %215 = vector.shape_cast %214 : vector<1x32x96xbf16> to vector<32x96xbf16>
    %cst_94 = arith.constant dense<0.000000e+00> : vector<108x96xf32>
    %216 = tpu.matmul %213, %215, %cst_94 {dimension_numbers = #tpu.dot_dimension_numbers<[1], [0], [0], [1], [0, 0, 1, 1], [], []>} : vector<108x32xbf16>, vector<32x96xbf16>, vector<108x96xf32> -> vector<108x96xf32>
    %c1_95 = arith.constant 1 : index
    %c0_96 = arith.constant 0 : index
    %c0_97 = arith.constant 0 : index
    %217 = vector.load %arg7[%c1_95, %c0_96, %c0_97] : memref<2x1x96xf32, #tpu.memory_space<vmem>>, vector<1x1x96xf32>
    %218 = vector.shape_cast %217 : vector<1x1x96xf32> to vector<1x96xf32>
    %219 = vector.broadcast %218 : vector<1x96xf32> to vector<108x96xf32>
    %220 = arith.addf %216, %219 : vector<108x96xf32>
    %221 = arith.truncf %220 : vector<108x96xf32> to vector<108x96xbf16>
    %222 = vector.extract_strided_slice %221 {offsets = [0, 0], sizes = [108, 8], strides = [1, 1]} : vector<108x96xbf16> to vector<108x8xbf16>
    %223 = vector.extract_strided_slice %221 {offsets = [0, 32], sizes = [108, 8], strides = [1, 1]} : vector<108x96xbf16> to vector<108x8xbf16>
    %224 = vector.extract_strided_slice %221 {offsets = [0, 64], sizes = [108, 8], strides = [1, 1]} : vector<108x96xbf16> to vector<108x8xbf16>
    %cst_98 = arith.constant dense<0.000000e+00> : vector<108x108xf32>
    %225 = tpu.matmul %222, %223, %cst_98 {dimension_numbers = #tpu.dot_dimension_numbers<[1], [1], [0], [0], [0, 0, 1, 0], [], []>} : vector<108x8xbf16>, vector<108x8xbf16>, vector<108x108xf32> -> vector<108x108xf32>
    %226 = arith.addf %225, %6 : vector<108x108xf32>
    %cst_99 = arith.constant dense<0xFF800000> : vector<108xf32>
    %227 = vector.multi_reduction <maximumf>, %226, %cst_99 [1] : vector<108x108xf32> to vector<108xf32>
    %228 = vector.shape_cast %227 : vector<108xf32> to vector<108x1xf32>
    %229 = vector.broadcast %228 : vector<108x1xf32> to vector<108x108xf32>
    %230 = arith.subf %226, %229 : vector<108x108xf32>
    %231 = math.exp %230 : vector<108x108xf32>
    %cst_100 = arith.constant dense<0.000000e+00> : vector<108xf32>
    %232 = vector.multi_reduction <add>, %231, %cst_100 [1] : vector<108x108xf32> to vector<108xf32>
    %233 = vector.shape_cast %232 : vector<108xf32> to vector<108x1xf32>
    %234 = tpu.reciprocal %233 {approx = true} : vector<108x1xf32> -> vector<108x1xf32>
    %235 = vector.broadcast %234 : vector<108x1xf32> to vector<108x108xf32>
    %236 = arith.mulf %231, %235 : vector<108x108xf32>
    %237 = arith.truncf %236 : vector<108x108xf32> to vector<108x108xbf16>
    %cst_101 = arith.constant dense<0.000000e+00> : vector<108x8xf32>
    %238 = tpu.matmul %237, %224, %cst_101 {dimension_numbers = #tpu.dot_dimension_numbers<[1], [0], [0], [1], [0, 0, 1, 1], [], []>} : vector<108x108xbf16>, vector<108x8xbf16>, vector<108x8xf32> -> vector<108x8xf32>
    %239 = vector.extract_strided_slice %221 {offsets = [0, 8], sizes = [108, 8], strides = [1, 1]} : vector<108x96xbf16> to vector<108x8xbf16>
    %240 = vector.extract_strided_slice %221 {offsets = [0, 40], sizes = [108, 8], strides = [1, 1]} : vector<108x96xbf16> to vector<108x8xbf16>
    %241 = vector.extract_strided_slice %221 {offsets = [0, 72], sizes = [108, 8], strides = [1, 1]} : vector<108x96xbf16> to vector<108x8xbf16>
    %cst_102 = arith.constant dense<0.000000e+00> : vector<108x108xf32>
    %242 = tpu.matmul %239, %240, %cst_102 {dimension_numbers = #tpu.dot_dimension_numbers<[1], [1], [0], [0], [0, 0, 1, 0], [], []>} : vector<108x8xbf16>, vector<108x8xbf16>, vector<108x108xf32> -> vector<108x108xf32>
    %243 = arith.addf %242, %9 : vector<108x108xf32>
    %cst_103 = arith.constant dense<0xFF800000> : vector<108xf32>
    %244 = vector.multi_reduction <maximumf>, %243, %cst_103 [1] : vector<108x108xf32> to vector<108xf32>
    %245 = vector.shape_cast %244 : vector<108xf32> to vector<108x1xf32>
    %246 = vector.broadcast %245 : vector<108x1xf32> to vector<108x108xf32>
    %247 = arith.subf %243, %246 : vector<108x108xf32>
    %248 = math.exp %247 : vector<108x108xf32>
    %cst_104 = arith.constant dense<0.000000e+00> : vector<108xf32>
    %249 = vector.multi_reduction <add>, %248, %cst_104 [1] : vector<108x108xf32> to vector<108xf32>
    %250 = vector.shape_cast %249 : vector<108xf32> to vector<108x1xf32>
    %251 = tpu.reciprocal %250 {approx = true} : vector<108x1xf32> -> vector<108x1xf32>
    %252 = vector.broadcast %251 : vector<108x1xf32> to vector<108x108xf32>
    %253 = arith.mulf %248, %252 : vector<108x108xf32>
    %254 = arith.truncf %253 : vector<108x108xf32> to vector<108x108xbf16>
    %cst_105 = arith.constant dense<0.000000e+00> : vector<108x8xf32>
    %255 = tpu.matmul %254, %241, %cst_105 {dimension_numbers = #tpu.dot_dimension_numbers<[1], [0], [0], [1], [0, 0, 1, 1], [], []>} : vector<108x108xbf16>, vector<108x8xbf16>, vector<108x8xf32> -> vector<108x8xf32>
    %256 = vector.extract_strided_slice %221 {offsets = [0, 16], sizes = [108, 8], strides = [1, 1]} : vector<108x96xbf16> to vector<108x8xbf16>
    %257 = vector.extract_strided_slice %221 {offsets = [0, 48], sizes = [108, 8], strides = [1, 1]} : vector<108x96xbf16> to vector<108x8xbf16>
    %258 = vector.extract_strided_slice %221 {offsets = [0, 80], sizes = [108, 8], strides = [1, 1]} : vector<108x96xbf16> to vector<108x8xbf16>
    %cst_106 = arith.constant dense<0.000000e+00> : vector<108x108xf32>
    %259 = tpu.matmul %256, %257, %cst_106 {dimension_numbers = #tpu.dot_dimension_numbers<[1], [1], [0], [0], [0, 0, 1, 0], [], []>} : vector<108x8xbf16>, vector<108x8xbf16>, vector<108x108xf32> -> vector<108x108xf32>
    %260 = arith.addf %259, %12 : vector<108x108xf32>
    %cst_107 = arith.constant dense<0xFF800000> : vector<108xf32>
    %261 = vector.multi_reduction <maximumf>, %260, %cst_107 [1] : vector<108x108xf32> to vector<108xf32>
    %262 = vector.shape_cast %261 : vector<108xf32> to vector<108x1xf32>
    %263 = vector.broadcast %262 : vector<108x1xf32> to vector<108x108xf32>
    %264 = arith.subf %260, %263 : vector<108x108xf32>
    %265 = math.exp %264 : vector<108x108xf32>
    %cst_108 = arith.constant dense<0.000000e+00> : vector<108xf32>
    %266 = vector.multi_reduction <add>, %265, %cst_108 [1] : vector<108x108xf32> to vector<108xf32>
    %267 = vector.shape_cast %266 : vector<108xf32> to vector<108x1xf32>
    %268 = tpu.reciprocal %267 {approx = true} : vector<108x1xf32> -> vector<108x1xf32>
    %269 = vector.broadcast %268 : vector<108x1xf32> to vector<108x108xf32>
    %270 = arith.mulf %265, %269 : vector<108x108xf32>
    %271 = arith.truncf %270 : vector<108x108xf32> to vector<108x108xbf16>
    %cst_109 = arith.constant dense<0.000000e+00> : vector<108x8xf32>
    %272 = tpu.matmul %271, %258, %cst_109 {dimension_numbers = #tpu.dot_dimension_numbers<[1], [0], [0], [1], [0, 0, 1, 1], [], []>} : vector<108x108xbf16>, vector<108x8xbf16>, vector<108x8xf32> -> vector<108x8xf32>
    %273 = vector.extract_strided_slice %221 {offsets = [0, 24], sizes = [108, 8], strides = [1, 1]} : vector<108x96xbf16> to vector<108x8xbf16>
    %274 = vector.extract_strided_slice %221 {offsets = [0, 56], sizes = [108, 8], strides = [1, 1]} : vector<108x96xbf16> to vector<108x8xbf16>
    %275 = vector.extract_strided_slice %221 {offsets = [0, 88], sizes = [108, 8], strides = [1, 1]} : vector<108x96xbf16> to vector<108x8xbf16>
    %cst_110 = arith.constant dense<0.000000e+00> : vector<108x108xf32>
    %276 = tpu.matmul %273, %274, %cst_110 {dimension_numbers = #tpu.dot_dimension_numbers<[1], [1], [0], [0], [0, 0, 1, 0], [], []>} : vector<108x8xbf16>, vector<108x8xbf16>, vector<108x108xf32> -> vector<108x108xf32>
    %277 = arith.addf %276, %15 : vector<108x108xf32>
    %cst_111 = arith.constant dense<0xFF800000> : vector<108xf32>
    %278 = vector.multi_reduction <maximumf>, %277, %cst_111 [1] : vector<108x108xf32> to vector<108xf32>
    %279 = vector.shape_cast %278 : vector<108xf32> to vector<108x1xf32>
    %280 = vector.broadcast %279 : vector<108x1xf32> to vector<108x108xf32>
    %281 = arith.subf %277, %280 : vector<108x108xf32>
    %282 = math.exp %281 : vector<108x108xf32>
    %cst_112 = arith.constant dense<0.000000e+00> : vector<108xf32>
    %283 = vector.multi_reduction <add>, %282, %cst_112 [1] : vector<108x108xf32> to vector<108xf32>
    %284 = vector.shape_cast %283 : vector<108xf32> to vector<108x1xf32>
    %285 = tpu.reciprocal %284 {approx = true} : vector<108x1xf32> -> vector<108x1xf32>
    %286 = vector.broadcast %285 : vector<108x1xf32> to vector<108x108xf32>
    %287 = arith.mulf %282, %286 : vector<108x108xf32>
    %288 = arith.truncf %287 : vector<108x108xf32> to vector<108x108xbf16>
    %cst_113 = arith.constant dense<0.000000e+00> : vector<108x8xf32>
    %289 = tpu.matmul %288, %275, %cst_113 {dimension_numbers = #tpu.dot_dimension_numbers<[1], [0], [0], [1], [0, 0, 1, 1], [], []>} : vector<108x108xbf16>, vector<108x8xbf16>, vector<108x8xf32> -> vector<108x8xf32>
    %290 = tpu.concatenate %238, %255, %272, %289 in 1 : vector<108x8xf32>, vector<108x8xf32>, vector<108x8xf32>, vector<108x8xf32> -> vector<108x32xf32>
    %291 = arith.truncf %290 : vector<108x32xf32> to vector<108x32xbf16>
    %c1_114 = arith.constant 1 : index
    %c0_115 = arith.constant 0 : index
    %c0_116 = arith.constant 0 : index
    %292 = vector.load %arg8[%c1_114, %c0_115, %c0_116] : memref<2x32x32xbf16, #tpu.memory_space<vmem>>, vector<1x32x32xbf16>
    %293 = vector.shape_cast %292 : vector<1x32x32xbf16> to vector<32x32xbf16>
    %cst_117 = arith.constant dense<0.000000e+00> : vector<108x32xf32>
    %294 = tpu.matmul %291, %293, %cst_117 {dimension_numbers = #tpu.dot_dimension_numbers<[1], [0], [0], [1], [0, 0, 1, 1], [], []>} : vector<108x32xbf16>, vector<32x32xbf16>, vector<108x32xf32> -> vector<108x32xf32>
    %c1_118 = arith.constant 1 : index
    %c0_119 = arith.constant 0 : index
    %c0_120 = arith.constant 0 : index
    %295 = vector.load %arg9[%c1_118, %c0_119, %c0_120] : memref<2x1x32xf32, #tpu.memory_space<vmem>>, vector<1x1x32xf32>
    %296 = vector.shape_cast %295 : vector<1x1x32xf32> to vector<1x32xf32>
    %297 = vector.broadcast %296 : vector<1x32xf32> to vector<108x32xf32>
    %298 = arith.addf %294, %297 : vector<108x32xf32>
    %299 = arith.addf %186, %298 : vector<108x32xf32>
    %c1_121 = arith.constant 1 : index
    %c0_122 = arith.constant 0 : index
    %c0_123 = arith.constant 0 : index
    %300 = vector.load %arg10[%c1_121, %c0_122, %c0_123] : memref<2x1x32xf32, #tpu.memory_space<vmem>>, vector<1x1x32xf32>
    %301 = vector.shape_cast %300 : vector<1x1x32xf32> to vector<1x32xf32>
    %c1_124 = arith.constant 1 : index
    %c0_125 = arith.constant 0 : index
    %c0_126 = arith.constant 0 : index
    %302 = vector.load %arg11[%c1_124, %c0_125, %c0_126] : memref<2x1x32xf32, #tpu.memory_space<vmem>>, vector<1x1x32xf32>
    %303 = vector.shape_cast %302 : vector<1x1x32xf32> to vector<1x32xf32>
    %cst_127 = arith.constant dense<0.000000e+00> : vector<108xf32>
    %304 = vector.multi_reduction <add>, %299, %cst_127 [1] : vector<108x32xf32> to vector<108xf32>
    %305 = vector.shape_cast %304 : vector<108xf32> to vector<108x1xf32>
    %cst_128 = arith.constant 3.200000e+01 : f32
    %306 = vector.broadcast %cst_128 : f32 to vector<108x1xf32>
    %307 = arith.divf %305, %306 : vector<108x1xf32>
    %308 = vector.broadcast %307 : vector<108x1xf32> to vector<108x32xf32>
    %309 = arith.subf %299, %308 : vector<108x32xf32>
    %310 = arith.mulf %309, %309 : vector<108x32xf32>
    %cst_129 = arith.constant dense<0.000000e+00> : vector<108xf32>
    %311 = vector.multi_reduction <add>, %310, %cst_129 [1] : vector<108x32xf32> to vector<108xf32>
    %312 = vector.shape_cast %311 : vector<108xf32> to vector<108x1xf32>
    %cst_130 = arith.constant 3.200000e+01 : f32
    %313 = vector.broadcast %cst_130 : f32 to vector<108x1xf32>
    %314 = arith.divf %312, %313 : vector<108x1xf32>
    %315 = vector.broadcast %307 : vector<108x1xf32> to vector<108x32xf32>
    %316 = arith.subf %299, %315 : vector<108x32xf32>
    %cst_131 = arith.constant 9.99999974E-6 : f32
    %317 = vector.broadcast %cst_131 : f32 to vector<108x1xf32>
    %318 = arith.addf %314, %317 : vector<108x1xf32>
    %319 = math.rsqrt %318 : vector<108x1xf32>
    %320 = vector.broadcast %319 : vector<108x1xf32> to vector<108x32xf32>
    %321 = arith.mulf %316, %320 : vector<108x32xf32>
    %322 = vector.broadcast %301 : vector<1x32xf32> to vector<108x32xf32>
    %323 = arith.mulf %321, %322 : vector<108x32xf32>
    %324 = vector.broadcast %303 : vector<1x32xf32> to vector<108x32xf32>
    %325 = arith.addf %323, %324 : vector<108x32xf32>
    %326 = arith.truncf %325 : vector<108x32xf32> to vector<108x32xbf16>
    %c1_132 = arith.constant 1 : index
    %c0_133 = arith.constant 0 : index
    %c0_134 = arith.constant 0 : index
    %327 = vector.load %arg12[%c1_132, %c0_133, %c0_134] : memref<2x32x128xbf16, #tpu.memory_space<vmem>>, vector<1x32x128xbf16>
    %328 = vector.shape_cast %327 : vector<1x32x128xbf16> to vector<32x128xbf16>
    %cst_135 = arith.constant dense<0.000000e+00> : vector<108x128xf32>
    %329 = tpu.matmul %326, %328, %cst_135 {dimension_numbers = #tpu.dot_dimension_numbers<[1], [0], [0], [1], [0, 0, 1, 1], [], []>} : vector<108x32xbf16>, vector<32x128xbf16>, vector<108x128xf32> -> vector<108x128xf32>
    %c1_136 = arith.constant 1 : index
    %c0_137 = arith.constant 0 : index
    %c0_138 = arith.constant 0 : index
    %330 = vector.load %arg13[%c1_136, %c0_137, %c0_138] : memref<2x1x128xf32, #tpu.memory_space<vmem>>, vector<1x1x128xf32>
    %331 = vector.shape_cast %330 : vector<1x1x128xf32> to vector<1x128xf32>
    %332 = vector.broadcast %331 : vector<1x128xf32> to vector<108x128xf32>
    %333 = arith.addf %329, %332 : vector<108x128xf32>
    %334 = arith.mulf %333, %333 : vector<108x128xf32>
    %335 = arith.mulf %333, %334 : vector<108x128xf32>
    %cst_139 = arith.constant 4.471500e-02 : f32
    %336 = vector.broadcast %cst_139 : f32 to vector<108x128xf32>
    %337 = arith.mulf %336, %335 : vector<108x128xf32>
    %338 = arith.addf %333, %337 : vector<108x128xf32>
    %cst_140 = arith.constant 0.797884583 : f32
    %339 = vector.broadcast %cst_140 : f32 to vector<108x128xf32>
    %340 = arith.mulf %339, %338 : vector<108x128xf32>
    %341 = math.tanh %340 : vector<108x128xf32>
    %cst_141 = arith.constant 1.000000e+00 : f32
    %342 = vector.broadcast %cst_141 : f32 to vector<108x128xf32>
    %343 = arith.addf %342, %341 : vector<108x128xf32>
    %cst_142 = arith.constant 5.000000e-01 : f32
    %344 = vector.broadcast %cst_142 : f32 to vector<108x128xf32>
    %345 = arith.mulf %344, %343 : vector<108x128xf32>
    %346 = arith.mulf %333, %345 : vector<108x128xf32>
    %347 = arith.truncf %346 : vector<108x128xf32> to vector<108x128xbf16>
    %c1_143 = arith.constant 1 : index
    %c0_144 = arith.constant 0 : index
    %c0_145 = arith.constant 0 : index
    %348 = vector.load %arg14[%c1_143, %c0_144, %c0_145] : memref<2x128x32xbf16, #tpu.memory_space<vmem>>, vector<1x128x32xbf16>
    %349 = vector.shape_cast %348 : vector<1x128x32xbf16> to vector<128x32xbf16>
    %cst_146 = arith.constant dense<0.000000e+00> : vector<108x32xf32>
    %350 = tpu.matmul %347, %349, %cst_146 {dimension_numbers = #tpu.dot_dimension_numbers<[1], [0], [0], [1], [0, 0, 1, 1], [], []>} : vector<108x128xbf16>, vector<128x32xbf16>, vector<108x32xf32> -> vector<108x32xf32>
    %c1_147 = arith.constant 1 : index
    %c0_148 = arith.constant 0 : index
    %c0_149 = arith.constant 0 : index
    %351 = vector.load %arg15[%c1_147, %c0_148, %c0_149] : memref<2x1x32xf32, #tpu.memory_space<vmem>>, vector<1x1x32xf32>
    %352 = vector.shape_cast %351 : vector<1x1x32xf32> to vector<1x32xf32>
    %353 = vector.broadcast %352 : vector<1x32xf32> to vector<108x32xf32>
    %354 = arith.addf %350, %353 : vector<108x32xf32>
    %355 = arith.addf %299, %354 : vector<108x32xf32>
    %c0_150 = arith.constant 0 : index
    %c0_151 = arith.constant 0 : index
    %c0_152 = arith.constant 0 : index
    %356 = vector.load %arg16[%c0_150, %c0_151, %c0_152] : memref<1x108x32xf32, #tpu.memory_space<vmem>>, vector<1x108x32xf32>
    %357 = vector.shape_cast %356 : vector<1x108x32xf32> to vector<108x32xf32>
    %358 = vector.shape_cast %355 : vector<108x32xf32> to vector<1x108x32xf32>
    tpu.vector_store %arg16[%c0_150, %c0_151, %c0_152], %358 {strides = array<i32>} : memref<1x108x32xf32, #tpu.memory_space<vmem>>, vector<1x108x32xf32>,
    return
  }
  func.func @transform_0(%arg0: i32) -> (i32, i32, i32) {
    %c0_i32 = arith.constant 0 : i32
    %c0_i32_0 = arith.constant 0 : i32
    %c0_i32_1 = arith.constant 0 : i32
    return %arg0, %c0_i32, %c0_i32_0 : i32, i32, i32
  }
  func.func @transform_1(%arg0: i32) -> (i32, i32, i32) {
    %c0_i32 = arith.constant 0 : i32
    %c0_i32_0 = arith.constant 0 : i32
    %c0_i32_1 = arith.constant 0 : i32
    return %arg0, %c0_i32, %c0_i32_0 : i32, i32, i32
  }
  func.func @transform_2(%arg0: i32) -> (i32, i32) {
    %c0_i32 = arith.constant 0 : i32
    %c0_i32_0 = arith.constant 0 : i32
    %c0_i32_1 = arith.constant 0 : i32
    return %c0_i32, %c0_i32_0 : i32, i32
  }
  func.func @transform_3(%arg0: i32) -> (i32, i32, i32) {
    %c0_i32 = arith.constant 0 : i32
    %c0_i32_0 = arith.constant 0 : i32
    %c0_i32_1 = arith.constant 0 : i32
    %c0_i32_2 = arith.constant 0 : i32
    return %c0_i32, %c0_i32_0, %c0_i32_1 : i32, i32, i32
  }
  func.func @transform_4(%arg0: i32) -> (i32, i32, i32) {
    %c0_i32 = arith.constant 0 : i32
    %c0_i32_0 = arith.constant 0 : i32
    %c0_i32_1 = arith.constant 0 : i32
    %c0_i32_2 = arith.constant 0 : i32
    return %c0_i32, %c0_i32_0, %c0_i32_1 : i32, i32, i32
  }
  func.func @transform_5(%arg0: i32) -> (i32, i32, i32) {
    %c0_i32 = arith.constant 0 : i32
    %c0_i32_0 = arith.constant 0 : i32
    %c0_i32_1 = arith.constant 0 : i32
    %c0_i32_2 = arith.constant 0 : i32
    return %c0_i32, %c0_i32_0, %c0_i32_1 : i32, i32, i32
  }
  func.func @transform_6(%arg0: i32) -> (i32, i32, i32) {
    %c0_i32 = arith.constant 0 : i32
    %c0_i32_0 = arith.constant 0 : i32
    %c0_i32_1 = arith.constant 0 : i32
    %c0_i32_2 = arith.constant 0 : i32
    return %c0_i32, %c0_i32_0, %c0_i32_1 : i32, i32, i32
  }
  func.func @transform_7(%arg0: i32) -> (i32, i32, i32) {
    %c0_i32 = arith.constant 0 : i32
    %c0_i32_0 = arith.constant 0 : i32
    %c0_i32_1 = arith.constant 0 : i32
    %c0_i32_2 = arith.constant 0 : i32
    return %c0_i32, %c0_i32_0, %c0_i32_1 : i32, i32, i32
  }
  func.func @transform_8(%arg0: i32) -> (i32, i32, i32) {
    %c0_i32 = arith.constant 0 : i32
    %c0_i32_0 = arith.constant 0 : i32
    %c0_i32_1 = arith.constant 0 : i32
    %c0_i32_2 = arith.constant 0 : i32
    return %c0_i32, %c0_i32_0, %c0_i32_1 : i32, i32, i32
  }
  func.func @transform_9(%arg0: i32) -> (i32, i32, i32) {
    %c0_i32 = arith.constant 0 : i32
    %c0_i32_0 = arith.constant 0 : i32
    %c0_i32_1 = arith.constant 0 : i32
    %c0_i32_2 = arith.constant 0 : i32
    return %c0_i32, %c0_i32_0, %c0_i32_1 : i32, i32, i32
  }
  func.func @transform_10(%arg0: i32) -> (i32, i32, i32) {
    %c0_i32 = arith.constant 0 : i32
    %c0_i32_0 = arith.constant 0 : i32
    %c0_i32_1 = arith.constant 0 : i32
    %c0_i32_2 = arith.constant 0 : i32
    return %c0_i32, %c0_i32_0, %c0_i32_1 : i32, i32, i32
  }
  func.func @transform_11(%arg0: i32) -> (i32, i32, i32) {
    %c0_i32 = arith.constant 0 : i32
    %c0_i32_0 = arith.constant 0 : i32
    %c0_i32_1 = arith.constant 0 : i32
    %c0_i32_2 = arith.constant 0 : i32
    return %c0_i32, %c0_i32_0, %c0_i32_1 : i32, i32, i32
  }
  func.func @transform_12(%arg0: i32) -> (i32, i32, i32) {
    %c0_i32 = arith.constant 0 : i32
    %c0_i32_0 = arith.constant 0 : i32
    %c0_i32_1 = arith.constant 0 : i32
    %c0_i32_2 = arith.constant 0 : i32
    return %c0_i32, %c0_i32_0, %c0_i32_1 : i32, i32, i32
  }
  func.func @transform_13(%arg0: i32) -> (i32, i32, i32) {
    %c0_i32 = arith.constant 0 : i32
    %c0_i32_0 = arith.constant 0 : i32
    %c0_i32_1 = arith.constant 0 : i32
    %c0_i32_2 = arith.constant 0 : i32
    return %c0_i32, %c0_i32_0, %c0_i32_1 : i32, i32, i32
  }
  func.func @transform_14(%arg0: i32) -> (i32, i32, i32) {
    %c0_i32 = arith.constant 0 : i32
    %c0_i32_0 = arith.constant 0 : i32
    %c0_i32_1 = arith.constant 0 : i32
    %c0_i32_2 = arith.constant 0 : i32
    return %c0_i32, %c0_i32_0, %c0_i32_1 : i32, i32, i32
  }
  func.func @transform_15(%arg0: i32) -> (i32, i32, i32) {
    %c0_i32 = arith.constant 0 : i32
    %c0_i32_0 = arith.constant 0 : i32
    %c0_i32_1 = arith.constant 0 : i32
    return %arg0, %c0_i32, %c0_i32_0 : i32, i32, i32
  }
}

</mosaic_0001>

<llo_original>
// kernel: graph_encoder_pred_forward.3
$region0: #{graph_encoder_pred_forward.3}
  #allocation0 [shape = 'u32[]', space=smem, size = 0x4, offset = 0x4, fixed_abs, tag = 'smem constant byte address 0x4 - core index']
  #allocation1 [shape = 'u32[144,128]{1,0:T(1,128)}', space=vmem, size = 0x12000, scoped, tag = 'internal scratch']
  #allocation2 [shape = 'f32[1,1]{1,0:T(1,128)S(1)}', space=vmem, size = 0x200, scoped, tag = 'scoped memory for graph_encoder_pred_forward.3']
  %s0 = inlined_call_operand.vmem [shape: f32[2,96,32], index: 0, kind: input, shape index: {}]
  %s1 = inlined_call_operand.vmem [shape: f32[1,32], index: 1, kind: input, shape index: {}]
  %s2 = inlined_call_operand.vmem [shape: f32[1,32], index: 2, kind: input, shape index: {}]
  %s3 = inlined_call_operand.vmem [shape: bf16[32,16], index: 3, kind: input, shape index: {}]
  %s4 = inlined_call_operand.vmem [shape: f32[1,16], index: 4, kind: input, shape index: {}]
  %s5 = inlined_call_operand.vmem [shape: f32[1,16], index: 5, kind: input, shape index: {}]
  %s6 = inlined_call_operand.vmem [shape: bf16[1,16], index: 6, kind: input, shape index: {}]
  %s7 = inlined_call_operand.<no memory space> [shape: f32[1,1], index: 7, kind: input, shape index: {}]
  %s8 = inlined_call_operand.hbm [shape: f32[2,1,96], index: 8, kind: output, shape index: {}]
  %s9 = sld [smem:[#allocation0]]
  $region65: #{graph_encoder_pred_forward.3} parent=0
    _
  %s11 = ssub.s32 1, %s9
  %s12 = scalar_select 0, %s11, %s9
  %v13 = vstv %s7
  %14 = vst [vmem:[#allocation2] sm:$0x1] %v13
  $region1: #{graph_encoder_pred_forward.3} parent=0
    #allocation3 [shape = 'u8[1024]{0}', space=vmem, size = 0x400, scoped, tag = 'output window, operand 0']
    #allocation4 [shape = 's32[2]{0}', space=sflag, size = 0x8, scoped, tag = 'scoped memory for graph_encoder_pred_forward.3']
    %15 = vsyncpa [#allocation4], 0
    %s16 = scalar_lea.sflag [#allocation4], 1
    %17 = vsyncpa %s16, 0
    loop: start=0, step=1, limit=4
    $region2: #{graph_encoder_pred_forward.3} parent=1 // loop_pre_header
      _
    $region3: #{graph_encoder_pred_forward.3} parent=1 // loop_header
      %s19 = sphi 0, %s23
      %p20 = scmp.ge.s32.totalorder %s19, 4
      %s29 = sphi 0, %s31
      %s32 = sphi 0, %s29
      %s33 = sphi 0, %s32
      %s49 = sphi 0, %s33
      %s53 = sphi 0, %s53
      %s55 = sphi 0, %s53
      %s56 = sphi 0, %s55
      %s70 = sphi 0, %s56
      %s74 = sphi 0, %s74
      %s76 = sphi 0, %s74
      %s77 = sphi 0, %s76
      %s91 = sphi 0, %s77
      %s95 = sphi 0, %s95
      %s97 = sphi 0, %s95
      %s98 = sphi 0, %s97
      %s112 = sphi 0, %s98
      %s116 = sphi 0, %s116
      %s118 = sphi 0, %s116
      %s119 = sphi 0, %s118
      %s133 = sphi 0, %s119
      %s137 = sphi 0, %s137
      %s139 = sphi 0, %s137
      %s140 = sphi 0, %s139
      %s154 = sphi 0, %s140
      %s158 = sphi 0, %s158
      %s160 = sphi 0, %s158
      %s161 = sphi 0, %s160
      %s175 = sphi 0, %s161
      %s179 = sphi 0, %s179
      %s181 = sphi 0, %s179
      %s182 = sphi 0, %s181
      %s196 = sphi 0, %s182
      %s202 = sphi 0, %s204
      %s205 = sphi 0, %s202
      %s206 = sphi 0, %s205
      %s222 = sphi 0, %s206
    $region4: #{graph_encoder_pred_forward.3} parent=1 // loop_header_branch
      %22 = sbr.rel (%p20) target = $region8
    $region5: #{graph_encoder_pred_forward.3} parent=1 // loop_body
      %s24 = ssub.s32 %s19, 1
      %s25 = ssub.s32 %s19, 2
      %s26 = sadd.s32 %s19, 1
      %s27 = ssub.s32 %s19, %s26
      %p28 = scmp.eq.s32.totalorder %s27, 0
      %s30 = sadd.s32 %s29, 1
      %s31 = scalar_select %p28, %s29, %s30
      %p34 = pneg %p28
      %p35 = scmp.eq.s32.totalorder %s19, 1
      %p36 = por %p34, %p35
      %p37 = scmp.ne.s32.totalorder %s29, %s32
      %p38 = scmp.eq.s32.totalorder %s19, 0
      %p39 = por %p37, %p38
      %p40 = scmp.ne.s32.totalorder %s29, %s32
      %p41 = scmp.eq.s32.totalorder %s24, 1
      %p42 = por %p40, %p41
      %p43 = scmp.ne.s32.totalorder %s32, %s33
      %p44 = scmp.eq.s32.totalorder %s24, 0
      %p45 = por %p43, %p44
      %p46 = scmp.ne.s32.totalorder %s32, %s33
      %p47 = scmp.eq.s32.totalorder %s25, 1
      %p48 = por %p46, %p47
      %p50 = scmp.ne.s32.totalorder %s33, %s49
      %p51 = scmp.eq.s32.totalorder %s25, 0
      %p52 = por %p50, %p51
      %s54 = sadd.s32 %s53, 1
      %p57 = scmp.eq.s32.totalorder %s19, 1
      %p58 = scmp.ne.s32.totalorder %s53, %s55
      %p59 = scmp.eq.s32.totalorder %s19, 0
      %p60 = por %p58, %p59
      %p61 = scmp.ne.s32.totalorder %s53, %s55
      %p62 = scmp.eq.s32.totalorder %s24, 1
      %p63 = por %p61, %p62
      %p64 = scmp.ne.s32.totalorder %s55, %s56
      %p65 = scmp.eq.s32.totalorder %s24, 0
      %p66 = por %p64, %p65
      %p67 = scmp.ne.s32.totalorder %s55, %s56
      %p68 = scmp.eq.s32.totalorder %s25, 1
      %p69 = por %p67, %p68
      %p71 = scmp.ne.s32.totalorder %s56, %s70
      %p72 = scmp.eq.s32.totalorder %s25, 0
      %p73 = por %p71, %p72
      %s75 = sadd.s32 %s74, 1
      %p78 = scmp.eq.s32.totalorder %s19, 1
      %p79 = scmp.ne.s32.totalorder %s74, %s76
      %p80 = scmp.eq.s32.totalorder %s19, 0
      %p81 = por %p79, %p80
      %p82 = scmp.ne.s32.totalorder %s74, %s76
      %p83 = scmp.eq.s32.totalorder %s24, 1
      %p84 = por %p82, %p83
      %p85 = scmp.ne.s32.totalorder %s76, %s77
      %p86 = scmp.eq.s32.totalorder %s24, 0
      %p87 = por %p85, %p86
      %p88 = scmp.ne.s32.totalorder %s76, %s77
      %p89 = scmp.eq.s32.totalorder %s25, 1
      %p90 = por %p88, %p89
      %p92 = scmp.ne.s32.totalorder %s77, %s91
      %p93 = scmp.eq.s32.totalorder %s25, 0
      %p94 = por %p92, %p93
      %s96 = sadd.s32 %s95, 1
      %p99 = scmp.eq.s32.totalorder %s19, 1
      %p100 = scmp.ne.s32.totalorder %s95, %s97
      %p101 = scmp.eq.s32.totalorder %s19, 0
      %p102 = por %p100, %p101
      %p103 = scmp.ne.s32.totalorder %s95, %s97
      %p104 = scmp.eq.s32.totalorder %s24, 1
      %p105 = por %p103, %p104
      %p106 = scmp.ne.s32.totalorder %s97, %s98
      %p107 = scmp.eq.s32.totalorder %s24, 0
      %p108 = por %p106, %p107
      %p109 = scmp.ne.s32.totalorder %s97, %s98
      %p110 = scmp.eq.s32.totalorder %s25, 1
      %p111 = por %p109, %p110
      %p113 = scmp.ne.s32.totalorder %s98, %s112
      %p114 = scmp.eq.s32.totalorder %s25, 0
      %p115 = por %p113, %p114
      %s117 = sadd.s32 %s116, 1
      %p120 = scmp.eq.s32.totalorder %s19, 1
      %p121 = scmp.ne.s32.totalorder %s116, %s118
      %p122 = scmp.eq.s32.totalorder %s19, 0
      %p123 = por %p121, %p122
      %p124 = scmp.ne.s32.totalorder %s116, %s118
      %p125 = scmp.eq.s32.totalorder %s24, 1
      %p126 = por %p124, %p125
      %p127 = scmp.ne.s32.totalorder %s118, %s119
      %p128 = scmp.eq.s32.totalorder %s24, 0
      %p129 = por %p127, %p128
      %p130 = scmp.ne.s32.totalorder %s118, %s119
      %p131 = scmp.eq.s32.totalorder %s25, 1
      %p132 = por %p130, %p131
      %p134 = scmp.ne.s32.totalorder %s119, %s133
      %p135 = scmp.eq.s32.totalorder %s25, 0
      %p136 = por %p134, %p135
      %s138 = sadd.s32 %s137, 1
      %p141 = scmp.eq.s32.totalorder %s19, 1
      %p142 = scmp.ne.s32.totalorder %s137, %s139
      %p143 = scmp.eq.s32.totalorder %s19, 0
      %p144 = por %p142, %p143
      %p145 = scmp.ne.s32.totalorder %s137, %s139
      %p146 = scmp.eq.s32.totalorder %s24, 1
      %p147 = por %p145, %p146
      %p148 = scmp.ne.s32.totalorder %s139, %s140
      %p149 = scmp.eq.s32.totalorder %s24, 0
      %p150 = por %p148, %p149
      %p151 = scmp.ne.s32.totalorder %s139, %s140
      %p152 = scmp.eq.s32.totalorder %s25, 1
      %p153 = por %p151, %p152
      %p155 = scmp.ne.s32.totalorder %s140, %s154
      %p156 = scmp.eq.s32.totalorder %s25, 0
      %p157 = por %p155, %p156
      %s159 = sadd.s32 %s158, 1
      %p162 = scmp.eq.s32.totalorder %s19, 1
      %p163 = scmp.ne.s32.totalorder %s158, %s160
      %p164 = scmp.eq.s32.totalorder %s19, 0
      %p165 = por %p163, %p164
      %p166 = scmp.ne.s32.totalorder %s158, %s160
      %p167 = scmp.eq.s32.totalorder %s24, 1
      %p168 = por %p166, %p167
      %p169 = scmp.ne.s32.totalorder %s160, %s161
      %p170 = scmp.eq.s32.totalorder %s24, 0
      %p171 = por %p169, %p170
      %p172 = scmp.ne.s32.totalorder %s160, %s161
      %p173 = scmp.eq.s32.totalorder %s25, 1
      %p174 = por %p172, %p173
      %p176 = scmp.ne.s32.totalorder %s161, %s175
      %p177 = scmp.eq.s32.totalorder %s25, 0
      %p178 = por %p176, %p177
      %s180 = sadd.s32 %s179, 1
      %p183 = scmp.eq.s32.totalorder %s19, 1
      %p184 = scmp.ne.s32.totalorder %s179, %s181
      %p185 = scmp.eq.s32.totalorder %s19, 0
      %p186 = por %p184, %p185
      %p187 = scmp.ne.s32.totalorder %s179, %s181
      %p188 = scmp.eq.s32.totalorder %s24, 1
      %p189 = por %p187, %p188
      %p190 = scmp.ne.s32.totalorder %s181, %s182
      %p191 = scmp.eq.s32.totalorder %s24, 0
      %p192 = por %p190, %p191
      %p193 = scmp.ne.s32.totalorder %s181, %s182
      %p194 = scmp.eq.s32.totalorder %s25, 1
      %p195 = por %p193, %p194
      %p197 = scmp.ne.s32.totalorder %s182, %s196
      %p198 = scmp.eq.s32.totalorder %s25, 0
      %p199 = por %p197, %p198
      %s200 = ssub.s32 %s19, %s26
      %p201 = scmp.eq.s32.totalorder %s200, 0
      %s203 = sadd.s32 %s202, 1
      %s204 = scalar_select %p201, %s202, %s203
      %p207 = pneg %p201
      %p208 = scmp.eq.s32.totalorder %s19, 1
      %p209 = por %p207, %p208
      %p210 = scmp.ne.s32.totalorder %s202, %s205
      %p211 = scmp.eq.s32.totalorder %s19, 0
      %p212 = por %p210, %p211
      %p213 = scmp.ne.s32.totalorder %s202, %s205
      %p214 = scmp.eq.s32.totalorder %s24, 1
      %p215 = por %p213, %p214
      %p216 = scmp.ne.s32.totalorder %s205, %s206
      %p217 = scmp.eq.s32.totalorder %s24, 0
      %p218 = por %p216, %p217
      %p219 = scmp.ne.s32.totalorder %s205, %s206
      %p220 = scmp.eq.s32.totalorder %s25, 1
      %p221 = por %p219, %p220
      %p223 = scmp.ne.s32.totalorder %s206, %s222
      %p224 = scmp.eq.s32.totalorder %s25, 0
      %p225 = por %p223, %p224
      %p226 = scmp.le.s32.totalorder 1, %s19
      %p227 = scmp.lt.s32.totalorder %s19, 3
      %p228 = pnand %p226, %p227
      %p229 = pneg %p228
      // Predicated region
      $region9: #{graph_encoder_pred_forward.3} parent=5 // pred_check
        _
      $region10: #{graph_encoder_pred_forward.3} parent=5 // pred_check_branch
        %231 = sbr.rel (%p228) target = $region12
      $region11: #{graph_encoder_pred_forward.3} parent=5 // pred_region
        %s232 = ssub.s32 %s19, 1
        // Predicated region
        $region13: #{graph_encoder_pred_forward.3} parent=11 // pred_check
          %p233 = pneg %p66
        $region14: #{graph_encoder_pred_forward.3} parent=11 // pred_check_branch
          %235 = sbr.rel (%p233) target = $region16
        $region15: #{graph_encoder_pred_forward.3} parent=11 // pred_region
          _
        $region16: #{graph_encoder_pred_forward.3} parent=11 // pred_fallthru
          _
        // Predicated region
        $region17: #{graph_encoder_pred_forward.3} parent=11 // pred_check
          %p236 = pneg %p87
        $region18: #{graph_encoder_pred_forward.3} parent=11 // pred_check_branch
          %238 = sbr.rel (%p236) target = $region20
        $region19: #{graph_encoder_pred_forward.3} parent=11 // pred_region
          _
        $region20: #{graph_encoder_pred_forward.3} parent=11 // pred_fallthru
          _
        // Predicated region
        $region21: #{graph_encoder_pred_forward.3} parent=11 // pred_check
          %p239 = pneg %p108
        $region22: #{graph_encoder_pred_forward.3} parent=11 // pred_check_branch
          %241 = sbr.rel (%p239) target = $region24
        $region23: #{graph_encoder_pred_forward.3} parent=11 // pred_region
          _
        $region24: #{graph_encoder_pred_forward.3} parent=11 // pred_fallthru
          _
        // Predicated region
        $region25: #{graph_encoder_pred_forward.3} parent=11 // pred_check
          %p242 = pneg %p129
        $region26: #{graph_encoder_pred_forward.3} parent=11 // pred_check_branch
          %244 = sbr.rel (%p242) target = $region28
        $region27: #{graph_encoder_pred_forward.3} parent=11 // pred_region
          _
        $region28: #{graph_encoder_pred_forward.3} parent=11 // pred_fallthru
          _
        // Predicated region
        $region29: #{graph_encoder_pred_forward.3} parent=11 // pred_check
          %p245 = pneg %p150
        $region30: #{graph_encoder_pred_forward.3} parent=11 // pred_check_branch
          %247 = sbr.rel (%p245) target = $region32
        $region31: #{graph_encoder_pred_forward.3} parent=11 // pred_region
          _
        $region32: #{graph_encoder_pred_forward.3} parent=11 // pred_fallthru
          _
        // Predicated region
        $region33: #{graph_encoder_pred_forward.3} parent=11 // pred_check
          %p248 = pneg %p171
        $region34: #{graph_encoder_pred_forward.3} parent=11 // pred_check_branch
          %250 = sbr.rel (%p248) target = $region36
        $region35: #{graph_encoder_pred_forward.3} parent=11 // pred_region
          _
        $region36: #{graph_encoder_pred_forward.3} parent=11 // pred_fallthru
          _
        // Predicated region
        $region37: #{graph_encoder_pred_forward.3} parent=11 // pred_check
          %p251 = pneg %p192
        $region38: #{graph_encoder_pred_forward.3} parent=11 // pred_check_branch
          %253 = sbr.rel (%p251) target = $region40
        $region39: #{graph_encoder_pred_forward.3} parent=11 // pred_region
          _
        $region40: #{graph_encoder_pred_forward.3} parent=11 // pred_fallthru
          _
      $region12: #{graph_encoder_pred_forward.3} parent=5 // pred_fallthru
        _
      %p254 = scmp.lt.s32.totalorder %s19, 2
      // Predicated region
      $region41: #{graph_encoder_pred_forward.3} parent=5 // pred_check
        %p255 = pneg %p254
      $region42: #{graph_encoder_pred_forward.3} parent=5 // pred_check_branch
        %257 = sbr.rel (%p255) target = $region44
      $region43: #{graph_encoder_pred_forward.3} parent=5 // pred_region
        // Predicated region
        $region45: #{graph_encoder_pred_forward.3} parent=43 // pred_check
          %p258 = pneg %p39
        $region46: #{graph_encoder_pred_forward.3} parent=43 // pred_check_branch
          %260 = sbr.rel (%p258) target = $region48
        $region47: #{graph_encoder_pred_forward.3} parent=43 // pred_region
          %p261 = scmp.lt.s32.totalorder %s19, 1
          %s262 = scalar_select %p261, %s19, 1
          %s263 = smul.addr %s262, 12
          %s264 = smul.addr %s263, 8
          %s265 = scalar_lea.vmem %s0, %s264
        $region48: #{graph_encoder_pred_forward.3} parent=43 // pred_fallthru
          _
      $region44: #{graph_encoder_pred_forward.3} parent=5 // pred_fallthru
        _
      %p266 = scmp.le.s32.totalorder 1, %s19
      %p267 = scmp.lt.s32.totalorder %s19, 3
      %p268 = pnand %p266, %p267
      %p269 = pneg %p268
      // Predicated region
      $region49: #{graph_encoder_pred_forward.3} parent=5 // pred_check
        _
      $region50: #{graph_encoder_pred_forward.3} parent=5 // pred_check_branch
        %271 = sbr.rel (%p268) target = $region52
      $region51: #{graph_encoder_pred_forward.3} parent=5 // pred_region
        %s272 = ssub.s32 %s19, 1
        %p273 = scmp.lt.s32.totalorder %s24, 1
        %s274 = scalar_select %p273, %s24, 1
        %s275 = smul.addr %s274, 12
        %s276 = smul.addr %s275, 8
        %s277 = scalar_lea.vmem %s0, %s276
        %p278 = pneg %p45
        %p279 = pneg %p42
        %p280 = pneg %p66
        %p281 = pneg %p63
        %p282 = pneg %p87
        %p283 = pneg %p84
        %p284 = pneg %p108
        %p285 = pneg %p105
        %p286 = pneg %p129
        %p287 = pneg %p126
        %p288 = pneg %p150
        %p289 = pneg %p147
        %p290 = pneg %p171
        %p291 = pneg %p168
        %p292 = pneg %p192
        %p293 = pneg %p189
        %p294 = pneg %p218
        %p295 = pneg %p215
        %s296 = sand.u32 %s205, 1
        %s297 = scalar_lea.sflag [#allocation4], %s296
        %s298 = sand.u32 %s205, 1
        %s299 = scalar_lea.vmem [#allocation3], %s298
        %p300 = scmp.lt.s32.totalorder %s24, 1
        %s301 = scalar_select %p300, %s24, 1
        %s302 = smul.addr %s301, 12
        %s303 = smul.addr %s302, 8
        %s304 = scalar_lea.vmem %s0, %s303
        %v306 = vld [vmem:[%s304] sm:$0xff]
        %v307 = vld [vmem:[%s304 + $0x8] sm:$0xff]
        %v308 = vld [vmem:[%s304 + $0x10] sm:$0xff]
        %v309 = vld [vmem:[%s304 + $0x18] sm:$0xff]
        %v310 = vld [vmem:[%s304 + $0x20] sm:$0xff]
        %v311 = vld [vmem:[%s304 + $0x28] sm:$0xff]
        %v312 = vld [vmem:[%s304 + $0x30] sm:$0xff]
        %v313 = vld [vmem:[%s304 + $0x38] sm:$0xff]
        %v314 = vld [vmem:[%s304 + $0x40] sm:$0xff]
        %v315 = vld [vmem:[%s304 + $0x48] sm:$0xff]
        %v316 = vld [vmem:[%s304 + $0x50] sm:$0xff]
        %v317 = vld [vmem:[%s304 + $0x58] sm:$0xff]
        %vm318 = vcmask 261120
        %v319 = vsel %vm318, %v306, 0.0
        %320 = vadd.xlane.f32.xlu0 %v319
        %v321 = vpop.xlane.xlu0 %320
        %v322 = vsel %vm318, %v307, 0.0
        %323 = vadd.xlane.f32.xlu0 %v322
        %v324 = vpop.xlane.xlu0 %323
        %v325 = vsel %vm318, %v308, 0.0
        %326 = vadd.xlane.f32.xlu0 %v325
        %v327 = vpop.xlane.xlu0 %326
        %v328 = vsel %vm318, %v309, 0.0
        %329 = vadd.xlane.f32.xlu0 %v328
        %v330 = vpop.xlane.xlu0 %329
        %v331 = vsel %vm318, %v310, 0.0
        %332 = vadd.xlane.f32.xlu0 %v331
        %v333 = vpop.xlane.xlu0 %332
        %v334 = vsel %vm318, %v311, 0.0
        %335 = vadd.xlane.f32.xlu0 %v334
        %v336 = vpop.xlane.xlu0 %335
        %v337 = vsel %vm318, %v312, 0.0
        %338 = vadd.xlane.f32.xlu0 %v337
        %v339 = vpop.xlane.xlu0 %338
        %v340 = vsel %vm318, %v313, 0.0
        %341 = vadd.xlane.f32.xlu0 %v340
        %v342 = vpop.xlane.xlu0 %341
        %v343 = vsel %vm318, %v314, 0.0
        %344 = vadd.xlane.f32.xlu0 %v343
        %v345 = vpop.xlane.xlu0 %344
        %v346 = vsel %vm318, %v315, 0.0
        %347 = vadd.xlane.f32.xlu0 %v346
        %v348 = vpop.xlane.xlu0 %347
        %v349 = vsel %vm318, %v316, 0.0
        %350 = vadd.xlane.f32.xlu0 %v349
        %v351 = vpop.xlane.xlu0 %350
        %v352 = vsel %vm318, %v317, 0.0
        %353 = vadd.xlane.f32.xlu0 %v352
        %v354 = vpop.xlane.xlu0 %353
        %v355 = vrcp.pop 32.0
        %v356 = vmul.f32 %v321, %v355
        %v357 = vmul.f32 %v324, %v355
        %v358 = vmul.f32 %v327, %v355
        %v359 = vmul.f32 %v330, %v355
        %v360 = vmul.f32 %v333, %v355
        %v361 = vmul.f32 %v336, %v355
        %v362 = vmul.f32 %v339, %v355
        %v363 = vmul.f32 %v342, %v355
        %v364 = vmul.f32 %v345, %v355
        %v365 = vmul.f32 %v348, %v355
        %v366 = vmul.f32 %v351, %v355
        %v367 = vmul.f32 %v354, %v355
        %v368 = vsub.f32 %v306, %v356
        %v369 = vsub.f32 %v307, %v357
        %v370 = vsub.f32 %v308, %v358
        %v371 = vsub.f32 %v309, %v359
        %v372 = vsub.f32 %v310, %v360
        %v373 = vsub.f32 %v311, %v361
        %v374 = vsub.f32 %v312, %v362
        %v375 = vsub.f32 %v313, %v363
        %v376 = vsub.f32 %v314, %v364
        %v377 = vsub.f32 %v315, %v365
        %v378 = vsub.f32 %v316, %v366
        %v379 = vsub.f32 %v317, %v367
        %v380 = vmul.f32 %v368, %v368
        %v381 = vmul.f32 %v369, %v369
        %v382 = vmul.f32 %v370, %v370
        %v383 = vmul.f32 %v371, %v371
        %v384 = vmul.f32 %v372, %v372
        %v385 = vmul.f32 %v373, %v373
        %v386 = vmul.f32 %v374, %v374
        %v387 = vmul.f32 %v375, %v375
        %v388 = vmul.f32 %v376, %v376
        %v389 = vmul.f32 %v377, %v377
        %v390 = vmul.f32 %v378, %v378
        %v391 = vmul.f32 %v379, %v379
        %v392 = vsel %vm318, %v380, 0.0
        %393 = vadd.xlane.f32.xlu0 %v392
        %v394 = vpop.xlane.xlu0 %393
        %v395 = vsel %vm318, %v381, 0.0
        %396 = vadd.xlane.f32.xlu0 %v395
        %v397 = vpop.xlane.xlu0 %396
        %v398 = vsel %vm318, %v382, 0.0
        %399 = vadd.xlane.f32.xlu0 %v398
        %v400 = vpop.xlane.xlu0 %399
        %v401 = vsel %vm318, %v383, 0.0
        %402 = vadd.xlane.f32.xlu0 %v401
        %v403 = vpop.xlane.xlu0 %402
        %v404 = vsel %vm318, %v384, 0.0
        %405 = vadd.xlane.f32.xlu0 %v404
        %v406 = vpop.xlane.xlu0 %405
        %v407 = vsel %vm318, %v385, 0.0
        %408 = vadd.xlane.f32.xlu0 %v407
        %v409 = vpop.xlane.xlu0 %408
        %v410 = vsel %vm318, %v386, 0.0
        %411 = vadd.xlane.f32.xlu0 %v410
        %v412 = vpop.xlane.xlu0 %411
        %v413 = vsel %vm318, %v387, 0.0
        %414 = vadd.xlane.f32.xlu0 %v413
        %v415 = vpop.xlane.xlu0 %414
        %v416 = vsel %vm318, %v388, 0.0
        %417 = vadd.xlane.f32.xlu0 %v416
        %v418 = vpop.xlane.xlu0 %417
        %v419 = vsel %vm318, %v389, 0.0
        %420 = vadd.xlane.f32.xlu0 %v419
        %v421 = vpop.xlane.xlu0 %420
        %v422 = vsel %vm318, %v390, 0.0
        %423 = vadd.xlane.f32.xlu0 %v422
        %v424 = vpop.xlane.xlu0 %423
        %v425 = vsel %vm318, %v391, 0.0
        %426 = vadd.xlane.f32.xlu0 %v425
        %v427 = vpop.xlane.xlu0 %426
        %v428 = vmul.f32 %v394, %v355
        %v429 = vmul.f32 %v397, %v355
        %v430 = vmul.f32 %v400, %v355
        %v431 = vmul.f32 %v403, %v355
        %v432 = vmul.f32 %v406, %v355
        %v433 = vmul.f32 %v409, %v355
        %v434 = vmul.f32 %v412, %v355
        %v435 = vmul.f32 %v415, %v355
        %v436 = vmul.f32 %v418, %v355
        %v437 = vmul.f32 %v421, %v355
        %v438 = vmul.f32 %v424, %v355
        %v439 = vmul.f32 %v427, %v355
        %v440 = vadd.f32 %v428, 1e-05
        %v441 = vadd.f32 %v429, 1e-05
        %v442 = vadd.f32 %v430, 1e-05
        %v443 = vadd.f32 %v431, 1e-05
        %v444 = vadd.f32 %v432, 1e-05
        %v445 = vadd.f32 %v433, 1e-05
        %v446 = vadd.f32 %v434, 1e-05
        %v447 = vadd.f32 %v435, 1e-05
        %v448 = vadd.f32 %v436, 1e-05
        %v449 = vadd.f32 %v437, 1e-05
        %v450 = vadd.f32 %v438, 1e-05
        %v451 = vadd.f32 %v439, 1e-05
        %v452 = vrsqrt.pop %v440
        %v453 = vrsqrt.pop %v441
        %v454 = vrsqrt.pop %v442
        %v455 = vrsqrt.pop %v443
        %v456 = vrsqrt.pop %v444
        %v457 = vrsqrt.pop %v445
        %v458 = vrsqrt.pop %v446
        %v459 = vrsqrt.pop %v447
        %v460 = vrsqrt.pop %v448
        %v461 = vrsqrt.pop %v449
        %v462 = vrsqrt.pop %v450
        %v463 = vrsqrt.pop %v451
        %v464 = vmul.f32 %v368, %v452
        %v465 = vmul.f32 %v369, %v453
        %v466 = vmul.f32 %v370, %v454
        %v467 = vmul.f32 %v371, %v455
        %v468 = vmul.f32 %v372, %v456
        %v469 = vmul.f32 %v373, %v457
        %v470 = vmul.f32 %v374, %v458
        %v471 = vmul.f32 %v375, %v459
        %v472 = vmul.f32 %v376, %v460
        %v473 = vmul.f32 %v377, %v461
        %v474 = vmul.f32 %v378, %v462
        %v475 = vmul.f32 %v379, %v463
        %v476 = vld [vmem:[%s1] sm:$0x1]
        %v478 = vlaneseq
        %v479 = vshrl.u32 %v478, 7
        %v480 = vsub.s32 0, %v479
        %v481 = vrot.slane %v476, %v480
        %v483 = vmul.f32 %v464, %v481
        %v484 = vmul.f32 %v465, %v481
        %v485 = vmul.f32 %v466, %v481
        %v486 = vmul.f32 %v467, %v481
        %v487 = vmul.f32 %v468, %v481
        %v488 = vmul.f32 %v469, %v481
        %v489 = vmul.f32 %v470, %v481
        %v490 = vmul.f32 %v471, %v481
        %v491 = vmul.f32 %v472, %v481
        %v492 = vmul.f32 %v473, %v481
        %v493 = vmul.f32 %v474, %v481
        %v494 = vmul.f32 %v475, %v481
        %v495 = vld [vmem:[%s2] sm:$0x1]
        %v497 = vlaneseq
        %v498 = vshrl.u32 %v497, 7
        %v499 = vsub.s32 0, %v498
        %v500 = vrot.slane %v495, %v499
        %v502 = vadd.f32 %v483, %v500
        %v503 = vadd.f32 %v484, %v500
        %v504 = vadd.f32 %v485, %v500
        %v505 = vadd.f32 %v486, %v500
        %v506 = vadd.f32 %v487, %v500
        %v507 = vadd.f32 %v488, %v500
        %v508 = vadd.f32 %v489, %v500
        %v509 = vadd.f32 %v490, %v500
        %v510 = vadd.f32 %v491, %v500
        %v511 = vadd.f32 %v492, %v500
        %v512 = vadd.f32 %v493, %v500
        %v513 = vadd.f32 %v494, %v500
        %v514 = vpack.c.bf16 %v503, %v502
        %v515 = vpack.c.bf16 %v505, %v504
        %v516 = vpack.c.bf16 %v507, %v506
        %v517 = vpack.c.bf16 %v509, %v508
        %v518 = vpack.c.bf16 %v511, %v510
        %v519 = vpack.c.bf16 %v513, %v512
        %v520 = vld [vmem:[%s3] sm:$0xf]
        %v521 = vld [vmem:[%s3 + $0x4] sm:$0xf]
        %v522 = vld [vmem:[%s3 + $0x8] sm:$0xf]
        %v523 = vld [vmem:[%s3 + $0xc] sm:$0xf]
        %v528 = vunpack.c.l.b16 %v520
        %v529 = vunpack.c.l.b16 %v521
        %v530 = vunpack.c.l.b16 %v522
        %v531 = vunpack.c.l.b16 %v523
        %v532 = vpack.c.b16 %v529, %v528
        %v533 = vpack.c.b16 %v531, %v530
        %v537 = vsel %vm318, %v514, 0
        %v540 = vsel %vm318, %v515, 0
        %v543 = vsel %vm318, %v516, 0
        %v546 = vsel %vm318, %v517, 0
        %v549 = vsel %vm318, %v518, 0
        %v552 = vsel %vm318, %v519, 0
        %554 = vmatprep.subr.bf16.mxu0 0
        %555 = vmatpush1.bf16.msra.mxu0 %v532
        %556 = vmatprep.subr.bf16.mxu0 0
        %557 = vmatpush1.bf16.msra.mxu0 %v533
        %558 = vmatprep.subr.bf16.mxu0 0
        %559 = vmatpush1.bf16.msra.mxu0 0
        %560 = vmatprep.subr.bf16.mxu0 0
        %561 = vmatpush1.bf16.msra.mxu0 0
        %562 = vmatprep.subr.bf16.mxu0 0
        %563 = vmatpush1.bf16.msra.mxu0 0
        %564 = vmatprep.subr.bf16.mxu0 0
        %565 = vmatpush1.bf16.msra.mxu0 0
        %566 = vmatprep.subr.bf16.mxu0 0
        %567 = vmatpush1.bf16.msra.mxu0 0
        %568 = vmatprep.subr.bf16.mxu0 0
        %569 = vmatpush1.bf16.msra.mxu0 0
        %570 = vmatprep.subr.bf16.mxu0 0
        %571 = vmatpush1.bf16.msra.mxu0 0
        %572 = vmatprep.subr.bf16.mxu0 0
        %573 = vmatpush1.bf16.msra.mxu0 0
        %574 = vmatprep.subr.bf16.mxu0 0
        %575 = vmatpush1.bf16.msra.mxu0 0
        %576 = vmatprep.subr.bf16.mxu0 0
        %577 = vmatpush1.bf16.msra.mxu0 0
        %578 = vmatprep.subr.bf16.mxu0 0
        %579 = vmatpush1.bf16.msra.mxu0 0
        %580 = vmatprep.subr.bf16.mxu0 0
        %581 = vmatpush1.bf16.msra.mxu0 0
        %582 = vmatprep.subr.bf16.mxu0 0
        %583 = vmatpush1.bf16.msra.mxu0 0
        %584 = vmatprep.subr.bf16.mxu0 0
        %585 = vmatpush1.bf16.msra.mxu0 0
        %586 = vmatprep.mubr.bf16.mxu0 0
        %587 = vmatmul.mubr.bf16.gmra.mrb[0].mxu0 %v537
        %v588 = vpop.f32.mrb[0].mxu0
        %v589 = vadd.f32 0.0, %v588
        %v590 = vpop.f32.mrb[0].mxu0
        %v591 = vpop.f32.mrb[0].mxu0
        %v592 = vadd.f32 0.0, %v591
        %v593 = vpop.f32.mrb[0].mxu0
        %594 = vmatprep.mubr.bf16.mxu0 0
        %595 = vmatmul.mubr.bf16.gmra.mrb[0].mxu0 %v540
        %v596 = vpop.f32.mrb[0].mxu0
        %v597 = vadd.f32 0.0, %v596
        %v598 = vpop.f32.mrb[0].mxu0
        %v599 = vpop.f32.mrb[0].mxu0
        %v600 = vadd.f32 0.0, %v599
        %v601 = vpop.f32.mrb[0].mxu0
        %602 = vmatprep.mubr.bf16.mxu0 0
        %603 = vmatmul.mubr.bf16.gmra.mrb[0].mxu0 %v543
        %v604 = vpop.f32.mrb[0].mxu0
        %v605 = vadd.f32 0.0, %v604
        %v606 = vpop.f32.mrb[0].mxu0
        %v607 = vpop.f32.mrb[0].mxu0
        %v608 = vadd.f32 0.0, %v607
        %v609 = vpop.f32.mrb[0].mxu0
        %610 = vmatprep.mubr.bf16.mxu0 0
        %611 = vmatmul.mubr.bf16.gmra.mrb[0].mxu0 %v546
        %v612 = vpop.f32.mrb[0].mxu0
        %v613 = vadd.f32 0.0, %v612
        %v614 = vpop.f32.mrb[0].mxu0
        %v615 = vpop.f32.mrb[0].mxu0
        %v616 = vadd.f32 0.0, %v615
        %v617 = vpop.f32.mrb[0].mxu0
        %618 = vmatprep.mubr.bf16.mxu0 0
        %619 = vmatmul.mubr.bf16.gmra.mrb[0].mxu0 %v549
        %v620 = vpop.f32.mrb[0].mxu0
        %v621 = vadd.f32 0.0, %v620
        %v622 = vpop.f32.mrb[0].mxu0
        %v623 = vpop.f32.mrb[0].mxu0
        %v624 = vadd.f32 0.0, %v623
        %v625 = vpop.f32.mrb[0].mxu0
        %626 = vmatprep.mubr.bf16.mxu0 0
        %627 = vmatmul.mubr.bf16.gmra.mrb[0].mxu0 %v552
        %v628 = vpop.f32.mrb[0].mxu0
        %v629 = vadd.f32 0.0, %v628
        %v630 = vpop.f32.mrb[0].mxu0
        %v631 = vpop.f32.mrb[0].mxu0
        %v632 = vadd.f32 0.0, %v631
        %v633 = vpop.f32.mrb[0].mxu0
        %634 = vdwg.mxu0
        %v635 = vld [vmem:[%s4] sm:$0x1]
        %v637 = vlaneseq
        %v638 = vshrl.u32 %v637, 7
        %v639 = vsub.s32 0, %v638
        %v640 = vrot.slane %v635, %v639
        %v642 = vmul.f32 %v589, %v640
        %v643 = vmul.f32 %v592, %v640
        %v644 = vmul.f32 %v597, %v640
        %v645 = vmul.f32 %v600, %v640
        %v646 = vmul.f32 %v605, %v640
        %v647 = vmul.f32 %v608, %v640
        %v648 = vmul.f32 %v613, %v640
        %v649 = vmul.f32 %v616, %v640
        %v650 = vmul.f32 %v621, %v640
        %v651 = vmul.f32 %v624, %v640
        %v652 = vmul.f32 %v629, %v640
        %v653 = vmul.f32 %v632, %v640
        %v654 = vld [vmem:[%s5] sm:$0x1]
        %v656 = vlaneseq
        %v657 = vshrl.u32 %v656, 7
        %v658 = vsub.s32 0, %v657
        %v659 = vrot.slane %v654, %v658
        %v661 = vadd.f32 %v642, %v659
        %v662 = vadd.f32 %v643, %v659
        %v663 = vadd.f32 %v644, %v659
        %v664 = vadd.f32 %v645, %v659
        %v665 = vadd.f32 %v646, %v659
        %v666 = vadd.f32 %v647, %v659
        %v667 = vadd.f32 %v648, %v659
        %v668 = vadd.f32 %v649, %v659
        %v669 = vadd.f32 %v650, %v659
        %v670 = vadd.f32 %v651, %v659
        %v671 = vadd.f32 %v652, %v659
        %v672 = vadd.f32 %v653, %v659
        %v673 = vmul.f32 %v661, %v661
        %v674 = vmul.f32 %v662, %v662
        %v675 = vmul.f32 %v663, %v663
        %v676 = vmul.f32 %v664, %v664
        %v677 = vmul.f32 %v665, %v665
        %v678 = vmul.f32 %v666, %v666
        %v679 = vmul.f32 %v667, %v667
        %v680 = vmul.f32 %v668, %v668
        %v681 = vmul.f32 %v669, %v669
        %v682 = vmul.f32 %v670, %v670
        %v683 = vmul.f32 %v671, %v671
        %v684 = vmul.f32 %v672, %v672
        %v685 = vmul.f32 %v661, %v673
        %v686 = vmul.f32 %v662, %v674
        %v687 = vmul.f32 %v663, %v675
        %v688 = vmul.f32 %v664, %v676
        %v689 = vmul.f32 %v665, %v677
        %v690 = vmul.f32 %v666, %v678
        %v691 = vmul.f32 %v667, %v679
        %v692 = vmul.f32 %v668, %v680
        %v693 = vmul.f32 %v669, %v681
        %v694 = vmul.f32 %v670, %v682
        %v695 = vmul.f32 %v671, %v683
        %v696 = vmul.f32 %v672, %v684
        %v697 = vmul.f32 %v685, 0.044715
        %v698 = vmul.f32 %v686, 0.044715
        %v699 = vmul.f32 %v687, 0.044715
        %v700 = vmul.f32 %v688, 0.044715
        %v701 = vmul.f32 %v689, 0.044715
        %v702 = vmul.f32 %v690, 0.044715
        %v703 = vmul.f32 %v691, 0.044715
        %v704 = vmul.f32 %v692, 0.044715
        %v705 = vmul.f32 %v693, 0.044715
        %v706 = vmul.f32 %v694, 0.044715
        %v707 = vmul.f32 %v695, 0.044715
        %v708 = vmul.f32 %v696, 0.044715
        %v709 = vadd.f32 %v661, %v697
        %v710 = vadd.f32 %v662, %v698
        %v711 = vadd.f32 %v663, %v699
        %v712 = vadd.f32 %v664, %v700
        %v713 = vadd.f32 %v665, %v701
        %v714 = vadd.f32 %v666, %v702
        %v715 = vadd.f32 %v667, %v703
        %v716 = vadd.f32 %v668, %v704
        %v717 = vadd.f32 %v669, %v705
        %v718 = vadd.f32 %v670, %v706
        %v719 = vadd.f32 %v671, %v707
        %v720 = vadd.f32 %v672, %v708
        %v721 = vmul.f32 %v709, 0.7978846
        %v722 = vmul.f32 %v710, 0.7978846
        %v723 = vmul.f32 %v711, 0.7978846
        %v724 = vmul.f32 %v712, 0.7978846
        %v725 = vmul.f32 %v713, 0.7978846
        %v726 = vmul.f32 %v714, 0.7978846
        %v727 = vmul.f32 %v715, 0.7978846
        %v728 = vmul.f32 %v716, 0.7978846
        %v729 = vmul.f32 %v717, 0.7978846
        %v730 = vmul.f32 %v718, 0.7978846
        %v731 = vmul.f32 %v719, 0.7978846
        %v732 = vmul.f32 %v720, 0.7978846
        %v733 = vtanh.pop %v721
        %v734 = vtanh.pop %v722
        %v735 = vtanh.pop %v723
        %v736 = vtanh.pop %v724
        %v737 = vtanh.pop %v725
        %v738 = vtanh.pop %v726
        %v739 = vtanh.pop %v727
        %v740 = vtanh.pop %v728
        %v741 = vtanh.pop %v729
        %v742 = vtanh.pop %v730
        %v743 = vtanh.pop %v731
        %v744 = vtanh.pop %v732
        %v745 = vadd.f32 %v733, 1.0
        %v746 = vadd.f32 %v734, 1.0
        %v747 = vadd.f32 %v735, 1.0
        %v748 = vadd.f32 %v736, 1.0
        %v749 = vadd.f32 %v737, 1.0
        %v750 = vadd.f32 %v738, 1.0
        %v751 = vadd.f32 %v739, 1.0
        %v752 = vadd.f32 %v740, 1.0
        %v753 = vadd.f32 %v741, 1.0
        %v754 = vadd.f32 %v742, 1.0
        %v755 = vadd.f32 %v743, 1.0
        %v756 = vadd.f32 %v744, 1.0
        %v757 = vmul.f32 %v745, 0.5
        %v758 = vmul.f32 %v746, 0.5
        %v759 = vmul.f32 %v747, 0.5
        %v760 = vmul.f32 %v748, 0.5
        %v761 = vmul.f32 %v749, 0.5
        %v762 = vmul.f32 %v750, 0.5
        %v763 = vmul.f32 %v751, 0.5
        %v764 = vmul.f32 %v752, 0.5
        %v765 = vmul.f32 %v753, 0.5
        %v766 = vmul.f32 %v754, 0.5
        %v767 = vmul.f32 %v755, 0.5
        %v768 = vmul.f32 %v756, 0.5
        %v769 = vmul.f32 %v661, %v757
        %v770 = vmul.f32 %v662, %v758
        %v771 = vmul.f32 %v663, %v759
        %v772 = vmul.f32 %v664, %v760
        %v773 = vmul.f32 %v665, %v761
        %v774 = vmul.f32 %v666, %v762
        %v775 = vmul.f32 %v667, %v763
        %v776 = vmul.f32 %v668, %v764
        %v777 = vmul.f32 %v669, %v765
        %v778 = vmul.f32 %v670, %v766
        %v779 = vmul.f32 %v671, %v767
        %v780 = vmul.f32 %v672, %v768
        %v781 = vld [vmem:[%s6] sm:$0x1]
        %v782 = vpack.c.bf16 %v770, %v769
        %v783 = vpack.c.bf16 %v772, %v771
        %v784 = vpack.c.bf16 %v774, %v773
        %v785 = vpack.c.bf16 %v776, %v775
        %v786 = vpack.c.bf16 %v778, %v777
        %v787 = vpack.c.bf16 %v780, %v779
        %v788 = vld [vmem:[#allocation2] sm:$0x1]
        %790 = vset.pattern.permute.xlu0 0
        %791 = vperm.xlu0 %790, %v788
        %v792 = vpop.permute.xlu0 %791
        %v794 = vlaneseq
        %v795 = vshrl.u32 %v794, 7
        %v796 = vsub.s32 0, %v795
        %v797 = vrot.slane %v792, %v796
        %vm798 = vcmask 130048
        %v800 = vsel %vm798, %v781, 0
        %v803 = vsel %vm798, %v782, 0
        %v806 = vsel %vm798, %v783, 0
        %v809 = vsel %vm798, %v784, 0
        %v812 = vsel %vm798, %v785, 0
        %v815 = vsel %vm798, %v786, 0
        %v818 = vsel %vm798, %v787, 0
        %820 = vmatprep.subr.bf16.mxu0 0
        %821 = vmatpush1.bf16.xpose.msra.mxu0 %v803
        %822 = vmatprep.subr.bf16.mxu0 0
        %823 = vmatpush1.bf16.xpose.msra.mxu0 %v806
        %824 = vmatprep.subr.bf16.mxu0 0
        %825 = vmatpush1.bf16.xpose.msra.mxu0 %v809
        %826 = vmatprep.subr.bf16.mxu0 0
        %827 = vmatpush1.bf16.xpose.msra.mxu0 %v812
        %828 = vmatprep.subr.bf16.mxu0 0
        %829 = vmatpush1.bf16.xpose.msra.mxu0 %v815
        %830 = vmatprep.subr.bf16.mxu0 0
        %831 = vmatpush1.bf16.xpose.msra.mxu0 %v818
        %832 = vmatprep.subr.bf16.mxu0 0
        %833 = vmatpush1.bf16.xpose.msra.mxu0 0
        %834 = vmatprep.subr.bf16.mxu0 0
        %835 = vmatpush1.bf16.xpose.msra.mxu0 0
        %836 = vmatprep.subr.bf16.mxu0 0
        %837 = vmatpush1.bf16.xpose.msra.mxu0 0
        %838 = vmatprep.subr.bf16.mxu0 0
        %839 = vmatpush1.bf16.xpose.msra.mxu0 0
        %840 = vmatprep.subr.bf16.mxu0 0
        %841 = vmatpush1.bf16.xpose.msra.mxu0 0
        %842 = vmatprep.subr.bf16.mxu0 0
        %843 = vmatpush1.bf16.xpose.msra.mxu0 0
        %844 = vmatprep.subr.bf16.mxu0 0
        %845 = vmatpush1.bf16.xpose.msra.mxu0 0
        %846 = vmatprep.subr.bf16.mxu0 0
        %847 = vmatpush1.bf16.xpose.msra.mxu0 0
        %848 = vmatprep.subr.bf16.mxu0 0
        %849 = vmatpush1.bf16.xpose.msra.mxu0 0
        %850 = vmatprep.subr.bf16.mxu0 0
        %851 = vmatpush1.bf16.xpose.msra.mxu0 0
        %852 = vmatprep.mubr.bf16.mxu0 0
        %853 = vmatmul.mubr.bf16.gmra.mrb[0].mxu0 %v800
        %v854 = vpop.f32.mrb[0].mxu0
        %v855 = vadd.f32 %v797, %v854
        %v856 = vpop.f32.mrb[0].mxu0
        %v857 = vpop.f32.mrb[0].mxu0
        %v858 = vpop.f32.mrb[0].mxu0
        %859 = vdwg.mxu0
        %vm860 = vcmask 778240
        %861 = vst.msk [vmem:[%s299] sm:$0x1] %vm860, %v855
        %s862 = sand.u32 %s205, 1
        %s863 = scalar_lea.sflag [#allocation4], %s862
        %s864 = sand.u32 %s205, 1
        %s865 = scalar_lea.vmem [#allocation3], %s864
        // Predicated region
        $region53: #{graph_encoder_pred_forward.3} parent=51 // pred_check
          %p866 = pneg %p215
        $region54: #{graph_encoder_pred_forward.3} parent=51 // pred_check_branch
          %868 = sbr.rel (%p866) target = $region56
        $region55: #{graph_encoder_pred_forward.3} parent=51 // pred_region
          %s870 = ssub.s32 16, 16
          %871 = vsyncadd %s863, %s870
          %s872 = smul.addr %s24, 16
          %s873 = scalar_lea.hbm %s8, %s872
          %s875 = sshll.u32 %s865, 4
          %s876 = int_to_ptr.vmem [resolvable:$true] %s875
          %878 = dma.vmem_to_hbm [thread:$0]  %s876, 16, %s873, %s863
        $region56: #{graph_encoder_pred_forward.3} parent=51 // pred_fallthru
          _
      $region52: #{graph_encoder_pred_forward.3} parent=5 // pred_fallthru
        _
      %p879 = scmp.le.s32.totalorder 2, %s19
      // Predicated region
      $region57: #{graph_encoder_pred_forward.3} parent=5 // pred_check
        %p880 = pneg %p879
      $region58: #{graph_encoder_pred_forward.3} parent=5 // pred_check_branch
        %882 = sbr.rel (%p880) target = $region60
      $region59: #{graph_encoder_pred_forward.3} parent=5 // pred_region
        %s883 = ssub.s32 %s19, 2
        // Predicated region
        $region61: #{graph_encoder_pred_forward.3} parent=59 // pred_check
          %p884 = pneg %p221
        $region62: #{graph_encoder_pred_forward.3} parent=59 // pred_check_branch
          %886 = sbr.rel (%p884) target = $region64
        $region63: #{graph_encoder_pred_forward.3} parent=59 // pred_region
          %s887 = sand.u32 %s206, 1
          %s888 = scalar_lea.sflag [#allocation4], %s887
          %s889 = sand.u32 %s206, 1
          %s890 = scalar_lea.vmem [#allocation3], %s889
          %891 = dma.done %s888, 16
        $region64: #{graph_encoder_pred_forward.3} parent=59 // pred_fallthru
          _
      $region60: #{graph_encoder_pred_forward.3} parent=5 // pred_fallthru
        _
    $region6: #{graph_encoder_pred_forward.3} parent=1 // loop_footer
      %s23 = sadd.s32 1, %s19
    $region7: #{graph_encoder_pred_forward.3} parent=1 // loop_footer_branch
      %18 = sbr.rel target = $region3
    $region8: #{graph_encoder_pred_forward.3} parent=1 // loop_exit
      _
    %892 = vsyncpa [#allocation4], 1
    %s893 = scalar_lea.sflag [#allocation4], 1
    %894 = vsyncpa %s893, 1

// kernel: graph_encoder_pred_forward.2
$region0: #{graph_encoder_pred_forward.2}
  #allocation0 [shape = 'u32[]', space=smem, size = 0x4, offset = 0x4, fixed_abs, tag = 'smem constant byte address 0x4 - core index']
  #allocation1 [shape = 'u32[144,128]{1,0:T(1,128)}', space=vmem, size = 0x12000, scoped, tag = 'internal scratch']
  %s0 = inlined_call_operand.vmem [shape: f32[2,108,32], index: 0, kind: input, shape index: {}]
  %s1 = inlined_call_operand.vmem [shape: bf16[2,9,36], index: 1, kind: input, shape index: {}]
  %s2 = inlined_call_operand.vmem [shape: bf16[108,9], index: 2, kind: input, shape index: {}]
  %s3 = inlined_call_operand.vmem [shape: f32[2,1,32], index: 3, kind: input, shape index: {}]
  %s4 = inlined_call_operand.vmem [shape: f32[2,1,32], index: 4, kind: input, shape index: {}]
  %s5 = inlined_call_operand.vmem [shape: bf16[2,32,96], index: 5, kind: input, shape index: {}]
  %s6 = inlined_call_operand.vmem [shape: f32[2,1,96], index: 6, kind: input, shape index: {}]
  %s7 = inlined_call_operand.vmem [shape: bf16[2,32,32], index: 7, kind: input, shape index: {}]
  %s8 = inlined_call_operand.vmem [shape: f32[2,1,32], index: 8, kind: input, shape index: {}]
  %s9 = inlined_call_operand.vmem [shape: f32[2,1,32], index: 9, kind: input, shape index: {}]
  %s10 = inlined_call_operand.vmem [shape: f32[2,1,32], index: 10, kind: input, shape index: {}]
  %s11 = inlined_call_operand.vmem [shape: bf16[2,32,128], index: 11, kind: input, shape index: {}]
  %s12 = inlined_call_operand.vmem [shape: f32[2,1,128], index: 12, kind: input, shape index: {}]
  %s13 = inlined_call_operand.vmem [shape: bf16[2,128,32], index: 13, kind: input, shape index: {}]
  %s14 = inlined_call_operand.vmem [shape: f32[2,1,32], index: 14, kind: input, shape index: {}]
  %s15 = inlined_call_operand.vmem [shape: f32[2,108,32], index: 15, kind: output, shape index: {}]
  %s16 = sld [smem:[#allocation0]]
  $region93: #{graph_encoder_pred_forward.2} parent=0
    _
  %s18 = ssub.s32 1, %s16
  %s19 = scalar_select 0, %s18, %s16
  loop: start=0, step=1, limit=4
  $region2: #{graph_encoder_pred_forward.2} parent=0 // loop_pre_header
    _
  $region3: #{graph_encoder_pred_forward.2} parent=0 // loop_header
    %s21 = sphi 0, %s25
    %p22 = scmp.ge.s32.totalorder %s21, 4
    %s31 = sphi 0, %s33
    %s34 = sphi 0, %s31
    %s35 = sphi 0, %s34
    %s51 = sphi 0, %s35
    %s57 = sphi 0, %s59
    %s60 = sphi 0, %s57
    %s61 = sphi 0, %s60
    %s77 = sphi 0, %s61
    %s81 = sphi 0, %s81
    %s83 = sphi 0, %s81
    %s84 = sphi 0, %s83
    %s98 = sphi 0, %s84
    %s102 = sphi 0, %s102
    %s104 = sphi 0, %s102
    %s105 = sphi 0, %s104
    %s119 = sphi 0, %s105
    %s123 = sphi 0, %s123
    %s125 = sphi 0, %s123
    %s126 = sphi 0, %s125
    %s140 = sphi 0, %s126
    %s144 = sphi 0, %s144
    %s146 = sphi 0, %s144
    %s147 = sphi 0, %s146
    %s161 = sphi 0, %s147
    %s165 = sphi 0, %s165
    %s167 = sphi 0, %s165
    %s168 = sphi 0, %s167
    %s182 = sphi 0, %s168
    %s186 = sphi 0, %s186
    %s188 = sphi 0, %s186
    %s189 = sphi 0, %s188
    %s203 = sphi 0, %s189
    %s207 = sphi 0, %s207
    %s209 = sphi 0, %s207
    %s210 = sphi 0, %s209
    %s224 = sphi 0, %s210
    %s228 = sphi 0, %s228
    %s230 = sphi 0, %s228
    %s231 = sphi 0, %s230
    %s245 = sphi 0, %s231
    %s249 = sphi 0, %s249
    %s251 = sphi 0, %s249
    %s252 = sphi 0, %s251
    %s266 = sphi 0, %s252
    %s270 = sphi 0, %s270
    %s272 = sphi 0, %s270
    %s273 = sphi 0, %s272
    %s287 = sphi 0, %s273
    %s291 = sphi 0, %s291
    %s293 = sphi 0, %s291
    %s294 = sphi 0, %s293
    %s308 = sphi 0, %s294
    %s312 = sphi 0, %s312
    %s314 = sphi 0, %s312
    %s315 = sphi 0, %s314
    %s329 = sphi 0, %s315
    %s333 = sphi 0, %s333
    %s335 = sphi 0, %s333
    %s336 = sphi 0, %s335
    %s350 = sphi 0, %s336
    %s356 = sphi 0, %s358
    %s359 = sphi 0, %s356
    %s360 = sphi 0, %s359
    %s376 = sphi 0, %s360
  $region4: #{graph_encoder_pred_forward.2} parent=0 // loop_header_branch
    %24 = sbr.rel (%p22) target = $region8
  $region5: #{graph_encoder_pred_forward.2} parent=0 // loop_body
    %s26 = ssub.s32 %s21, 1
    %s27 = ssub.s32 %s21, 2
    %s28 = sadd.s32 %s21, 1
    %s29 = ssub.s32 %s21, %s28
    %p30 = scmp.eq.s32.totalorder %s29, 0
    %s32 = sadd.s32 %s31, 1
    %s33 = scalar_select %p30, %s31, %s32
    %p36 = pneg %p30
    %p37 = scmp.eq.s32.totalorder %s21, 1
    %p38 = por %p36, %p37
    %p39 = scmp.ne.s32.totalorder %s31, %s34
    %p40 = scmp.eq.s32.totalorder %s21, 0
    %p41 = por %p39, %p40
    %p42 = scmp.ne.s32.totalorder %s31, %s34
    %p43 = scmp.eq.s32.totalorder %s26, 1
    %p44 = por %p42, %p43
    %p45 = scmp.ne.s32.totalorder %s34, %s35
    %p46 = scmp.eq.s32.totalorder %s26, 0
    %p47 = por %p45, %p46
    %p48 = scmp.ne.s32.totalorder %s34, %s35
    %p49 = scmp.eq.s32.totalorder %s27, 1
    %p50 = por %p48, %p49
    %p52 = scmp.ne.s32.totalorder %s35, %s51
    %p53 = scmp.eq.s32.totalorder %s27, 0
    %p54 = por %p52, %p53
    %s55 = ssub.s32 %s21, %s28
    %p56 = scmp.eq.s32.totalorder %s55, 0
    %s58 = sadd.s32 %s57, 1
    %s59 = scalar_select %p56, %s57, %s58
    %p62 = pneg %p56
    %p63 = scmp.eq.s32.totalorder %s21, 1
    %p64 = por %p62, %p63
    %p65 = scmp.ne.s32.totalorder %s57, %s60
    %p66 = scmp.eq.s32.totalorder %s21, 0
    %p67 = por %p65, %p66
    %p68 = scmp.ne.s32.totalorder %s57, %s60
    %p69 = scmp.eq.s32.totalorder %s26, 1
    %p70 = por %p68, %p69
    %p71 = scmp.ne.s32.totalorder %s60, %s61
    %p72 = scmp.eq.s32.totalorder %s26, 0
    %p73 = por %p71, %p72
    %p74 = scmp.ne.s32.totalorder %s60, %s61
    %p75 = scmp.eq.s32.totalorder %s27, 1
    %p76 = por %p74, %p75
    %p78 = scmp.ne.s32.totalorder %s61, %s77
    %p79 = scmp.eq.s32.totalorder %s27, 0
    %p80 = por %p78, %p79
    %s82 = sadd.s32 %s81, 1
    %p85 = scmp.eq.s32.totalorder %s21, 1
    %p86 = scmp.ne.s32.totalorder %s81, %s83
    %p87 = scmp.eq.s32.totalorder %s21, 0
    %p88 = por %p86, %p87
    %p89 = scmp.ne.s32.totalorder %s81, %s83
    %p90 = scmp.eq.s32.totalorder %s26, 1
    %p91 = por %p89, %p90
    %p92 = scmp.ne.s32.totalorder %s83, %s84
    %p93 = scmp.eq.s32.totalorder %s26, 0
    %p94 = por %p92, %p93
    %p95 = scmp.ne.s32.totalorder %s83, %s84
    %p96 = scmp.eq.s32.totalorder %s27, 1
    %p97 = por %p95, %p96
    %p99 = scmp.ne.s32.totalorder %s84, %s98
    %p100 = scmp.eq.s32.totalorder %s27, 0
    %p101 = por %p99, %p100
    %s103 = sadd.s32 %s102, 1
    %p106 = scmp.eq.s32.totalorder %s21, 1
    %p107 = scmp.ne.s32.totalorder %s102, %s104
    %p108 = scmp.eq.s32.totalorder %s21, 0
    %p109 = por %p107, %p108
    %p110 = scmp.ne.s32.totalorder %s102, %s104
    %p111 = scmp.eq.s32.totalorder %s26, 1
    %p112 = por %p110, %p111
    %p113 = scmp.ne.s32.totalorder %s104, %s105
    %p114 = scmp.eq.s32.totalorder %s26, 0
    %p115 = por %p113, %p114
    %p116 = scmp.ne.s32.totalorder %s104, %s105
    %p117 = scmp.eq.s32.totalorder %s27, 1
    %p118 = por %p116, %p117
    %p120 = scmp.ne.s32.totalorder %s105, %s119
    %p121 = scmp.eq.s32.totalorder %s27, 0
    %p122 = por %p120, %p121
    %s124 = sadd.s32 %s123, 1
    %p127 = scmp.eq.s32.totalorder %s21, 1
    %p128 = scmp.ne.s32.totalorder %s123, %s125
    %p129 = scmp.eq.s32.totalorder %s21, 0
    %p130 = por %p128, %p129
    %p131 = scmp.ne.s32.totalorder %s123, %s125
    %p132 = scmp.eq.s32.totalorder %s26, 1
    %p133 = por %p131, %p132
    %p134 = scmp.ne.s32.totalorder %s125, %s126
    %p135 = scmp.eq.s32.totalorder %s26, 0
    %p136 = por %p134, %p135
    %p137 = scmp.ne.s32.totalorder %s125, %s126
    %p138 = scmp.eq.s32.totalorder %s27, 1
    %p139 = por %p137, %p138
    %p141 = scmp.ne.s32.totalorder %s126, %s140
    %p142 = scmp.eq.s32.totalorder %s27, 0
    %p143 = por %p141, %p142
    %s145 = sadd.s32 %s144, 1
    %p148 = scmp.eq.s32.totalorder %s21, 1
    %p149 = scmp.ne.s32.totalorder %s144, %s146
    %p150 = scmp.eq.s32.totalorder %s21, 0
    %p151 = por %p149, %p150
    %p152 = scmp.ne.s32.totalorder %s144, %s146
    %p153 = scmp.eq.s32.totalorder %s26, 1
    %p154 = por %p152, %p153
    %p155 = scmp.ne.s32.totalorder %s146, %s147
    %p156 = scmp.eq.s32.totalorder %s26, 0
    %p157 = por %p155, %p156
    %p158 = scmp.ne.s32.totalorder %s146, %s147
    %p159 = scmp.eq.s32.totalorder %s27, 1
    %p160 = por %p158, %p159
    %p162 = scmp.ne.s32.totalorder %s147, %s161
    %p163 = scmp.eq.s32.totalorder %s27, 0
    %p164 = por %p162, %p163
    %s166 = sadd.s32 %s165, 1
    %p169 = scmp.eq.s32.totalorder %s21, 1
    %p170 = scmp.ne.s32.totalorder %s165, %s167
    %p171 = scmp.eq.s32.totalorder %s21, 0
    %p172 = por %p170, %p171
    %p173 = scmp.ne.s32.totalorder %s165, %s167
    %p174 = scmp.eq.s32.totalorder %s26, 1
    %p175 = por %p173, %p174
    %p176 = scmp.ne.s32.totalorder %s167, %s168
    %p177 = scmp.eq.s32.totalorder %s26, 0
    %p178 = por %p176, %p177
    %p179 = scmp.ne.s32.totalorder %s167, %s168
    %p180 = scmp.eq.s32.totalorder %s27, 1
    %p181 = por %p179, %p180
    %p183 = scmp.ne.s32.totalorder %s168, %s182
    %p184 = scmp.eq.s32.totalorder %s27, 0
    %p185 = por %p183, %p184
    %s187 = sadd.s32 %s186, 1
    %p190 = scmp.eq.s32.totalorder %s21, 1
    %p191 = scmp.ne.s32.totalorder %s186, %s188
    %p192 = scmp.eq.s32.totalorder %s21, 0
    %p193 = por %p191, %p192
    %p194 = scmp.ne.s32.totalorder %s186, %s188
    %p195 = scmp.eq.s32.totalorder %s26, 1
    %p196 = por %p194, %p195
    %p197 = scmp.ne.s32.totalorder %s188, %s189
    %p198 = scmp.eq.s32.totalorder %s26, 0
    %p199 = por %p197, %p198
    %p200 = scmp.ne.s32.totalorder %s188, %s189
    %p201 = scmp.eq.s32.totalorder %s27, 1
    %p202 = por %p200, %p201
    %p204 = scmp.ne.s32.totalorder %s189, %s203
    %p205 = scmp.eq.s32.totalorder %s27, 0
    %p206 = por %p204, %p205
    %s208 = sadd.s32 %s207, 1
    %p211 = scmp.eq.s32.totalorder %s21, 1
    %p212 = scmp.ne.s32.totalorder %s207, %s209
    %p213 = scmp.eq.s32.totalorder %s21, 0
    %p214 = por %p212, %p213
    %p215 = scmp.ne.s32.totalorder %s207, %s209
    %p216 = scmp.eq.s32.totalorder %s26, 1
    %p217 = por %p215, %p216
    %p218 = scmp.ne.s32.totalorder %s209, %s210
    %p219 = scmp.eq.s32.totalorder %s26, 0
    %p220 = por %p218, %p219
    %p221 = scmp.ne.s32.totalorder %s209, %s210
    %p222 = scmp.eq.s32.totalorder %s27, 1
    %p223 = por %p221, %p222
    %p225 = scmp.ne.s32.totalorder %s210, %s224
    %p226 = scmp.eq.s32.totalorder %s27, 0
    %p227 = por %p225, %p226
    %s229 = sadd.s32 %s228, 1
    %p232 = scmp.eq.s32.totalorder %s21, 1
    %p233 = scmp.ne.s32.totalorder %s228, %s230
    %p234 = scmp.eq.s32.totalorder %s21, 0
    %p235 = por %p233, %p234
    %p236 = scmp.ne.s32.totalorder %s228, %s230
    %p237 = scmp.eq.s32.totalorder %s26, 1
    %p238 = por %p236, %p237
    %p239 = scmp.ne.s32.totalorder %s230, %s231
    %p240 = scmp.eq.s32.totalorder %s26, 0
    %p241 = por %p239, %p240
    %p242 = scmp.ne.s32.totalorder %s230, %s231
    %p243 = scmp.eq.s32.totalorder %s27, 1
    %p244 = por %p242, %p243
    %p246 = scmp.ne.s32.totalorder %s231, %s245
    %p247 = scmp.eq.s32.totalorder %s27, 0
    %p248 = por %p246, %p247
    %s250 = sadd.s32 %s249, 1
    %p253 = scmp.eq.s32.totalorder %s21, 1
    %p254 = scmp.ne.s32.totalorder %s249, %s251
    %p255 = scmp.eq.s32.totalorder %s21, 0
    %p256 = por %p254, %p255
    %p257 = scmp.ne.s32.totalorder %s249, %s251
    %p258 = scmp.eq.s32.totalorder %s26, 1
    %p259 = por %p257, %p258
    %p260 = scmp.ne.s32.totalorder %s251, %s252
    %p261 = scmp.eq.s32.totalorder %s26, 0
    %p262 = por %p260, %p261
    %p263 = scmp.ne.s32.totalorder %s251, %s252
    %p264 = scmp.eq.s32.totalorder %s27, 1
    %p265 = por %p263, %p264
    %p267 = scmp.ne.s32.totalorder %s252, %s266
    %p268 = scmp.eq.s32.totalorder %s27, 0
    %p269 = por %p267, %p268
    %s271 = sadd.s32 %s270, 1
    %p274 = scmp.eq.s32.totalorder %s21, 1
    %p275 = scmp.ne.s32.totalorder %s270, %s272
    %p276 = scmp.eq.s32.totalorder %s21, 0
    %p277 = por %p275, %p276
    %p278 = scmp.ne.s32.totalorder %s270, %s272
    %p279 = scmp.eq.s32.totalorder %s26, 1
    %p280 = por %p278, %p279
    %p281 = scmp.ne.s32.totalorder %s272, %s273
    %p282 = scmp.eq.s32.totalorder %s26, 0
    %p283 = por %p281, %p282
    %p284 = scmp.ne.s32.totalorder %s272, %s273
    %p285 = scmp.eq.s32.totalorder %s27, 1
    %p286 = por %p284, %p285
    %p288 = scmp.ne.s32.totalorder %s273, %s287
    %p289 = scmp.eq.s32.totalorder %s27, 0
    %p290 = por %p288, %p289
    %s292 = sadd.s32 %s291, 1
    %p295 = scmp.eq.s32.totalorder %s21, 1
    %p296 = scmp.ne.s32.totalorder %s291, %s293
    %p297 = scmp.eq.s32.totalorder %s21, 0
    %p298 = por %p296, %p297
    %p299 = scmp.ne.s32.totalorder %s291, %s293
    %p300 = scmp.eq.s32.totalorder %s26, 1
    %p301 = por %p299, %p300
    %p302 = scmp.ne.s32.totalorder %s293, %s294
    %p303 = scmp.eq.s32.totalorder %s26, 0
    %p304 = por %p302, %p303
    %p305 = scmp.ne.s32.totalorder %s293, %s294
    %p306 = scmp.eq.s32.totalorder %s27, 1
    %p307 = por %p305, %p306
    %p309 = scmp.ne.s32.totalorder %s294, %s308
    %p310 = scmp.eq.s32.totalorder %s27, 0
    %p311 = por %p309, %p310
    %s313 = sadd.s32 %s312, 1
    %p316 = scmp.eq.s32.totalorder %s21, 1
    %p317 = scmp.ne.s32.totalorder %s312, %s314
    %p318 = scmp.eq.s32.totalorder %s21, 0
    %p319 = por %p317, %p318
    %p320 = scmp.ne.s32.totalorder %s312, %s314
    %p321 = scmp.eq.s32.totalorder %s26, 1
    %p322 = por %p320, %p321
    %p323 = scmp.ne.s32.totalorder %s314, %s315
    %p324 = scmp.eq.s32.totalorder %s26, 0
    %p325 = por %p323, %p324
    %p326 = scmp.ne.s32.totalorder %s314, %s315
    %p327 = scmp.eq.s32.totalorder %s27, 1
    %p328 = por %p326, %p327
    %p330 = scmp.ne.s32.totalorder %s315, %s329
    %p331 = scmp.eq.s32.totalorder %s27, 0
    %p332 = por %p330, %p331
    %s334 = sadd.s32 %s333, 1
    %p337 = scmp.eq.s32.totalorder %s21, 1
    %p338 = scmp.ne.s32.totalorder %s333, %s335
    %p339 = scmp.eq.s32.totalorder %s21, 0
    %p340 = por %p338, %p339
    %p341 = scmp.ne.s32.totalorder %s333, %s335
    %p342 = scmp.eq.s32.totalorder %s26, 1
    %p343 = por %p341, %p342
    %p344 = scmp.ne.s32.totalorder %s335, %s336
    %p345 = scmp.eq.s32.totalorder %s26, 0
    %p346 = por %p344, %p345
    %p347 = scmp.ne.s32.totalorder %s335, %s336
    %p348 = scmp.eq.s32.totalorder %s27, 1
    %p349 = por %p347, %p348
    %p351 = scmp.ne.s32.totalorder %s336, %s350
    %p352 = scmp.eq.s32.totalorder %s27, 0
    %p353 = por %p351, %p352
    %s354 = ssub.s32 %s21, %s28
    %p355 = scmp.eq.s32.totalorder %s354, 0
    %s357 = sadd.s32 %s356, 1
    %s358 = scalar_select %p355, %s356, %s357
    %p361 = pneg %p355
    %p362 = scmp.eq.s32.totalorder %s21, 1
    %p363 = por %p361, %p362
    %p364 = scmp.ne.s32.totalorder %s356, %s359
    %p365 = scmp.eq.s32.totalorder %s21, 0
    %p366 = por %p364, %p365
    %p367 = scmp.ne.s32.totalorder %s356, %s359
    %p368 = scmp.eq.s32.totalorder %s26, 1
    %p369 = por %p367, %p368
    %p370 = scmp.ne.s32.totalorder %s359, %s360
    %p371 = scmp.eq.s32.totalorder %s26, 0
    %p372 = por %p370, %p371
    %p373 = scmp.ne.s32.totalorder %s359, %s360
    %p374 = scmp.eq.s32.totalorder %s27, 1
    %p375 = por %p373, %p374
    %p377 = scmp.ne.s32.totalorder %s360, %s376
    %p378 = scmp.eq.s32.totalorder %s27, 0
    %p379 = por %p377, %p378
    %p380 = scmp.le.s32.totalorder 1, %s21
    %p381 = scmp.lt.s32.totalorder %s21, 3
    %p382 = pnand %p380, %p381
    %p383 = pneg %p382
    // Predicated region
    $region9: #{graph_encoder_pred_forward.2} parent=5 // pred_check
      _
    $region10: #{graph_encoder_pred_forward.2} parent=5 // pred_check_branch
      %385 = sbr.rel (%p382) target = $region12
    $region11: #{graph_encoder_pred_forward.2} parent=5 // pred_region
      %s386 = ssub.s32 %s21, 1
      // Predicated region
      $region13: #{graph_encoder_pred_forward.2} parent=11 // pred_check
        %p387 = pneg %p94
      $region14: #{graph_encoder_pred_forward.2} parent=11 // pred_check_branch
        %389 = sbr.rel (%p387) target = $region16
      $region15: #{graph_encoder_pred_forward.2} parent=11 // pred_region
        _
      $region16: #{graph_encoder_pred_forward.2} parent=11 // pred_fallthru
        _
      // Predicated region
      $region17: #{graph_encoder_pred_forward.2} parent=11 // pred_check
        %p390 = pneg %p115
      $region18: #{graph_encoder_pred_forward.2} parent=11 // pred_check_branch
        %392 = sbr.rel (%p390) target = $region20
      $region19: #{graph_encoder_pred_forward.2} parent=11 // pred_region
        _
      $region20: #{graph_encoder_pred_forward.2} parent=11 // pred_fallthru
        _
      // Predicated region
      $region21: #{graph_encoder_pred_forward.2} parent=11 // pred_check
        %p393 = pneg %p136
      $region22: #{graph_encoder_pred_forward.2} parent=11 // pred_check_branch
        %395 = sbr.rel (%p393) target = $region24
      $region23: #{graph_encoder_pred_forward.2} parent=11 // pred_region
        _
      $region24: #{graph_encoder_pred_forward.2} parent=11 // pred_fallthru
        _
      // Predicated region
      $region25: #{graph_encoder_pred_forward.2} parent=11 // pred_check
        %p396 = pneg %p157
      $region26: #{graph_encoder_pred_forward.2} parent=11 // pred_check_branch
        %398 = sbr.rel (%p396) target = $region28
      $region27: #{graph_encoder_pred_forward.2} parent=11 // pred_region
        _
      $region28: #{graph_encoder_pred_forward.2} parent=11 // pred_fallthru
        _
      // Predicated region
      $region29: #{graph_encoder_pred_forward.2} parent=11 // pred_check
        %p399 = pneg %p178
      $region30: #{graph_encoder_pred_forward.2} parent=11 // pred_check_branch
        %401 = sbr.rel (%p399) target = $region32
      $region31: #{graph_encoder_pred_forward.2} parent=11 // pred_region
        _
      $region32: #{graph_encoder_pred_forward.2} parent=11 // pred_fallthru
        _
      // Predicated region
      $region33: #{graph_encoder_pred_forward.2} parent=11 // pred_check
        %p402 = pneg %p199
      $region34: #{graph_encoder_pred_forward.2} parent=11 // pred_check_branch
        %404 = sbr.rel (%p402) target = $region36
      $region35: #{graph_encoder_pred_forward.2} parent=11 // pred_region
        _
      $region36: #{graph_encoder_pred_forward.2} parent=11 // pred_fallthru
        _
      // Predicated region
      $region37: #{graph_encoder_pred_forward.2} parent=11 // pred_check
        %p405 = pneg %p220
      $region38: #{graph_encoder_pred_forward.2} parent=11 // pred_check_branch
        %407 = sbr.rel (%p405) target = $region40
      $region39: #{graph_encoder_pred_forward.2} parent=11 // pred_region
        _
      $region40: #{graph_encoder_pred_forward.2} parent=11 // pred_fallthru
        _
      // Predicated region
      $region41: #{graph_encoder_pred_forward.2} parent=11 // pred_check
        %p408 = pneg %p241
      $region42: #{graph_encoder_pred_forward.2} parent=11 // pred_check_branch
        %410 = sbr.rel (%p408) target = $region44
      $region43: #{graph_encoder_pred_forward.2} parent=11 // pred_region
        _
      $region44: #{graph_encoder_pred_forward.2} parent=11 // pred_fallthru
        _
      // Predicated region
      $region45: #{graph_encoder_pred_forward.2} parent=11 // pred_check
        %p411 = pneg %p262
      $region46: #{graph_encoder_pred_forward.2} parent=11 // pred_check_branch
        %413 = sbr.rel (%p411) target = $region48
      $region47: #{graph_encoder_pred_forward.2} parent=11 // pred_region
        _
      $region48: #{graph_encoder_pred_forward.2} parent=11 // pred_fallthru
        _
      // Predicated region
      $region49: #{graph_encoder_pred_forward.2} parent=11 // pred_check
        %p414 = pneg %p283
      $region50: #{graph_encoder_pred_forward.2} parent=11 // pred_check_branch
        %416 = sbr.rel (%p414) target = $region52
      $region51: #{graph_encoder_pred_forward.2} parent=11 // pred_region
        _
      $region52: #{graph_encoder_pred_forward.2} parent=11 // pred_fallthru
        _
      // Predicated region
      $region53: #{graph_encoder_pred_forward.2} parent=11 // pred_check
        %p417 = pneg %p304
      $region54: #{graph_encoder_pred_forward.2} parent=11 // pred_check_branch
        %419 = sbr.rel (%p417) target = $region56
      $region55: #{graph_encoder_pred_forward.2} parent=11 // pred_region
        _
      $region56: #{graph_encoder_pred_forward.2} parent=11 // pred_fallthru
        _
      // Predicated region
      $region57: #{graph_encoder_pred_forward.2} parent=11 // pred_check
        %p420 = pneg %p325
      $region58: #{graph_encoder_pred_forward.2} parent=11 // pred_check_branch
        %422 = sbr.rel (%p420) target = $region60
      $region59: #{graph_encoder_pred_forward.2} parent=11 // pred_region
        _
      $region60: #{graph_encoder_pred_forward.2} parent=11 // pred_fallthru
        _
      // Predicated region
      $region61: #{graph_encoder_pred_forward.2} parent=11 // pred_check
        %p423 = pneg %p346
      $region62: #{graph_encoder_pred_forward.2} parent=11 // pred_check_branch
        %425 = sbr.rel (%p423) target = $region64
      $region63: #{graph_encoder_pred_forward.2} parent=11 // pred_region
        _
      $region64: #{graph_encoder_pred_forward.2} parent=11 // pred_fallthru
        _
    $region12: #{graph_encoder_pred_forward.2} parent=5 // pred_fallthru
      _
    %p426 = scmp.lt.s32.totalorder %s21, 2
    // Predicated region
    $region65: #{graph_encoder_pred_forward.2} parent=5 // pred_check
      %p427 = pneg %p426
    $region66: #{graph_encoder_pred_forward.2} parent=5 // pred_check_branch
      %429 = sbr.rel (%p427) target = $region68
    $region67: #{graph_encoder_pred_forward.2} parent=5 // pred_region
      // Predicated region
      $region69: #{graph_encoder_pred_forward.2} parent=67 // pred_check
        %p430 = pneg %p41
      $region70: #{graph_encoder_pred_forward.2} parent=67 // pred_check_branch
        %432 = sbr.rel (%p430) target = $region72
      $region71: #{graph_encoder_pred_forward.2} parent=67 // pred_region
        %p433 = scmp.lt.s32.totalorder %s21, 1
        %s434 = scalar_select %p433, %s21, 1
        %s435 = smul.addr %s434, 14
        %s436 = smul.addr %s435, 8
        %s437 = scalar_lea.vmem %s0, %s436
      $region72: #{graph_encoder_pred_forward.2} parent=67 // pred_fallthru
        _
      // Predicated region
      $region73: #{graph_encoder_pred_forward.2} parent=67 // pred_check
        %p438 = pneg %p67
      $region74: #{graph_encoder_pred_forward.2} parent=67 // pred_check_branch
        %440 = sbr.rel (%p438) target = $region76
      $region75: #{graph_encoder_pred_forward.2} parent=67 // pred_region
        %p441 = scmp.lt.s32.totalorder %s21, 1
        %s442 = scalar_select %p441, %s21, 1
        %s443 = smul.addr %s442, 2
        %s444 = smul.addr %s443, 4
        %s445 = scalar_lea.vmem %s1, %s444
      $region76: #{graph_encoder_pred_forward.2} parent=67 // pred_fallthru
        _
    $region68: #{graph_encoder_pred_forward.2} parent=5 // pred_fallthru
      _
    %p446 = scmp.le.s32.totalorder 1, %s21
    %p447 = scmp.lt.s32.totalorder %s21, 3
    %p448 = pnand %p446, %p447
    %p449 = pneg %p448
    // Predicated region
    $region77: #{graph_encoder_pred_forward.2} parent=5 // pred_check
      _
    $region78: #{graph_encoder_pred_forward.2} parent=5 // pred_check_branch
      %451 = sbr.rel (%p448) target = $region80
    $region79: #{graph_encoder_pred_forward.2} parent=5 // pred_region
      %s452 = ssub.s32 %s21, 1
      %p453 = scmp.lt.s32.totalorder %s26, 1
      %s454 = scalar_select %p453, %s26, 1
      %s455 = smul.addr %s454, 14
      %s456 = smul.addr %s455, 8
      %s457 = scalar_lea.vmem %s0, %s456
      %p458 = pneg %p47
      %p459 = pneg %p44
      %p460 = scmp.lt.s32.totalorder %s26, 1
      %s461 = scalar_select %p460, %s26, 1
      %s462 = smul.addr %s461, 2
      %s463 = smul.addr %s462, 4
      %s464 = scalar_lea.vmem %s1, %s463
      %p465 = pneg %p73
      %p466 = pneg %p70
      %p467 = pneg %p94
      %p468 = pneg %p91
      %p469 = pneg %p115
      %p470 = pneg %p112
      %p471 = pneg %p136
      %p472 = pneg %p133
      %p473 = pneg %p157
      %p474 = pneg %p154
      %p475 = pneg %p178
      %p476 = pneg %p175
      %p477 = pneg %p199
      %p478 = pneg %p196
      %p479 = pneg %p220
      %p480 = pneg %p217
      %p481 = pneg %p241
      %p482 = pneg %p238
      %p483 = pneg %p262
      %p484 = pneg %p259
      %p485 = pneg %p283
      %p486 = pneg %p280
      %p487 = pneg %p304
      %p488 = pneg %p301
      %p489 = pneg %p325
      %p490 = pneg %p322
      %p491 = pneg %p346
      %p492 = pneg %p343
      %p493 = pneg %p372
      %p494 = pneg %p369
      %p495 = scmp.lt.s32.totalorder %s26, 1
      %s496 = scalar_select %p495, %s26, 1
      %s497 = smul.addr %s496, 14
      %s498 = smul.addr %s497, 8
      %s499 = scalar_lea.vmem %s15, %s498
      %p500 = scmp.lt.s32.totalorder %s26, 1
      %s501 = scalar_select %p500, %s26, 1
      %s502 = smul.addr %s501, 14
      %s503 = smul.addr %s502, 8
      %s504 = scalar_lea.vmem %s0, %s503
      %p505 = scmp.lt.s32.totalorder %s26, 1
      %s506 = scalar_select %p505, %s26, 1
      %s507 = smul.addr %s506, 2
      %s508 = smul.addr %s507, 4
      %s509 = scalar_lea.vmem %s1, %s508
      %p510 = scmp.lt.s32.totalorder %s26, 1
      %s511 = scalar_select %p510, %s26, 1
      %s512 = smul.addr %s511, 14
      %s513 = smul.addr %s512, 8
      %s514 = scalar_lea.vmem %s15, %s513
      %v516 = vld [vmem:[%s2] sm:$0xf]
      %v517 = vld [vmem:[%s2 + $0x4] sm:$0xf]
      %v518 = vld [vmem:[%s2 + $0x8] sm:$0xf]
      %v519 = vld [vmem:[%s2 + $0xc] sm:$0xf]
      %v520 = vld [vmem:[%s2 + $0x10] sm:$0xf]
      %v521 = vld [vmem:[%s2 + $0x14] sm:$0xf]
      %v522 = vld [vmem:[%s2 + $0x18] sm:$0xf]
      %v523 = vld [vmem:[%s2 + $0x1c] sm:$0xf]
      %v524 = vld [vmem:[%s2 + $0x20] sm:$0xf]
      %v525 = vld [vmem:[%s2 + $0x24] sm:$0xf]
      %v526 = vld [vmem:[%s2 + $0x28] sm:$0xf]
      %v527 = vld [vmem:[%s2 + $0x2c] sm:$0xf]
      %v528 = vld [vmem:[%s2 + $0x30] sm:$0xf]
      %v529 = vld [vmem:[%s2 + $0x34] sm:$0x3]
      %v530 = vld [vmem:[%s509] sm:$0xf]
      %v531 = vld [vmem:[%s509 + $0x4] sm:$0x1]
      %v546 = vunpack.c.l.b16 %v516
      %v547 = vunpack.c.l.b16 %v517
      %v548 = vunpack.c.l.b16 %v518
      %v549 = vunpack.c.l.b16 %v519
      %v550 = vunpack.c.l.b16 %v520
      %v551 = vunpack.c.l.b16 %v521
      %v552 = vunpack.c.l.b16 %v522
      %v553 = vunpack.c.l.b16 %v523
      %v554 = vunpack.c.l.b16 %v524
      %v555 = vunpack.c.l.b16 %v525
      %v556 = vunpack.c.l.b16 %v526
      %v557 = vunpack.c.l.b16 %v527
      %v558 = vunpack.c.l.b16 %v528
      %v559 = vunpack.c.l.b16 %v529
      %v560 = vpack.c.b16 %v547, %v546
      %v561 = vpack.c.b16 %v549, %v548
      %v562 = vpack.c.b16 %v551, %v550
      %v563 = vpack.c.b16 %v553, %v552
      %v564 = vpack.c.b16 %v555, %v554
      %v565 = vpack.c.b16 %v557, %v556
      %v566 = vpack.c.b16 %v559, %v558
      %v569 = vunpack.c.l.b16 %v530
      %v570 = vunpack.c.l.b16 %v531
      %v571 = vpack.c.b16 %v570, %v569
      %vm572 = vcmask 72704
      %v574 = vsel %vm572, %v560, 0
      %v577 = vsel %vm572, %v561, 0
      %v580 = vsel %vm572, %v562, 0
      %v583 = vsel %vm572, %v563, 0
      %v586 = vsel %vm572, %v564, 0
      %v589 = vsel %vm572, %v565, 0
      %v592 = vsel %vm572, %v566, 0
      %vm594 = vcmask 1043456
      %vm595 = vcmask 1044480
      %v596 = vsel %vm594, 4294967295, 65535
      %v597 = vsel %vm595, %v596, 0
      %v599 = vand.u32 %v571, %v597
      %601 = vmatprep.subr.bf16.mxu0 0
      %602 = vmatpush1.bf16.msra.mxu0 %v599
      %603 = vmatprep.subr.bf16.mxu0 0
      %604 = vmatpush1.bf16.msra.mxu0 0
      %605 = vmatprep.subr.bf16.mxu0 0
      %606 = vmatpush1.bf16.msra.mxu0 0
      %607 = vmatprep.subr.bf16.mxu0 0
      %608 = vmatpush1.bf16.msra.mxu0 0
      %609 = vmatprep.subr.bf16.mxu0 0
      %610 = vmatpush1.bf16.msra.mxu0 0
      %611 = vmatprep.subr.bf16.mxu0 0
      %612 = vmatpush1.bf16.msra.mxu0 0
      %613 = vmatprep.subr.bf16.mxu0 0
      %614 = vmatpush1.bf16.msra.mxu0 0
      %615 = vmatprep.subr.bf16.mxu0 0
      %616 = vmatpush1.bf16.msra.mxu0 0
      %617 = vmatprep.subr.bf16.mxu0 0
      %618 = vmatpush1.bf16.msra.mxu0 0
      %619 = vmatprep.subr.bf16.mxu0 0
      %620 = vmatpush1.bf16.msra.mxu0 0
      %621 = vmatprep.subr.bf16.mxu0 0
      %622 = vmatpush1.bf16.msra.mxu0 0
      %623 = vmatprep.subr.bf16.mxu0 0
      %624 = vmatpush1.bf16.msra.mxu0 0
      %625 = vmatprep.subr.bf16.mxu0 0
      %626 = vmatpush1.bf16.msra.mxu0 0
      %627 = vmatprep.subr.bf16.mxu0 0
      %628 = vmatpush1.bf16.msra.mxu0 0
      %629 = vmatprep.subr.bf16.mxu0 0
      %630 = vmatpush1.bf16.msra.mxu0 0
      %631 = vmatprep.subr.bf16.mxu0 0
      %632 = vmatpush1.bf16.msra.mxu0 0
      %633 = vmatprep.mubr.bf16.mxu0 0
      %634 = vmatmul.mubr.bf16.gmra.mrb[0].mxu0 %v574
      %v635 = vpop.f32.mrb[0].mxu0
      %v636 = vadd.f32 0.0, %v635
      %v637 = vpop.f32.mrb[0].mxu0
      %v638 = vpop.f32.mrb[0].mxu0
      %v639 = vadd.f32 0.0, %v638
      %v640 = vpop.f32.mrb[0].mxu0
      %641 = vmatprep.mubr.bf16.mxu0 0
      %642 = vmatmul.mubr.bf16.gmra.mrb[0].mxu0 %v577
      %v643 = vpop.f32.mrb[0].mxu0
      %v644 = vadd.f32 0.0, %v643
      %v645 = vpop.f32.mrb[0].mxu0
      %v646 = vpop.f32.mrb[0].mxu0
      %v647 = vadd.f32 0.0, %v646
      %v648 = vpop.f32.mrb[0].mxu0
      %649 = vmatprep.mubr.bf16.mxu0 0
      %650 = vmatmul.mubr.bf16.gmra.mrb[0].mxu0 %v580
      %v651 = vpop.f32.mrb[0].mxu0
      %v652 = vadd.f32 0.0, %v651
      %v653 = vpop.f32.mrb[0].mxu0
      %v654 = vpop.f32.mrb[0].mxu0
      %v655 = vadd.f32 0.0, %v654
      %v656 = vpop.f32.mrb[0].mxu0
      %657 = vmatprep.mubr.bf16.mxu0 0
      %658 = vmatmul.mubr.bf16.gmra.mrb[0].mxu0 %v583
      %v659 = vpop.f32.mrb[0].mxu0
      %v660 = vadd.f32 0.0, %v659
      %v661 = vpop.f32.mrb[0].mxu0
      %v662 = vpop.f32.mrb[0].mxu0
      %v663 = vadd.f32 0.0, %v662
      %v664 = vpop.f32.mrb[0].mxu0
      %665 = vmatprep.mubr.bf16.mxu0 0
      %666 = vmatmul.mubr.bf16.gmra.mrb[0].mxu0 %v586
      %v667 = vpop.f32.mrb[0].mxu0
      %v668 = vadd.f32 0.0, %v667
      %v669 = vpop.f32.mrb[0].mxu0
      %v670 = vpop.f32.mrb[0].mxu0
      %v671 = vadd.f32 0.0, %v670
      %v672 = vpop.f32.mrb[0].mxu0
      %673 = vmatprep.mubr.bf16.mxu0 0
      %674 = vmatmul.mubr.bf16.gmra.mrb[0].mxu0 %v589
      %v675 = vpop.f32.mrb[0].mxu0
      %v676 = vadd.f32 0.0, %v675
      %v677 = vpop.f32.mrb[0].mxu0
      %v678 = vpop.f32.mrb[0].mxu0
      %v679 = vadd.f32 0.0, %v678
      %v680 = vpop.f32.mrb[0].mxu0
      %681 = vmatprep.mubr.bf16.mxu0 0
      %682 = vmatmul.mubr.bf16.gmra.mrb[0].mxu0 %v592
      %v683 = vpop.f32.mrb[0].mxu0
      %v684 = vadd.f32 0.0, %v683
      %v685 = vpop.f32.mrb[0].mxu0
      %v686 = vpop.f32.mrb[0].mxu0
      %v687 = vadd.f32 0.0, %v686
      %v688 = vpop.f32.mrb[0].mxu0
      %689 = vdwg.mxu0
      %v690 = vpack.c.bf16 %v639, %v636
      %v691 = vpack.c.bf16 %v647, %v644
      %v692 = vpack.c.bf16 %v655, %v652
      %v693 = vpack.c.bf16 %v663, %v660
      %v694 = vpack.c.bf16 %v671, %v668
      %v695 = vpack.c.bf16 %v679, %v676
      %v696 = vpack.c.bf16 %v687, %v684
      %v698 = vsel %vm572, %v690, 0
      %v701 = vsel %vm572, %v691, 0
      %v704 = vsel %vm572, %v692, 0
      %v707 = vsel %vm572, %v693, 0
      %v710 = vsel %vm572, %v694, 0
      %v713 = vsel %vm572, %v695, 0
      %v716 = vsel %vm572, %v696, 0
      %718 = vmatprep.subr.bf16.mxu0 0
      %719 = vmatpush1.bf16.xpose.msra.mxu0 %v574
      %720 = vmatprep.subr.bf16.mxu0 0
      %721 = vmatpush1.bf16.xpose.msra.mxu0 %v577
      %722 = vmatprep.subr.bf16.mxu0 0
      %723 = vmatpush1.bf16.xpose.msra.mxu0 %v580
      %724 = vmatprep.subr.bf16.mxu0 0
      %725 = vmatpush1.bf16.xpose.msra.mxu0 %v583
      %726 = vmatprep.subr.bf16.mxu0 0
      %727 = vmatpush1.bf16.xpose.msra.mxu0 %v586
      %728 = vmatprep.subr.bf16.mxu0 0
      %729 = vmatpush1.bf16.xpose.msra.mxu0 %v589
      %730 = vmatprep.subr.bf16.mxu0 0
      %731 = vmatpush1.bf16.xpose.msra.mxu0 %v592
      %732 = vmatprep.subr.bf16.mxu0 0
      %733 = vmatpush1.bf16.xpose.msra.mxu0 0
      %734 = vmatprep.subr.bf16.mxu0 0
      %735 = vmatpush1.bf16.xpose.msra.mxu0 0
      %736 = vmatprep.subr.bf16.mxu0 0
      %737 = vmatpush1.bf16.xpose.msra.mxu0 0
      %738 = vmatprep.subr.bf16.mxu0 0
      %739 = vmatpush1.bf16.xpose.msra.mxu0 0
      %740 = vmatprep.subr.bf16.mxu0 0
      %741 = vmatpush1.bf16.xpose.msra.mxu0 0
      %742 = vmatprep.subr.bf16.mxu0 0
      %743 = vmatpush1.bf16.xpose.msra.mxu0 0
      %744 = vmatprep.subr.bf16.mxu0 0
      %745 = vmatpush1.bf16.xpose.msra.mxu0 0
      %746 = vmatprep.subr.bf16.mxu0 0
      %747 = vmatpush1.bf16.xpose.msra.mxu0 0
      %748 = vmatprep.subr.bf16.mxu0 0
      %749 = vmatpush1.bf16.xpose.msra.mxu0 0
      %750 = vmatprep.mubr.bf16.mxu0 0
      %751 = vmatmul.mubr.bf16.gmra.mrb[0].mxu0 %v698
      %v752 = vpop.f32.mrb[0].mxu0
      %v753 = vadd.f32 0.0, %v752
      %v754 = vpop.f32.mrb[0].mxu0
      %v755 = vpop.f32.mrb[0].mxu0
      %v756 = vadd.f32 0.0, %v755
      %v757 = vpop.f32.mrb[0].mxu0
      %758 = vmatprep.mubr.bf16.mxu0 0
      %759 = vmatmul.mubr.bf16.gmra.mrb[0].mxu0 %v701
      %v760 = vpop.f32.mrb[0].mxu0
      %v761 = vadd.f32 0.0, %v760
      %v762 = vpop.f32.mrb[0].mxu0
      %v763 = vpop.f32.mrb[0].mxu0
      %v764 = vadd.f32 0.0, %v763
      %v765 = vpop.f32.mrb[0].mxu0
      %766 = vmatprep.mubr.bf16.mxu0 0
      %767 = vmatmul.mubr.bf16.gmra.mrb[0].mxu0 %v704
      %v768 = vpop.f32.mrb[0].mxu0
      %v769 = vadd.f32 0.0, %v768
      %v770 = vpop.f32.mrb[0].mxu0
      %v771 = vpop.f32.mrb[0].mxu0
      %v772 = vadd.f32 0.0, %v771
      %v773 = vpop.f32.mrb[0].mxu0
      %774 = vmatprep.mubr.bf16.mxu0 0
      %775 = vmatmul.mubr.bf16.gmra.mrb[0].mxu0 %v707
      %v776 = vpop.f32.mrb[0].mxu0
      %v777 = vadd.f32 0.0, %v776
      %v778 = vpop.f32.mrb[0].mxu0
      %v779 = vpop.f32.mrb[0].mxu0
      %v780 = vadd.f32 0.0, %v779
      %v781 = vpop.f32.mrb[0].mxu0
      %782 = vmatprep.mubr.bf16.mxu0 0
      %783 = vmatmul.mubr.bf16.gmra.mrb[0].mxu0 %v710
      %v784 = vpop.f32.mrb[0].mxu0
      %v785 = vadd.f32 0.0, %v784
      %v786 = vpop.f32.mrb[0].mxu0
      %v787 = vpop.f32.mrb[0].mxu0
      %v788 = vadd.f32 0.0, %v787
      %v789 = vpop.f32.mrb[0].mxu0
      %790 = vmatprep.mubr.bf16.mxu0 0
      %791 = vmatmul.mubr.bf16.gmra.mrb[0].mxu0 %v713
      %v792 = vpop.f32.mrb[0].mxu0
      %v793 = vadd.f32 0.0, %v792
      %v794 = vpop.f32.mrb[0].mxu0
      %v795 = vpop.f32.mrb[0].mxu0
      %v796 = vadd.f32 0.0, %v795
      %v797 = vpop.f32.mrb[0].mxu0
      %798 = vmatprep.mubr.bf16.mxu0 0
      %799 = vmatmul.mubr.bf16.gmra.mrb[0].mxu0 %v716
      %v800 = vpop.f32.mrb[0].mxu0
      %v801 = vadd.f32 0.0, %v800
      %v802 = vpop.f32.mrb[0].mxu0
      %v803 = vpop.f32.mrb[0].mxu0
      %v804 = vadd.f32 0.0, %v803
      %v805 = vpop.f32.mrb[0].mxu0
      %806 = vdwg.mxu0
      %814 = vrot.lane.b32.xlu0 %v690, 119
      %v815 = vpop.permute.xlu0 %814
      %816 = vrot.lane.b32.xlu0 %v691, 119
      %v817 = vpop.permute.xlu0 %816
      %818 = vrot.lane.b32.xlu0 %v692, 119
      %v819 = vpop.permute.xlu0 %818
      %820 = vrot.lane.b32.xlu0 %v693, 119
      %v821 = vpop.permute.xlu0 %820
      %822 = vrot.lane.b32.xlu0 %v694, 119
      %v823 = vpop.permute.xlu0 %822
      %824 = vrot.lane.b32.xlu0 %v695, 119
      %v825 = vpop.permute.xlu0 %824
      %826 = vrot.lane.b32.xlu0 %v696, 119
      %v827 = vpop.permute.xlu0 %826
      %v829 = vsel %vm572, %v815, 0
      %v832 = vsel %vm572, %v817, 0
      %v835 = vsel %vm572, %v819, 0
      %v838 = vsel %vm572, %v821, 0
      %v841 = vsel %vm572, %v823, 0
      %v844 = vsel %vm572, %v825, 0
      %v847 = vsel %vm572, %v827, 0
      %849 = vmatprep.subr.bf16.mxu0 0
      %850 = vmatpush1.bf16.xpose.msra.mxu0 %v574
      %851 = vmatprep.subr.bf16.mxu0 0
      %852 = vmatpush1.bf16.xpose.msra.mxu0 %v577
      %853 = vmatprep.subr.bf16.mxu0 0
      %854 = vmatpush1.bf16.xpose.msra.mxu0 %v580
      %855 = vmatprep.subr.bf16.mxu0 0
      %856 = vmatpush1.bf16.xpose.msra.mxu0 %v583
      %857 = vmatprep.subr.bf16.mxu0 0
      %858 = vmatpush1.bf16.xpose.msra.mxu0 %v586
      %859 = vmatprep.subr.bf16.mxu0 0
      %860 = vmatpush1.bf16.xpose.msra.mxu0 %v589
      %861 = vmatprep.subr.bf16.mxu0 0
      %862 = vmatpush1.bf16.xpose.msra.mxu0 %v592
      %863 = vmatprep.subr.bf16.mxu0 0
      %864 = vmatpush1.bf16.xpose.msra.mxu0 0
      %865 = vmatprep.subr.bf16.mxu0 0
      %866 = vmatpush1.bf16.xpose.msra.mxu0 0
      %867 = vmatprep.subr.bf16.mxu0 0
      %868 = vmatpush1.bf16.xpose.msra.mxu0 0
      %869 = vmatprep.subr.bf16.mxu0 0
      %870 = vmatpush1.bf16.xpose.msra.mxu0 0
      %871 = vmatprep.subr.bf16.mxu0 0
      %872 = vmatpush1.bf16.xpose.msra.mxu0 0
      %873 = vmatprep.subr.bf16.mxu0 0
      %874 = vmatpush1.bf16.xpose.msra.mxu0 0
      %875 = vmatprep.subr.bf16.mxu0 0
      %876 = vmatpush1.bf16.xpose.msra.mxu0 0
      %877 = vmatprep.subr.bf16.mxu0 0
      %878 = vmatpush1.bf16.xpose.msra.mxu0 0
      %879 = vmatprep.subr.bf16.mxu0 0
      %880 = vmatpush1.bf16.xpose.msra.mxu0 0
      %881 = vmatprep.mubr.bf16.mxu0 0
      %882 = vmatmul.mubr.bf16.gmra.mrb[0].mxu0 %v829
      %v883 = vpop.f32.mrb[0].mxu0
      %v884 = vadd.f32 0.0, %v883
      %v885 = vpop.f32.mrb[0].mxu0
      %v886 = vpop.f32.mrb[0].mxu0
      %v887 = vadd.f32 0.0, %v886
      %v888 = vpop.f32.mrb[0].mxu0
      %889 = vmatprep.mubr.bf16.mxu0 0
      %890 = vmatmul.mubr.bf16.gmra.mrb[0].mxu0 %v832
      %v891 = vpop.f32.mrb[0].mxu0
      %v892 = vadd.f32 0.0, %v891
      %v893 = vpop.f32.mrb[0].mxu0
      %v894 = vpop.f32.mrb[0].mxu0
      %v895 = vadd.f32 0.0, %v894
      %v896 = vpop.f32.mrb[0].mxu0
      %897 = vmatprep.mubr.bf16.mxu0 0
      %898 = vmatmul.mubr.bf16.gmra.mrb[0].mxu0 %v835
      %v899 = vpop.f32.mrb[0].mxu0
      %v900 = vadd.f32 0.0, %v899
      %v901 = vpop.f32.mrb[0].mxu0
      %v902 = vpop.f32.mrb[0].mxu0
      %v903 = vadd.f32 0.0, %v902
      %v904 = vpop.f32.mrb[0].mxu0
      %905 = vmatprep.mubr.bf16.mxu0 0
      %906 = vmatmul.mubr.bf16.gmra.mrb[0].mxu0 %v838
      %v907 = vpop.f32.mrb[0].mxu0
      %v908 = vadd.f32 0.0, %v907
      %v909 = vpop.f32.mrb[0].mxu0
      %v910 = vpop.f32.mrb[0].mxu0
      %v911 = vadd.f32 0.0, %v910
      %v912 = vpop.f32.mrb[0].mxu0
      %913 = vmatprep.mubr.bf16.mxu0 0
      %914 = vmatmul.mubr.bf16.gmra.mrb[0].mxu0 %v841
      %v915 = vpop.f32.mrb[0].mxu0
      %v916 = vadd.f32 0.0, %v915
      %v917 = vpop.f32.mrb[0].mxu0
      %v918 = vpop.f32.mrb[0].mxu0
      %v919 = vadd.f32 0.0, %v918
      %v920 = vpop.f32.mrb[0].mxu0
      %921 = vmatprep.mubr.bf16.mxu0 0
      %922 = vmatmul.mubr.bf16.gmra.mrb[0].mxu0 %v844
      %v923 = vpop.f32.mrb[0].mxu0
      %v924 = vadd.f32 0.0, %v923
      %v925 = vpop.f32.mrb[0].mxu0
      %v926 = vpop.f32.mrb[0].mxu0
      %v927 = vadd.f32 0.0, %v926
      %v928 = vpop.f32.mrb[0].mxu0
      %929 = vmatprep.mubr.bf16.mxu0 0
      %930 = vmatmul.mubr.bf16.gmra.mrb[0].mxu0 %v847
      %v931 = vpop.f32.mrb[0].mxu0
      %v932 = vadd.f32 0.0, %v931
      %v933 = vpop.f32.mrb[0].mxu0
      %v934 = vpop.f32.mrb[0].mxu0
      %v935 = vadd.f32 0.0, %v934
      %v936 = vpop.f32.mrb[0].mxu0
      %937 = vdwg.mxu0
      %938 = vrot.lane.b32.xlu0 %v690, 110
      %v939 = vpop.permute.xlu0 %938
      %940 = vrot.lane.b32.xlu0 %v691, 110
      %v941 = vpop.permute.xlu0 %940
      %942 = vrot.lane.b32.xlu0 %v692, 110
      %v943 = vpop.permute.xlu0 %942
      %944 = vrot.lane.b32.xlu0 %v693, 110
      %v945 = vpop.permute.xlu0 %944
      %946 = vrot.lane.b32.xlu0 %v694, 110
      %v947 = vpop.permute.xlu0 %946
      %948 = vrot.lane.b32.xlu0 %v695, 110
      %v949 = vpop.permute.xlu0 %948
      %950 = vrot.lane.b32.xlu0 %v696, 110
      %v951 = vpop.permute.xlu0 %950
      %v953 = vsel %vm572, %v939, 0
      %v956 = vsel %vm572, %v941, 0
      %v959 = vsel %vm572, %v943, 0
      %v962 = vsel %vm572, %v945, 0
      %v965 = vsel %vm572, %v947, 0
      %v968 = vsel %vm572, %v949, 0
      %v971 = vsel %vm572, %v951, 0
      %973 = vmatprep.subr.bf16.mxu0 0
      %974 = vmatpush1.bf16.xpose.msra.mxu0 %v574
      %975 = vmatprep.subr.bf16.mxu0 0
      %976 = vmatpush1.bf16.xpose.msra.mxu0 %v577
      %977 = vmatprep.subr.bf16.mxu0 0
      %978 = vmatpush1.bf16.xpose.msra.mxu0 %v580
      %979 = vmatprep.subr.bf16.mxu0 0
      %980 = vmatpush1.bf16.xpose.msra.mxu0 %v583
      %981 = vmatprep.subr.bf16.mxu0 0
      %982 = vmatpush1.bf16.xpose.msra.mxu0 %v586
      %983 = vmatprep.subr.bf16.mxu0 0
      %984 = vmatpush1.bf16.xpose.msra.mxu0 %v589
      %985 = vmatprep.subr.bf16.mxu0 0
      %986 = vmatpush1.bf16.xpose.msra.mxu0 %v592
      %987 = vmatprep.subr.bf16.mxu0 0
      %988 = vmatpush1.bf16.xpose.msra.mxu0 0
      %989 = vmatprep.subr.bf16.mxu0 0
      %990 = vmatpush1.bf16.xpose.msra.mxu0 0
      %991 = vmatprep.subr.bf16.mxu0 0
      %992 = vmatpush1.bf16.xpose.msra.mxu0 0
      %993 = vmatprep.subr.bf16.mxu0 0
      %994 = vmatpush1.bf16.xpose.msra.mxu0 0
      %995 = vmatprep.subr.bf16.mxu0 0
      %996 = vmatpush1.bf16.xpose.msra.mxu0 0
      %997 = vmatprep.subr.bf16.mxu0 0
      %998 = vmatpush1.bf16.xpose.msra.mxu0 0
      %999 = vmatprep.subr.bf16.mxu0 0
      %1000 = vmatpush1.bf16.xpose.msra.mxu0 0
      %1001 = vmatprep.subr.bf16.mxu0 0
      %1002 = vmatpush1.bf16.xpose.msra.mxu0 0
      %1003 = vmatprep.subr.bf16.mxu0 0
      %1004 = vmatpush1.bf16.xpose.msra.mxu0 0
      %1005 = vmatprep.mubr.bf16.mxu0 0
      %1006 = vmatmul.mubr.bf16.gmra.mrb[0].mxu0 %v953
      %v1007 = vpop.f32.mrb[0].mxu0
      %v1008 = vadd.f32 0.0, %v1007
      %v1009 = vpop.f32.mrb[0].mxu0
      %v1010 = vpop.f32.mrb[0].mxu0
      %v1011 = vadd.f32 0.0, %v1010
      %v1012 = vpop.f32.mrb[0].mxu0
      %1013 = vmatprep.mubr.bf16.mxu0 0
      %1014 = vmatmul.mubr.bf16.gmra.mrb[0].mxu0 %v956
      %v1015 = vpop.f32.mrb[0].mxu0
      %v1016 = vadd.f32 0.0, %v1015
      %v1017 = vpop.f32.mrb[0].mxu0
      %v1018 = vpop.f32.mrb[0].mxu0
      %v1019 = vadd.f32 0.0, %v1018
      %v1020 = vpop.f32.mrb[0].mxu0
      %1021 = vmatprep.mubr.bf16.mxu0 0
      %1022 = vmatmul.mubr.bf16.gmra.mrb[0].mxu0 %v959
      %v1023 = vpop.f32.mrb[0].mxu0
      %v1024 = vadd.f32 0.0, %v1023
      %v1025 = vpop.f32.mrb[0].mxu0
      %v1026 = vpop.f32.mrb[0].mxu0
      %v1027 = vadd.f32 0.0, %v1026
      %v1028 = vpop.f32.mrb[0].mxu0
      %1029 = vmatprep.mubr.bf16.mxu0 0
      %1030 = vmatmul.mubr.bf16.gmra.mrb[0].mxu0 %v962
      %v1031 = vpop.f32.mrb[0].mxu0
      %v1032 = vadd.f32 0.0, %v1031
      %v1033 = vpop.f32.mrb[0].mxu0
      %v1034 = vpop.f32.mrb[0].mxu0
      %v1035 = vadd.f32 0.0, %v1034
      %v1036 = vpop.f32.mrb[0].mxu0
      %1037 = vmatprep.mubr.bf16.mxu0 0
      %1038 = vmatmul.mubr.bf16.gmra.mrb[0].mxu0 %v965
      %v1039 = vpop.f32.mrb[0].mxu0
      %v1040 = vadd.f32 0.0, %v1039
      %v1041 = vpop.f32.mrb[0].mxu0
      %v1042 = vpop.f32.mrb[0].mxu0
      %v1043 = vadd.f32 0.0, %v1042
      %v1044 = vpop.f32.mrb[0].mxu0
      %1045 = vmatprep.mubr.bf16.mxu0 0
      %1046 = vmatmul.mubr.bf16.gmra.mrb[0].mxu0 %v968
      %v1047 = vpop.f32.mrb[0].mxu0
      %v1048 = vadd.f32 0.0, %v1047
      %v1049 = vpop.f32.mrb[0].mxu0
      %v1050 = vpop.f32.mrb[0].mxu0
      %v1051 = vadd.f32 0.0, %v1050
      %v1052 = vpop.f32.mrb[0].mxu0
      %1053 = vmatprep.mubr.bf16.mxu0 0
      %1054 = vmatmul.mubr.bf16.gmra.mrb[0].mxu0 %v971
      %v1055 = vpop.f32.mrb[0].mxu0
      %v1056 = vadd.f32 0.0, %v1055
      %v1057 = vpop.f32.mrb[0].mxu0
      %v1058 = vpop.f32.mrb[0].mxu0
      %v1059 = vadd.f32 0.0, %v1058
      %v1060 = vpop.f32.mrb[0].mxu0
      %1061 = vdwg.mxu0
      %1062 = vrot.lane.b32.xlu0 %v690, 101
      %v1063 = vpop.permute.xlu0 %1062
      %1064 = vrot.lane.b32.xlu0 %v691, 101
      %v1065 = vpop.permute.xlu0 %1064
      %1066 = vrot.lane.b32.xlu0 %v692, 101
      %v1067 = vpop.permute.xlu0 %1066
      %1068 = vrot.lane.b32.xlu0 %v693, 101
      %v1069 = vpop.permute.xlu0 %1068
      %1070 = vrot.lane.b32.xlu0 %v694, 101
      %v1071 = vpop.permute.xlu0 %1070
      %1072 = vrot.lane.b32.xlu0 %v695, 101
      %v1073 = vpop.permute.xlu0 %1072
      %1074 = vrot.lane.b32.xlu0 %v696, 101
      %v1075 = vpop.permute.xlu0 %1074
      %v1077 = vsel %vm572, %v1063, 0
      %v1080 = vsel %vm572, %v1065, 0
      %v1083 = vsel %vm572, %v1067, 0
      %v1086 = vsel %vm572, %v1069, 0
      %v1089 = vsel %vm572, %v1071, 0
      %v1092 = vsel %vm572, %v1073, 0
      %v1095 = vsel %vm572, %v1075, 0
      %1097 = vmatprep.subr.bf16.mxu0 0
      %1098 = vmatpush1.bf16.xpose.msra.mxu0 %v574
      %1099 = vmatprep.subr.bf16.mxu0 0
      %1100 = vmatpush1.bf16.xpose.msra.mxu0 %v577
      %1101 = vmatprep.subr.bf16.mxu0 0
      %1102 = vmatpush1.bf16.xpose.msra.mxu0 %v580
      %1103 = vmatprep.subr.bf16.mxu0 0
      %1104 = vmatpush1.bf16.xpose.msra.mxu0 %v583
      %1105 = vmatprep.subr.bf16.mxu0 0
      %1106 = vmatpush1.bf16.xpose.msra.mxu0 %v586
      %1107 = vmatprep.subr.bf16.mxu0 0
      %1108 = vmatpush1.bf16.xpose.msra.mxu0 %v589
      %1109 = vmatprep.subr.bf16.mxu0 0
      %1110 = vmatpush1.bf16.xpose.msra.mxu0 %v592
      %1111 = vmatprep.subr.bf16.mxu0 0
      %1112 = vmatpush1.bf16.xpose.msra.mxu0 0
      %1113 = vmatprep.subr.bf16.mxu0 0
      %1114 = vmatpush1.bf16.xpose.msra.mxu0 0
      %1115 = vmatprep.subr.bf16.mxu0 0
      %1116 = vmatpush1.bf16.xpose.msra.mxu0 0
      %1117 = vmatprep.subr.bf16.mxu0 0
      %1118 = vmatpush1.bf16.xpose.msra.mxu0 0
      %1119 = vmatprep.subr.bf16.mxu0 0
      %1120 = vmatpush1.bf16.xpose.msra.mxu0 0
      %1121 = vmatprep.subr.bf16.mxu0 0
      %1122 = vmatpush1.bf16.xpose.msra.mxu0 0
      %1123 = vmatprep.subr.bf16.mxu0 0
      %1124 = vmatpush1.bf16.xpose.msra.mxu0 0
      %1125 = vmatprep.subr.bf16.mxu0 0
      %1126 = vmatpush1.bf16.xpose.msra.mxu0 0
      %1127 = vmatprep.subr.bf16.mxu0 0
      %1128 = vmatpush1.bf16.xpose.msra.mxu0 0
      %1129 = vmatprep.mubr.bf16.mxu0 0
      %1130 = vmatmul.mubr.bf16.gmra.mrb[0].mxu0 %v1077
      %v1131 = vpop.f32.mrb[0].mxu0
      %v1132 = vadd.f32 0.0, %v1131
      %v1133 = vpop.f32.mrb[0].mxu0
      %v1134 = vpop.f32.mrb[0].mxu0
      %v1135 = vadd.f32 0.0, %v1134
      %v1136 = vpop.f32.mrb[0].mxu0
      %1137 = vmatprep.mubr.bf16.mxu0 0
      %1138 = vmatmul.mubr.bf16.gmra.mrb[0].mxu0 %v1080
      %v1139 = vpop.f32.mrb[0].mxu0
      %v1140 = vadd.f32 0.0, %v1139
      %v1141 = vpop.f32.mrb[0].mxu0
      %v1142 = vpop.f32.mrb[0].mxu0
      %v1143 = vadd.f32 0.0, %v1142
      %v1144 = vpop.f32.mrb[0].mxu0
      %1145 = vmatprep.mubr.bf16.mxu0 0
      %1146 = vmatmul.mubr.bf16.gmra.mrb[0].mxu0 %v1083
      %v1147 = vpop.f32.mrb[0].mxu0
      %v1148 = vadd.f32 0.0, %v1147
      %v1149 = vpop.f32.mrb[0].mxu0
      %v1150 = vpop.f32.mrb[0].mxu0
      %v1151 = vadd.f32 0.0, %v1150
      %v1152 = vpop.f32.mrb[0].mxu0
      %1153 = vmatprep.mubr.bf16.mxu0 0
      %1154 = vmatmul.mubr.bf16.gmra.mrb[0].mxu0 %v1086
      %v1155 = vpop.f32.mrb[0].mxu0
      %v1156 = vadd.f32 0.0, %v1155
      %v1157 = vpop.f32.mrb[0].mxu0
      %v1158 = vpop.f32.mrb[0].mxu0
      %v1159 = vadd.f32 0.0, %v1158
      %v1160 = vpop.f32.mrb[0].mxu0
      %1161 = vmatprep.mubr.bf16.mxu0 0
      %1162 = vmatmul.mubr.bf16.gmra.mrb[0].mxu0 %v1089
      %v1163 = vpop.f32.mrb[0].mxu0
      %v1164 = vadd.f32 0.0, %v1163
      %v1165 = vpop.f32.mrb[0].mxu0
      %v1166 = vpop.f32.mrb[0].mxu0
      %v1167 = vadd.f32 0.0, %v1166
      %v1168 = vpop.f32.mrb[0].mxu0
      %1169 = vmatprep.mubr.bf16.mxu0 0
      %1170 = vmatmul.mubr.bf16.gmra.mrb[0].mxu0 %v1092
      %v1171 = vpop.f32.mrb[0].mxu0
      %v1172 = vadd.f32 0.0, %v1171
      %v1173 = vpop.f32.mrb[0].mxu0
      %v1174 = vpop.f32.mrb[0].mxu0
      %v1175 = vadd.f32 0.0, %v1174
      %v1176 = vpop.f32.mrb[0].mxu0
      %1177 = vmatprep.mubr.bf16.mxu0 0
      %1178 = vmatmul.mubr.bf16.gmra.mrb[0].mxu0 %v1095
      %v1179 = vpop.f32.mrb[0].mxu0
      %v1180 = vadd.f32 0.0, %v1179
      %v1181 = vpop.f32.mrb[0].mxu0
      %v1182 = vpop.f32.mrb[0].mxu0
      %v1183 = vadd.f32 0.0, %v1182
      %v1184 = vpop.f32.mrb[0].mxu0
      %1185 = vdwg.mxu0
      %v1186 = vld [vmem:[%s504] sm:$0xff]
      %v1187 = vld [vmem:[%s504 + $0x8] sm:$0xff]
      %v1188 = vld [vmem:[%s504 + $0x10] sm:$0xff]
      %v1189 = vld [vmem:[%s504 + $0x18] sm:$0xff]
      %v1190 = vld [vmem:[%s504 + $0x20] sm:$0xff]
      %v1191 = vld [vmem:[%s504 + $0x28] sm:$0xff]
      %v1192 = vld [vmem:[%s504 + $0x30] sm:$0xff]
      %v1193 = vld [vmem:[%s504 + $0x38] sm:$0xff]
      %v1194 = vld [vmem:[%s504 + $0x40] sm:$0xff]
      %v1195 = vld [vmem:[%s504 + $0x48] sm:$0xff]
      %v1196 = vld [vmem:[%s504 + $0x50] sm:$0xff]
      %v1197 = vld [vmem:[%s504 + $0x58] sm:$0xff]
      %v1198 = vld [vmem:[%s504 + $0x60] sm:$0xff]
      %v1199 = vld [vmem:[%s504 + $0x68] sm:$0xf]
      %v1200 = vld [vmem:[%s3] sm:$0x1]
      %v1201 = vld [vmem:[%s4] sm:$0x1]
      %vm1202 = vcmask 261120
      %v1203 = vsel %vm1202, %v1186, 0.0
      %1204 = vadd.xlane.f32.xlu0 %v1203
      %v1205 = vpop.xlane.xlu0 %1204
      %v1206 = vsel %vm1202, %v1187, 0.0
      %1207 = vadd.xlane.f32.xlu0 %v1206
      %v1208 = vpop.xlane.xlu0 %1207
      %v1209 = vsel %vm1202, %v1188, 0.0
      %1210 = vadd.xlane.f32.xlu0 %v1209
      %v1211 = vpop.xlane.xlu0 %1210
      %v1212 = vsel %vm1202, %v1189, 0.0
      %1213 = vadd.xlane.f32.xlu0 %v1212
      %v1214 = vpop.xlane.xlu0 %1213
      %v1215 = vsel %vm1202, %v1190, 0.0
      %1216 = vadd.xlane.f32.xlu0 %v1215
      %v1217 = vpop.xlane.xlu0 %1216
      %v1218 = vsel %vm1202, %v1191, 0.0
      %1219 = vadd.xlane.f32.xlu0 %v1218
      %v1220 = vpop.xlane.xlu0 %1219
      %v1221 = vsel %vm1202, %v1192, 0.0
      %1222 = vadd.xlane.f32.xlu0 %v1221
      %v1223 = vpop.xlane.xlu0 %1222
      %v1224 = vsel %vm1202, %v1193, 0.0
      %1225 = vadd.xlane.f32.xlu0 %v1224
      %v1226 = vpop.xlane.xlu0 %1225
      %v1227 = vsel %vm1202, %v1194, 0.0
      %1228 = vadd.xlane.f32.xlu0 %v1227
      %v1229 = vpop.xlane.xlu0 %1228
      %v1230 = vsel %vm1202, %v1195, 0.0
      %1231 = vadd.xlane.f32.xlu0 %v1230
      %v1232 = vpop.xlane.xlu0 %1231
      %v1233 = vsel %vm1202, %v1196, 0.0
      %1234 = vadd.xlane.f32.xlu0 %v1233
      %v1235 = vpop.xlane.xlu0 %1234
      %v1236 = vsel %vm1202, %v1197, 0.0
      %1237 = vadd.xlane.f32.xlu0 %v1236
      %v1238 = vpop.xlane.xlu0 %1237
      %v1239 = vsel %vm1202, %v1198, 0.0
      %1240 = vadd.xlane.f32.xlu0 %v1239
      %v1241 = vpop.xlane.xlu0 %1240
      %vm1242 = vcmask 257024
      %v1243 = vsel %vm1242, %v1199, 0.0
      %1244 = vadd.xlane.f32.xlu0 %v1243
      %v1245 = vpop.xlane.xlu0 %1244
      %v1246 = vrcp.pop 32.0
      %v1247 = vmul.f32 %v1205, %v1246
      %v1248 = vmul.f32 %v1208, %v1246
      %v1249 = vmul.f32 %v1211, %v1246
      %v1250 = vmul.f32 %v1214, %v1246
      %v1251 = vmul.f32 %v1217, %v1246
      %v1252 = vmul.f32 %v1220, %v1246
      %v1253 = vmul.f32 %v1223, %v1246
      %v1254 = vmul.f32 %v1226, %v1246
      %v1255 = vmul.f32 %v1229, %v1246
      %v1256 = vmul.f32 %v1232, %v1246
      %v1257 = vmul.f32 %v1235, %v1246
      %v1258 = vmul.f32 %v1238, %v1246
      %v1259 = vmul.f32 %v1241, %v1246
      %v1260 = vmul.f32 %v1245, %v1246
      %v1261 = vsub.f32 %v1186, %v1247
      %v1262 = vsub.f32 %v1187, %v1248
      %v1263 = vsub.f32 %v1188, %v1249
      %v1264 = vsub.f32 %v1189, %v1250
      %v1265 = vsub.f32 %v1190, %v1251
      %v1266 = vsub.f32 %v1191, %v1252
      %v1267 = vsub.f32 %v1192, %v1253
      %v1268 = vsub.f32 %v1193, %v1254
      %v1269 = vsub.f32 %v1194, %v1255
      %v1270 = vsub.f32 %v1195, %v1256
      %v1271 = vsub.f32 %v1196, %v1257
      %v1272 = vsub.f32 %v1197, %v1258
      %v1273 = vsub.f32 %v1198, %v1259
      %v1274 = vsub.f32 %v1199, %v1260
      %v1275 = vmul.f32 %v1261, %v1261
      %v1276 = vmul.f32 %v1262, %v1262
      %v1277 = vmul.f32 %v1263, %v1263
      %v1278 = vmul.f32 %v1264, %v1264
      %v1279 = vmul.f32 %v1265, %v1265
      %v1280 = vmul.f32 %v1266, %v1266
      %v1281 = vmul.f32 %v1267, %v1267
      %v1282 = vmul.f32 %v1268, %v1268
      %v1283 = vmul.f32 %v1269, %v1269
      %v1284 = vmul.f32 %v1270, %v1270
      %v1285 = vmul.f32 %v1271, %v1271
      %v1286 = vmul.f32 %v1272, %v1272
      %v1287 = vmul.f32 %v1273, %v1273
      %v1288 = vmul.f32 %v1274, %v1274
      %v1289 = vsel %vm1202, %v1275, 0.0
      %1290 = vadd.xlane.f32.xlu0 %v1289
      %v1291 = vpop.xlane.xlu0 %1290
      %v1292 = vsel %vm1202, %v1276, 0.0
      %1293 = vadd.xlane.f32.xlu0 %v1292
      %v1294 = vpop.xlane.xlu0 %1293
      %v1295 = vsel %vm1202, %v1277, 0.0
      %1296 = vadd.xlane.f32.xlu0 %v1295
      %v1297 = vpop.xlane.xlu0 %1296
      %v1298 = vsel %vm1202, %v1278, 0.0
      %1299 = vadd.xlane.f32.xlu0 %v1298
      %v1300 = vpop.xlane.xlu0 %1299
      %v1301 = vsel %vm1202, %v1279, 0.0
      %1302 = vadd.xlane.f32.xlu0 %v1301
      %v1303 = vpop.xlane.xlu0 %1302
      %v1304 = vsel %vm1202, %v1280, 0.0
      %1305 = vadd.xlane.f32.xlu0 %v1304
      %v1306 = vpop.xlane.xlu0 %1305
      %v1307 = vsel %vm1202, %v1281, 0.0
      %1308 = vadd.xlane.f32.xlu0 %v1307
      %v1309 = vpop.xlane.xlu0 %1308
      %v1310 = vsel %vm1202, %v1282, 0.0
      %1311 = vadd.xlane.f32.xlu0 %v1310
      %v1312 = vpop.xlane.xlu0 %1311
      %v1313 = vsel %vm1202, %v1283, 0.0
      %1314 = vadd.xlane.f32.xlu0 %v1313
      %v1315 = vpop.xlane.xlu0 %1314
      %v1316 = vsel %vm1202, %v1284, 0.0
      %1317 = vadd.xlane.f32.xlu0 %v1316
      %v1318 = vpop.xlane.xlu0 %1317
      %v1319 = vsel %vm1202, %v1285, 0.0
      %1320 = vadd.xlane.f32.xlu0 %v1319
      %v1321 = vpop.xlane.xlu0 %1320
      %v1322 = vsel %vm1202, %v1286, 0.0
      %1323 = vadd.xlane.f32.xlu0 %v1322
      %v1324 = vpop.xlane.xlu0 %1323
      %v1325 = vsel %vm1202, %v1287, 0.0
      %1326 = vadd.xlane.f32.xlu0 %v1325
      %v1327 = vpop.xlane.xlu0 %1326
      %v1328 = vsel %vm1242, %v1288, 0.0
      %1329 = vadd.xlane.f32.xlu0 %v1328
      %v1330 = vpop.xlane.xlu0 %1329
      %v1331 = vmul.f32 %v1291, %v1246
      %v1332 = vmul.f32 %v1294, %v1246
      %v1333 = vmul.f32 %v1297, %v1246
      %v1334 = vmul.f32 %v1300, %v1246
      %v1335 = vmul.f32 %v1303, %v1246
      %v1336 = vmul.f32 %v1306, %v1246
      %v1337 = vmul.f32 %v1309, %v1246
      %v1338 = vmul.f32 %v1312, %v1246
      %v1339 = vmul.f32 %v1315, %v1246
      %v1340 = vmul.f32 %v1318, %v1246
      %v1341 = vmul.f32 %v1321, %v1246
      %v1342 = vmul.f32 %v1324, %v1246
      %v1343 = vmul.f32 %v1327, %v1246
      %v1344 = vmul.f32 %v1330, %v1246
      %v1345 = vadd.f32 %v1331, 1e-05
      %v1346 = vadd.f32 %v1332, 1e-05
      %v1347 = vadd.f32 %v1333, 1e-05
      %v1348 = vadd.f32 %v1334, 1e-05
      %v1349 = vadd.f32 %v1335, 1e-05
      %v1350 = vadd.f32 %v1336, 1e-05
      %v1351 = vadd.f32 %v1337, 1e-05
      %v1352 = vadd.f32 %v1338, 1e-05
      %v1353 = vadd.f32 %v1339, 1e-05
      %v1354 = vadd.f32 %v1340, 1e-05
      %v1355 = vadd.f32 %v1341, 1e-05
      %v1356 = vadd.f32 %v1342, 1e-05
      %v1357 = vadd.f32 %v1343, 1e-05
      %v1358 = vadd.f32 %v1344, 1e-05
      %v1359 = vrsqrt.pop %v1345
      %v1360 = vrsqrt.pop %v1346
      %v1361 = vrsqrt.pop %v1347
      %v1362 = vrsqrt.pop %v1348
      %v1363 = vrsqrt.pop %v1349
      %v1364 = vrsqrt.pop %v1350
      %v1365 = vrsqrt.pop %v1351
      %v1366 = vrsqrt.pop %v1352
      %v1367 = vrsqrt.pop %v1353
      %v1368 = vrsqrt.pop %v1354
      %v1369 = vrsqrt.pop %v1355
      %v1370 = vrsqrt.pop %v1356
      %v1371 = vrsqrt.pop %v1357
      %v1372 = vrsqrt.pop %v1358
      %v1373 = vmul.f32 %v1261, %v1359
      %v1374 = vmul.f32 %v1262, %v1360
      %v1375 = vmul.f32 %v1263, %v1361
      %v1376 = vmul.f32 %v1264, %v1362
      %v1377 = vmul.f32 %v1265, %v1363
      %v1378 = vmul.f32 %v1266, %v1364
      %v1379 = vmul.f32 %v1267, %v1365
      %v1380 = vmul.f32 %v1268, %v1366
      %v1381 = vmul.f32 %v1269, %v1367
      %v1382 = vmul.f32 %v1270, %v1368
      %v1383 = vmul.f32 %v1271, %v1369
      %v1384 = vmul.f32 %v1272, %v1370
      %v1385 = vmul.f32 %v1273, %v1371
      %v1386 = vmul.f32 %v1274, %v1372
      %v1388 = vlaneseq
      %v1389 = vshrl.u32 %v1388, 7
      %v1390 = vsub.s32 0, %v1389
      %v1391 = vrot.slane %v1200, %v1390
      %v1393 = vmul.f32 %v1373, %v1391
      %v1394 = vmul.f32 %v1374, %v1391
      %v1395 = vmul.f32 %v1375, %v1391
      %v1396 = vmul.f32 %v1376, %v1391
      %v1397 = vmul.f32 %v1377, %v1391
      %v1398 = vmul.f32 %v1378, %v1391
      %v1399 = vmul.f32 %v1379, %v1391
      %v1400 = vmul.f32 %v1380, %v1391
      %v1401 = vmul.f32 %v1381, %v1391
      %v1402 = vmul.f32 %v1382, %v1391
      %v1403 = vmul.f32 %v1383, %v1391
      %v1404 = vmul.f32 %v1384, %v1391
      %v1405 = vmul.f32 %v1385, %v1391
      %v1406 = vmul.f32 %v1386, %v1391
      %v1408 = vlaneseq
      %v1409 = vshrl.u32 %v1408, 7
      %v1410 = vsub.s32 0, %v1409
      %v1411 = vrot.slane %v1201, %v1410
      %v1413 = vadd.f32 %v1393, %v1411
      %v1414 = vadd.f32 %v1394, %v1411
      %v1415 = vadd.f32 %v1395, %v1411
      %v1416 = vadd.f32 %v1396, %v1411
      %v1417 = vadd.f32 %v1397, %v1411
      %v1418 = vadd.f32 %v1398, %v1411
      %v1419 = vadd.f32 %v1399, %v1411
      %v1420 = vadd.f32 %v1400, %v1411
      %v1421 = vadd.f32 %v1401, %v1411
      %v1422 = vadd.f32 %v1402, %v1411
      %v1423 = vadd.f32 %v1403, %v1411
      %v1424 = vadd.f32 %v1404, %v1411
      %v1425 = vadd.f32 %v1405, %v1411
      %v1426 = vadd.f32 %v1406, %v1411
      %v1427 = vpack.c.bf16 %v1414, %v1413
      %v1428 = vpack.c.bf16 %v1416, %v1415
      %v1429 = vpack.c.bf16 %v1418, %v1417
      %v1430 = vpack.c.bf16 %v1420, %v1419
      %v1431 = vpack.c.bf16 %v1422, %v1421
      %v1432 = vpack.c.bf16 %v1424, %v1423
      %v1433 = vpack.c.bf16 %v1426, %v1425
      %v1434 = vld [vmem:[%s5] sm:$0xf]
      %v1435 = vld [vmem:[%s5 + $0x4] sm:$0xf]
      %v1436 = vld [vmem:[%s5 + $0x8] sm:$0xf]
      %v1437 = vld [vmem:[%s5 + $0xc] sm:$0xf]
      %v1438 = vld [vmem:[%s6] sm:$0x1]
      %v1440 = vlaneseq
      %v1441 = vshrl.u32 %v1440, 7
      %v1442 = vsub.s32 0, %v1441
      %v1443 = vrot.slane %v1438, %v1442
      %v1449 = vunpack.c.l.b16 %v1434
      %v1450 = vunpack.c.l.b16 %v1435
      %v1451 = vunpack.c.l.b16 %v1436
      %v1452 = vunpack.c.l.b16 %v1437
      %v1453 = vpack.c.b16 %v1450, %v1449
      %v1454 = vpack.c.b16 %v1452, %v1451
      %v1458 = vsel %vm1202, %v1427, 0
      %v1461 = vsel %vm1202, %v1428, 0
      %v1464 = vsel %vm1202, %v1429, 0
      %v1467 = vsel %vm1202, %v1430, 0
      %v1470 = vsel %vm1202, %v1431, 0
      %v1473 = vsel %vm1202, %v1432, 0
      %v1476 = vsel %vm1202, %v1433, 0
      %1478 = vmatprep.subr.bf16.mxu0 0
      %1479 = vmatpush1.bf16.msra.mxu0 %v1453
      %1480 = vmatprep.subr.bf16.mxu0 0
      %1481 = vmatpush1.bf16.msra.mxu0 %v1454
      %1482 = vmatprep.subr.bf16.mxu0 0
      %1483 = vmatpush1.bf16.msra.mxu0 0
      %1484 = vmatprep.subr.bf16.mxu0 0
      %1485 = vmatpush1.bf16.msra.mxu0 0
      %1486 = vmatprep.subr.bf16.mxu0 0
      %1487 = vmatpush1.bf16.msra.mxu0 0
      %1488 = vmatprep.subr.bf16.mxu0 0
      %1489 = vmatpush1.bf16.msra.mxu0 0
      %1490 = vmatprep.subr.bf16.mxu0 0
      %1491 = vmatpush1.bf16.msra.mxu0 0
      %1492 = vmatprep.subr.bf16.mxu0 0
      %1493 = vmatpush1.bf16.msra.mxu0 0
      %1494 = vmatprep.subr.bf16.mxu0 0
      %1495 = vmatpush1.bf16.msra.mxu0 0
      %1496 = vmatprep.subr.bf16.mxu0 0
      %1497 = vmatpush1.bf16.msra.mxu0 0
      %1498 = vmatprep.subr.bf16.mxu0 0
      %1499 = vmatpush1.bf16.msra.mxu0 0
      %1500 = vmatprep.subr.bf16.mxu0 0
      %1501 = vmatpush1.bf16.msra.mxu0 0
      %1502 = vmatprep.subr.bf16.mxu0 0
      %1503 = vmatpush1.bf16.msra.mxu0 0
      %1504 = vmatprep.subr.bf16.mxu0 0
      %1505 = vmatpush1.bf16.msra.mxu0 0
      %1506 = vmatprep.subr.bf16.mxu0 0
      %1507 = vmatpush1.bf16.msra.mxu0 0
      %1508 = vmatprep.subr.bf16.mxu0 0
      %1509 = vmatpush1.bf16.msra.mxu0 0
      %1510 = vmatprep.mubr.bf16.mxu0 0
      %1511 = vmatmul.mubr.bf16.gmra.mrb[0].mxu0 %v1458
      %v1512 = vpop.f32.mrb[0].mxu0
      %v1513 = vadd.f32 %v1443, %v1512
      %v1514 = vpop.f32.mrb[0].mxu0
      %v1515 = vpop.f32.mrb[0].mxu0
      %v1516 = vadd.f32 %v1443, %v1515
      %v1517 = vpop.f32.mrb[0].mxu0
      %1518 = vmatprep.mubr.bf16.mxu0 0
      %1519 = vmatmul.mubr.bf16.gmra.mrb[0].mxu0 %v1461
      %v1520 = vpop.f32.mrb[0].mxu0
      %v1521 = vadd.f32 %v1443, %v1520
      %v1522 = vpop.f32.mrb[0].mxu0
      %v1523 = vpop.f32.mrb[0].mxu0
      %v1524 = vadd.f32 %v1443, %v1523
      %v1525 = vpop.f32.mrb[0].mxu0
      %1526 = vmatprep.mubr.bf16.mxu0 0
      %1527 = vmatmul.mubr.bf16.gmra.mrb[0].mxu0 %v1464
      %v1528 = vpop.f32.mrb[0].mxu0
      %v1529 = vadd.f32 %v1443, %v1528
      %v1530 = vpop.f32.mrb[0].mxu0
      %v1531 = vpop.f32.mrb[0].mxu0
      %v1532 = vadd.f32 %v1443, %v1531
      %v1533 = vpop.f32.mrb[0].mxu0
      %1534 = vmatprep.mubr.bf16.mxu0 0
      %1535 = vmatmul.mubr.bf16.gmra.mrb[0].mxu0 %v1467
      %v1536 = vpop.f32.mrb[0].mxu0
      %v1537 = vadd.f32 %v1443, %v1536
      %v1538 = vpop.f32.mrb[0].mxu0
      %v1539 = vpop.f32.mrb[0].mxu0
      %v1540 = vadd.f32 %v1443, %v1539
      %v1541 = vpop.f32.mrb[0].mxu0
      %1542 = vmatprep.mubr.bf16.mxu0 0
      %1543 = vmatmul.mubr.bf16.gmra.mrb[0].mxu0 %v1470
      %v1544 = vpop.f32.mrb[0].mxu0
      %v1545 = vadd.f32 %v1443, %v1544
      %v1546 = vpop.f32.mrb[0].mxu0
      %v1547 = vpop.f32.mrb[0].mxu0
      %v1548 = vadd.f32 %v1443, %v1547
      %v1549 = vpop.f32.mrb[0].mxu0
      %1550 = vmatprep.mubr.bf16.mxu0 0
      %1551 = vmatmul.mubr.bf16.gmra.mrb[0].mxu0 %v1473
      %v1552 = vpop.f32.mrb[0].mxu0
      %v1553 = vadd.f32 %v1443, %v1552
      %v1554 = vpop.f32.mrb[0].mxu0
      %v1555 = vpop.f32.mrb[0].mxu0
      %v1556 = vadd.f32 %v1443, %v1555
      %v1557 = vpop.f32.mrb[0].mxu0
      %1558 = vmatprep.mubr.bf16.mxu0 0
      %1559 = vmatmul.mubr.bf16.gmra.mrb[0].mxu0 %v1476
      %v1560 = vpop.f32.mrb[0].mxu0
      %v1561 = vadd.f32 %v1443, %v1560
      %v1562 = vpop.f32.mrb[0].mxu0
      %v1563 = vpop.f32.mrb[0].mxu0
      %v1564 = vadd.f32 %v1443, %v1563
      %v1565 = vpop.f32.mrb[0].mxu0
      %1566 = vdwg.mxu0
      %v1567 = vpack.c.bf16 %v1516, %v1513
      %v1568 = vpack.c.bf16 %v1524, %v1521
      %v1569 = vpack.c.bf16 %v1532, %v1529
      %v1570 = vpack.c.bf16 %v1540, %v1537
      %v1571 = vpack.c.bf16 %v1548, %v1545
      %v1572 = vpack.c.bf16 %v1556, %v1553
      %v1573 = vpack.c.bf16 %v1564, %v1561
      %1581 = vrot.lane.b32.xlu0 %v1567, 96
      %v1582 = vpop.permute.xlu0 %1581
      %1583 = vrot.lane.b32.xlu0 %v1568, 96
      %v1584 = vpop.permute.xlu0 %1583
      %1585 = vrot.lane.b32.xlu0 %v1569, 96
      %v1586 = vpop.permute.xlu0 %1585
      %1587 = vrot.lane.b32.xlu0 %v1570, 96
      %v1588 = vpop.permute.xlu0 %1587
      %1589 = vrot.lane.b32.xlu0 %v1571, 96
      %v1590 = vpop.permute.xlu0 %1589
      %1591 = vrot.lane.b32.xlu0 %v1572, 96
      %v1592 = vpop.permute.xlu0 %1591
      %1593 = vrot.lane.b32.xlu0 %v1573, 96
      %v1594 = vpop.permute.xlu0 %1593
      %vm1595 = vcmask 64512
      %v1597 = vsel %vm1595, %v1567, 0
      %v1600 = vsel %vm1595, %v1568, 0
      %v1603 = vsel %vm1595, %v1569, 0
      %v1606 = vsel %vm1595, %v1570, 0
      %v1609 = vsel %vm1595, %v1571, 0
      %v1612 = vsel %vm1595, %v1572, 0
      %v1615 = vsel %vm1595, %v1573, 0
      %v1618 = vsel %vm1595, %v1582, 0
      %v1621 = vsel %vm1595, %v1584, 0
      %v1624 = vsel %vm1595, %v1586, 0
      %v1627 = vsel %vm1595, %v1588, 0
      %v1630 = vsel %vm1595, %v1590, 0
      %v1633 = vsel %vm1595, %v1592, 0
      %v1636 = vsel %vm1595, %v1594, 0
      %1638 = vmatprep.subr.bf16.mxu0 0
      %1639 = vmatpush1.bf16.xpose.msra.mxu0 %v1618
      %1640 = vmatprep.subr.bf16.mxu0 0
      %1641 = vmatpush1.bf16.xpose.msra.mxu0 %v1621
      %1642 = vmatprep.subr.bf16.mxu0 0
      %1643 = vmatpush1.bf16.xpose.msra.mxu0 %v1624
      %1644 = vmatprep.subr.bf16.mxu0 0
      %1645 = vmatpush1.bf16.xpose.msra.mxu0 %v1627
      %1646 = vmatprep.subr.bf16.mxu0 0
      %1647 = vmatpush1.bf16.xpose.msra.mxu0 %v1630
      %1648 = vmatprep.subr.bf16.mxu0 0
      %1649 = vmatpush1.bf16.xpose.msra.mxu0 %v1633
      %1650 = vmatprep.subr.bf16.mxu0 0
      %1651 = vmatpush1.bf16.xpose.msra.mxu0 %v1636
      %1652 = vmatprep.subr.bf16.mxu0 0
      %1653 = vmatpush1.bf16.xpose.msra.mxu0 0
      %1654 = vmatprep.subr.bf16.mxu0 0
      %1655 = vmatpush1.bf16.xpose.msra.mxu0 0
      %1656 = vmatprep.subr.bf16.mxu0 0
      %1657 = vmatpush1.bf16.xpose.msra.mxu0 0
      %1658 = vmatprep.subr.bf16.mxu0 0
      %1659 = vmatpush1.bf16.xpose.msra.mxu0 0
      %1660 = vmatprep.subr.bf16.mxu0 0
      %1661 = vmatpush1.bf16.xpose.msra.mxu0 0
      %1662 = vmatprep.subr.bf16.mxu0 0
      %1663 = vmatpush1.bf16.xpose.msra.mxu0 0
      %1664 = vmatprep.subr.bf16.mxu0 0
      %1665 = vmatpush1.bf16.xpose.msra.mxu0 0
      %1666 = vmatprep.subr.bf16.mxu0 0
      %1667 = vmatpush1.bf16.xpose.msra.mxu0 0
      %1668 = vmatprep.subr.bf16.mxu0 0
      %1669 = vmatpush1.bf16.xpose.msra.mxu0 0
      %1670 = vmatprep.mubr.bf16.mxu0 0
      %1671 = vmatmul.mubr.bf16.gmra.mrb[0].mxu0 %v1597
      %v1672 = vpop.f32.mrb[0].mxu0
      %v1673 = vadd.f32 %v753, %v1672
      %v1674 = vpop.f32.mrb[0].mxu0
      %v1675 = vpop.f32.mrb[0].mxu0
      %v1676 = vadd.f32 %v756, %v1675
      %v1677 = vpop.f32.mrb[0].mxu0
      %1678 = vmatprep.mubr.bf16.mxu0 0
      %1679 = vmatmul.mubr.bf16.gmra.mrb[0].mxu0 %v1600
      %v1680 = vpop.f32.mrb[0].mxu0
      %v1681 = vadd.f32 %v761, %v1680
      %v1682 = vpop.f32.mrb[0].mxu0
      %v1683 = vpop.f32.mrb[0].mxu0
      %v1684 = vadd.f32 %v764, %v1683
      %v1685 = vpop.f32.mrb[0].mxu0
      %1686 = vmatprep.mubr.bf16.mxu0 0
      %1687 = vmatmul.mubr.bf16.gmra.mrb[0].mxu0 %v1603
      %v1688 = vpop.f32.mrb[0].mxu0
      %v1689 = vadd.f32 %v769, %v1688
      %v1690 = vpop.f32.mrb[0].mxu0
      %v1691 = vpop.f32.mrb[0].mxu0
      %v1692 = vadd.f32 %v772, %v1691
      %v1693 = vpop.f32.mrb[0].mxu0
      %1694 = vmatprep.mubr.bf16.mxu0 0
      %1695 = vmatmul.mubr.bf16.gmra.mrb[0].mxu0 %v1606
      %v1696 = vpop.f32.mrb[0].mxu0
      %v1697 = vadd.f32 %v777, %v1696
      %v1698 = vpop.f32.mrb[0].mxu0
      %v1699 = vpop.f32.mrb[0].mxu0
      %v1700 = vadd.f32 %v780, %v1699
      %v1701 = vpop.f32.mrb[0].mxu0
      %1702 = vmatprep.mubr.bf16.mxu0 0
      %1703 = vmatmul.mubr.bf16.gmra.mrb[0].mxu0 %v1609
      %v1704 = vpop.f32.mrb[0].mxu0
      %v1705 = vadd.f32 %v785, %v1704
      %v1706 = vpop.f32.mrb[0].mxu0
      %v1707 = vpop.f32.mrb[0].mxu0
      %v1708 = vadd.f32 %v788, %v1707
      %v1709 = vpop.f32.mrb[0].mxu0
      %1710 = vmatprep.mubr.bf16.mxu0 0
      %1711 = vmatmul.mubr.bf16.gmra.mrb[0].mxu0 %v1612
      %v1712 = vpop.f32.mrb[0].mxu0
      %v1713 = vadd.f32 %v793, %v1712
      %v1714 = vpop.f32.mrb[0].mxu0
      %v1715 = vpop.f32.mrb[0].mxu0
      %v1716 = vadd.f32 %v796, %v1715
      %v1717 = vpop.f32.mrb[0].mxu0
      %1718 = vmatprep.mubr.bf16.mxu0 0
      %1719 = vmatmul.mubr.bf16.gmra.mrb[0].mxu0 %v1615
      %v1720 = vpop.f32.mrb[0].mxu0
      %v1721 = vadd.f32 %v801, %v1720
      %v1722 = vpop.f32.mrb[0].mxu0
      %v1723 = vpop.f32.mrb[0].mxu0
      %v1724 = vadd.f32 %v804, %v1723
      %v1725 = vpop.f32.mrb[0].mxu0
      %1726 = vdwg.mxu0
      %vm1727 = vcmask 883712
      %v1728 = vsel %vm1727, %v1673, -inf
      %1729 = vmax.xlane.f32.xlu0 %v1728
      %v1730 = vpop.xlane.xlu0 %1729
      %v1731 = vsel %vm1727, %v1676, -inf
      %1732 = vmax.xlane.f32.xlu0 %v1731
      %v1733 = vpop.xlane.xlu0 %1732
      %v1734 = vsel %vm1727, %v1681, -inf
      %1735 = vmax.xlane.f32.xlu0 %v1734
      %v1736 = vpop.xlane.xlu0 %1735
      %v1737 = vsel %vm1727, %v1684, -inf
      %1738 = vmax.xlane.f32.xlu0 %v1737
      %v1739 = vpop.xlane.xlu0 %1738
      %v1740 = vsel %vm1727, %v1689, -inf
      %1741 = vmax.xlane.f32.xlu0 %v1740
      %v1742 = vpop.xlane.xlu0 %1741
      %v1743 = vsel %vm1727, %v1692, -inf
      %1744 = vmax.xlane.f32.xlu0 %v1743
      %v1745 = vpop.xlane.xlu0 %1744
      %v1746 = vsel %vm1727, %v1697, -inf
      %1747 = vmax.xlane.f32.xlu0 %v1746
      %v1748 = vpop.xlane.xlu0 %1747
      %v1749 = vsel %vm1727, %v1700, -inf
      %1750 = vmax.xlane.f32.xlu0 %v1749
      %v1751 = vpop.xlane.xlu0 %1750
      %v1752 = vsel %vm1727, %v1705, -inf
      %1753 = vmax.xlane.f32.xlu0 %v1752
      %v1754 = vpop.xlane.xlu0 %1753
      %v1755 = vsel %vm1727, %v1708, -inf
      %1756 = vmax.xlane.f32.xlu0 %v1755
      %v1757 = vpop.xlane.xlu0 %1756
      %v1758 = vsel %vm1727, %v1713, -inf
      %1759 = vmax.xlane.f32.xlu0 %v1758
      %v1760 = vpop.xlane.xlu0 %1759
      %v1761 = vsel %vm1727, %v1716, -inf
      %1762 = vmax.xlane.f32.xlu0 %v1761
      %v1763 = vpop.xlane.xlu0 %1762
      %v1764 = vsel %vm1727, %v1721, -inf
      %1765 = vmax.xlane.f32.xlu0 %v1764
      %v1766 = vpop.xlane.xlu0 %1765
      %vm1767 = vcmask 879616
      %v1768 = vsel %vm1767, %v1724, -inf
      %1769 = vmax.xlane.f32.xlu0 %v1768
      %v1770 = vpop.xlane.xlu0 %1769
      %v1771 = vsub.f32 %v1673, %v1730
      %v1772 = vsub.f32 %v1676, %v1733
      %v1773 = vsub.f32 %v1681, %v1736
      %v1774 = vsub.f32 %v1684, %v1739
      %v1775 = vsub.f32 %v1689, %v1742
      %v1776 = vsub.f32 %v1692, %v1745
      %v1777 = vsub.f32 %v1697, %v1748
      %v1778 = vsub.f32 %v1700, %v1751
      %v1779 = vsub.f32 %v1705, %v1754
      %v1780 = vsub.f32 %v1708, %v1757
      %v1781 = vsub.f32 %v1713, %v1760
      %v1782 = vsub.f32 %v1716, %v1763
      %v1783 = vsub.f32 %v1721, %v1766
      %v1784 = vsub.f32 %v1724, %v1770
      %v1785 = vmul.f32 %v1771, 1.442695
      %v1786 = vpow.pop %v1785
      %v1787 = vmul.f32 %v1772, 1.442695
      %v1788 = vpow.pop %v1787
      %v1789 = vmul.f32 %v1773, 1.442695
      %v1790 = vpow.pop %v1789
      %v1791 = vmul.f32 %v1774, 1.442695
      %v1792 = vpow.pop %v1791
      %v1793 = vmul.f32 %v1775, 1.442695
      %v1794 = vpow.pop %v1793
      %v1795 = vmul.f32 %v1776, 1.442695
      %v1796 = vpow.pop %v1795
      %v1797 = vmul.f32 %v1777, 1.442695
      %v1798 = vpow.pop %v1797
      %v1799 = vmul.f32 %v1778, 1.442695
      %v1800 = vpow.pop %v1799
      %v1801 = vmul.f32 %v1779, 1.442695
      %v1802 = vpow.pop %v1801
      %v1803 = vmul.f32 %v1780, 1.442695
      %v1804 = vpow.pop %v1803
      %v1805 = vmul.f32 %v1781, 1.442695
      %v1806 = vpow.pop %v1805
      %v1807 = vmul.f32 %v1782, 1.442695
      %v1808 = vpow.pop %v1807
      %v1809 = vmul.f32 %v1783, 1.442695
      %v1810 = vpow.pop %v1809
      %v1811 = vmul.f32 %v1784, 1.442695
      %v1812 = vpow.pop %v1811
      %v1813 = vsel %vm1727, %v1786, 0.0
      %1814 = vadd.xlane.f32.xlu0 %v1813
      %v1815 = vpop.xlane.xlu0 %1814
      %v1816 = vsel %vm1727, %v1788, 0.0
      %1817 = vadd.xlane.f32.xlu0 %v1816
      %v1818 = vpop.xlane.xlu0 %1817
      %v1819 = vsel %vm1727, %v1790, 0.0
      %1820 = vadd.xlane.f32.xlu0 %v1819
      %v1821 = vpop.xlane.xlu0 %1820
      %v1822 = vsel %vm1727, %v1792, 0.0
      %1823 = vadd.xlane.f32.xlu0 %v1822
      %v1824 = vpop.xlane.xlu0 %1823
      %v1825 = vsel %vm1727, %v1794, 0.0
      %1826 = vadd.xlane.f32.xlu0 %v1825
      %v1827 = vpop.xlane.xlu0 %1826
      %v1828 = vsel %vm1727, %v1796, 0.0
      %1829 = vadd.xlane.f32.xlu0 %v1828
      %v1830 = vpop.xlane.xlu0 %1829
      %v1831 = vsel %vm1727, %v1798, 0.0
      %1832 = vadd.xlane.f32.xlu0 %v1831
      %v1833 = vpop.xlane.xlu0 %1832
      %v1834 = vsel %vm1727, %v1800, 0.0
      %1835 = vadd.xlane.f32.xlu0 %v1834
      %v1836 = vpop.xlane.xlu0 %1835
      %v1837 = vsel %vm1727, %v1802, 0.0
      %1838 = vadd.xlane.f32.xlu0 %v1837
      %v1839 = vpop.xlane.xlu0 %1838
      %v1840 = vsel %vm1727, %v1804, 0.0
      %1841 = vadd.xlane.f32.xlu0 %v1840
      %v1842 = vpop.xlane.xlu0 %1841
      %v1843 = vsel %vm1727, %v1806, 0.0
      %1844 = vadd.xlane.f32.xlu0 %v1843
      %v1845 = vpop.xlane.xlu0 %1844
      %v1846 = vsel %vm1727, %v1808, 0.0
      %1847 = vadd.xlane.f32.xlu0 %v1846
      %v1848 = vpop.xlane.xlu0 %1847
      %v1849 = vsel %vm1727, %v1810, 0.0
      %1850 = vadd.xlane.f32.xlu0 %v1849
      %v1851 = vpop.xlane.xlu0 %1850
      %v1852 = vsel %vm1767, %v1812, 0.0
      %1853 = vadd.xlane.f32.xlu0 %v1852
      %v1854 = vpop.xlane.xlu0 %1853
      %v1855 = vrcp.pop %v1815
      %v1856 = vrcp.pop %v1818
      %v1857 = vrcp.pop %v1821
      %v1858 = vrcp.pop %v1824
      %v1859 = vrcp.pop %v1827
      %v1860 = vrcp.pop %v1830
      %v1861 = vrcp.pop %v1833
      %v1862 = vrcp.pop %v1836
      %v1863 = vrcp.pop %v1839
      %v1864 = vrcp.pop %v1842
      %v1865 = vrcp.pop %v1845
      %v1866 = vrcp.pop %v1848
      %v1867 = vrcp.pop %v1851
      %v1868 = vrcp.pop %v1854
      %v1869 = vmul.f32 %v1786, %v1855
      %v1870 = vmul.f32 %v1788, %v1856
      %v1871 = vmul.f32 %v1790, %v1857
      %v1872 = vmul.f32 %v1792, %v1858
      %v1873 = vmul.f32 %v1794, %v1859
      %v1874 = vmul.f32 %v1796, %v1860
      %v1875 = vmul.f32 %v1798, %v1861
      %v1876 = vmul.f32 %v1800, %v1862
      %v1877 = vmul.f32 %v1802, %v1863
      %v1878 = vmul.f32 %v1804, %v1864
      %v1879 = vmul.f32 %v1806, %v1865
      %v1880 = vmul.f32 %v1808, %v1866
      %v1881 = vmul.f32 %v1810, %v1867
      %v1882 = vmul.f32 %v1812, %v1868
      %v1883 = vpack.c.bf16 %v1870, %v1869
      %v1884 = vpack.c.bf16 %v1872, %v1871
      %v1885 = vpack.c.bf16 %v1874, %v1873
      %v1886 = vpack.c.bf16 %v1876, %v1875
      %v1887 = vpack.c.bf16 %v1878, %v1877
      %v1888 = vpack.c.bf16 %v1880, %v1879
      %v1889 = vpack.c.bf16 %v1882, %v1881
      %1890 = vrot.lane.b32.xlu0 %v1567, 64
      %v1891 = vpop.permute.xlu0 %1890
      %1892 = vrot.lane.b32.xlu0 %v1568, 64
      %v1893 = vpop.permute.xlu0 %1892
      %1894 = vrot.lane.b32.xlu0 %v1569, 64
      %v1895 = vpop.permute.xlu0 %1894
      %1896 = vrot.lane.b32.xlu0 %v1570, 64
      %v1897 = vpop.permute.xlu0 %1896
      %1898 = vrot.lane.b32.xlu0 %v1571, 64
      %v1899 = vpop.permute.xlu0 %1898
      %1900 = vrot.lane.b32.xlu0 %v1572, 64
      %v1901 = vpop.permute.xlu0 %1900
      %1902 = vrot.lane.b32.xlu0 %v1573, 64
      %v1903 = vpop.permute.xlu0 %1902
      %v1911 = vsel %vm1727, %v1883, 0
      %v1914 = vsel %vm1727, %v1884, 0
      %v1917 = vsel %vm1727, %v1885, 0
      %v1920 = vsel %vm1727, %v1886, 0
      %v1923 = vsel %vm1727, %v1887, 0
      %v1926 = vsel %vm1727, %v1888, 0
      %v1929 = vsel %vm1727, %v1889, 0
      %vm1931 = vcmask 1045504
      %v1933 = vsel %vm1931, %v1903, 0
      %1935 = vmatprep.subr.bf16.mxu0 0
      %1936 = vmatpush1.bf16.msra.mxu0 %v1891
      %1937 = vmatprep.subr.bf16.mxu0 0
      %1938 = vmatpush1.bf16.msra.mxu0 %v1893
      %1939 = vmatprep.subr.bf16.mxu0 0
      %1940 = vmatpush1.bf16.msra.mxu0 %v1895
      %1941 = vmatprep.subr.bf16.mxu0 0
      %1942 = vmatpush1.bf16.msra.mxu0 %v1897
      %1943 = vmatprep.subr.bf16.mxu0 0
      %1944 = vmatpush1.bf16.msra.mxu0 %v1899
      %1945 = vmatprep.subr.bf16.mxu0 0
      %1946 = vmatpush1.bf16.msra.mxu0 %v1901
      %1947 = vmatprep.subr.bf16.mxu0 0
      %1948 = vmatpush1.bf16.msra.mxu0 %v1933
      %1949 = vmatprep.subr.bf16.mxu0 0
      %1950 = vmatpush1.bf16.msra.mxu0 0
      %1951 = vmatprep.subr.bf16.mxu0 0
      %1952 = vmatpush1.bf16.msra.mxu0 0
      %1953 = vmatprep.subr.bf16.mxu0 0
      %1954 = vmatpush1.bf16.msra.mxu0 0
      %1955 = vmatprep.subr.bf16.mxu0 0
      %1956 = vmatpush1.bf16.msra.mxu0 0
      %1957 = vmatprep.subr.bf16.mxu0 0
      %1958 = vmatpush1.bf16.msra.mxu0 0
      %1959 = vmatprep.subr.bf16.mxu0 0
      %1960 = vmatpush1.bf16.msra.mxu0 0
      %1961 = vmatprep.subr.bf16.mxu0 0
      %1962 = vmatpush1.bf16.msra.mxu0 0
      %1963 = vmatprep.subr.bf16.mxu0 0
      %1964 = vmatpush1.bf16.msra.mxu0 0
      %1965 = vmatprep.subr.bf16.mxu0 0
      %1966 = vmatpush1.bf16.msra.mxu0 0
      %1967 = vmatprep.mubr.bf16.mxu0 0
      %1968 = vmatmul.mubr.bf16.gmra.mrb[0].mxu0 %v1911
      %v1969 = vpop.f32.mrb[0].mxu0
      %v1970 = vadd.f32 0.0, %v1969
      %v1971 = vpop.f32.mrb[0].mxu0
      %v1972 = vpop.f32.mrb[0].mxu0
      %v1973 = vadd.f32 0.0, %v1972
      %v1974 = vpop.f32.mrb[0].mxu0
      %1975 = vmatprep.mubr.bf16.mxu0 0
      %1976 = vmatmul.mubr.bf16.gmra.mrb[0].mxu0 %v1914
      %v1977 = vpop.f32.mrb[0].mxu0
      %v1978 = vadd.f32 0.0, %v1977
      %v1979 = vpop.f32.mrb[0].mxu0
      %v1980 = vpop.f32.mrb[0].mxu0
      %v1981 = vadd.f32 0.0, %v1980
      %v1982 = vpop.f32.mrb[0].mxu0
      %1983 = vmatprep.mubr.bf16.mxu0 0
      %1984 = vmatmul.mubr.bf16.gmra.mrb[0].mxu0 %v1917
      %v1985 = vpop.f32.mrb[0].mxu0
      %v1986 = vadd.f32 0.0, %v1985
      %v1987 = vpop.f32.mrb[0].mxu0
      %v1988 = vpop.f32.mrb[0].mxu0
      %v1989 = vadd.f32 0.0, %v1988
      %v1990 = vpop.f32.mrb[0].mxu0
      %1991 = vmatprep.mubr.bf16.mxu0 0
      %1992 = vmatmul.mubr.bf16.gmra.mrb[0].mxu0 %v1920
      %v1993 = vpop.f32.mrb[0].mxu0
      %v1994 = vadd.f32 0.0, %v1993
      %v1995 = vpop.f32.mrb[0].mxu0
      %v1996 = vpop.f32.mrb[0].mxu0
      %v1997 = vadd.f32 0.0, %v1996
      %v1998 = vpop.f32.mrb[0].mxu0
      %1999 = vmatprep.mubr.bf16.mxu0 0
      %2000 = vmatmul.mubr.bf16.gmra.mrb[0].mxu0 %v1923
      %v2001 = vpop.f32.mrb[0].mxu0
      %v2002 = vadd.f32 0.0, %v2001
      %v2003 = vpop.f32.mrb[0].mxu0
      %v2004 = vpop.f32.mrb[0].mxu0
      %v2005 = vadd.f32 0.0, %v2004
      %v2006 = vpop.f32.mrb[0].mxu0
      %2007 = vmatprep.mubr.bf16.mxu0 0
      %2008 = vmatmul.mubr.bf16.gmra.mrb[0].mxu0 %v1926
      %v2009 = vpop.f32.mrb[0].mxu0
      %v2010 = vadd.f32 0.0, %v2009
      %v2011 = vpop.f32.mrb[0].mxu0
      %v2012 = vpop.f32.mrb[0].mxu0
      %v2013 = vadd.f32 0.0, %v2012
      %v2014 = vpop.f32.mrb[0].mxu0
      %2015 = vmatprep.mubr.bf16.mxu0 0
      %2016 = vmatmul.mubr.bf16.gmra.mrb[0].mxu0 %v1929
      %v2017 = vpop.f32.mrb[0].mxu0
      %v2018 = vadd.f32 0.0, %v2017
      %v2019 = vpop.f32.mrb[0].mxu0
      %v2020 = vpop.f32.mrb[0].mxu0
      %v2021 = vadd.f32 0.0, %v2020
      %v2022 = vpop.f32.mrb[0].mxu0
      %2023 = vdwg.mxu0
      %2024 = vrot.lane.b32.xlu0 %v1567, 120
      %v2025 = vpop.permute.xlu0 %2024
      %2026 = vrot.lane.b32.xlu0 %v1568, 120
      %v2027 = vpop.permute.xlu0 %2026
      %2028 = vrot.lane.b32.xlu0 %v1569, 120
      %v2029 = vpop.permute.xlu0 %2028
      %2030 = vrot.lane.b32.xlu0 %v1570, 120
      %v2031 = vpop.permute.xlu0 %2030
      %2032 = vrot.lane.b32.xlu0 %v1571, 120
      %v2033 = vpop.permute.xlu0 %2032
      %2034 = vrot.lane.b32.xlu0 %v1572, 120
      %v2035 = vpop.permute.xlu0 %2034
      %2036 = vrot.lane.b32.xlu0 %v1573, 120
      %v2037 = vpop.permute.xlu0 %2036
      %2038 = vrot.lane.b32.xlu0 %v1567, 88
      %v2039 = vpop.permute.xlu0 %2038
      %2040 = vrot.lane.b32.xlu0 %v1568, 88
      %v2041 = vpop.permute.xlu0 %2040
      %2042 = vrot.lane.b32.xlu0 %v1569, 88
      %v2043 = vpop.permute.xlu0 %2042
      %2044 = vrot.lane.b32.xlu0 %v1570, 88
      %v2045 = vpop.permute.xlu0 %2044
      %2046 = vrot.lane.b32.xlu0 %v1571, 88
      %v2047 = vpop.permute.xlu0 %2046
      %2048 = vrot.lane.b32.xlu0 %v1572, 88
      %v2049 = vpop.permute.xlu0 %2048
      %2050 = vrot.lane.b32.xlu0 %v1573, 88
      %v2051 = vpop.permute.xlu0 %2050
      %v2053 = vsel %vm1595, %v2025, 0
      %v2056 = vsel %vm1595, %v2027, 0
      %v2059 = vsel %vm1595, %v2029, 0
      %v2062 = vsel %vm1595, %v2031, 0
      %v2065 = vsel %vm1595, %v2033, 0
      %v2068 = vsel %vm1595, %v2035, 0
      %v2071 = vsel %vm1595, %v2037, 0
      %v2074 = vsel %vm1595, %v2039, 0
      %v2077 = vsel %vm1595, %v2041, 0
      %v2080 = vsel %vm1595, %v2043, 0
      %v2083 = vsel %vm1595, %v2045, 0
      %v2086 = vsel %vm1595, %v2047, 0
      %v2089 = vsel %vm1595, %v2049, 0
      %v2092 = vsel %vm1595, %v2051, 0
      %2094 = vmatprep.subr.bf16.mxu0 0
      %2095 = vmatpush1.bf16.xpose.msra.mxu0 %v2074
      %2096 = vmatprep.subr.bf16.mxu0 0
      %2097 = vmatpush1.bf16.xpose.msra.mxu0 %v2077
      %2098 = vmatprep.subr.bf16.mxu0 0
      %2099 = vmatpush1.bf16.xpose.msra.mxu0 %v2080
      %2100 = vmatprep.subr.bf16.mxu0 0
      %2101 = vmatpush1.bf16.xpose.msra.mxu0 %v2083
      %2102 = vmatprep.subr.bf16.mxu0 0
      %2103 = vmatpush1.bf16.xpose.msra.mxu0 %v2086
      %2104 = vmatprep.subr.bf16.mxu0 0
      %2105 = vmatpush1.bf16.xpose.msra.mxu0 %v2089
      %2106 = vmatprep.subr.bf16.mxu0 0
      %2107 = vmatpush1.bf16.xpose.msra.mxu0 %v2092
      %2108 = vmatprep.subr.bf16.mxu0 0
      %2109 = vmatpush1.bf16.xpose.msra.mxu0 0
      %2110 = vmatprep.subr.bf16.mxu0 0
      %2111 = vmatpush1.bf16.xpose.msra.mxu0 0
      %2112 = vmatprep.subr.bf16.mxu0 0
      %2113 = vmatpush1.bf16.xpose.msra.mxu0 0
      %2114 = vmatprep.subr.bf16.mxu0 0
      %2115 = vmatpush1.bf16.xpose.msra.mxu0 0
      %2116 = vmatprep.subr.bf16.mxu0 0
      %2117 = vmatpush1.bf16.xpose.msra.mxu0 0
      %2118 = vmatprep.subr.bf16.mxu0 0
      %2119 = vmatpush1.bf16.xpose.msra.mxu0 0
      %2120 = vmatprep.subr.bf16.mxu0 0
      %2121 = vmatpush1.bf16.xpose.msra.mxu0 0
      %2122 = vmatprep.subr.bf16.mxu0 0
      %2123 = vmatpush1.bf16.xpose.msra.mxu0 0
      %2124 = vmatprep.subr.bf16.mxu0 0
      %2125 = vmatpush1.bf16.xpose.msra.mxu0 0
      %2126 = vmatprep.mubr.bf16.mxu0 0
      %2127 = vmatmul.mubr.bf16.gmra.mrb[0].mxu0 %v2053
      %v2128 = vpop.f32.mrb[0].mxu0
      %v2129 = vadd.f32 %v884, %v2128
      %v2130 = vpop.f32.mrb[0].mxu0
      %v2131 = vpop.f32.mrb[0].mxu0
      %v2132 = vadd.f32 %v887, %v2131
      %v2133 = vpop.f32.mrb[0].mxu0
      %2134 = vmatprep.mubr.bf16.mxu0 0
      %2135 = vmatmul.mubr.bf16.gmra.mrb[0].mxu0 %v2056
      %v2136 = vpop.f32.mrb[0].mxu0
      %v2137 = vadd.f32 %v892, %v2136
      %v2138 = vpop.f32.mrb[0].mxu0
      %v2139 = vpop.f32.mrb[0].mxu0
      %v2140 = vadd.f32 %v895, %v2139
      %v2141 = vpop.f32.mrb[0].mxu0
      %2142 = vmatprep.mubr.bf16.mxu0 0
      %2143 = vmatmul.mubr.bf16.gmra.mrb[0].mxu0 %v2059
      %v2144 = vpop.f32.mrb[0].mxu0
      %v2145 = vadd.f32 %v900, %v2144
      %v2146 = vpop.f32.mrb[0].mxu0
      %v2147 = vpop.f32.mrb[0].mxu0
      %v2148 = vadd.f32 %v903, %v2147
      %v2149 = vpop.f32.mrb[0].mxu0
      %2150 = vmatprep.mubr.bf16.mxu0 0
      %2151 = vmatmul.mubr.bf16.gmra.mrb[0].mxu0 %v2062
      %v2152 = vpop.f32.mrb[0].mxu0
      %v2153 = vadd.f32 %v908, %v2152
      %v2154 = vpop.f32.mrb[0].mxu0
      %v2155 = vpop.f32.mrb[0].mxu0
      %v2156 = vadd.f32 %v911, %v2155
      %v2157 = vpop.f32.mrb[0].mxu0
      %2158 = vmatprep.mubr.bf16.mxu0 0
      %2159 = vmatmul.mubr.bf16.gmra.mrb[0].mxu0 %v2065
      %v2160 = vpop.f32.mrb[0].mxu0
      %v2161 = vadd.f32 %v916, %v2160
      %v2162 = vpop.f32.mrb[0].mxu0
      %v2163 = vpop.f32.mrb[0].mxu0
      %v2164 = vadd.f32 %v919, %v2163
      %v2165 = vpop.f32.mrb[0].mxu0
      %2166 = vmatprep.mubr.bf16.mxu0 0
      %2167 = vmatmul.mubr.bf16.gmra.mrb[0].mxu0 %v2068
      %v2168 = vpop.f32.mrb[0].mxu0
      %v2169 = vadd.f32 %v924, %v2168
      %v2170 = vpop.f32.mrb[0].mxu0
      %v2171 = vpop.f32.mrb[0].mxu0
      %v2172 = vadd.f32 %v927, %v2171
      %v2173 = vpop.f32.mrb[0].mxu0
      %2174 = vmatprep.mubr.bf16.mxu0 0
      %2175 = vmatmul.mubr.bf16.gmra.mrb[0].mxu0 %v2071
      %v2176 = vpop.f32.mrb[0].mxu0
      %v2177 = vadd.f32 %v932, %v2176
      %v2178 = vpop.f32.mrb[0].mxu0
      %v2179 = vpop.f32.mrb[0].mxu0
      %v2180 = vadd.f32 %v935, %v2179
      %v2181 = vpop.f32.mrb[0].mxu0
      %2182 = vdwg.mxu0
      %v2183 = vsel %vm1727, %v2129, -inf
      %2184 = vmax.xlane.f32.xlu0 %v2183
      %v2185 = vpop.xlane.xlu0 %2184
      %v2186 = vsel %vm1727, %v2132, -inf
      %2187 = vmax.xlane.f32.xlu0 %v2186
      %v2188 = vpop.xlane.xlu0 %2187
      %v2189 = vsel %vm1727, %v2137, -inf
      %2190 = vmax.xlane.f32.xlu0 %v2189
      %v2191 = vpop.xlane.xlu0 %2190
      %v2192 = vsel %vm1727, %v2140, -inf
      %2193 = vmax.xlane.f32.xlu0 %v2192
      %v2194 = vpop.xlane.xlu0 %2193
      %v2195 = vsel %vm1727, %v2145, -inf
      %2196 = vmax.xlane.f32.xlu0 %v2195
      %v2197 = vpop.xlane.xlu0 %2196
      %v2198 = vsel %vm1727, %v2148, -inf
      %2199 = vmax.xlane.f32.xlu0 %v2198
      %v2200 = vpop.xlane.xlu0 %2199
      %v2201 = vsel %vm1727, %v2153, -inf
      %2202 = vmax.xlane.f32.xlu0 %v2201
      %v2203 = vpop.xlane.xlu0 %2202
      %v2204 = vsel %vm1727, %v2156, -inf
      %2205 = vmax.xlane.f32.xlu0 %v2204
      %v2206 = vpop.xlane.xlu0 %2205
      %v2207 = vsel %vm1727, %v2161, -inf
      %2208 = vmax.xlane.f32.xlu0 %v2207
      %v2209 = vpop.xlane.xlu0 %2208
      %v2210 = vsel %vm1727, %v2164, -inf
      %2211 = vmax.xlane.f32.xlu0 %v2210
      %v2212 = vpop.xlane.xlu0 %2211
      %v2213 = vsel %vm1727, %v2169, -inf
      %2214 = vmax.xlane.f32.xlu0 %v2213
      %v2215 = vpop.xlane.xlu0 %2214
      %v2216 = vsel %vm1727, %v2172, -inf
      %2217 = vmax.xlane.f32.xlu0 %v2216
      %v2218 = vpop.xlane.xlu0 %2217
      %v2219 = vsel %vm1727, %v2177, -inf
      %2220 = vmax.xlane.f32.xlu0 %v2219
      %v2221 = vpop.xlane.xlu0 %2220
      %v2222 = vsel %vm1767, %v2180, -inf
      %2223 = vmax.xlane.f32.xlu0 %v2222
      %v2224 = vpop.xlane.xlu0 %2223
      %v2225 = vsub.f32 %v2129, %v2185
      %v2226 = vsub.f32 %v2132, %v2188
      %v2227 = vsub.f32 %v2137, %v2191
      %v2228 = vsub.f32 %v2140, %v2194
      %v2229 = vsub.f32 %v2145, %v2197
      %v2230 = vsub.f32 %v2148, %v2200
      %v2231 = vsub.f32 %v2153, %v2203
      %v2232 = vsub.f32 %v2156, %v2206
      %v2233 = vsub.f32 %v2161, %v2209
      %v2234 = vsub.f32 %v2164, %v2212
      %v2235 = vsub.f32 %v2169, %v2215
      %v2236 = vsub.f32 %v2172, %v2218
      %v2237 = vsub.f32 %v2177, %v2221
      %v2238 = vsub.f32 %v2180, %v2224
      %v2239 = vmul.f32 %v2225, 1.442695
      %v2240 = vpow.pop %v2239
      %v2241 = vmul.f32 %v2226, 1.442695
      %v2242 = vpow.pop %v2241
      %v2243 = vmul.f32 %v2227, 1.442695
      %v2244 = vpow.pop %v2243
      %v2245 = vmul.f32 %v2228, 1.442695
      %v2246 = vpow.pop %v2245
      %v2247 = vmul.f32 %v2229, 1.442695
      %v2248 = vpow.pop %v2247
      %v2249 = vmul.f32 %v2230, 1.442695
      %v2250 = vpow.pop %v2249
      %v2251 = vmul.f32 %v2231, 1.442695
      %v2252 = vpow.pop %v2251
      %v2253 = vmul.f32 %v2232, 1.442695
      %v2254 = vpow.pop %v2253
      %v2255 = vmul.f32 %v2233, 1.442695
      %v2256 = vpow.pop %v2255
      %v2257 = vmul.f32 %v2234, 1.442695
      %v2258 = vpow.pop %v2257
      %v2259 = vmul.f32 %v2235, 1.442695
      %v2260 = vpow.pop %v2259
      %v2261 = vmul.f32 %v2236, 1.442695
      %v2262 = vpow.pop %v2261
      %v2263 = vmul.f32 %v2237, 1.442695
      %v2264 = vpow.pop %v2263
      %v2265 = vmul.f32 %v2238, 1.442695
      %v2266 = vpow.pop %v2265
      %v2267 = vsel %vm1727, %v2240, 0.0
      %2268 = vadd.xlane.f32.xlu0 %v2267
      %v2269 = vpop.xlane.xlu0 %2268
      %v2270 = vsel %vm1727, %v2242, 0.0
      %2271 = vadd.xlane.f32.xlu0 %v2270
      %v2272 = vpop.xlane.xlu0 %2271
      %v2273 = vsel %vm1727, %v2244, 0.0
      %2274 = vadd.xlane.f32.xlu0 %v2273
      %v2275 = vpop.xlane.xlu0 %2274
      %v2276 = vsel %vm1727, %v2246, 0.0
      %2277 = vadd.xlane.f32.xlu0 %v2276
      %v2278 = vpop.xlane.xlu0 %2277
      %v2279 = vsel %vm1727, %v2248, 0.0
      %2280 = vadd.xlane.f32.xlu0 %v2279
      %v2281 = vpop.xlane.xlu0 %2280
      %v2282 = vsel %vm1727, %v2250, 0.0
      %2283 = vadd.xlane.f32.xlu0 %v2282
      %v2284 = vpop.xlane.xlu0 %2283
      %v2285 = vsel %vm1727, %v2252, 0.0
      %2286 = vadd.xlane.f32.xlu0 %v2285
      %v2287 = vpop.xlane.xlu0 %2286
      %v2288 = vsel %vm1727, %v2254, 0.0
      %2289 = vadd.xlane.f32.xlu0 %v2288
      %v2290 = vpop.xlane.xlu0 %2289
      %v2291 = vsel %vm1727, %v2256, 0.0
      %2292 = vadd.xlane.f32.xlu0 %v2291
      %v2293 = vpop.xlane.xlu0 %2292
      %v2294 = vsel %vm1727, %v2258, 0.0
      %2295 = vadd.xlane.f32.xlu0 %v2294
      %v2296 = vpop.xlane.xlu0 %2295
      %v2297 = vsel %vm1727, %v2260, 0.0
      %2298 = vadd.xlane.f32.xlu0 %v2297
      %v2299 = vpop.xlane.xlu0 %2298
      %v2300 = vsel %vm1727, %v2262, 0.0
      %2301 = vadd.xlane.f32.xlu0 %v2300
      %v2302 = vpop.xlane.xlu0 %2301
      %v2303 = vsel %vm1727, %v2264, 0.0
      %2304 = vadd.xlane.f32.xlu0 %v2303
      %v2305 = vpop.xlane.xlu0 %2304
      %v2306 = vsel %vm1767, %v2266, 0.0
      %2307 = vadd.xlane.f32.xlu0 %v2306
      %v2308 = vpop.xlane.xlu0 %2307
      %v2309 = vrcp.pop %v2269
      %v2310 = vrcp.pop %v2272
      %v2311 = vrcp.pop %v2275
      %v2312 = vrcp.pop %v2278
      %v2313 = vrcp.pop %v2281
      %v2314 = vrcp.pop %v2284
      %v2315 = vrcp.pop %v2287
      %v2316 = vrcp.pop %v2290
      %v2317 = vrcp.pop %v2293
      %v2318 = vrcp.pop %v2296
      %v2319 = vrcp.pop %v2299
      %v2320 = vrcp.pop %v2302
      %v2321 = vrcp.pop %v2305
      %v2322 = vrcp.pop %v2308
      %v2323 = vmul.f32 %v2240, %v2309
      %v2324 = vmul.f32 %v2242, %v2310
      %v2325 = vmul.f32 %v2244, %v2311
      %v2326 = vmul.f32 %v2246, %v2312
      %v2327 = vmul.f32 %v2248, %v2313
      %v2328 = vmul.f32 %v2250, %v2314
      %v2329 = vmul.f32 %v2252, %v2315
      %v2330 = vmul.f32 %v2254, %v2316
      %v2331 = vmul.f32 %v2256, %v2317
      %v2332 = vmul.f32 %v2258, %v2318
      %v2333 = vmul.f32 %v2260, %v2319
      %v2334 = vmul.f32 %v2262, %v2320
      %v2335 = vmul.f32 %v2264, %v2321
      %v2336 = vmul.f32 %v2266, %v2322
      %v2337 = vpack.c.bf16 %v2324, %v2323
      %v2338 = vpack.c.bf16 %v2326, %v2325
      %v2339 = vpack.c.bf16 %v2328, %v2327
      %v2340 = vpack.c.bf16 %v2330, %v2329
      %v2341 = vpack.c.bf16 %v2332, %v2331
      %v2342 = vpack.c.bf16 %v2334, %v2333
      %v2343 = vpack.c.bf16 %v2336, %v2335
      %2344 = vrot.lane.b32.xlu0 %v1567, 56
      %v2345 = vpop.permute.xlu0 %2344
      %2346 = vrot.lane.b32.xlu0 %v1568, 56
      %v2347 = vpop.permute.xlu0 %2346
      %2348 = vrot.lane.b32.xlu0 %v1569, 56
      %v2349 = vpop.permute.xlu0 %2348
      %2350 = vrot.lane.b32.xlu0 %v1570, 56
      %v2351 = vpop.permute.xlu0 %2350
      %2352 = vrot.lane.b32.xlu0 %v1571, 56
      %v2353 = vpop.permute.xlu0 %2352
      %2354 = vrot.lane.b32.xlu0 %v1572, 56
      %v2355 = vpop.permute.xlu0 %2354
      %2356 = vrot.lane.b32.xlu0 %v1573, 56
      %v2357 = vpop.permute.xlu0 %2356
      %v2365 = vsel %vm1727, %v2337, 0
      %v2368 = vsel %vm1727, %v2338, 0
      %v2371 = vsel %vm1727, %v2339, 0
      %v2374 = vsel %vm1727, %v2340, 0
      %v2377 = vsel %vm1727, %v2341, 0
      %v2380 = vsel %vm1727, %v2342, 0
      %v2383 = vsel %vm1727, %v2343, 0
      %v2386 = vsel %vm1931, %v2357, 0
      %2388 = vmatprep.subr.bf16.mxu0 0
      %2389 = vmatpush1.bf16.msra.mxu0 %v2345
      %2390 = vmatprep.subr.bf16.mxu0 0
      %2391 = vmatpush1.bf16.msra.mxu0 %v2347
      %2392 = vmatprep.subr.bf16.mxu0 0
      %2393 = vmatpush1.bf16.msra.mxu0 %v2349
      %2394 = vmatprep.subr.bf16.mxu0 0
      %2395 = vmatpush1.bf16.msra.mxu0 %v2351
      %2396 = vmatprep.subr.bf16.mxu0 0
      %2397 = vmatpush1.bf16.msra.mxu0 %v2353
      %2398 = vmatprep.subr.bf16.mxu0 0
      %2399 = vmatpush1.bf16.msra.mxu0 %v2355
      %2400 = vmatprep.subr.bf16.mxu0 0
      %2401 = vmatpush1.bf16.msra.mxu0 %v2386
      %2402 = vmatprep.subr.bf16.mxu0 0
      %2403 = vmatpush1.bf16.msra.mxu0 0
      %2404 = vmatprep.subr.bf16.mxu0 0
      %2405 = vmatpush1.bf16.msra.mxu0 0
      %2406 = vmatprep.subr.bf16.mxu0 0
      %2407 = vmatpush1.bf16.msra.mxu0 0
      %2408 = vmatprep.subr.bf16.mxu0 0
      %2409 = vmatpush1.bf16.msra.mxu0 0
      %2410 = vmatprep.subr.bf16.mxu0 0
      %2411 = vmatpush1.bf16.msra.mxu0 0
      %2412 = vmatprep.subr.bf16.mxu0 0
      %2413 = vmatpush1.bf16.msra.mxu0 0
      %2414 = vmatprep.subr.bf16.mxu0 0
      %2415 = vmatpush1.bf16.msra.mxu0 0
      %2416 = vmatprep.subr.bf16.mxu0 0
      %2417 = vmatpush1.bf16.msra.mxu0 0
      %2418 = vmatprep.subr.bf16.mxu0 0
      %2419 = vmatpush1.bf16.msra.mxu0 0
      %2420 = vmatprep.mubr.bf16.mxu0 0
      %2421 = vmatmul.mubr.bf16.gmra.mrb[0].mxu0 %v2365
      %v2422 = vpop.f32.mrb[0].mxu0
      %v2423 = vadd.f32 0.0, %v2422
      %v2424 = vpop.f32.mrb[0].mxu0
      %v2425 = vpop.f32.mrb[0].mxu0
      %v2426 = vadd.f32 0.0, %v2425
      %v2427 = vpop.f32.mrb[0].mxu0
      %2428 = vmatprep.mubr.bf16.mxu0 0
      %2429 = vmatmul.mubr.bf16.gmra.mrb[0].mxu0 %v2368
      %v2430 = vpop.f32.mrb[0].mxu0
      %v2431 = vadd.f32 0.0, %v2430
      %v2432 = vpop.f32.mrb[0].mxu0
      %v2433 = vpop.f32.mrb[0].mxu0
      %v2434 = vadd.f32 0.0, %v2433
      %v2435 = vpop.f32.mrb[0].mxu0
      %2436 = vmatprep.mubr.bf16.mxu0 0
      %2437 = vmatmul.mubr.bf16.gmra.mrb[0].mxu0 %v2371
      %v2438 = vpop.f32.mrb[0].mxu0
      %v2439 = vadd.f32 0.0, %v2438
      %v2440 = vpop.f32.mrb[0].mxu0
      %v2441 = vpop.f32.mrb[0].mxu0
      %v2442 = vadd.f32 0.0, %v2441
      %v2443 = vpop.f32.mrb[0].mxu0
      %2444 = vmatprep.mubr.bf16.mxu0 0
      %2445 = vmatmul.mubr.bf16.gmra.mrb[0].mxu0 %v2374
      %v2446 = vpop.f32.mrb[0].mxu0
      %v2447 = vadd.f32 0.0, %v2446
      %v2448 = vpop.f32.mrb[0].mxu0
      %v2449 = vpop.f32.mrb[0].mxu0
      %v2450 = vadd.f32 0.0, %v2449
      %v2451 = vpop.f32.mrb[0].mxu0
      %2452 = vmatprep.mubr.bf16.mxu0 0
      %2453 = vmatmul.mubr.bf16.gmra.mrb[0].mxu0 %v2377
      %v2454 = vpop.f32.mrb[0].mxu0
      %v2455 = vadd.f32 0.0, %v2454
      %v2456 = vpop.f32.mrb[0].mxu0
      %v2457 = vpop.f32.mrb[0].mxu0
      %v2458 = vadd.f32 0.0, %v2457
      %v2459 = vpop.f32.mrb[0].mxu0
      %2460 = vmatprep.mubr.bf16.mxu0 0
      %2461 = vmatmul.mubr.bf16.gmra.mrb[0].mxu0 %v2380
      %v2462 = vpop.f32.mrb[0].mxu0
      %v2463 = vadd.f32 0.0, %v2462
      %v2464 = vpop.f32.mrb[0].mxu0
      %v2465 = vpop.f32.mrb[0].mxu0
      %v2466 = vadd.f32 0.0, %v2465
      %v2467 = vpop.f32.mrb[0].mxu0
      %2468 = vmatprep.mubr.bf16.mxu0 0
      %2469 = vmatmul.mubr.bf16.gmra.mrb[0].mxu0 %v2383
      %v2470 = vpop.f32.mrb[0].mxu0
      %v2471 = vadd.f32 0.0, %v2470
      %v2472 = vpop.f32.mrb[0].mxu0
      %v2473 = vpop.f32.mrb[0].mxu0
      %v2474 = vadd.f32 0.0, %v2473
      %v2475 = vpop.f32.mrb[0].mxu0
      %2476 = vdwg.mxu0
      %2477 = vrot.lane.b32.xlu0 %v1567, 112
      %v2478 = vpop.permute.xlu0 %2477
      %2479 = vrot.lane.b32.xlu0 %v1568, 112
      %v2480 = vpop.permute.xlu0 %2479
      %2481 = vrot.lane.b32.xlu0 %v1569, 112
      %v2482 = vpop.permute.xlu0 %2481
      %2483 = vrot.lane.b32.xlu0 %v1570, 112
      %v2484 = vpop.permute.xlu0 %2483
      %2485 = vrot.lane.b32.xlu0 %v1571, 112
      %v2486 = vpop.permute.xlu0 %2485
      %2487 = vrot.lane.b32.xlu0 %v1572, 112
      %v2488 = vpop.permute.xlu0 %2487
      %2489 = vrot.lane.b32.xlu0 %v1573, 112
      %v2490 = vpop.permute.xlu0 %2489
      %2491 = vrot.lane.b32.xlu0 %v1567, 80
      %v2492 = vpop.permute.xlu0 %2491
      %2493 = vrot.lane.b32.xlu0 %v1568, 80
      %v2494 = vpop.permute.xlu0 %2493
      %2495 = vrot.lane.b32.xlu0 %v1569, 80
      %v2496 = vpop.permute.xlu0 %2495
      %2497 = vrot.lane.b32.xlu0 %v1570, 80
      %v2498 = vpop.permute.xlu0 %2497
      %2499 = vrot.lane.b32.xlu0 %v1571, 80
      %v2500 = vpop.permute.xlu0 %2499
      %2501 = vrot.lane.b32.xlu0 %v1572, 80
      %v2502 = vpop.permute.xlu0 %2501
      %2503 = vrot.lane.b32.xlu0 %v1573, 80
      %v2504 = vpop.permute.xlu0 %2503
      %v2506 = vsel %vm1595, %v2478, 0
      %v2509 = vsel %vm1595, %v2480, 0
      %v2512 = vsel %vm1595, %v2482, 0
      %v2515 = vsel %vm1595, %v2484, 0
      %v2518 = vsel %vm1595, %v2486, 0
      %v2521 = vsel %vm1595, %v2488, 0
      %v2524 = vsel %vm1595, %v2490, 0
      %v2527 = vsel %vm1595, %v2492, 0
      %v2530 = vsel %vm1595, %v2494, 0
      %v2533 = vsel %vm1595, %v2496, 0
      %v2536 = vsel %vm1595, %v2498, 0
      %v2539 = vsel %vm1595, %v2500, 0
      %v2542 = vsel %vm1595, %v2502, 0
      %v2545 = vsel %vm1595, %v2504, 0
      %2547 = vmatprep.subr.bf16.mxu0 0
      %2548 = vmatpush1.bf16.xpose.msra.mxu0 %v2527
      %2549 = vmatprep.subr.bf16.mxu0 0
      %2550 = vmatpush1.bf16.xpose.msra.mxu0 %v2530
      %2551 = vmatprep.subr.bf16.mxu0 0
      %2552 = vmatpush1.bf16.xpose.msra.mxu0 %v2533
      %2553 = vmatprep.subr.bf16.mxu0 0
      %2554 = vmatpush1.bf16.xpose.msra.mxu0 %v2536
      %2555 = vmatprep.subr.bf16.mxu0 0
      %2556 = vmatpush1.bf16.xpose.msra.mxu0 %v2539
      %2557 = vmatprep.subr.bf16.mxu0 0
      %2558 = vmatpush1.bf16.xpose.msra.mxu0 %v2542
      %2559 = vmatprep.subr.bf16.mxu0 0
      %2560 = vmatpush1.bf16.xpose.msra.mxu0 %v2545
      %2561 = vmatprep.subr.bf16.mxu0 0
      %2562 = vmatpush1.bf16.xpose.msra.mxu0 0
      %2563 = vmatprep.subr.bf16.mxu0 0
      %2564 = vmatpush1.bf16.xpose.msra.mxu0 0
      %2565 = vmatprep.subr.bf16.mxu0 0
      %2566 = vmatpush1.bf16.xpose.msra.mxu0 0
      %2567 = vmatprep.subr.bf16.mxu0 0
      %2568 = vmatpush1.bf16.xpose.msra.mxu0 0
      %2569 = vmatprep.subr.bf16.mxu0 0
      %2570 = vmatpush1.bf16.xpose.msra.mxu0 0
      %2571 = vmatprep.subr.bf16.mxu0 0
      %2572 = vmatpush1.bf16.xpose.msra.mxu0 0
      %2573 = vmatprep.subr.bf16.mxu0 0
      %2574 = vmatpush1.bf16.xpose.msra.mxu0 0
      %2575 = vmatprep.subr.bf16.mxu0 0
      %2576 = vmatpush1.bf16.xpose.msra.mxu0 0
      %2577 = vmatprep.subr.bf16.mxu0 0
      %2578 = vmatpush1.bf16.xpose.msra.mxu0 0
      %2579 = vmatprep.mubr.bf16.mxu0 0
      %2580 = vmatmul.mubr.bf16.gmra.mrb[0].mxu0 %v2506
      %v2581 = vpop.f32.mrb[0].mxu0
      %v2582 = vadd.f32 %v1008, %v2581
      %v2583 = vpop.f32.mrb[0].mxu0
      %v2584 = vpop.f32.mrb[0].mxu0
      %v2585 = vadd.f32 %v1011, %v2584
      %v2586 = vpop.f32.mrb[0].mxu0
      %2587 = vmatprep.mubr.bf16.mxu0 0
      %2588 = vmatmul.mubr.bf16.gmra.mrb[0].mxu0 %v2509
      %v2589 = vpop.f32.mrb[0].mxu0
      %v2590 = vadd.f32 %v1016, %v2589
      %v2591 = vpop.f32.mrb[0].mxu0
      %v2592 = vpop.f32.mrb[0].mxu0
      %v2593 = vadd.f32 %v1019, %v2592
      %v2594 = vpop.f32.mrb[0].mxu0
      %2595 = vmatprep.mubr.bf16.mxu0 0
      %2596 = vmatmul.mubr.bf16.gmra.mrb[0].mxu0 %v2512
      %v2597 = vpop.f32.mrb[0].mxu0
      %v2598 = vadd.f32 %v1024, %v2597
      %v2599 = vpop.f32.mrb[0].mxu0
      %v2600 = vpop.f32.mrb[0].mxu0
      %v2601 = vadd.f32 %v1027, %v2600
      %v2602 = vpop.f32.mrb[0].mxu0
      %2603 = vmatprep.mubr.bf16.mxu0 0
      %2604 = vmatmul.mubr.bf16.gmra.mrb[0].mxu0 %v2515
      %v2605 = vpop.f32.mrb[0].mxu0
      %v2606 = vadd.f32 %v1032, %v2605
      %v2607 = vpop.f32.mrb[0].mxu0
      %v2608 = vpop.f32.mrb[0].mxu0
      %v2609 = vadd.f32 %v1035, %v2608
      %v2610 = vpop.f32.mrb[0].mxu0
      %2611 = vmatprep.mubr.bf16.mxu0 0
      %2612 = vmatmul.mubr.bf16.gmra.mrb[0].mxu0 %v2518
      %v2613 = vpop.f32.mrb[0].mxu0
      %v2614 = vadd.f32 %v1040, %v2613
      %v2615 = vpop.f32.mrb[0].mxu0
      %v2616 = vpop.f32.mrb[0].mxu0
      %v2617 = vadd.f32 %v1043, %v2616
      %v2618 = vpop.f32.mrb[0].mxu0
      %2619 = vmatprep.mubr.bf16.mxu0 0
      %2620 = vmatmul.mubr.bf16.gmra.mrb[0].mxu0 %v2521
      %v2621 = vpop.f32.mrb[0].mxu0
      %v2622 = vadd.f32 %v1048, %v2621
      %v2623 = vpop.f32.mrb[0].mxu0
      %v2624 = vpop.f32.mrb[0].mxu0
      %v2625 = vadd.f32 %v1051, %v2624
      %v2626 = vpop.f32.mrb[0].mxu0
      %2627 = vmatprep.mubr.bf16.mxu0 0
      %2628 = vmatmul.mubr.bf16.gmra.mrb[0].mxu0 %v2524
      %v2629 = vpop.f32.mrb[0].mxu0
      %v2630 = vadd.f32 %v1056, %v2629
      %v2631 = vpop.f32.mrb[0].mxu0
      %v2632 = vpop.f32.mrb[0].mxu0
      %v2633 = vadd.f32 %v1059, %v2632
      %v2634 = vpop.f32.mrb[0].mxu0
      %2635 = vdwg.mxu0
      %v2636 = vsel %vm1727, %v2582, -inf
      %2637 = vmax.xlane.f32.xlu0 %v2636
      %v2638 = vpop.xlane.xlu0 %2637
      %v2639 = vsel %vm1727, %v2585, -inf
      %2640 = vmax.xlane.f32.xlu0 %v2639
      %v2641 = vpop.xlane.xlu0 %2640
      %v2642 = vsel %vm1727, %v2590, -inf
      %2643 = vmax.xlane.f32.xlu0 %v2642
      %v2644 = vpop.xlane.xlu0 %2643
      %v2645 = vsel %vm1727, %v2593, -inf
      %2646 = vmax.xlane.f32.xlu0 %v2645
      %v2647 = vpop.xlane.xlu0 %2646
      %v2648 = vsel %vm1727, %v2598, -inf
      %2649 = vmax.xlane.f32.xlu0 %v2648
      %v2650 = vpop.xlane.xlu0 %2649
      %v2651 = vsel %vm1727, %v2601, -inf
      %2652 = vmax.xlane.f32.xlu0 %v2651
      %v2653 = vpop.xlane.xlu0 %2652
      %v2654 = vsel %vm1727, %v2606, -inf
      %2655 = vmax.xlane.f32.xlu0 %v2654
      %v2656 = vpop.xlane.xlu0 %2655
      %v2657 = vsel %vm1727, %v2609, -inf
      %2658 = vmax.xlane.f32.xlu0 %v2657
      %v2659 = vpop.xlane.xlu0 %2658
      %v2660 = vsel %vm1727, %v2614, -inf
      %2661 = vmax.xlane.f32.xlu0 %v2660
      %v2662 = vpop.xlane.xlu0 %2661
      %v2663 = vsel %vm1727, %v2617, -inf
      %2664 = vmax.xlane.f32.xlu0 %v2663
      %v2665 = vpop.xlane.xlu0 %2664
      %v2666 = vsel %vm1727, %v2622, -inf
      %2667 = vmax.xlane.f32.xlu0 %v2666
      %v2668 = vpop.xlane.xlu0 %2667
      %v2669 = vsel %vm1727, %v2625, -inf
      %2670 = vmax.xlane.f32.xlu0 %v2669
      %v2671 = vpop.xlane.xlu0 %2670
      %v2672 = vsel %vm1727, %v2630, -inf
      %2673 = vmax.xlane.f32.xlu0 %v2672
      %v2674 = vpop.xlane.xlu0 %2673
      %v2675 = vsel %vm1767, %v2633, -inf
      %2676 = vmax.xlane.f32.xlu0 %v2675
      %v2677 = vpop.xlane.xlu0 %2676
      %v2678 = vsub.f32 %v2582, %v2638
      %v2679 = vsub.f32 %v2585, %v2641
      %v2680 = vsub.f32 %v2590, %v2644
      %v2681 = vsub.f32 %v2593, %v2647
      %v2682 = vsub.f32 %v2598, %v2650
      %v2683 = vsub.f32 %v2601, %v2653
      %v2684 = vsub.f32 %v2606, %v2656
      %v2685 = vsub.f32 %v2609, %v2659
      %v2686 = vsub.f32 %v2614, %v2662
      %v2687 = vsub.f32 %v2617, %v2665
      %v2688 = vsub.f32 %v2622, %v2668
      %v2689 = vsub.f32 %v2625, %v2671
      %v2690 = vsub.f32 %v2630, %v2674
      %v2691 = vsub.f32 %v2633, %v2677
      %v2692 = vmul.f32 %v2678, 1.442695
      %v2693 = vpow.pop %v2692
      %v2694 = vmul.f32 %v2679, 1.442695
      %v2695 = vpow.pop %v2694
      %v2696 = vmul.f32 %v2680, 1.442695
      %v2697 = vpow.pop %v2696
      %v2698 = vmul.f32 %v2681, 1.442695
      %v2699 = vpow.pop %v2698
      %v2700 = vmul.f32 %v2682, 1.442695
      %v2701 = vpow.pop %v2700
      %v2702 = vmul.f32 %v2683, 1.442695
      %v2703 = vpow.pop %v2702
      %v2704 = vmul.f32 %v2684, 1.442695
      %v2705 = vpow.pop %v2704
      %v2706 = vmul.f32 %v2685, 1.442695
      %v2707 = vpow.pop %v2706
      %v2708 = vmul.f32 %v2686, 1.442695
      %v2709 = vpow.pop %v2708
      %v2710 = vmul.f32 %v2687, 1.442695
      %v2711 = vpow.pop %v2710
      %v2712 = vmul.f32 %v2688, 1.442695
      %v2713 = vpow.pop %v2712
      %v2714 = vmul.f32 %v2689, 1.442695
      %v2715 = vpow.pop %v2714
      %v2716 = vmul.f32 %v2690, 1.442695
      %v2717 = vpow.pop %v2716
      %v2718 = vmul.f32 %v2691, 1.442695
      %v2719 = vpow.pop %v2718
      %v2720 = vsel %vm1727, %v2693, 0.0
      %2721 = vadd.xlane.f32.xlu0 %v2720
      %v2722 = vpop.xlane.xlu0 %2721
      %v2723 = vsel %vm1727, %v2695, 0.0
      %2724 = vadd.xlane.f32.xlu0 %v2723
      %v2725 = vpop.xlane.xlu0 %2724
      %v2726 = vsel %vm1727, %v2697, 0.0
      %2727 = vadd.xlane.f32.xlu0 %v2726
      %v2728 = vpop.xlane.xlu0 %2727
      %v2729 = vsel %vm1727, %v2699, 0.0
      %2730 = vadd.xlane.f32.xlu0 %v2729
      %v2731 = vpop.xlane.xlu0 %2730
      %v2732 = vsel %vm1727, %v2701, 0.0
      %2733 = vadd.xlane.f32.xlu0 %v2732
      %v2734 = vpop.xlane.xlu0 %2733
      %v2735 = vsel %vm1727, %v2703, 0.0
      %2736 = vadd.xlane.f32.xlu0 %v2735
      %v2737 = vpop.xlane.xlu0 %2736
      %v2738 = vsel %vm1727, %v2705, 0.0
      %2739 = vadd.xlane.f32.xlu0 %v2738
      %v2740 = vpop.xlane.xlu0 %2739
      %v2741 = vsel %vm1727, %v2707, 0.0
      %2742 = vadd.xlane.f32.xlu0 %v2741
      %v2743 = vpop.xlane.xlu0 %2742
      %v2744 = vsel %vm1727, %v2709, 0.0
      %2745 = vadd.xlane.f32.xlu0 %v2744
      %v2746 = vpop.xlane.xlu0 %2745
      %v2747 = vsel %vm1727, %v2711, 0.0
      %2748 = vadd.xlane.f32.xlu0 %v2747
      %v2749 = vpop.xlane.xlu0 %2748
      %v2750 = vsel %vm1727, %v2713, 0.0
      %2751 = vadd.xlane.f32.xlu0 %v2750
      %v2752 = vpop.xlane.xlu0 %2751
      %v2753 = vsel %vm1727, %v2715, 0.0
      %2754 = vadd.xlane.f32.xlu0 %v2753
      %v2755 = vpop.xlane.xlu0 %2754
      %v2756 = vsel %vm1727, %v2717, 0.0
      %2757 = vadd.xlane.f32.xlu0 %v2756
      %v2758 = vpop.xlane.xlu0 %2757
      %v2759 = vsel %vm1767, %v2719, 0.0
      %2760 = vadd.xlane.f32.xlu0 %v2759
      %v2761 = vpop.xlane.xlu0 %2760
      %v2762 = vrcp.pop %v2722
      %v2763 = vrcp.pop %v2725
      %v2764 = vrcp.pop %v2728
      %v2765 = vrcp.pop %v2731
      %v2766 = vrcp.pop %v2734
      %v2767 = vrcp.pop %v2737
      %v2768 = vrcp.pop %v2740
      %v2769 = vrcp.pop %v2743
      %v2770 = vrcp.pop %v2746
      %v2771 = vrcp.pop %v2749
      %v2772 = vrcp.pop %v2752
      %v2773 = vrcp.pop %v2755
      %v2774 = vrcp.pop %v2758
      %v2775 = vrcp.pop %v2761
      %v2776 = vmul.f32 %v2693, %v2762
      %v2777 = vmul.f32 %v2695, %v2763
      %v2778 = vmul.f32 %v2697, %v2764
      %v2779 = vmul.f32 %v2699, %v2765
      %v2780 = vmul.f32 %v2701, %v2766
      %v2781 = vmul.f32 %v2703, %v2767
      %v2782 = vmul.f32 %v2705, %v2768
      %v2783 = vmul.f32 %v2707, %v2769
      %v2784 = vmul.f32 %v2709, %v2770
      %v2785 = vmul.f32 %v2711, %v2771
      %v2786 = vmul.f32 %v2713, %v2772
      %v2787 = vmul.f32 %v2715, %v2773
      %v2788 = vmul.f32 %v2717, %v2774
      %v2789 = vmul.f32 %v2719, %v2775
      %v2790 = vpack.c.bf16 %v2777, %v2776
      %v2791 = vpack.c.bf16 %v2779, %v2778
      %v2792 = vpack.c.bf16 %v2781, %v2780
      %v2793 = vpack.c.bf16 %v2783, %v2782
      %v2794 = vpack.c.bf16 %v2785, %v2784
      %v2795 = vpack.c.bf16 %v2787, %v2786
      %v2796 = vpack.c.bf16 %v2789, %v2788
      %2797 = vrot.lane.b32.xlu0 %v1567, 48
      %v2798 = vpop.permute.xlu0 %2797
      %2799 = vrot.lane.b32.xlu0 %v1568, 48
      %v2800 = vpop.permute.xlu0 %2799
      %2801 = vrot.lane.b32.xlu0 %v1569, 48
      %v2802 = vpop.permute.xlu0 %2801
      %2803 = vrot.lane.b32.xlu0 %v1570, 48
      %v2804 = vpop.permute.xlu0 %2803
      %2805 = vrot.lane.b32.xlu0 %v1571, 48
      %v2806 = vpop.permute.xlu0 %2805
      %2807 = vrot.lane.b32.xlu0 %v1572, 48
      %v2808 = vpop.permute.xlu0 %2807
      %2809 = vrot.lane.b32.xlu0 %v1573, 48
      %v2810 = vpop.permute.xlu0 %2809
      %v2818 = vsel %vm1727, %v2790, 0
      %v2821 = vsel %vm1727, %v2791, 0
      %v2824 = vsel %vm1727, %v2792, 0
      %v2827 = vsel %vm1727, %v2793, 0
      %v2830 = vsel %vm1727, %v2794, 0
      %v2833 = vsel %vm1727, %v2795, 0
      %v2836 = vsel %vm1727, %v2796, 0
      %v2839 = vsel %vm1931, %v2810, 0
      %2841 = vmatprep.subr.bf16.mxu0 0
      %2842 = vmatpush1.bf16.msra.mxu0 %v2798
      %2843 = vmatprep.subr.bf16.mxu0 0
      %2844 = vmatpush1.bf16.msra.mxu0 %v2800
      %2845 = vmatprep.subr.bf16.mxu0 0
      %2846 = vmatpush1.bf16.msra.mxu0 %v2802
      %2847 = vmatprep.subr.bf16.mxu0 0
      %2848 = vmatpush1.bf16.msra.mxu0 %v2804
      %2849 = vmatprep.subr.bf16.mxu0 0
      %2850 = vmatpush1.bf16.msra.mxu0 %v2806
      %2851 = vmatprep.subr.bf16.mxu0 0
      %2852 = vmatpush1.bf16.msra.mxu0 %v2808
      %2853 = vmatprep.subr.bf16.mxu0 0
      %2854 = vmatpush1.bf16.msra.mxu0 %v2839
      %2855 = vmatprep.subr.bf16.mxu0 0
      %2856 = vmatpush1.bf16.msra.mxu0 0
      %2857 = vmatprep.subr.bf16.mxu0 0
      %2858 = vmatpush1.bf16.msra.mxu0 0
      %2859 = vmatprep.subr.bf16.mxu0 0
      %2860 = vmatpush1.bf16.msra.mxu0 0
      %2861 = vmatprep.subr.bf16.mxu0 0
      %2862 = vmatpush1.bf16.msra.mxu0 0
      %2863 = vmatprep.subr.bf16.mxu0 0
      %2864 = vmatpush1.bf16.msra.mxu0 0
      %2865 = vmatprep.subr.bf16.mxu0 0
      %2866 = vmatpush1.bf16.msra.mxu0 0
      %2867 = vmatprep.subr.bf16.mxu0 0
      %2868 = vmatpush1.bf16.msra.mxu0 0
      %2869 = vmatprep.subr.bf16.mxu0 0
      %2870 = vmatpush1.bf16.msra.mxu0 0
      %2871 = vmatprep.subr.bf16.mxu0 0
      %2872 = vmatpush1.bf16.msra.mxu0 0
      %2873 = vmatprep.mubr.bf16.mxu0 0
      %2874 = vmatmul.mubr.bf16.gmra.mrb[0].mxu0 %v2818
      %v2875 = vpop.f32.mrb[0].mxu0
      %v2876 = vadd.f32 0.0, %v2875
      %v2877 = vpop.f32.mrb[0].mxu0
      %v2878 = vpop.f32.mrb[0].mxu0
      %v2879 = vadd.f32 0.0, %v2878
      %v2880 = vpop.f32.mrb[0].mxu0
      %2881 = vmatprep.mubr.bf16.mxu0 0
      %2882 = vmatmul.mubr.bf16.gmra.mrb[0].mxu0 %v2821
      %v2883 = vpop.f32.mrb[0].mxu0
      %v2884 = vadd.f32 0.0, %v2883
      %v2885 = vpop.f32.mrb[0].mxu0
      %v2886 = vpop.f32.mrb[0].mxu0
      %v2887 = vadd.f32 0.0, %v2886
      %v2888 = vpop.f32.mrb[0].mxu0
      %2889 = vmatprep.mubr.bf16.mxu0 0
      %2890 = vmatmul.mubr.bf16.gmra.mrb[0].mxu0 %v2824
      %v2891 = vpop.f32.mrb[0].mxu0
      %v2892 = vadd.f32 0.0, %v2891
      %v2893 = vpop.f32.mrb[0].mxu0
      %v2894 = vpop.f32.mrb[0].mxu0
      %v2895 = vadd.f32 0.0, %v2894
      %v2896 = vpop.f32.mrb[0].mxu0
      %2897 = vmatprep.mubr.bf16.mxu0 0
      %2898 = vmatmul.mubr.bf16.gmra.mrb[0].mxu0 %v2827
      %v2899 = vpop.f32.mrb[0].mxu0
      %v2900 = vadd.f32 0.0, %v2899
      %v2901 = vpop.f32.mrb[0].mxu0
      %v2902 = vpop.f32.mrb[0].mxu0
      %v2903 = vadd.f32 0.0, %v2902
      %v2904 = vpop.f32.mrb[0].mxu0
      %2905 = vmatprep.mubr.bf16.mxu0 0
      %2906 = vmatmul.mubr.bf16.gmra.mrb[0].mxu0 %v2830
      %v2907 = vpop.f32.mrb[0].mxu0
      %v2908 = vadd.f32 0.0, %v2907
      %v2909 = vpop.f32.mrb[0].mxu0
      %v2910 = vpop.f32.mrb[0].mxu0
      %v2911 = vadd.f32 0.0, %v2910
      %v2912 = vpop.f32.mrb[0].mxu0
      %2913 = vmatprep.mubr.bf16.mxu0 0
      %2914 = vmatmul.mubr.bf16.gmra.mrb[0].mxu0 %v2833
      %v2915 = vpop.f32.mrb[0].mxu0
      %v2916 = vadd.f32 0.0, %v2915
      %v2917 = vpop.f32.mrb[0].mxu0
      %v2918 = vpop.f32.mrb[0].mxu0
      %v2919 = vadd.f32 0.0, %v2918
      %v2920 = vpop.f32.mrb[0].mxu0
      %2921 = vmatprep.mubr.bf16.mxu0 0
      %2922 = vmatmul.mubr.bf16.gmra.mrb[0].mxu0 %v2836
      %v2923 = vpop.f32.mrb[0].mxu0
      %v2924 = vadd.f32 0.0, %v2923
      %v2925 = vpop.f32.mrb[0].mxu0
      %v2926 = vpop.f32.mrb[0].mxu0
      %v2927 = vadd.f32 0.0, %v2926
      %v2928 = vpop.f32.mrb[0].mxu0
      %2929 = vdwg.mxu0
      %2930 = vrot.lane.b32.xlu0 %v1567, 104
      %v2931 = vpop.permute.xlu0 %2930
      %2932 = vrot.lane.b32.xlu0 %v1568, 104
      %v2933 = vpop.permute.xlu0 %2932
      %2934 = vrot.lane.b32.xlu0 %v1569, 104
      %v2935 = vpop.permute.xlu0 %2934
      %2936 = vrot.lane.b32.xlu0 %v1570, 104
      %v2937 = vpop.permute.xlu0 %2936
      %2938 = vrot.lane.b32.xlu0 %v1571, 104
      %v2939 = vpop.permute.xlu0 %2938
      %2940 = vrot.lane.b32.xlu0 %v1572, 104
      %v2941 = vpop.permute.xlu0 %2940
      %2942 = vrot.lane.b32.xlu0 %v1573, 104
      %v2943 = vpop.permute.xlu0 %2942
      %2944 = vrot.lane.b32.xlu0 %v1567, 72
      %v2945 = vpop.permute.xlu0 %2944
      %2946 = vrot.lane.b32.xlu0 %v1568, 72
      %v2947 = vpop.permute.xlu0 %2946
      %2948 = vrot.lane.b32.xlu0 %v1569, 72
      %v2949 = vpop.permute.xlu0 %2948
      %2950 = vrot.lane.b32.xlu0 %v1570, 72
      %v2951 = vpop.permute.xlu0 %2950
      %2952 = vrot.lane.b32.xlu0 %v1571, 72
      %v2953 = vpop.permute.xlu0 %2952
      %2954 = vrot.lane.b32.xlu0 %v1572, 72
      %v2955 = vpop.permute.xlu0 %2954
      %2956 = vrot.lane.b32.xlu0 %v1573, 72
      %v2957 = vpop.permute.xlu0 %2956
      %v2959 = vsel %vm1595, %v2931, 0
      %v2962 = vsel %vm1595, %v2933, 0
      %v2965 = vsel %vm1595, %v2935, 0
      %v2968 = vsel %vm1595, %v2937, 0
      %v2971 = vsel %vm1595, %v2939, 0
      %v2974 = vsel %vm1595, %v2941, 0
      %v2977 = vsel %vm1595, %v2943, 0
      %v2980 = vsel %vm1595, %v2945, 0
      %v2983 = vsel %vm1595, %v2947, 0
      %v2986 = vsel %vm1595, %v2949, 0
      %v2989 = vsel %vm1595, %v2951, 0
      %v2992 = vsel %vm1595, %v2953, 0
      %v2995 = vsel %vm1595, %v2955, 0
      %v2998 = vsel %vm1595, %v2957, 0
      %3000 = vmatprep.subr.bf16.mxu0 0
      %3001 = vmatpush1.bf16.xpose.msra.mxu0 %v2980
      %3002 = vmatprep.subr.bf16.mxu0 0
      %3003 = vmatpush1.bf16.xpose.msra.mxu0 %v2983
      %3004 = vmatprep.subr.bf16.mxu0 0
      %3005 = vmatpush1.bf16.xpose.msra.mxu0 %v2986
      %3006 = vmatprep.subr.bf16.mxu0 0
      %3007 = vmatpush1.bf16.xpose.msra.mxu0 %v2989
      %3008 = vmatprep.subr.bf16.mxu0 0
      %3009 = vmatpush1.bf16.xpose.msra.mxu0 %v2992
      %3010 = vmatprep.subr.bf16.mxu0 0
      %3011 = vmatpush1.bf16.xpose.msra.mxu0 %v2995
      %3012 = vmatprep.subr.bf16.mxu0 0
      %3013 = vmatpush1.bf16.xpose.msra.mxu0 %v2998
      %3014 = vmatprep.subr.bf16.mxu0 0
      %3015 = vmatpush1.bf16.xpose.msra.mxu0 0
      %3016 = vmatprep.subr.bf16.mxu0 0
      %3017 = vmatpush1.bf16.xpose.msra.mxu0 0
      %3018 = vmatprep.subr.bf16.mxu0 0
      %3019 = vmatpush1.bf16.xpose.msra.mxu0 0
      %3020 = vmatprep.subr.bf16.mxu0 0
      %3021 = vmatpush1.bf16.xpose.msra.mxu0 0
      %3022 = vmatprep.subr.bf16.mxu0 0
      %3023 = vmatpush1.bf16.xpose.msra.mxu0 0
      %3024 = vmatprep.subr.bf16.mxu0 0
      %3025 = vmatpush1.bf16.xpose.msra.mxu0 0
      %3026 = vmatprep.subr.bf16.mxu0 0
      %3027 = vmatpush1.bf16.xpose.msra.mxu0 0
      %3028 = vmatprep.subr.bf16.mxu0 0
      %3029 = vmatpush1.bf16.xpose.msra.mxu0 0
      %3030 = vmatprep.subr.bf16.mxu0 0
      %3031 = vmatpush1.bf16.xpose.msra.mxu0 0
      %3032 = vmatprep.mubr.bf16.mxu0 0
      %3033 = vmatmul.mubr.bf16.gmra.mrb[0].mxu0 %v2959
      %v3034 = vpop.f32.mrb[0].mxu0
      %v3035 = vadd.f32 %v1132, %v3034
      %v3036 = vpop.f32.mrb[0].mxu0
      %v3037 = vpop.f32.mrb[0].mxu0
      %v3038 = vadd.f32 %v1135, %v3037
      %v3039 = vpop.f32.mrb[0].mxu0
      %3040 = vmatprep.mubr.bf16.mxu0 0
      %3041 = vmatmul.mubr.bf16.gmra.mrb[0].mxu0 %v2962
      %v3042 = vpop.f32.mrb[0].mxu0
      %v3043 = vadd.f32 %v1140, %v3042
      %v3044 = vpop.f32.mrb[0].mxu0
      %v3045 = vpop.f32.mrb[0].mxu0
      %v3046 = vadd.f32 %v1143, %v3045
      %v3047 = vpop.f32.mrb[0].mxu0
      %3048 = vmatprep.mubr.bf16.mxu0 0
      %3049 = vmatmul.mubr.bf16.gmra.mrb[0].mxu0 %v2965
      %v3050 = vpop.f32.mrb[0].mxu0
      %v3051 = vadd.f32 %v1148, %v3050
      %v3052 = vpop.f32.mrb[0].mxu0
      %v3053 = vpop.f32.mrb[0].mxu0
      %v3054 = vadd.f32 %v1151, %v3053
      %v3055 = vpop.f32.mrb[0].mxu0
      %3056 = vmatprep.mubr.bf16.mxu0 0
      %3057 = vmatmul.mubr.bf16.gmra.mrb[0].mxu0 %v2968
      %v3058 = vpop.f32.mrb[0].mxu0
      %v3059 = vadd.f32 %v1156, %v3058
      %v3060 = vpop.f32.mrb[0].mxu0
      %v3061 = vpop.f32.mrb[0].mxu0
      %v3062 = vadd.f32 %v1159, %v3061
      %v3063 = vpop.f32.mrb[0].mxu0
      %3064 = vmatprep.mubr.bf16.mxu0 0
      %3065 = vmatmul.mubr.bf16.gmra.mrb[0].mxu0 %v2971
      %v3066 = vpop.f32.mrb[0].mxu0
      %v3067 = vadd.f32 %v1164, %v3066
      %v3068 = vpop.f32.mrb[0].mxu0
      %v3069 = vpop.f32.mrb[0].mxu0
      %v3070 = vadd.f32 %v1167, %v3069
      %v3071 = vpop.f32.mrb[0].mxu0
      %3072 = vmatprep.mubr.bf16.mxu0 0
      %3073 = vmatmul.mubr.bf16.gmra.mrb[0].mxu0 %v2974
      %v3074 = vpop.f32.mrb[0].mxu0
      %v3075 = vadd.f32 %v1172, %v3074
      %v3076 = vpop.f32.mrb[0].mxu0
      %v3077 = vpop.f32.mrb[0].mxu0
      %v3078 = vadd.f32 %v1175, %v3077
      %v3079 = vpop.f32.mrb[0].mxu0
      %3080 = vmatprep.mubr.bf16.mxu0 0
      %3081 = vmatmul.mubr.bf16.gmra.mrb[0].mxu0 %v2977
      %v3082 = vpop.f32.mrb[0].mxu0
      %v3083 = vadd.f32 %v1180, %v3082
      %v3084 = vpop.f32.mrb[0].mxu0
      %v3085 = vpop.f32.mrb[0].mxu0
      %v3086 = vadd.f32 %v1183, %v3085
      %v3087 = vpop.f32.mrb[0].mxu0
      %3088 = vdwg.mxu0
      %v3089 = vsel %vm1727, %v3035, -inf
      %3090 = vmax.xlane.f32.xlu0 %v3089
      %v3091 = vpop.xlane.xlu0 %3090
      %v3092 = vsel %vm1727, %v3038, -inf
      %3093 = vmax.xlane.f32.xlu0 %v3092
      %v3094 = vpop.xlane.xlu0 %3093
      %v3095 = vsel %vm1727, %v3043, -inf
      %3096 = vmax.xlane.f32.xlu0 %v3095
      %v3097 = vpop.xlane.xlu0 %3096
      %v3098 = vsel %vm1727, %v3046, -inf
      %3099 = vmax.xlane.f32.xlu0 %v3098
      %v3100 = vpop.xlane.xlu0 %3099
      %v3101 = vsel %vm1727, %v3051, -inf
      %3102 = vmax.xlane.f32.xlu0 %v3101
      %v3103 = vpop.xlane.xlu0 %3102
      %v3104 = vsel %vm1727, %v3054, -inf
      %3105 = vmax.xlane.f32.xlu0 %v3104
      %v3106 = vpop.xlane.xlu0 %3105
      %v3107 = vsel %vm1727, %v3059, -inf
      %3108 = vmax.xlane.f32.xlu0 %v3107
      %v3109 = vpop.xlane.xlu0 %3108
      %v3110 = vsel %vm1727, %v3062, -inf
      %3111 = vmax.xlane.f32.xlu0 %v3110
      %v3112 = vpop.xlane.xlu0 %3111
      %v3113 = vsel %vm1727, %v3067, -inf
      %3114 = vmax.xlane.f32.xlu0 %v3113
      %v3115 = vpop.xlane.xlu0 %3114
      %v3116 = vsel %vm1727, %v3070, -inf
      %3117 = vmax.xlane.f32.xlu0 %v3116
      %v3118 = vpop.xlane.xlu0 %3117
      %v3119 = vsel %vm1727, %v3075, -inf
      %3120 = vmax.xlane.f32.xlu0 %v3119
      %v3121 = vpop.xlane.xlu0 %3120
      %v3122 = vsel %vm1727, %v3078, -inf
      %3123 = vmax.xlane.f32.xlu0 %v3122
      %v3124 = vpop.xlane.xlu0 %3123
      %v3125 = vsel %vm1727, %v3083, -inf
      %3126 = vmax.xlane.f32.xlu0 %v3125
      %v3127 = vpop.xlane.xlu0 %3126
      %v3128 = vsel %vm1767, %v3086, -inf
      %3129 = vmax.xlane.f32.xlu0 %v3128
      %v3130 = vpop.xlane.xlu0 %3129
      %v3131 = vsub.f32 %v3035, %v3091
      %v3132 = vsub.f32 %v3038, %v3094
      %v3133 = vsub.f32 %v3043, %v3097
      %v3134 = vsub.f32 %v3046, %v3100
      %v3135 = vsub.f32 %v3051, %v3103
      %v3136 = vsub.f32 %v3054, %v3106
      %v3137 = vsub.f32 %v3059, %v3109
      %v3138 = vsub.f32 %v3062, %v3112
      %v3139 = vsub.f32 %v3067, %v3115
      %v3140 = vsub.f32 %v3070, %v3118
      %v3141 = vsub.f32 %v3075, %v3121
      %v3142 = vsub.f32 %v3078, %v3124
      %v3143 = vsub.f32 %v3083, %v3127
      %v3144 = vsub.f32 %v3086, %v3130
      %v3145 = vmul.f32 %v3131, 1.442695
      %v3146 = vpow.pop %v3145
      %v3147 = vmul.f32 %v3132, 1.442695
      %v3148 = vpow.pop %v3147
      %v3149 = vmul.f32 %v3133, 1.442695
      %v3150 = vpow.pop %v3149
      %v3151 = vmul.f32 %v3134, 1.442695
      %v3152 = vpow.pop %v3151
      %v3153 = vmul.f32 %v3135, 1.442695
      %v3154 = vpow.pop %v3153
      %v3155 = vmul.f32 %v3136, 1.442695
      %v3156 = vpow.pop %v3155
      %v3157 = vmul.f32 %v3137, 1.442695
      %v3158 = vpow.pop %v3157
      %v3159 = vmul.f32 %v3138, 1.442695
      %v3160 = vpow.pop %v3159
      %v3161 = vmul.f32 %v3139, 1.442695
      %v3162 = vpow.pop %v3161
      %v3163 = vmul.f32 %v3140, 1.442695
      %v3164 = vpow.pop %v3163
      %v3165 = vmul.f32 %v3141, 1.442695
      %v3166 = vpow.pop %v3165
      %v3167 = vmul.f32 %v3142, 1.442695
      %v3168 = vpow.pop %v3167
      %v3169 = vmul.f32 %v3143, 1.442695
      %v3170 = vpow.pop %v3169
      %v3171 = vmul.f32 %v3144, 1.442695
      %v3172 = vpow.pop %v3171
      %v3173 = vsel %vm1727, %v3146, 0.0
      %3174 = vadd.xlane.f32.xlu0 %v3173
      %v3175 = vpop.xlane.xlu0 %3174
      %v3176 = vsel %vm1727, %v3148, 0.0
      %3177 = vadd.xlane.f32.xlu0 %v3176
      %v3178 = vpop.xlane.xlu0 %3177
      %v3179 = vsel %vm1727, %v3150, 0.0
      %3180 = vadd.xlane.f32.xlu0 %v3179
      %v3181 = vpop.xlane.xlu0 %3180
      %v3182 = vsel %vm1727, %v3152, 0.0
      %3183 = vadd.xlane.f32.xlu0 %v3182
      %v3184 = vpop.xlane.xlu0 %3183
      %v3185 = vsel %vm1727, %v3154, 0.0
      %3186 = vadd.xlane.f32.xlu0 %v3185
      %v3187 = vpop.xlane.xlu0 %3186
      %v3188 = vsel %vm1727, %v3156, 0.0
      %3189 = vadd.xlane.f32.xlu0 %v3188
      %v3190 = vpop.xlane.xlu0 %3189
      %v3191 = vsel %vm1727, %v3158, 0.0
      %3192 = vadd.xlane.f32.xlu0 %v3191
      %v3193 = vpop.xlane.xlu0 %3192
      %v3194 = vsel %vm1727, %v3160, 0.0
      %3195 = vadd.xlane.f32.xlu0 %v3194
      %v3196 = vpop.xlane.xlu0 %3195
      %v3197 = vsel %vm1727, %v3162, 0.0
      %3198 = vadd.xlane.f32.xlu0 %v3197
      %v3199 = vpop.xlane.xlu0 %3198
      %v3200 = vsel %vm1727, %v3164, 0.0
      %3201 = vadd.xlane.f32.xlu0 %v3200
      %v3202 = vpop.xlane.xlu0 %3201
      %v3203 = vsel %vm1727, %v3166, 0.0
      %3204 = vadd.xlane.f32.xlu0 %v3203
      %v3205 = vpop.xlane.xlu0 %3204
      %v3206 = vsel %vm1727, %v3168, 0.0
      %3207 = vadd.xlane.f32.xlu0 %v3206
      %v3208 = vpop.xlane.xlu0 %3207
      %v3209 = vsel %vm1727, %v3170, 0.0
      %3210 = vadd.xlane.f32.xlu0 %v3209
      %v3211 = vpop.xlane.xlu0 %3210
      %v3212 = vsel %vm1767, %v3172, 0.0
      %3213 = vadd.xlane.f32.xlu0 %v3212
      %v3214 = vpop.xlane.xlu0 %3213
      %v3215 = vrcp.pop %v3175
      %v3216 = vrcp.pop %v3178
      %v3217 = vrcp.pop %v3181
      %v3218 = vrcp.pop %v3184
      %v3219 = vrcp.pop %v3187
      %v3220 = vrcp.pop %v3190
      %v3221 = vrcp.pop %v3193
      %v3222 = vrcp.pop %v3196
      %v3223 = vrcp.pop %v3199
      %v3224 = vrcp.pop %v3202
      %v3225 = vrcp.pop %v3205
      %v3226 = vrcp.pop %v3208
      %v3227 = vrcp.pop %v3211
      %v3228 = vrcp.pop %v3214
      %v3229 = vmul.f32 %v3146, %v3215
      %v3230 = vmul.f32 %v3148, %v3216
      %v3231 = vmul.f32 %v3150, %v3217
      %v3232 = vmul.f32 %v3152, %v3218
      %v3233 = vmul.f32 %v3154, %v3219
      %v3234 = vmul.f32 %v3156, %v3220
      %v3235 = vmul.f32 %v3158, %v3221
      %v3236 = vmul.f32 %v3160, %v3222
      %v3237 = vmul.f32 %v3162, %v3223
      %v3238 = vmul.f32 %v3164, %v3224
      %v3239 = vmul.f32 %v3166, %v3225
      %v3240 = vmul.f32 %v3168, %v3226
      %v3241 = vmul.f32 %v3170, %v3227
      %v3242 = vmul.f32 %v3172, %v3228
      %v3243 = vpack.c.bf16 %v3230, %v3229
      %v3244 = vpack.c.bf16 %v3232, %v3231
      %v3245 = vpack.c.bf16 %v3234, %v3233
      %v3246 = vpack.c.bf16 %v3236, %v3235
      %v3247 = vpack.c.bf16 %v3238, %v3237
      %v3248 = vpack.c.bf16 %v3240, %v3239
      %v3249 = vpack.c.bf16 %v3242, %v3241
      %3250 = vrot.lane.b32.xlu0 %v1567, 40
      %v3251 = vpop.permute.xlu0 %3250
      %3252 = vrot.lane.b32.xlu0 %v1568, 40
      %v3253 = vpop.permute.xlu0 %3252
      %3254 = vrot.lane.b32.xlu0 %v1569, 40
      %v3255 = vpop.permute.xlu0 %3254
      %3256 = vrot.lane.b32.xlu0 %v1570, 40
      %v3257 = vpop.permute.xlu0 %3256
      %3258 = vrot.lane.b32.xlu0 %v1571, 40
      %v3259 = vpop.permute.xlu0 %3258
      %3260 = vrot.lane.b32.xlu0 %v1572, 40
      %v3261 = vpop.permute.xlu0 %3260
      %3262 = vrot.lane.b32.xlu0 %v1573, 40
      %v3263 = vpop.permute.xlu0 %3262
      %v3271 = vsel %vm1727, %v3243, 0
      %v3274 = vsel %vm1727, %v3244, 0
      %v3277 = vsel %vm1727, %v3245, 0
      %v3280 = vsel %vm1727, %v3246, 0
      %v3283 = vsel %vm1727, %v3247, 0
      %v3286 = vsel %vm1727, %v3248, 0
      %v3289 = vsel %vm1727, %v3249, 0
      %v3292 = vsel %vm1931, %v3263, 0
      %3294 = vmatprep.subr.bf16.mxu0 0
      %3295 = vmatpush1.bf16.msra.mxu0 %v3251
      %3296 = vmatprep.subr.bf16.mxu0 0
      %3297 = vmatpush1.bf16.msra.mxu0 %v3253
      %3298 = vmatprep.subr.bf16.mxu0 0
      %3299 = vmatpush1.bf16.msra.mxu0 %v3255
      %3300 = vmatprep.subr.bf16.mxu0 0
      %3301 = vmatpush1.bf16.msra.mxu0 %v3257
      %3302 = vmatprep.subr.bf16.mxu0 0
      %3303 = vmatpush1.bf16.msra.mxu0 %v3259
      %3304 = vmatprep.subr.bf16.mxu0 0
      %3305 = vmatpush1.bf16.msra.mxu0 %v3261
      %3306 = vmatprep.subr.bf16.mxu0 0
      %3307 = vmatpush1.bf16.msra.mxu0 %v3292
      %3308 = vmatprep.subr.bf16.mxu0 0
      %3309 = vmatpush1.bf16.msra.mxu0 0
      %3310 = vmatprep.subr.bf16.mxu0 0
      %3311 = vmatpush1.bf16.msra.mxu0 0
      %3312 = vmatprep.subr.bf16.mxu0 0
      %3313 = vmatpush1.bf16.msra.mxu0 0
      %3314 = vmatprep.subr.bf16.mxu0 0
      %3315 = vmatpush1.bf16.msra.mxu0 0
      %3316 = vmatprep.subr.bf16.mxu0 0
      %3317 = vmatpush1.bf16.msra.mxu0 0
      %3318 = vmatprep.subr.bf16.mxu0 0
      %3319 = vmatpush1.bf16.msra.mxu0 0
      %3320 = vmatprep.subr.bf16.mxu0 0
      %3321 = vmatpush1.bf16.msra.mxu0 0
      %3322 = vmatprep.subr.bf16.mxu0 0
      %3323 = vmatpush1.bf16.msra.mxu0 0
      %3324 = vmatprep.subr.bf16.mxu0 0
      %3325 = vmatpush1.bf16.msra.mxu0 0
      %3326 = vmatprep.mubr.bf16.mxu0 0
      %3327 = vmatmul.mubr.bf16.gmra.mrb[0].mxu0 %v3271
      %v3328 = vpop.f32.mrb[0].mxu0
      %v3329 = vadd.f32 0.0, %v3328
      %v3330 = vpop.f32.mrb[0].mxu0
      %v3331 = vpop.f32.mrb[0].mxu0
      %v3332 = vadd.f32 0.0, %v3331
      %v3333 = vpop.f32.mrb[0].mxu0
      %3334 = vmatprep.mubr.bf16.mxu0 0
      %3335 = vmatmul.mubr.bf16.gmra.mrb[0].mxu0 %v3274
      %v3336 = vpop.f32.mrb[0].mxu0
      %v3337 = vadd.f32 0.0, %v3336
      %v3338 = vpop.f32.mrb[0].mxu0
      %v3339 = vpop.f32.mrb[0].mxu0
      %v3340 = vadd.f32 0.0, %v3339
      %v3341 = vpop.f32.mrb[0].mxu0
      %3342 = vmatprep.mubr.bf16.mxu0 0
      %3343 = vmatmul.mubr.bf16.gmra.mrb[0].mxu0 %v3277
      %v3344 = vpop.f32.mrb[0].mxu0
      %v3345 = vadd.f32 0.0, %v3344
      %v3346 = vpop.f32.mrb[0].mxu0
      %v3347 = vpop.f32.mrb[0].mxu0
      %v3348 = vadd.f32 0.0, %v3347
      %v3349 = vpop.f32.mrb[0].mxu0
      %3350 = vmatprep.mubr.bf16.mxu0 0
      %3351 = vmatmul.mubr.bf16.gmra.mrb[0].mxu0 %v3280
      %v3352 = vpop.f32.mrb[0].mxu0
      %v3353 = vadd.f32 0.0, %v3352
      %v3354 = vpop.f32.mrb[0].mxu0
      %v3355 = vpop.f32.mrb[0].mxu0
      %v3356 = vadd.f32 0.0, %v3355
      %v3357 = vpop.f32.mrb[0].mxu0
      %3358 = vmatprep.mubr.bf16.mxu0 0
      %3359 = vmatmul.mubr.bf16.gmra.mrb[0].mxu0 %v3283
      %v3360 = vpop.f32.mrb[0].mxu0
      %v3361 = vadd.f32 0.0, %v3360
      %v3362 = vpop.f32.mrb[0].mxu0
      %v3363 = vpop.f32.mrb[0].mxu0
      %v3364 = vadd.f32 0.0, %v3363
      %v3365 = vpop.f32.mrb[0].mxu0
      %3366 = vmatprep.mubr.bf16.mxu0 0
      %3367 = vmatmul.mubr.bf16.gmra.mrb[0].mxu0 %v3286
      %v3368 = vpop.f32.mrb[0].mxu0
      %v3369 = vadd.f32 0.0, %v3368
      %v3370 = vpop.f32.mrb[0].mxu0
      %v3371 = vpop.f32.mrb[0].mxu0
      %v3372 = vadd.f32 0.0, %v3371
      %v3373 = vpop.f32.mrb[0].mxu0
      %3374 = vmatprep.mubr.bf16.mxu0 0
      %3375 = vmatmul.mubr.bf16.gmra.mrb[0].mxu0 %v3289
      %v3376 = vpop.f32.mrb[0].mxu0
      %v3377 = vadd.f32 0.0, %v3376
      %v3378 = vpop.f32.mrb[0].mxu0
      %v3379 = vpop.f32.mrb[0].mxu0
      %v3380 = vadd.f32 0.0, %v3379
      %v3381 = vpop.f32.mrb[0].mxu0
      %3382 = vdwg.mxu0
      %3397 = vrot.lane.b32.xlu0 %v2423, 8
      %v3398 = vpop.permute.xlu0 %3397
      %3399 = vrot.lane.b32.xlu0 %v2426, 8
      %v3400 = vpop.permute.xlu0 %3399
      %3401 = vrot.lane.b32.xlu0 %v2431, 8
      %v3402 = vpop.permute.xlu0 %3401
      %3403 = vrot.lane.b32.xlu0 %v2434, 8
      %v3404 = vpop.permute.xlu0 %3403
      %3405 = vrot.lane.b32.xlu0 %v2439, 8
      %v3406 = vpop.permute.xlu0 %3405
      %3407 = vrot.lane.b32.xlu0 %v2442, 8
      %v3408 = vpop.permute.xlu0 %3407
      %3409 = vrot.lane.b32.xlu0 %v2447, 8
      %v3410 = vpop.permute.xlu0 %3409
      %3411 = vrot.lane.b32.xlu0 %v2450, 8
      %v3412 = vpop.permute.xlu0 %3411
      %3413 = vrot.lane.b32.xlu0 %v2455, 8
      %v3414 = vpop.permute.xlu0 %3413
      %3415 = vrot.lane.b32.xlu0 %v2458, 8
      %v3416 = vpop.permute.xlu0 %3415
      %3417 = vrot.lane.b32.xlu0 %v2463, 8
      %v3418 = vpop.permute.xlu0 %3417
      %3419 = vrot.lane.b32.xlu0 %v2466, 8
      %v3420 = vpop.permute.xlu0 %3419
      %3421 = vrot.lane.b32.xlu0 %v2471, 8
      %v3422 = vpop.permute.xlu0 %3421
      %3423 = vrot.lane.b32.xlu0 %v2474, 8
      %v3424 = vpop.permute.xlu0 %3423
      %3453 = vrot.lane.b32.xlu0 %v2876, 16
      %v3454 = vpop.permute.xlu0 %3453
      %3455 = vrot.lane.b32.xlu0 %v2879, 16
      %v3456 = vpop.permute.xlu0 %3455
      %3457 = vrot.lane.b32.xlu0 %v2884, 16
      %v3458 = vpop.permute.xlu0 %3457
      %3459 = vrot.lane.b32.xlu0 %v2887, 16
      %v3460 = vpop.permute.xlu0 %3459
      %3461 = vrot.lane.b32.xlu0 %v2892, 16
      %v3462 = vpop.permute.xlu0 %3461
      %3463 = vrot.lane.b32.xlu0 %v2895, 16
      %v3464 = vpop.permute.xlu0 %3463
      %3465 = vrot.lane.b32.xlu0 %v2900, 16
      %v3466 = vpop.permute.xlu0 %3465
      %3467 = vrot.lane.b32.xlu0 %v2903, 16
      %v3468 = vpop.permute.xlu0 %3467
      %3469 = vrot.lane.b32.xlu0 %v2908, 16
      %v3470 = vpop.permute.xlu0 %3469
      %3471 = vrot.lane.b32.xlu0 %v2911, 16
      %v3472 = vpop.permute.xlu0 %3471
      %3473 = vrot.lane.b32.xlu0 %v2916, 16
      %v3474 = vpop.permute.xlu0 %3473
      %3475 = vrot.lane.b32.xlu0 %v2919, 16
      %v3476 = vpop.permute.xlu0 %3475
      %3477 = vrot.lane.b32.xlu0 %v2924, 16
      %v3478 = vpop.permute.xlu0 %3477
      %3479 = vrot.lane.b32.xlu0 %v2927, 16
      %v3480 = vpop.permute.xlu0 %3479
      %3509 = vrot.lane.b32.xlu0 %v3329, 24
      %v3510 = vpop.permute.xlu0 %3509
      %3511 = vrot.lane.b32.xlu0 %v3332, 24
      %v3512 = vpop.permute.xlu0 %3511
      %3513 = vrot.lane.b32.xlu0 %v3337, 24
      %v3514 = vpop.permute.xlu0 %3513
      %3515 = vrot.lane.b32.xlu0 %v3340, 24
      %v3516 = vpop.permute.xlu0 %3515
      %3517 = vrot.lane.b32.xlu0 %v3345, 24
      %v3518 = vpop.permute.xlu0 %3517
      %3519 = vrot.lane.b32.xlu0 %v3348, 24
      %v3520 = vpop.permute.xlu0 %3519
      %3521 = vrot.lane.b32.xlu0 %v3353, 24
      %v3522 = vpop.permute.xlu0 %3521
      %3523 = vrot.lane.b32.xlu0 %v3356, 24
      %v3524 = vpop.permute.xlu0 %3523
      %3525 = vrot.lane.b32.xlu0 %v3361, 24
      %v3526 = vpop.permute.xlu0 %3525
      %3527 = vrot.lane.b32.xlu0 %v3364, 24
      %v3528 = vpop.permute.xlu0 %3527
      %3529 = vrot.lane.b32.xlu0 %v3369, 24
      %v3530 = vpop.permute.xlu0 %3529
      %3531 = vrot.lane.b32.xlu0 %v3372, 24
      %v3532 = vpop.permute.xlu0 %3531
      %3533 = vrot.lane.b32.xlu0 %v3377, 24
      %v3534 = vpop.permute.xlu0 %3533
      %3535 = vrot.lane.b32.xlu0 %v3380, 24
      %v3536 = vpop.permute.xlu0 %3535
      %v3551 = vsel %vm1595, %v1970, %v3398
      %v3552 = vsel %vm1595, %v1973, %v3400
      %v3553 = vsel %vm1595, %v1978, %v3402
      %v3554 = vsel %vm1595, %v1981, %v3404
      %v3555 = vsel %vm1595, %v1986, %v3406
      %v3556 = vsel %vm1595, %v1989, %v3408
      %v3557 = vsel %vm1595, %v1994, %v3410
      %v3558 = vsel %vm1595, %v1997, %v3412
      %v3559 = vsel %vm1595, %v2002, %v3414
      %v3560 = vsel %vm1595, %v2005, %v3416
      %v3561 = vsel %vm1595, %v2010, %v3418
      %v3562 = vsel %vm1595, %v2013, %v3420
      %v3563 = vsel %vm1595, %v2018, %v3422
      %v3564 = vsel %vm1595, %v2021, %v3424
      %vm3565 = vcmask 130048
      %v3566 = vsel %vm3565, %v3551, %v3454
      %v3567 = vsel %vm3565, %v3552, %v3456
      %v3568 = vsel %vm3565, %v3553, %v3458
      %v3569 = vsel %vm3565, %v3554, %v3460
      %v3570 = vsel %vm3565, %v3555, %v3462
      %v3571 = vsel %vm3565, %v3556, %v3464
      %v3572 = vsel %vm3565, %v3557, %v3466
      %v3573 = vsel %vm3565, %v3558, %v3468
      %v3574 = vsel %vm3565, %v3559, %v3470
      %v3575 = vsel %vm3565, %v3560, %v3472
      %v3576 = vsel %vm3565, %v3561, %v3474
      %v3577 = vsel %vm3565, %v3562, %v3476
      %v3578 = vsel %vm3565, %v3563, %v3478
      %v3579 = vsel %vm3565, %v3564, %v3480
      %vm3580 = vcmask 195584
      %v3581 = vsel %vm3580, %v3566, %v3510
      %v3582 = vsel %vm3580, %v3567, %v3512
      %v3583 = vsel %vm3580, %v3568, %v3514
      %v3584 = vsel %vm3580, %v3569, %v3516
      %v3585 = vsel %vm3580, %v3570, %v3518
      %v3586 = vsel %vm3580, %v3571, %v3520
      %v3587 = vsel %vm3580, %v3572, %v3522
      %v3588 = vsel %vm3580, %v3573, %v3524
      %v3589 = vsel %vm3580, %v3574, %v3526
      %v3590 = vsel %vm3580, %v3575, %v3528
      %v3591 = vsel %vm3580, %v3576, %v3530
      %v3592 = vsel %vm3580, %v3577, %v3532
      %v3593 = vsel %vm3580, %v3578, %v3534
      %v3594 = vsel %vm3580, %v3579, %v3536
      %v3595 = vpack.c.bf16 %v3582, %v3581
      %v3596 = vpack.c.bf16 %v3584, %v3583
      %v3597 = vpack.c.bf16 %v3586, %v3585
      %v3598 = vpack.c.bf16 %v3588, %v3587
      %v3599 = vpack.c.bf16 %v3590, %v3589
      %v3600 = vpack.c.bf16 %v3592, %v3591
      %v3601 = vpack.c.bf16 %v3594, %v3593
      %v3602 = vld [vmem:[%s7] sm:$0xf]
      %v3603 = vld [vmem:[%s7 + $0x4] sm:$0xf]
      %v3604 = vld [vmem:[%s7 + $0x8] sm:$0xf]
      %v3605 = vld [vmem:[%s7 + $0xc] sm:$0xf]
      %v3606 = vld [vmem:[%s8] sm:$0x1]
      %v3608 = vlaneseq
      %v3609 = vshrl.u32 %v3608, 7
      %v3610 = vsub.s32 0, %v3609
      %v3611 = vrot.slane %v3606, %v3610
      %v3617 = vunpack.c.l.b16 %v3602
      %v3618 = vunpack.c.l.b16 %v3603
      %v3619 = vunpack.c.l.b16 %v3604
      %v3620 = vunpack.c.l.b16 %v3605
      %v3621 = vpack.c.b16 %v3618, %v3617
      %v3622 = vpack.c.b16 %v3620, %v3619
      %v3626 = vsel %vm1202, %v3595, 0
      %v3629 = vsel %vm1202, %v3596, 0
      %v3632 = vsel %vm1202, %v3597, 0
      %v3635 = vsel %vm1202, %v3598, 0
      %v3638 = vsel %vm1202, %v3599, 0
      %v3641 = vsel %vm1202, %v3600, 0
      %v3644 = vsel %vm1202, %v3601, 0
      %3646 = vmatprep.subr.bf16.mxu0 0
      %3647 = vmatpush1.bf16.msra.mxu0 %v3621
      %3648 = vmatprep.subr.bf16.mxu0 0
      %3649 = vmatpush1.bf16.msra.mxu0 %v3622
      %3650 = vmatprep.subr.bf16.mxu0 0
      %3651 = vmatpush1.bf16.msra.mxu0 0
      %3652 = vmatprep.subr.bf16.mxu0 0
      %3653 = vmatpush1.bf16.msra.mxu0 0
      %3654 = vmatprep.subr.bf16.mxu0 0
      %3655 = vmatpush1.bf16.msra.mxu0 0
      %3656 = vmatprep.subr.bf16.mxu0 0
      %3657 = vmatpush1.bf16.msra.mxu0 0
      %3658 = vmatprep.subr.bf16.mxu0 0
      %3659 = vmatpush1.bf16.msra.mxu0 0
      %3660 = vmatprep.subr.bf16.mxu0 0
      %3661 = vmatpush1.bf16.msra.mxu0 0
      %3662 = vmatprep.subr.bf16.mxu0 0
      %3663 = vmatpush1.bf16.msra.mxu0 0
      %3664 = vmatprep.subr.bf16.mxu0 0
      %3665 = vmatpush1.bf16.msra.mxu0 0
      %3666 = vmatprep.subr.bf16.mxu0 0
      %3667 = vmatpush1.bf16.msra.mxu0 0
      %3668 = vmatprep.subr.bf16.mxu0 0
      %3669 = vmatpush1.bf16.msra.mxu0 0
      %3670 = vmatprep.subr.bf16.mxu0 0
      %3671 = vmatpush1.bf16.msra.mxu0 0
      %3672 = vmatprep.subr.bf16.mxu0 0
      %3673 = vmatpush1.bf16.msra.mxu0 0
      %3674 = vmatprep.subr.bf16.mxu0 0
      %3675 = vmatpush1.bf16.msra.mxu0 0
      %3676 = vmatprep.subr.bf16.mxu0 0
      %3677 = vmatpush1.bf16.msra.mxu0 0
      %3678 = vmatprep.mubr.bf16.mxu0 0
      %3679 = vmatmul.mubr.bf16.gmra.mrb[0].mxu0 %v3626
      %v3680 = vpop.f32.mrb[0].mxu0
      %v3681 = vadd.f32 %v3611, %v3680
      %v3682 = vpop.f32.mrb[0].mxu0
      %v3683 = vpop.f32.mrb[0].mxu0
      %v3684 = vadd.f32 %v3611, %v3683
      %v3685 = vpop.f32.mrb[0].mxu0
      %3686 = vmatprep.mubr.bf16.mxu0 0
      %3687 = vmatmul.mubr.bf16.gmra.mrb[0].mxu0 %v3629
      %v3688 = vpop.f32.mrb[0].mxu0
      %v3689 = vadd.f32 %v3611, %v3688
      %v3690 = vpop.f32.mrb[0].mxu0
      %v3691 = vpop.f32.mrb[0].mxu0
      %v3692 = vadd.f32 %v3611, %v3691
      %v3693 = vpop.f32.mrb[0].mxu0
      %3694 = vmatprep.mubr.bf16.mxu0 0
      %3695 = vmatmul.mubr.bf16.gmra.mrb[0].mxu0 %v3632
      %v3696 = vpop.f32.mrb[0].mxu0
      %v3697 = vadd.f32 %v3611, %v3696
      %v3698 = vpop.f32.mrb[0].mxu0
      %v3699 = vpop.f32.mrb[0].mxu0
      %v3700 = vadd.f32 %v3611, %v3699
      %v3701 = vpop.f32.mrb[0].mxu0
      %3702 = vmatprep.mubr.bf16.mxu0 0
      %3703 = vmatmul.mubr.bf16.gmra.mrb[0].mxu0 %v3635
      %v3704 = vpop.f32.mrb[0].mxu0
      %v3705 = vadd.f32 %v3611, %v3704
      %v3706 = vpop.f32.mrb[0].mxu0
      %v3707 = vpop.f32.mrb[0].mxu0
      %v3708 = vadd.f32 %v3611, %v3707
      %v3709 = vpop.f32.mrb[0].mxu0
      %3710 = vmatprep.mubr.bf16.mxu0 0
      %3711 = vmatmul.mubr.bf16.gmra.mrb[0].mxu0 %v3638
      %v3712 = vpop.f32.mrb[0].mxu0
      %v3713 = vadd.f32 %v3611, %v3712
      %v3714 = vpop.f32.mrb[0].mxu0
      %v3715 = vpop.f32.mrb[0].mxu0
      %v3716 = vadd.f32 %v3611, %v3715
      %v3717 = vpop.f32.mrb[0].mxu0
      %3718 = vmatprep.mubr.bf16.mxu0 0
      %3719 = vmatmul.mubr.bf16.gmra.mrb[0].mxu0 %v3641
      %v3720 = vpop.f32.mrb[0].mxu0
      %v3721 = vadd.f32 %v3611, %v3720
      %v3722 = vpop.f32.mrb[0].mxu0
      %v3723 = vpop.f32.mrb[0].mxu0
      %v3724 = vadd.f32 %v3611, %v3723
      %v3725 = vpop.f32.mrb[0].mxu0
      %3726 = vmatprep.mubr.bf16.mxu0 0
      %3727 = vmatmul.mubr.bf16.gmra.mrb[0].mxu0 %v3644
      %v3728 = vpop.f32.mrb[0].mxu0
      %v3729 = vadd.f32 %v3611, %v3728
      %v3730 = vpop.f32.mrb[0].mxu0
      %v3731 = vpop.f32.mrb[0].mxu0
      %v3732 = vadd.f32 %v3611, %v3731
      %v3733 = vpop.f32.mrb[0].mxu0
      %3734 = vdwg.mxu0
      %v3735 = vadd.f32 %v1186, %v3681
      %v3736 = vadd.f32 %v1187, %v3684
      %v3737 = vadd.f32 %v1188, %v3689
      %v3738 = vadd.f32 %v1189, %v3692
      %v3739 = vadd.f32 %v1190, %v3697
      %v3740 = vadd.f32 %v1191, %v3700
      %v3741 = vadd.f32 %v1192, %v3705
      %v3742 = vadd.f32 %v1193, %v3708
      %v3743 = vadd.f32 %v1194, %v3713
      %v3744 = vadd.f32 %v1195, %v3716
      %v3745 = vadd.f32 %v1196, %v3721
      %v3746 = vadd.f32 %v1197, %v3724
      %v3747 = vadd.f32 %v1198, %v3729
      %v3748 = vadd.f32 %v1199, %v3732
      %v3749 = vld [vmem:[%s9] sm:$0x1]
      %v3750 = vld [vmem:[%s10] sm:$0x1]
      %v3751 = vsel %vm1202, %v3735, 0.0
      %3752 = vadd.xlane.f32.xlu0 %v3751
      %v3753 = vpop.xlane.xlu0 %3752
      %v3754 = vsel %vm1202, %v3736, 0.0
      %3755 = vadd.xlane.f32.xlu0 %v3754
      %v3756 = vpop.xlane.xlu0 %3755
      %v3757 = vsel %vm1202, %v3737, 0.0
      %3758 = vadd.xlane.f32.xlu0 %v3757
      %v3759 = vpop.xlane.xlu0 %3758
      %v3760 = vsel %vm1202, %v3738, 0.0
      %3761 = vadd.xlane.f32.xlu0 %v3760
      %v3762 = vpop.xlane.xlu0 %3761
      %v3763 = vsel %vm1202, %v3739, 0.0
      %3764 = vadd.xlane.f32.xlu0 %v3763
      %v3765 = vpop.xlane.xlu0 %3764
      %v3766 = vsel %vm1202, %v3740, 0.0
      %3767 = vadd.xlane.f32.xlu0 %v3766
      %v3768 = vpop.xlane.xlu0 %3767
      %v3769 = vsel %vm1202, %v3741, 0.0
      %3770 = vadd.xlane.f32.xlu0 %v3769
      %v3771 = vpop.xlane.xlu0 %3770
      %v3772 = vsel %vm1202, %v3742, 0.0
      %3773 = vadd.xlane.f32.xlu0 %v3772
      %v3774 = vpop.xlane.xlu0 %3773
      %v3775 = vsel %vm1202, %v3743, 0.0
      %3776 = vadd.xlane.f32.xlu0 %v3775
      %v3777 = vpop.xlane.xlu0 %3776
      %v3778 = vsel %vm1202, %v3744, 0.0
      %3779 = vadd.xlane.f32.xlu0 %v3778
      %v3780 = vpop.xlane.xlu0 %3779
      %v3781 = vsel %vm1202, %v3745, 0.0
      %3782 = vadd.xlane.f32.xlu0 %v3781
      %v3783 = vpop.xlane.xlu0 %3782
      %v3784 = vsel %vm1202, %v3746, 0.0
      %3785 = vadd.xlane.f32.xlu0 %v3784
      %v3786 = vpop.xlane.xlu0 %3785
      %v3787 = vsel %vm1202, %v3747, 0.0
      %3788 = vadd.xlane.f32.xlu0 %v3787
      %v3789 = vpop.xlane.xlu0 %3788
      %v3790 = vsel %vm1242, %v3748, 0.0
      %3791 = vadd.xlane.f32.xlu0 %v3790
      %v3792 = vpop.xlane.xlu0 %3791
      %v3793 = vmul.f32 %v3753, %v1246
      %v3794 = vmul.f32 %v3756, %v1246
      %v3795 = vmul.f32 %v3759, %v1246
      %v3796 = vmul.f32 %v3762, %v1246
      %v3797 = vmul.f32 %v3765, %v1246
      %v3798 = vmul.f32 %v3768, %v1246
      %v3799 = vmul.f32 %v3771, %v1246
      %v3800 = vmul.f32 %v3774, %v1246
      %v3801 = vmul.f32 %v3777, %v1246
      %v3802 = vmul.f32 %v3780, %v1246
      %v3803 = vmul.f32 %v3783, %v1246
      %v3804 = vmul.f32 %v3786, %v1246
      %v3805 = vmul.f32 %v3789, %v1246
      %v3806 = vmul.f32 %v3792, %v1246
      %v3807 = vsub.f32 %v3735, %v3793
      %v3808 = vsub.f32 %v3736, %v3794
      %v3809 = vsub.f32 %v3737, %v3795
      %v3810 = vsub.f32 %v3738, %v3796
      %v3811 = vsub.f32 %v3739, %v3797
      %v3812 = vsub.f32 %v3740, %v3798
      %v3813 = vsub.f32 %v3741, %v3799
      %v3814 = vsub.f32 %v3742, %v3800
      %v3815 = vsub.f32 %v3743, %v3801
      %v3816 = vsub.f32 %v3744, %v3802
      %v3817 = vsub.f32 %v3745, %v3803
      %v3818 = vsub.f32 %v3746, %v3804
      %v3819 = vsub.f32 %v3747, %v3805
      %v3820 = vsub.f32 %v3748, %v3806
      %v3821 = vmul.f32 %v3807, %v3807
      %v3822 = vmul.f32 %v3808, %v3808
      %v3823 = vmul.f32 %v3809, %v3809
      %v3824 = vmul.f32 %v3810, %v3810
      %v3825 = vmul.f32 %v3811, %v3811
      %v3826 = vmul.f32 %v3812, %v3812
      %v3827 = vmul.f32 %v3813, %v3813
      %v3828 = vmul.f32 %v3814, %v3814
      %v3829 = vmul.f32 %v3815, %v3815
      %v3830 = vmul.f32 %v3816, %v3816
      %v3831 = vmul.f32 %v3817, %v3817
      %v3832 = vmul.f32 %v3818, %v3818
      %v3833 = vmul.f32 %v3819, %v3819
      %v3834 = vmul.f32 %v3820, %v3820
      %v3835 = vsel %vm1202, %v3821, 0.0
      %3836 = vadd.xlane.f32.xlu0 %v3835
      %v3837 = vpop.xlane.xlu0 %3836
      %v3838 = vsel %vm1202, %v3822, 0.0
      %3839 = vadd.xlane.f32.xlu0 %v3838
      %v3840 = vpop.xlane.xlu0 %3839
      %v3841 = vsel %vm1202, %v3823, 0.0
      %3842 = vadd.xlane.f32.xlu0 %v3841
      %v3843 = vpop.xlane.xlu0 %3842
      %v3844 = vsel %vm1202, %v3824, 0.0
      %3845 = vadd.xlane.f32.xlu0 %v3844
      %v3846 = vpop.xlane.xlu0 %3845
      %v3847 = vsel %vm1202, %v3825, 0.0
      %3848 = vadd.xlane.f32.xlu0 %v3847
      %v3849 = vpop.xlane.xlu0 %3848
      %v3850 = vsel %vm1202, %v3826, 0.0
      %3851 = vadd.xlane.f32.xlu0 %v3850
      %v3852 = vpop.xlane.xlu0 %3851
      %v3853 = vsel %vm1202, %v3827, 0.0
      %3854 = vadd.xlane.f32.xlu0 %v3853
      %v3855 = vpop.xlane.xlu0 %3854
      %v3856 = vsel %vm1202, %v3828, 0.0
      %3857 = vadd.xlane.f32.xlu0 %v3856
      %v3858 = vpop.xlane.xlu0 %3857
      %v3859 = vsel %vm1202, %v3829, 0.0
      %3860 = vadd.xlane.f32.xlu0 %v3859
      %v3861 = vpop.xlane.xlu0 %3860
      %v3862 = vsel %vm1202, %v3830, 0.0
      %3863 = vadd.xlane.f32.xlu0 %v3862
      %v3864 = vpop.xlane.xlu0 %3863
      %v3865 = vsel %vm1202, %v3831, 0.0
      %3866 = vadd.xlane.f32.xlu0 %v3865
      %v3867 = vpop.xlane.xlu0 %3866
      %v3868 = vsel %vm1202, %v3832, 0.0
      %3869 = vadd.xlane.f32.xlu0 %v3868
      %v3870 = vpop.xlane.xlu0 %3869
      %v3871 = vsel %vm1202, %v3833, 0.0
      %3872 = vadd.xlane.f32.xlu0 %v3871
      %v3873 = vpop.xlane.xlu0 %3872
      %v3874 = vsel %vm1242, %v3834, 0.0
      %3875 = vadd.xlane.f32.xlu0 %v3874
      %v3876 = vpop.xlane.xlu0 %3875
      %v3877 = vmul.f32 %v3837, %v1246
      %v3878 = vmul.f32 %v3840, %v1246
      %v3879 = vmul.f32 %v3843, %v1246
      %v3880 = vmul.f32 %v3846, %v1246
      %v3881 = vmul.f32 %v3849, %v1246
      %v3882 = vmul.f32 %v3852, %v1246
      %v3883 = vmul.f32 %v3855, %v1246
      %v3884 = vmul.f32 %v3858, %v1246
      %v3885 = vmul.f32 %v3861, %v1246
      %v3886 = vmul.f32 %v3864, %v1246
      %v3887 = vmul.f32 %v3867, %v1246
      %v3888 = vmul.f32 %v3870, %v1246
      %v3889 = vmul.f32 %v3873, %v1246
      %v3890 = vmul.f32 %v3876, %v1246
      %v3891 = vadd.f32 %v3877, 1e-05
      %v3892 = vadd.f32 %v3878, 1e-05
      %v3893 = vadd.f32 %v3879, 1e-05
      %v3894 = vadd.f32 %v3880, 1e-05
      %v3895 = vadd.f32 %v3881, 1e-05
      %v3896 = vadd.f32 %v3882, 1e-05
      %v3897 = vadd.f32 %v3883, 1e-05
      %v3898 = vadd.f32 %v3884, 1e-05
      %v3899 = vadd.f32 %v3885, 1e-05
      %v3900 = vadd.f32 %v3886, 1e-05
      %v3901 = vadd.f32 %v3887, 1e-05
      %v3902 = vadd.f32 %v3888, 1e-05
      %v3903 = vadd.f32 %v3889, 1e-05
      %v3904 = vadd.f32 %v3890, 1e-05
      %v3905 = vrsqrt.pop %v3891
      %v3906 = vrsqrt.pop %v3892
      %v3907 = vrsqrt.pop %v3893
      %v3908 = vrsqrt.pop %v3894
      %v3909 = vrsqrt.pop %v3895
      %v3910 = vrsqrt.pop %v3896
      %v3911 = vrsqrt.pop %v3897
      %v3912 = vrsqrt.pop %v3898
      %v3913 = vrsqrt.pop %v3899
      %v3914 = vrsqrt.pop %v3900
      %v3915 = vrsqrt.pop %v3901
      %v3916 = vrsqrt.pop %v3902
      %v3917 = vrsqrt.pop %v3903
      %v3918 = vrsqrt.pop %v3904
      %v3919 = vmul.f32 %v3807, %v3905
      %v3920 = vmul.f32 %v3808, %v3906
      %v3921 = vmul.f32 %v3809, %v3907
      %v3922 = vmul.f32 %v3810, %v3908
      %v3923 = vmul.f32 %v3811, %v3909
      %v3924 = vmul.f32 %v3812, %v3910
      %v3925 = vmul.f32 %v3813, %v3911
      %v3926 = vmul.f32 %v3814, %v3912
      %v3927 = vmul.f32 %v3815, %v3913
      %v3928 = vmul.f32 %v3816, %v3914
      %v3929 = vmul.f32 %v3817, %v3915
      %v3930 = vmul.f32 %v3818, %v3916
      %v3931 = vmul.f32 %v3819, %v3917
      %v3932 = vmul.f32 %v3820, %v3918
      %v3934 = vlaneseq
      %v3935 = vshrl.u32 %v3934, 7
      %v3936 = vsub.s32 0, %v3935
      %v3937 = vrot.slane %v3749, %v3936
      %v3939 = vmul.f32 %v3919, %v3937
      %v3940 = vmul.f32 %v3920, %v3937
      %v3941 = vmul.f32 %v3921, %v3937
      %v3942 = vmul.f32 %v3922, %v3937
      %v3943 = vmul.f32 %v3923, %v3937
      %v3944 = vmul.f32 %v3924, %v3937
      %v3945 = vmul.f32 %v3925, %v3937
      %v3946 = vmul.f32 %v3926, %v3937
      %v3947 = vmul.f32 %v3927, %v3937
      %v3948 = vmul.f32 %v3928, %v3937
      %v3949 = vmul.f32 %v3929, %v3937
      %v3950 = vmul.f32 %v3930, %v3937
      %v3951 = vmul.f32 %v3931, %v3937
      %v3952 = vmul.f32 %v3932, %v3937
      %v3954 = vlaneseq
      %v3955 = vshrl.u32 %v3954, 7
      %v3956 = vsub.s32 0, %v3955
      %v3957 = vrot.slane %v3750, %v3956
      %v3959 = vadd.f32 %v3939, %v3957
      %v3960 = vadd.f32 %v3940, %v3957
      %v3961 = vadd.f32 %v3941, %v3957
      %v3962 = vadd.f32 %v3942, %v3957
      %v3963 = vadd.f32 %v3943, %v3957
      %v3964 = vadd.f32 %v3944, %v3957
      %v3965 = vadd.f32 %v3945, %v3957
      %v3966 = vadd.f32 %v3946, %v3957
      %v3967 = vadd.f32 %v3947, %v3957
      %v3968 = vadd.f32 %v3948, %v3957
      %v3969 = vadd.f32 %v3949, %v3957
      %v3970 = vadd.f32 %v3950, %v3957
      %v3971 = vadd.f32 %v3951, %v3957
      %v3972 = vadd.f32 %v3952, %v3957
      %v3973 = vpack.c.bf16 %v3960, %v3959
      %v3974 = vpack.c.bf16 %v3962, %v3961
      %v3975 = vpack.c.bf16 %v3964, %v3963
      %v3976 = vpack.c.bf16 %v3966, %v3965
      %v3977 = vpack.c.bf16 %v3968, %v3967
      %v3978 = vpack.c.bf16 %v3970, %v3969
      %v3979 = vpack.c.bf16 %v3972, %v3971
      %v3980 = vld [vmem:[%s11] sm:$0xf]
      %v3981 = vld [vmem:[%s11 + $0x4] sm:$0xf]
      %v3982 = vld [vmem:[%s11 + $0x8] sm:$0xf]
      %v3983 = vld [vmem:[%s11 + $0xc] sm:$0xf]
      %v3984 = vld [vmem:[%s12] sm:$0x1]
      %v3986 = vlaneseq
      %v3987 = vshrl.u32 %v3986, 7
      %v3988 = vsub.s32 0, %v3987
      %v3989 = vrot.slane %v3984, %v3988
      %v3995 = vunpack.c.l.b16 %v3980
      %v3996 = vunpack.c.l.b16 %v3981
      %v3997 = vunpack.c.l.b16 %v3982
      %v3998 = vunpack.c.l.b16 %v3983
      %v3999 = vpack.c.b16 %v3996, %v3995
      %v4000 = vpack.c.b16 %v3998, %v3997
      %v4004 = vsel %vm1202, %v3973, 0
      %v4007 = vsel %vm1202, %v3974, 0
      %v4010 = vsel %vm1202, %v3975, 0
      %v4013 = vsel %vm1202, %v3976, 0
      %v4016 = vsel %vm1202, %v3977, 0
      %v4019 = vsel %vm1202, %v3978, 0
      %v4022 = vsel %vm1202, %v3979, 0
      %4024 = vmatprep.subr.bf16.mxu0 0
      %4025 = vmatpush1.bf16.msra.mxu0 %v3999
      %4026 = vmatprep.subr.bf16.mxu0 0
      %4027 = vmatpush1.bf16.msra.mxu0 %v4000
      %4028 = vmatprep.subr.bf16.mxu0 0
      %4029 = vmatpush1.bf16.msra.mxu0 0
      %4030 = vmatprep.subr.bf16.mxu0 0
      %4031 = vmatpush1.bf16.msra.mxu0 0
      %4032 = vmatprep.subr.bf16.mxu0 0
      %4033 = vmatpush1.bf16.msra.mxu0 0
      %4034 = vmatprep.subr.bf16.mxu0 0
      %4035 = vmatpush1.bf16.msra.mxu0 0
      %4036 = vmatprep.subr.bf16.mxu0 0
      %4037 = vmatpush1.bf16.msra.mxu0 0
      %4038 = vmatprep.subr.bf16.mxu0 0
      %4039 = vmatpush1.bf16.msra.mxu0 0
      %4040 = vmatprep.subr.bf16.mxu0 0
      %4041 = vmatpush1.bf16.msra.mxu0 0
      %4042 = vmatprep.subr.bf16.mxu0 0
      %4043 = vmatpush1.bf16.msra.mxu0 0
      %4044 = vmatprep.subr.bf16.mxu0 0
      %4045 = vmatpush1.bf16.msra.mxu0 0
      %4046 = vmatprep.subr.bf16.mxu0 0
      %4047 = vmatpush1.bf16.msra.mxu0 0
      %4048 = vmatprep.subr.bf16.mxu0 0
      %4049 = vmatpush1.bf16.msra.mxu0 0
      %4050 = vmatprep.subr.bf16.mxu0 0
      %4051 = vmatpush1.bf16.msra.mxu0 0
      %4052 = vmatprep.subr.bf16.mxu0 0
      %4053 = vmatpush1.bf16.msra.mxu0 0
      %4054 = vmatprep.subr.bf16.mxu0 0
      %4055 = vmatpush1.bf16.msra.mxu0 0
      %4056 = vmatprep.mubr.bf16.mxu0 0
      %4057 = vmatmul.mubr.bf16.gmra.mrb[0].mxu0 %v4004
      %v4058 = vpop.f32.mrb[0].mxu0
      %v4059 = vadd.f32 %v3989, %v4058
      %v4060 = vpop.f32.mrb[0].mxu0
      %v4061 = vpop.f32.mrb[0].mxu0
      %v4062 = vadd.f32 %v3989, %v4061
      %v4063 = vpop.f32.mrb[0].mxu0
      %4064 = vmatprep.mubr.bf16.mxu0 0
      %4065 = vmatmul.mubr.bf16.gmra.mrb[0].mxu0 %v4007
      %v4066 = vpop.f32.mrb[0].mxu0
      %v4067 = vadd.f32 %v3989, %v4066
      %v4068 = vpop.f32.mrb[0].mxu0
      %v4069 = vpop.f32.mrb[0].mxu0
      %v4070 = vadd.f32 %v3989, %v4069
      %v4071 = vpop.f32.mrb[0].mxu0
      %4072 = vmatprep.mubr.bf16.mxu0 0
      %4073 = vmatmul.mubr.bf16.gmra.mrb[0].mxu0 %v4010
      %v4074 = vpop.f32.mrb[0].mxu0
      %v4075 = vadd.f32 %v3989, %v4074
      %v4076 = vpop.f32.mrb[0].mxu0
      %v4077 = vpop.f32.mrb[0].mxu0
      %v4078 = vadd.f32 %v3989, %v4077
      %v4079 = vpop.f32.mrb[0].mxu0
      %4080 = vmatprep.mubr.bf16.mxu0 0
      %4081 = vmatmul.mubr.bf16.gmra.mrb[0].mxu0 %v4013
      %v4082 = vpop.f32.mrb[0].mxu0
      %v4083 = vadd.f32 %v3989, %v4082
      %v4084 = vpop.f32.mrb[0].mxu0
      %v4085 = vpop.f32.mrb[0].mxu0
      %v4086 = vadd.f32 %v3989, %v4085
      %v4087 = vpop.f32.mrb[0].mxu0
      %4088 = vmatprep.mubr.bf16.mxu0 0
      %4089 = vmatmul.mubr.bf16.gmra.mrb[0].mxu0 %v4016
      %v4090 = vpop.f32.mrb[0].mxu0
      %v4091 = vadd.f32 %v3989, %v4090
      %v4092 = vpop.f32.mrb[0].mxu0
      %v4093 = vpop.f32.mrb[0].mxu0
      %v4094 = vadd.f32 %v3989, %v4093
      %v4095 = vpop.f32.mrb[0].mxu0
      %4096 = vmatprep.mubr.bf16.mxu0 0
      %4097 = vmatmul.mubr.bf16.gmra.mrb[0].mxu0 %v4019
      %v4098 = vpop.f32.mrb[0].mxu0
      %v4099 = vadd.f32 %v3989, %v4098
      %v4100 = vpop.f32.mrb[0].mxu0
      %v4101 = vpop.f32.mrb[0].mxu0
      %v4102 = vadd.f32 %v3989, %v4101
      %v4103 = vpop.f32.mrb[0].mxu0
      %4104 = vmatprep.mubr.bf16.mxu0 0
      %4105 = vmatmul.mubr.bf16.gmra.mrb[0].mxu0 %v4022
      %v4106 = vpop.f32.mrb[0].mxu0
      %v4107 = vadd.f32 %v3989, %v4106
      %v4108 = vpop.f32.mrb[0].mxu0
      %v4109 = vpop.f32.mrb[0].mxu0
      %v4110 = vadd.f32 %v3989, %v4109
      %v4111 = vpop.f32.mrb[0].mxu0
      %4112 = vdwg.mxu0
      %v4113 = vmul.f32 %v4059, %v4059
      %v4114 = vmul.f32 %v4062, %v4062
      %v4115 = vmul.f32 %v4067, %v4067
      %v4116 = vmul.f32 %v4070, %v4070
      %v4117 = vmul.f32 %v4075, %v4075
      %v4118 = vmul.f32 %v4078, %v4078
      %v4119 = vmul.f32 %v4083, %v4083
      %v4120 = vmul.f32 %v4086, %v4086
      %v4121 = vmul.f32 %v4091, %v4091
      %v4122 = vmul.f32 %v4094, %v4094
      %v4123 = vmul.f32 %v4099, %v4099
      %v4124 = vmul.f32 %v4102, %v4102
      %v4125 = vmul.f32 %v4107, %v4107
      %v4126 = vmul.f32 %v4110, %v4110
      %v4127 = vmul.f32 %v4059, %v4113
      %v4128 = vmul.f32 %v4062, %v4114
      %v4129 = vmul.f32 %v4067, %v4115
      %v4130 = vmul.f32 %v4070, %v4116
      %v4131 = vmul.f32 %v4075, %v4117
      %v4132 = vmul.f32 %v4078, %v4118
      %v4133 = vmul.f32 %v4083, %v4119
      %v4134 = vmul.f32 %v4086, %v4120
      %v4135 = vmul.f32 %v4091, %v4121
      %v4136 = vmul.f32 %v4094, %v4122
      %v4137 = vmul.f32 %v4099, %v4123
      %v4138 = vmul.f32 %v4102, %v4124
      %v4139 = vmul.f32 %v4107, %v4125
      %v4140 = vmul.f32 %v4110, %v4126
      %v4141 = vmul.f32 %v4127, 0.044715
      %v4142 = vmul.f32 %v4128, 0.044715
      %v4143 = vmul.f32 %v4129, 0.044715
      %v4144 = vmul.f32 %v4130, 0.044715
      %v4145 = vmul.f32 %v4131, 0.044715
      %v4146 = vmul.f32 %v4132, 0.044715
      %v4147 = vmul.f32 %v4133, 0.044715
      %v4148 = vmul.f32 %v4134, 0.044715
      %v4149 = vmul.f32 %v4135, 0.044715
      %v4150 = vmul.f32 %v4136, 0.044715
      %v4151 = vmul.f32 %v4137, 0.044715
      %v4152 = vmul.f32 %v4138, 0.044715
      %v4153 = vmul.f32 %v4139, 0.044715
      %v4154 = vmul.f32 %v4140, 0.044715
      %v4155 = vadd.f32 %v4059, %v4141
      %v4156 = vadd.f32 %v4062, %v4142
      %v4157 = vadd.f32 %v4067, %v4143
      %v4158 = vadd.f32 %v4070, %v4144
      %v4159 = vadd.f32 %v4075, %v4145
      %v4160 = vadd.f32 %v4078, %v4146
      %v4161 = vadd.f32 %v4083, %v4147
      %v4162 = vadd.f32 %v4086, %v4148
      %v4163 = vadd.f32 %v4091, %v4149
      %v4164 = vadd.f32 %v4094, %v4150
      %v4165 = vadd.f32 %v4099, %v4151
      %v4166 = vadd.f32 %v4102, %v4152
      %v4167 = vadd.f32 %v4107, %v4153
      %v4168 = vadd.f32 %v4110, %v4154
      %v4169 = vmul.f32 %v4155, 0.7978846
      %v4170 = vmul.f32 %v4156, 0.7978846
      %v4171 = vmul.f32 %v4157, 0.7978846
      %v4172 = vmul.f32 %v4158, 0.7978846
      %v4173 = vmul.f32 %v4159, 0.7978846
      %v4174 = vmul.f32 %v4160, 0.7978846
      %v4175 = vmul.f32 %v4161, 0.7978846
      %v4176 = vmul.f32 %v4162, 0.7978846
      %v4177 = vmul.f32 %v4163, 0.7978846
      %v4178 = vmul.f32 %v4164, 0.7978846
      %v4179 = vmul.f32 %v4165, 0.7978846
      %v4180 = vmul.f32 %v4166, 0.7978846
      %v4181 = vmul.f32 %v4167, 0.7978846
      %v4182 = vmul.f32 %v4168, 0.7978846
      %v4183 = vtanh.pop %v4169
      %v4184 = vtanh.pop %v4170
      %v4185 = vtanh.pop %v4171
      %v4186 = vtanh.pop %v4172
      %v4187 = vtanh.pop %v4173
      %v4188 = vtanh.pop %v4174
      %v4189 = vtanh.pop %v4175
      %v4190 = vtanh.pop %v4176
      %v4191 = vtanh.pop %v4177
      %v4192 = vtanh.pop %v4178
      %v4193 = vtanh.pop %v4179
      %v4194 = vtanh.pop %v4180
      %v4195 = vtanh.pop %v4181
      %v4196 = vtanh.pop %v4182
      %v4197 = vadd.f32 %v4183, 1.0
      %v4198 = vadd.f32 %v4184, 1.0
      %v4199 = vadd.f32 %v4185, 1.0
      %v4200 = vadd.f32 %v4186, 1.0
      %v4201 = vadd.f32 %v4187, 1.0
      %v4202 = vadd.f32 %v4188, 1.0
      %v4203 = vadd.f32 %v4189, 1.0
      %v4204 = vadd.f32 %v4190, 1.0
      %v4205 = vadd.f32 %v4191, 1.0
      %v4206 = vadd.f32 %v4192, 1.0
      %v4207 = vadd.f32 %v4193, 1.0
      %v4208 = vadd.f32 %v4194, 1.0
      %v4209 = vadd.f32 %v4195, 1.0
      %v4210 = vadd.f32 %v4196, 1.0
      %v4211 = vmul.f32 %v4197, 0.5
      %v4212 = vmul.f32 %v4198, 0.5
      %v4213 = vmul.f32 %v4199, 0.5
      %v4214 = vmul.f32 %v4200, 0.5
      %v4215 = vmul.f32 %v4201, 0.5
      %v4216 = vmul.f32 %v4202, 0.5
      %v4217 = vmul.f32 %v4203, 0.5
      %v4218 = vmul.f32 %v4204, 0.5
      %v4219 = vmul.f32 %v4205, 0.5
      %v4220 = vmul.f32 %v4206, 0.5
      %v4221 = vmul.f32 %v4207, 0.5
      %v4222 = vmul.f32 %v4208, 0.5
      %v4223 = vmul.f32 %v4209, 0.5
      %v4224 = vmul.f32 %v4210, 0.5
      %v4225 = vmul.f32 %v4059, %v4211
      %v4226 = vmul.f32 %v4062, %v4212
      %v4227 = vmul.f32 %v4067, %v4213
      %v4228 = vmul.f32 %v4070, %v4214
      %v4229 = vmul.f32 %v4075, %v4215
      %v4230 = vmul.f32 %v4078, %v4216
      %v4231 = vmul.f32 %v4083, %v4217
      %v4232 = vmul.f32 %v4086, %v4218
      %v4233 = vmul.f32 %v4091, %v4219
      %v4234 = vmul.f32 %v4094, %v4220
      %v4235 = vmul.f32 %v4099, %v4221
      %v4236 = vmul.f32 %v4102, %v4222
      %v4237 = vmul.f32 %v4107, %v4223
      %v4238 = vmul.f32 %v4110, %v4224
      %v4239 = vpack.c.bf16 %v4226, %v4225
      %v4240 = vpack.c.bf16 %v4228, %v4227
      %v4241 = vpack.c.bf16 %v4230, %v4229
      %v4242 = vpack.c.bf16 %v4232, %v4231
      %v4243 = vpack.c.bf16 %v4234, %v4233
      %v4244 = vpack.c.bf16 %v4236, %v4235
      %v4245 = vpack.c.bf16 %v4238, %v4237
      %v4246 = vld [vmem:[%s13] sm:$0xf]
      %v4247 = vld [vmem:[%s13 + $0x4] sm:$0xf]
      %v4248 = vld [vmem:[%s13 + $0x8] sm:$0xf]
      %v4249 = vld [vmem:[%s13 + $0xc] sm:$0xf]
      %v4250 = vld [vmem:[%s13 + $0x10] sm:$0xf]
      %v4251 = vld [vmem:[%s13 + $0x14] sm:$0xf]
      %v4252 = vld [vmem:[%s13 + $0x18] sm:$0xf]
      %v4253 = vld [vmem:[%s13 + $0x1c] sm:$0xf]
      %v4254 = vld [vmem:[%s13 + $0x20] sm:$0xf]
      %v4255 = vld [vmem:[%s13 + $0x24] sm:$0xf]
      %v4256 = vld [vmem:[%s13 + $0x28] sm:$0xf]
      %v4257 = vld [vmem:[%s13 + $0x2c] sm:$0xf]
      %v4258 = vld [vmem:[%s13 + $0x30] sm:$0xf]
      %v4259 = vld [vmem:[%s13 + $0x34] sm:$0xf]
      %v4260 = vld [vmem:[%s13 + $0x38] sm:$0xf]
      %v4261 = vld [vmem:[%s13 + $0x3c] sm:$0xf]
      %v4262 = vld [vmem:[%s14] sm:$0x1]
      %v4264 = vlaneseq
      %v4265 = vshrl.u32 %v4264, 7
      %v4266 = vsub.s32 0, %v4265
      %v4267 = vrot.slane %v4262, %v4266
      %v4285 = vunpack.c.l.b16 %v4246
      %v4286 = vunpack.c.l.b16 %v4247
      %v4287 = vunpack.c.l.b16 %v4248
      %v4288 = vunpack.c.l.b16 %v4249
      %v4289 = vunpack.c.l.b16 %v4250
      %v4290 = vunpack.c.l.b16 %v4251
      %v4291 = vunpack.c.l.b16 %v4252
      %v4292 = vunpack.c.l.b16 %v4253
      %v4293 = vunpack.c.l.b16 %v4254
      %v4294 = vunpack.c.l.b16 %v4255
      %v4295 = vunpack.c.l.b16 %v4256
      %v4296 = vunpack.c.l.b16 %v4257
      %v4297 = vunpack.c.l.b16 %v4258
      %v4298 = vunpack.c.l.b16 %v4259
      %v4299 = vunpack.c.l.b16 %v4260
      %v4300 = vunpack.c.l.b16 %v4261
      %v4301 = vpack.c.b16 %v4286, %v4285
      %v4302 = vpack.c.b16 %v4288, %v4287
      %v4303 = vpack.c.b16 %v4290, %v4289
      %v4304 = vpack.c.b16 %v4292, %v4291
      %v4305 = vpack.c.b16 %v4294, %v4293
      %v4306 = vpack.c.b16 %v4296, %v4295
      %v4307 = vpack.c.b16 %v4298, %v4297
      %v4308 = vpack.c.b16 %v4300, %v4299
      %4317 = vmatprep.subr.bf16.mxu0 0
      %4318 = vmatpush1.bf16.msra.mxu0 %v4301
      %4319 = vmatprep.subr.bf16.mxu0 0
      %4320 = vmatpush1.bf16.msra.mxu0 %v4302
      %4321 = vmatprep.subr.bf16.mxu0 0
      %4322 = vmatpush1.bf16.msra.mxu0 %v4303
      %4323 = vmatprep.subr.bf16.mxu0 0
      %4324 = vmatpush1.bf16.msra.mxu0 %v4304
      %4325 = vmatprep.subr.bf16.mxu0 0
      %4326 = vmatpush1.bf16.msra.mxu0 %v4305
      %4327 = vmatprep.subr.bf16.mxu0 0
      %4328 = vmatpush1.bf16.msra.mxu0 %v4306
      %4329 = vmatprep.subr.bf16.mxu0 0
      %4330 = vmatpush1.bf16.msra.mxu0 %v4307
      %4331 = vmatprep.subr.bf16.mxu0 0
      %4332 = vmatpush1.bf16.msra.mxu0 %v4308
      %4333 = vmatprep.subr.bf16.mxu0 0
      %4334 = vmatpush1.bf16.msra.mxu0 0
      %4335 = vmatprep.subr.bf16.mxu0 0
      %4336 = vmatpush1.bf16.msra.mxu0 0
      %4337 = vmatprep.subr.bf16.mxu0 0
      %4338 = vmatpush1.bf16.msra.mxu0 0
      %4339 = vmatprep.subr.bf16.mxu0 0
      %4340 = vmatpush1.bf16.msra.mxu0 0
      %4341 = vmatprep.subr.bf16.mxu0 0
      %4342 = vmatpush1.bf16.msra.mxu0 0
      %4343 = vmatprep.subr.bf16.mxu0 0
      %4344 = vmatpush1.bf16.msra.mxu0 0
      %4345 = vmatprep.subr.bf16.mxu0 0
      %4346 = vmatpush1.bf16.msra.mxu0 0
      %4347 = vmatprep.subr.bf16.mxu0 0
      %4348 = vmatpush1.bf16.msra.mxu0 0
      %4349 = vmatprep.mubr.bf16.mxu0 0
      %4350 = vmatmul.mubr.bf16.gmra.mrb[0].mxu0 %v4239
      %v4351 = vpop.f32.mrb[0].mxu0
      %v4352 = vadd.f32 %v4267, %v4351
      %v4353 = vpop.f32.mrb[0].mxu0
      %v4354 = vpop.f32.mrb[0].mxu0
      %v4355 = vadd.f32 %v4267, %v4354
      %v4356 = vpop.f32.mrb[0].mxu0
      %4357 = vmatprep.mubr.bf16.mxu0 0
      %4358 = vmatmul.mubr.bf16.gmra.mrb[0].mxu0 %v4240
      %v4359 = vpop.f32.mrb[0].mxu0
      %v4360 = vadd.f32 %v4267, %v4359
      %v4361 = vpop.f32.mrb[0].mxu0
      %v4362 = vpop.f32.mrb[0].mxu0
      %v4363 = vadd.f32 %v4267, %v4362
      %v4364 = vpop.f32.mrb[0].mxu0
      %4365 = vmatprep.mubr.bf16.mxu0 0
      %4366 = vmatmul.mubr.bf16.gmra.mrb[0].mxu0 %v4241
      %v4367 = vpop.f32.mrb[0].mxu0
      %v4368 = vadd.f32 %v4267, %v4367
      %v4369 = vpop.f32.mrb[0].mxu0
      %v4370 = vpop.f32.mrb[0].mxu0
      %v4371 = vadd.f32 %v4267, %v4370
      %v4372 = vpop.f32.mrb[0].mxu0
      %4373 = vmatprep.mubr.bf16.mxu0 0
      %4374 = vmatmul.mubr.bf16.gmra.mrb[0].mxu0 %v4242
      %v4375 = vpop.f32.mrb[0].mxu0
      %v4376 = vadd.f32 %v4267, %v4375
      %v4377 = vpop.f32.mrb[0].mxu0
      %v4378 = vpop.f32.mrb[0].mxu0
      %v4379 = vadd.f32 %v4267, %v4378
      %v4380 = vpop.f32.mrb[0].mxu0
      %4381 = vmatprep.mubr.bf16.mxu0 0
      %4382 = vmatmul.mubr.bf16.gmra.mrb[0].mxu0 %v4243
      %v4383 = vpop.f32.mrb[0].mxu0
      %v4384 = vadd.f32 %v4267, %v4383
      %v4385 = vpop.f32.mrb[0].mxu0
      %v4386 = vpop.f32.mrb[0].mxu0
      %v4387 = vadd.f32 %v4267, %v4386
      %v4388 = vpop.f32.mrb[0].mxu0
      %4389 = vmatprep.mubr.bf16.mxu0 0
      %4390 = vmatmul.mubr.bf16.gmra.mrb[0].mxu0 %v4244
      %v4391 = vpop.f32.mrb[0].mxu0
      %v4392 = vadd.f32 %v4267, %v4391
      %v4393 = vpop.f32.mrb[0].mxu0
      %v4394 = vpop.f32.mrb[0].mxu0
      %v4395 = vadd.f32 %v4267, %v4394
      %v4396 = vpop.f32.mrb[0].mxu0
      %4397 = vmatprep.mubr.bf16.mxu0 0
      %4398 = vmatmul.mubr.bf16.gmra.mrb[0].mxu0 %v4245
      %v4399 = vpop.f32.mrb[0].mxu0
      %v4400 = vadd.f32 %v4267, %v4399
      %v4401 = vpop.f32.mrb[0].mxu0
      %v4402 = vpop.f32.mrb[0].mxu0
      %v4403 = vadd.f32 %v4267, %v4402
      %v4404 = vpop.f32.mrb[0].mxu0
      %4405 = vdwg.mxu0
      %v4406 = vadd.f32 %v3735, %v4352
      %v4407 = vadd.f32 %v3736, %v4355
      %v4408 = vadd.f32 %v3737, %v4360
      %v4409 = vadd.f32 %v3738, %v4363
      %v4410 = vadd.f32 %v3739, %v4368
      %v4411 = vadd.f32 %v3740, %v4371
      %v4412 = vadd.f32 %v3741, %v4376
      %v4413 = vadd.f32 %v3742, %v4379
      %v4414 = vadd.f32 %v3743, %v4384
      %v4415 = vadd.f32 %v3744, %v4387
      %v4416 = vadd.f32 %v3745, %v4392
      %v4417 = vadd.f32 %v3746, %v4395
      %v4418 = vadd.f32 %v3747, %v4400
      %v4419 = vadd.f32 %v3748, %v4403
      %s4420 = scalar_lea.vmem %s3, 1
      %v4421 = vld [vmem:[%s4420] sm:$0x1]
      %s4422 = scalar_lea.vmem %s4, 1
      %v4423 = vld [vmem:[%s4422] sm:$0x1]
      %v4424 = vsel %vm1202, %v4406, 0.0
      %4425 = vadd.xlane.f32.xlu0 %v4424
      %v4426 = vpop.xlane.xlu0 %4425
      %v4427 = vsel %vm1202, %v4407, 0.0
      %4428 = vadd.xlane.f32.xlu0 %v4427
      %v4429 = vpop.xlane.xlu0 %4428
      %v4430 = vsel %vm1202, %v4408, 0.0
      %4431 = vadd.xlane.f32.xlu0 %v4430
      %v4432 = vpop.xlane.xlu0 %4431
      %v4433 = vsel %vm1202, %v4409, 0.0
      %4434 = vadd.xlane.f32.xlu0 %v4433
      %v4435 = vpop.xlane.xlu0 %4434
      %v4436 = vsel %vm1202, %v4410, 0.0
      %4437 = vadd.xlane.f32.xlu0 %v4436
      %v4438 = vpop.xlane.xlu0 %4437
      %v4439 = vsel %vm1202, %v4411, 0.0
      %4440 = vadd.xlane.f32.xlu0 %v4439
      %v4441 = vpop.xlane.xlu0 %4440
      %v4442 = vsel %vm1202, %v4412, 0.0
      %4443 = vadd.xlane.f32.xlu0 %v4442
      %v4444 = vpop.xlane.xlu0 %4443
      %v4445 = vsel %vm1202, %v4413, 0.0
      %4446 = vadd.xlane.f32.xlu0 %v4445
      %v4447 = vpop.xlane.xlu0 %4446
      %v4448 = vsel %vm1202, %v4414, 0.0
      %4449 = vadd.xlane.f32.xlu0 %v4448
      %v4450 = vpop.xlane.xlu0 %4449
      %v4451 = vsel %vm1202, %v4415, 0.0
      %4452 = vadd.xlane.f32.xlu0 %v4451
      %v4453 = vpop.xlane.xlu0 %4452
      %v4454 = vsel %vm1202, %v4416, 0.0
      %4455 = vadd.xlane.f32.xlu0 %v4454
      %v4456 = vpop.xlane.xlu0 %4455
      %v4457 = vsel %vm1202, %v4417, 0.0
      %4458 = vadd.xlane.f32.xlu0 %v4457
      %v4459 = vpop.xlane.xlu0 %4458
      %v4460 = vsel %vm1202, %v4418, 0.0
      %4461 = vadd.xlane.f32.xlu0 %v4460
      %v4462 = vpop.xlane.xlu0 %4461
      %v4463 = vsel %vm1242, %v4419, 0.0
      %4464 = vadd.xlane.f32.xlu0 %v4463
      %v4465 = vpop.xlane.xlu0 %4464
      %v4466 = vmul.f32 %v4426, %v1246
      %v4467 = vmul.f32 %v4429, %v1246
      %v4468 = vmul.f32 %v4432, %v1246
      %v4469 = vmul.f32 %v4435, %v1246
      %v4470 = vmul.f32 %v4438, %v1246
      %v4471 = vmul.f32 %v4441, %v1246
      %v4472 = vmul.f32 %v4444, %v1246
      %v4473 = vmul.f32 %v4447, %v1246
      %v4474 = vmul.f32 %v4450, %v1246
      %v4475 = vmul.f32 %v4453, %v1246
      %v4476 = vmul.f32 %v4456, %v1246
      %v4477 = vmul.f32 %v4459, %v1246
      %v4478 = vmul.f32 %v4462, %v1246
      %v4479 = vmul.f32 %v4465, %v1246
      %v4480 = vsub.f32 %v4406, %v4466
      %v4481 = vsub.f32 %v4407, %v4467
      %v4482 = vsub.f32 %v4408, %v4468
      %v4483 = vsub.f32 %v4409, %v4469
      %v4484 = vsub.f32 %v4410, %v4470
      %v4485 = vsub.f32 %v4411, %v4471
      %v4486 = vsub.f32 %v4412, %v4472
      %v4487 = vsub.f32 %v4413, %v4473
      %v4488 = vsub.f32 %v4414, %v4474
      %v4489 = vsub.f32 %v4415, %v4475
      %v4490 = vsub.f32 %v4416, %v4476
      %v4491 = vsub.f32 %v4417, %v4477
      %v4492 = vsub.f32 %v4418, %v4478
      %v4493 = vsub.f32 %v4419, %v4479
      %v4494 = vmul.f32 %v4480, %v4480
      %v4495 = vmul.f32 %v4481, %v4481
      %v4496 = vmul.f32 %v4482, %v4482
      %v4497 = vmul.f32 %v4483, %v4483
      %v4498 = vmul.f32 %v4484, %v4484
      %v4499 = vmul.f32 %v4485, %v4485
      %v4500 = vmul.f32 %v4486, %v4486
      %v4501 = vmul.f32 %v4487, %v4487
      %v4502 = vmul.f32 %v4488, %v4488
      %v4503 = vmul.f32 %v4489, %v4489
      %v4504 = vmul.f32 %v4490, %v4490
      %v4505 = vmul.f32 %v4491, %v4491
      %v4506 = vmul.f32 %v4492, %v4492
      %v4507 = vmul.f32 %v4493, %v4493
      %v4508 = vsel %vm1202, %v4494, 0.0
      %4509 = vadd.xlane.f32.xlu0 %v4508
      %v4510 = vpop.xlane.xlu0 %4509
      %v4511 = vsel %vm1202, %v4495, 0.0
      %4512 = vadd.xlane.f32.xlu0 %v4511
      %v4513 = vpop.xlane.xlu0 %4512
      %v4514 = vsel %vm1202, %v4496, 0.0
      %4515 = vadd.xlane.f32.xlu0 %v4514
      %v4516 = vpop.xlane.xlu0 %4515
      %v4517 = vsel %vm1202, %v4497, 0.0
      %4518 = vadd.xlane.f32.xlu0 %v4517
      %v4519 = vpop.xlane.xlu0 %4518
      %v4520 = vsel %vm1202, %v4498, 0.0
      %4521 = vadd.xlane.f32.xlu0 %v4520
      %v4522 = vpop.xlane.xlu0 %4521
      %v4523 = vsel %vm1202, %v4499, 0.0
      %4524 = vadd.xlane.f32.xlu0 %v4523
      %v4525 = vpop.xlane.xlu0 %4524
      %v4526 = vsel %vm1202, %v4500, 0.0
      %4527 = vadd.xlane.f32.xlu0 %v4526
      %v4528 = vpop.xlane.xlu0 %4527
      %v4529 = vsel %vm1202, %v4501, 0.0
      %4530 = vadd.xlane.f32.xlu0 %v4529
      %v4531 = vpop.xlane.xlu0 %4530
      %v4532 = vsel %vm1202, %v4502, 0.0
      %4533 = vadd.xlane.f32.xlu0 %v4532
      %v4534 = vpop.xlane.xlu0 %4533
      %v4535 = vsel %vm1202, %v4503, 0.0
      %4536 = vadd.xlane.f32.xlu0 %v4535
      %v4537 = vpop.xlane.xlu0 %4536
      %v4538 = vsel %vm1202, %v4504, 0.0
      %4539 = vadd.xlane.f32.xlu0 %v4538
      %v4540 = vpop.xlane.xlu0 %4539
      %v4541 = vsel %vm1202, %v4505, 0.0
      %4542 = vadd.xlane.f32.xlu0 %v4541
      %v4543 = vpop.xlane.xlu0 %4542
      %v4544 = vsel %vm1202, %v4506, 0.0
      %4545 = vadd.xlane.f32.xlu0 %v4544
      %v4546 = vpop.xlane.xlu0 %4545
      %v4547 = vsel %vm1242, %v4507, 0.0
      %4548 = vadd.xlane.f32.xlu0 %v4547
      %v4549 = vpop.xlane.xlu0 %4548
      %v4550 = vmul.f32 %v4510, %v1246
      %v4551 = vmul.f32 %v4513, %v1246
      %v4552 = vmul.f32 %v4516, %v1246
      %v4553 = vmul.f32 %v4519, %v1246
      %v4554 = vmul.f32 %v4522, %v1246
      %v4555 = vmul.f32 %v4525, %v1246
      %v4556 = vmul.f32 %v4528, %v1246
      %v4557 = vmul.f32 %v4531, %v1246
      %v4558 = vmul.f32 %v4534, %v1246
      %v4559 = vmul.f32 %v4537, %v1246
      %v4560 = vmul.f32 %v4540, %v1246
      %v4561 = vmul.f32 %v4543, %v1246
      %v4562 = vmul.f32 %v4546, %v1246
      %v4563 = vmul.f32 %v4549, %v1246
      %v4564 = vadd.f32 %v4550, 1e-05
      %v4565 = vadd.f32 %v4551, 1e-05
      %v4566 = vadd.f32 %v4552, 1e-05
      %v4567 = vadd.f32 %v4553, 1e-05
      %v4568 = vadd.f32 %v4554, 1e-05
      %v4569 = vadd.f32 %v4555, 1e-05
      %v4570 = vadd.f32 %v4556, 1e-05
      %v4571 = vadd.f32 %v4557, 1e-05
      %v4572 = vadd.f32 %v4558, 1e-05
      %v4573 = vadd.f32 %v4559, 1e-05
      %v4574 = vadd.f32 %v4560, 1e-05
      %v4575 = vadd.f32 %v4561, 1e-05
      %v4576 = vadd.f32 %v4562, 1e-05
      %v4577 = vadd.f32 %v4563, 1e-05
      %v4578 = vrsqrt.pop %v4564
      %v4579 = vrsqrt.pop %v4565
      %v4580 = vrsqrt.pop %v4566
      %v4581 = vrsqrt.pop %v4567
      %v4582 = vrsqrt.pop %v4568
      %v4583 = vrsqrt.pop %v4569
      %v4584 = vrsqrt.pop %v4570
      %v4585 = vrsqrt.pop %v4571
      %v4586 = vrsqrt.pop %v4572
      %v4587 = vrsqrt.pop %v4573
      %v4588 = vrsqrt.pop %v4574
      %v4589 = vrsqrt.pop %v4575
      %v4590 = vrsqrt.pop %v4576
      %v4591 = vrsqrt.pop %v4577
      %v4592 = vmul.f32 %v4480, %v4578
      %v4593 = vmul.f32 %v4481, %v4579
      %v4594 = vmul.f32 %v4482, %v4580
      %v4595 = vmul.f32 %v4483, %v4581
      %v4596 = vmul.f32 %v4484, %v4582
      %v4597 = vmul.f32 %v4485, %v4583
      %v4598 = vmul.f32 %v4486, %v4584
      %v4599 = vmul.f32 %v4487, %v4585
      %v4600 = vmul.f32 %v4488, %v4586
      %v4601 = vmul.f32 %v4489, %v4587
      %v4602 = vmul.f32 %v4490, %v4588
      %v4603 = vmul.f32 %v4491, %v4589
      %v4604 = vmul.f32 %v4492, %v4590
      %v4605 = vmul.f32 %v4493, %v4591
      %v4607 = vlaneseq
      %v4608 = vshrl.u32 %v4607, 7
      %v4609 = vsub.s32 0, %v4608
      %v4610 = vrot.slane %v4421, %v4609
      %v4612 = vmul.f32 %v4592, %v4610
      %v4613 = vmul.f32 %v4593, %v4610
      %v4614 = vmul.f32 %v4594, %v4610
      %v4615 = vmul.f32 %v4595, %v4610
      %v4616 = vmul.f32 %v4596, %v4610
      %v4617 = vmul.f32 %v4597, %v4610
      %v4618 = vmul.f32 %v4598, %v4610
      %v4619 = vmul.f32 %v4599, %v4610
      %v4620 = vmul.f32 %v4600, %v4610
      %v4621 = vmul.f32 %v4601, %v4610
      %v4622 = vmul.f32 %v4602, %v4610
      %v4623 = vmul.f32 %v4603, %v4610
      %v4624 = vmul.f32 %v4604, %v4610
      %v4625 = vmul.f32 %v4605, %v4610
      %v4627 = vlaneseq
      %v4628 = vshrl.u32 %v4627, 7
      %v4629 = vsub.s32 0, %v4628
      %v4630 = vrot.slane %v4423, %v4629
      %v4632 = vadd.f32 %v4612, %v4630
      %v4633 = vadd.f32 %v4613, %v4630
      %v4634 = vadd.f32 %v4614, %v4630
      %v4635 = vadd.f32 %v4615, %v4630
      %v4636 = vadd.f32 %v4616, %v4630
      %v4637 = vadd.f32 %v4617, %v4630
      %v4638 = vadd.f32 %v4618, %v4630
      %v4639 = vadd.f32 %v4619, %v4630
      %v4640 = vadd.f32 %v4620, %v4630
      %v4641 = vadd.f32 %v4621, %v4630
      %v4642 = vadd.f32 %v4622, %v4630
      %v4643 = vadd.f32 %v4623, %v4630
      %v4644 = vadd.f32 %v4624, %v4630
      %v4645 = vadd.f32 %v4625, %v4630
      %v4646 = vpack.c.bf16 %v4633, %v4632
      %v4647 = vpack.c.bf16 %v4635, %v4634
      %v4648 = vpack.c.bf16 %v4637, %v4636
      %v4649 = vpack.c.bf16 %v4639, %v4638
      %v4650 = vpack.c.bf16 %v4641, %v4640
      %v4651 = vpack.c.bf16 %v4643, %v4642
      %v4652 = vpack.c.bf16 %v4645, %v4644
      %s4653 = scalar_lea.vmem %s5, 16
      %v4654 = vld [vmem:[%s4653] sm:$0xf]
      %v4655 = vld [vmem:[%s4653 + $0x4] sm:$0xf]
      %v4656 = vld [vmem:[%s4653 + $0x8] sm:$0xf]
      %v4657 = vld [vmem:[%s4653 + $0xc] sm:$0xf]
      %s4658 = scalar_lea.vmem %s6, 1
      %v4659 = vld [vmem:[%s4658] sm:$0x1]
      %v4661 = vlaneseq
      %v4662 = vshrl.u32 %v4661, 7
      %v4663 = vsub.s32 0, %v4662
      %v4664 = vrot.slane %v4659, %v4663
      %v4670 = vunpack.c.l.b16 %v4654
      %v4671 = vunpack.c.l.b16 %v4655
      %v4672 = vunpack.c.l.b16 %v4656
      %v4673 = vunpack.c.l.b16 %v4657
      %v4674 = vpack.c.b16 %v4671, %v4670
      %v4675 = vpack.c.b16 %v4673, %v4672
      %v4679 = vsel %vm1202, %v4646, 0
      %v4682 = vsel %vm1202, %v4647, 0
      %v4685 = vsel %vm1202, %v4648, 0
      %v4688 = vsel %vm1202, %v4649, 0
      %v4691 = vsel %vm1202, %v4650, 0
      %v4694 = vsel %vm1202, %v4651, 0
      %v4697 = vsel %vm1202, %v4652, 0
      %4699 = vmatprep.subr.bf16.mxu0 0
      %4700 = vmatpush1.bf16.msra.mxu0 %v4674
      %4701 = vmatprep.subr.bf16.mxu0 0
      %4702 = vmatpush1.bf16.msra.mxu0 %v4675
      %4703 = vmatprep.subr.bf16.mxu0 0
      %4704 = vmatpush1.bf16.msra.mxu0 0
      %4705 = vmatprep.subr.bf16.mxu0 0
      %4706 = vmatpush1.bf16.msra.mxu0 0
      %4707 = vmatprep.subr.bf16.mxu0 0
      %4708 = vmatpush1.bf16.msra.mxu0 0
      %4709 = vmatprep.subr.bf16.mxu0 0
      %4710 = vmatpush1.bf16.msra.mxu0 0
      %4711 = vmatprep.subr.bf16.mxu0 0
      %4712 = vmatpush1.bf16.msra.mxu0 0
      %4713 = vmatprep.subr.bf16.mxu0 0
      %4714 = vmatpush1.bf16.msra.mxu0 0
      %4715 = vmatprep.subr.bf16.mxu0 0
      %4716 = vmatpush1.bf16.msra.mxu0 0
      %4717 = vmatprep.subr.bf16.mxu0 0
      %4718 = vmatpush1.bf16.msra.mxu0 0
      %4719 = vmatprep.subr.bf16.mxu0 0
      %4720 = vmatpush1.bf16.msra.mxu0 0
      %4721 = vmatprep.subr.bf16.mxu0 0
      %4722 = vmatpush1.bf16.msra.mxu0 0
      %4723 = vmatprep.subr.bf16.mxu0 0
      %4724 = vmatpush1.bf16.msra.mxu0 0
      %4725 = vmatprep.subr.bf16.mxu0 0
      %4726 = vmatpush1.bf16.msra.mxu0 0
      %4727 = vmatprep.subr.bf16.mxu0 0
      %4728 = vmatpush1.bf16.msra.mxu0 0
      %4729 = vmatprep.subr.bf16.mxu0 0
      %4730 = vmatpush1.bf16.msra.mxu0 0
      %4731 = vmatprep.mubr.bf16.mxu0 0
      %4732 = vmatmul.mubr.bf16.gmra.mrb[0].mxu0 %v4679
      %v4733 = vpop.f32.mrb[0].mxu0
      %v4734 = vadd.f32 %v4664, %v4733
      %v4735 = vpop.f32.mrb[0].mxu0
      %v4736 = vpop.f32.mrb[0].mxu0
      %v4737 = vadd.f32 %v4664, %v4736
      %v4738 = vpop.f32.mrb[0].mxu0
      %4739 = vmatprep.mubr.bf16.mxu0 0
      %4740 = vmatmul.mubr.bf16.gmra.mrb[0].mxu0 %v4682
      %v4741 = vpop.f32.mrb[0].mxu0
      %v4742 = vadd.f32 %v4664, %v4741
      %v4743 = vpop.f32.mrb[0].mxu0
      %v4744 = vpop.f32.mrb[0].mxu0
      %v4745 = vadd.f32 %v4664, %v4744
      %v4746 = vpop.f32.mrb[0].mxu0
      %4747 = vmatprep.mubr.bf16.mxu0 0
      %4748 = vmatmul.mubr.bf16.gmra.mrb[0].mxu0 %v4685
      %v4749 = vpop.f32.mrb[0].mxu0
      %v4750 = vadd.f32 %v4664, %v4749
      %v4751 = vpop.f32.mrb[0].mxu0
      %v4752 = vpop.f32.mrb[0].mxu0
      %v4753 = vadd.f32 %v4664, %v4752
      %v4754 = vpop.f32.mrb[0].mxu0
      %4755 = vmatprep.mubr.bf16.mxu0 0
      %4756 = vmatmul.mubr.bf16.gmra.mrb[0].mxu0 %v4688
      %v4757 = vpop.f32.mrb[0].mxu0
      %v4758 = vadd.f32 %v4664, %v4757
      %v4759 = vpop.f32.mrb[0].mxu0
      %v4760 = vpop.f32.mrb[0].mxu0
      %v4761 = vadd.f32 %v4664, %v4760
      %v4762 = vpop.f32.mrb[0].mxu0
      %4763 = vmatprep.mubr.bf16.mxu0 0
      %4764 = vmatmul.mubr.bf16.gmra.mrb[0].mxu0 %v4691
      %v4765 = vpop.f32.mrb[0].mxu0
      %v4766 = vadd.f32 %v4664, %v4765
      %v4767 = vpop.f32.mrb[0].mxu0
      %v4768 = vpop.f32.mrb[0].mxu0
      %v4769 = vadd.f32 %v4664, %v4768
      %v4770 = vpop.f32.mrb[0].mxu0
      %4771 = vmatprep.mubr.bf16.mxu0 0
      %4772 = vmatmul.mubr.bf16.gmra.mrb[0].mxu0 %v4694
      %v4773 = vpop.f32.mrb[0].mxu0
      %v4774 = vadd.f32 %v4664, %v4773
      %v4775 = vpop.f32.mrb[0].mxu0
      %v4776 = vpop.f32.mrb[0].mxu0
      %v4777 = vadd.f32 %v4664, %v4776
      %v4778 = vpop.f32.mrb[0].mxu0
      %4779 = vmatprep.mubr.bf16.mxu0 0
      %4780 = vmatmul.mubr.bf16.gmra.mrb[0].mxu0 %v4697
      %v4781 = vpop.f32.mrb[0].mxu0
      %v4782 = vadd.f32 %v4664, %v4781
      %v4783 = vpop.f32.mrb[0].mxu0
      %v4784 = vpop.f32.mrb[0].mxu0
      %v4785 = vadd.f32 %v4664, %v4784
      %v4786 = vpop.f32.mrb[0].mxu0
      %4787 = vdwg.mxu0
      %v4788 = vpack.c.bf16 %v4737, %v4734
      %v4789 = vpack.c.bf16 %v4745, %v4742
      %v4790 = vpack.c.bf16 %v4753, %v4750
      %v4791 = vpack.c.bf16 %v4761, %v4758
      %v4792 = vpack.c.bf16 %v4769, %v4766
      %v4793 = vpack.c.bf16 %v4777, %v4774
      %v4794 = vpack.c.bf16 %v4785, %v4782
      %4802 = vrot.lane.b32.xlu0 %v4788, 96
      %v4803 = vpop.permute.xlu0 %4802
      %4804 = vrot.lane.b32.xlu0 %v4789, 96
      %v4805 = vpop.permute.xlu0 %4804
      %4806 = vrot.lane.b32.xlu0 %v4790, 96
      %v4807 = vpop.permute.xlu0 %4806
      %4808 = vrot.lane.b32.xlu0 %v4791, 96
      %v4809 = vpop.permute.xlu0 %4808
      %4810 = vrot.lane.b32.xlu0 %v4792, 96
      %v4811 = vpop.permute.xlu0 %4810
      %4812 = vrot.lane.b32.xlu0 %v4793, 96
      %v4813 = vpop.permute.xlu0 %4812
      %4814 = vrot.lane.b32.xlu0 %v4794, 96
      %v4815 = vpop.permute.xlu0 %4814
      %v4817 = vsel %vm1595, %v4788, 0
      %v4820 = vsel %vm1595, %v4789, 0
      %v4823 = vsel %vm1595, %v4790, 0
      %v4826 = vsel %vm1595, %v4791, 0
      %v4829 = vsel %vm1595, %v4792, 0
      %v4832 = vsel %vm1595, %v4793, 0
      %v4835 = vsel %vm1595, %v4794, 0
      %v4838 = vsel %vm1595, %v4803, 0
      %v4841 = vsel %vm1595, %v4805, 0
      %v4844 = vsel %vm1595, %v4807, 0
      %v4847 = vsel %vm1595, %v4809, 0
      %v4850 = vsel %vm1595, %v4811, 0
      %v4853 = vsel %vm1595, %v4813, 0
      %v4856 = vsel %vm1595, %v4815, 0
      %4858 = vmatprep.subr.bf16.mxu0 0
      %4859 = vmatpush1.bf16.xpose.msra.mxu0 %v4838
      %4860 = vmatprep.subr.bf16.mxu0 0
      %4861 = vmatpush1.bf16.xpose.msra.mxu0 %v4841
      %4862 = vmatprep.subr.bf16.mxu0 0
      %4863 = vmatpush1.bf16.xpose.msra.mxu0 %v4844
      %4864 = vmatprep.subr.bf16.mxu0 0
      %4865 = vmatpush1.bf16.xpose.msra.mxu0 %v4847
      %4866 = vmatprep.subr.bf16.mxu0 0
      %4867 = vmatpush1.bf16.xpose.msra.mxu0 %v4850
      %4868 = vmatprep.subr.bf16.mxu0 0
      %4869 = vmatpush1.bf16.xpose.msra.mxu0 %v4853
      %4870 = vmatprep.subr.bf16.mxu0 0
      %4871 = vmatpush1.bf16.xpose.msra.mxu0 %v4856
      %4872 = vmatprep.subr.bf16.mxu0 0
      %4873 = vmatpush1.bf16.xpose.msra.mxu0 0
      %4874 = vmatprep.subr.bf16.mxu0 0
      %4875 = vmatpush1.bf16.xpose.msra.mxu0 0
      %4876 = vmatprep.subr.bf16.mxu0 0
      %4877 = vmatpush1.bf16.xpose.msra.mxu0 0
      %4878 = vmatprep.subr.bf16.mxu0 0
      %4879 = vmatpush1.bf16.xpose.msra.mxu0 0
      %4880 = vmatprep.subr.bf16.mxu0 0
      %4881 = vmatpush1.bf16.xpose.msra.mxu0 0
      %4882 = vmatprep.subr.bf16.mxu0 0
      %4883 = vmatpush1.bf16.xpose.msra.mxu0 0
      %4884 = vmatprep.subr.bf16.mxu0 0
      %4885 = vmatpush1.bf16.xpose.msra.mxu0 0
      %4886 = vmatprep.subr.bf16.mxu0 0
      %4887 = vmatpush1.bf16.xpose.msra.mxu0 0
      %4888 = vmatprep.subr.bf16.mxu0 0
      %4889 = vmatpush1.bf16.xpose.msra.mxu0 0
      %4890 = vmatprep.mubr.bf16.mxu0 0
      %4891 = vmatmul.mubr.bf16.gmra.mrb[0].mxu0 %v4817
      %v4892 = vpop.f32.mrb[0].mxu0
      %v4893 = vadd.f32 %v753, %v4892
      %v4894 = vpop.f32.mrb[0].mxu0
      %v4895 = vpop.f32.mrb[0].mxu0
      %v4896 = vadd.f32 %v756, %v4895
      %v4897 = vpop.f32.mrb[0].mxu0
      %4898 = vmatprep.mubr.bf16.mxu0 0
      %4899 = vmatmul.mubr.bf16.gmra.mrb[0].mxu0 %v4820
      %v4900 = vpop.f32.mrb[0].mxu0
      %v4901 = vadd.f32 %v761, %v4900
      %v4902 = vpop.f32.mrb[0].mxu0
      %v4903 = vpop.f32.mrb[0].mxu0
      %v4904 = vadd.f32 %v764, %v4903
      %v4905 = vpop.f32.mrb[0].mxu0
      %4906 = vmatprep.mubr.bf16.mxu0 0
      %4907 = vmatmul.mubr.bf16.gmra.mrb[0].mxu0 %v4823
      %v4908 = vpop.f32.mrb[0].mxu0
      %v4909 = vadd.f32 %v769, %v4908
      %v4910 = vpop.f32.mrb[0].mxu0
      %v4911 = vpop.f32.mrb[0].mxu0
      %v4912 = vadd.f32 %v772, %v4911
      %v4913 = vpop.f32.mrb[0].mxu0
      %4914 = vmatprep.mubr.bf16.mxu0 0
      %4915 = vmatmul.mubr.bf16.gmra.mrb[0].mxu0 %v4826
      %v4916 = vpop.f32.mrb[0].mxu0
      %v4917 = vadd.f32 %v777, %v4916
      %v4918 = vpop.f32.mrb[0].mxu0
      %v4919 = vpop.f32.mrb[0].mxu0
      %v4920 = vadd.f32 %v780, %v4919
      %v4921 = vpop.f32.mrb[0].mxu0
      %4922 = vmatprep.mubr.bf16.mxu0 0
      %4923 = vmatmul.mubr.bf16.gmra.mrb[0].mxu0 %v4829
      %v4924 = vpop.f32.mrb[0].mxu0
      %v4925 = vadd.f32 %v785, %v4924
      %v4926 = vpop.f32.mrb[0].mxu0
      %v4927 = vpop.f32.mrb[0].mxu0
      %v4928 = vadd.f32 %v788, %v4927
      %v4929 = vpop.f32.mrb[0].mxu0
      %4930 = vmatprep.mubr.bf16.mxu0 0
      %4931 = vmatmul.mubr.bf16.gmra.mrb[0].mxu0 %v4832
      %v4932 = vpop.f32.mrb[0].mxu0
      %v4933 = vadd.f32 %v793, %v4932
      %v4934 = vpop.f32.mrb[0].mxu0
      %v4935 = vpop.f32.mrb[0].mxu0
      %v4936 = vadd.f32 %v796, %v4935
      %v4937 = vpop.f32.mrb[0].mxu0
      %4938 = vmatprep.mubr.bf16.mxu0 0
      %4939 = vmatmul.mubr.bf16.gmra.mrb[0].mxu0 %v4835
      %v4940 = vpop.f32.mrb[0].mxu0
      %v4941 = vadd.f32 %v801, %v4940
      %v4942 = vpop.f32.mrb[0].mxu0
      %v4943 = vpop.f32.mrb[0].mxu0
      %v4944 = vadd.f32 %v804, %v4943
      %v4945 = vpop.f32.mrb[0].mxu0
      %4946 = vdwg.mxu0
      %v4947 = vsel %vm1727, %v4893, -inf
      %4948 = vmax.xlane.f32.xlu0 %v4947
      %v4949 = vpop.xlane.xlu0 %4948
      %v4950 = vsel %vm1727, %v4896, -inf
      %4951 = vmax.xlane.f32.xlu0 %v4950
      %v4952 = vpop.xlane.xlu0 %4951
      %v4953 = vsel %vm1727, %v4901, -inf
      %4954 = vmax.xlane.f32.xlu0 %v4953
      %v4955 = vpop.xlane.xlu0 %4954
      %v4956 = vsel %vm1727, %v4904, -inf
      %4957 = vmax.xlane.f32.xlu0 %v4956
      %v4958 = vpop.xlane.xlu0 %4957
      %v4959 = vsel %vm1727, %v4909, -inf
      %4960 = vmax.xlane.f32.xlu0 %v4959
      %v4961 = vpop.xlane.xlu0 %4960
      %v4962 = vsel %vm1727, %v4912, -inf
      %4963 = vmax.xlane.f32.xlu0 %v4962
      %v4964 = vpop.xlane.xlu0 %4963
      %v4965 = vsel %vm1727, %v4917, -inf
      %4966 = vmax.xlane.f32.xlu0 %v4965
      %v4967 = vpop.xlane.xlu0 %4966
      %v4968 = vsel %vm1727, %v4920, -inf
      %4969 = vmax.xlane.f32.xlu0 %v4968
      %v4970 = vpop.xlane.xlu0 %4969
      %v4971 = vsel %vm1727, %v4925, -inf
      %4972 = vmax.xlane.f32.xlu0 %v4971
      %v4973 = vpop.xlane.xlu0 %4972
      %v4974 = vsel %vm1727, %v4928, -inf
      %4975 = vmax.xlane.f32.xlu0 %v4974
      %v4976 = vpop.xlane.xlu0 %4975
      %v4977 = vsel %vm1727, %v4933, -inf
      %4978 = vmax.xlane.f32.xlu0 %v4977
      %v4979 = vpop.xlane.xlu0 %4978
      %v4980 = vsel %vm1727, %v4936, -inf
      %4981 = vmax.xlane.f32.xlu0 %v4980
      %v4982 = vpop.xlane.xlu0 %4981
      %v4983 = vsel %vm1727, %v4941, -inf
      %4984 = vmax.xlane.f32.xlu0 %v4983
      %v4985 = vpop.xlane.xlu0 %4984
      %v4986 = vsel %vm1767, %v4944, -inf
      %4987 = vmax.xlane.f32.xlu0 %v4986
      %v4988 = vpop.xlane.xlu0 %4987
      %v4989 = vsub.f32 %v4893, %v4949
      %v4990 = vsub.f32 %v4896, %v4952
      %v4991 = vsub.f32 %v4901, %v4955
      %v4992 = vsub.f32 %v4904, %v4958
      %v4993 = vsub.f32 %v4909, %v4961
      %v4994 = vsub.f32 %v4912, %v4964
      %v4995 = vsub.f32 %v4917, %v4967
      %v4996 = vsub.f32 %v4920, %v4970
      %v4997 = vsub.f32 %v4925, %v4973
      %v4998 = vsub.f32 %v4928, %v4976
      %v4999 = vsub.f32 %v4933, %v4979
      %v5000 = vsub.f32 %v4936, %v4982
      %v5001 = vsub.f32 %v4941, %v4985
      %v5002 = vsub.f32 %v4944, %v4988
      %v5003 = vmul.f32 %v4989, 1.442695
      %v5004 = vpow.pop %v5003
      %v5005 = vmul.f32 %v4990, 1.442695
      %v5006 = vpow.pop %v5005
      %v5007 = vmul.f32 %v4991, 1.442695
      %v5008 = vpow.pop %v5007
      %v5009 = vmul.f32 %v4992, 1.442695
      %v5010 = vpow.pop %v5009
      %v5011 = vmul.f32 %v4993, 1.442695
      %v5012 = vpow.pop %v5011
      %v5013 = vmul.f32 %v4994, 1.442695
      %v5014 = vpow.pop %v5013
      %v5015 = vmul.f32 %v4995, 1.442695
      %v5016 = vpow.pop %v5015
      %v5017 = vmul.f32 %v4996, 1.442695
      %v5018 = vpow.pop %v5017
      %v5019 = vmul.f32 %v4997, 1.442695
      %v5020 = vpow.pop %v5019
      %v5021 = vmul.f32 %v4998, 1.442695
      %v5022 = vpow.pop %v5021
      %v5023 = vmul.f32 %v4999, 1.442695
      %v5024 = vpow.pop %v5023
      %v5025 = vmul.f32 %v5000, 1.442695
      %v5026 = vpow.pop %v5025
      %v5027 = vmul.f32 %v5001, 1.442695
      %v5028 = vpow.pop %v5027
      %v5029 = vmul.f32 %v5002, 1.442695
      %v5030 = vpow.pop %v5029
      %v5031 = vsel %vm1727, %v5004, 0.0
      %5032 = vadd.xlane.f32.xlu0 %v5031
      %v5033 = vpop.xlane.xlu0 %5032
      %v5034 = vsel %vm1727, %v5006, 0.0
      %5035 = vadd.xlane.f32.xlu0 %v5034
      %v5036 = vpop.xlane.xlu0 %5035
      %v5037 = vsel %vm1727, %v5008, 0.0
      %5038 = vadd.xlane.f32.xlu0 %v5037
      %v5039 = vpop.xlane.xlu0 %5038
      %v5040 = vsel %vm1727, %v5010, 0.0
      %5041 = vadd.xlane.f32.xlu0 %v5040
      %v5042 = vpop.xlane.xlu0 %5041
      %v5043 = vsel %vm1727, %v5012, 0.0
      %5044 = vadd.xlane.f32.xlu0 %v5043
      %v5045 = vpop.xlane.xlu0 %5044
      %v5046 = vsel %vm1727, %v5014, 0.0
      %5047 = vadd.xlane.f32.xlu0 %v5046
      %v5048 = vpop.xlane.xlu0 %5047
      %v5049 = vsel %vm1727, %v5016, 0.0
      %5050 = vadd.xlane.f32.xlu0 %v5049
      %v5051 = vpop.xlane.xlu0 %5050
      %v5052 = vsel %vm1727, %v5018, 0.0
      %5053 = vadd.xlane.f32.xlu0 %v5052
      %v5054 = vpop.xlane.xlu0 %5053
      %v5055 = vsel %vm1727, %v5020, 0.0
      %5056 = vadd.xlane.f32.xlu0 %v5055
      %v5057 = vpop.xlane.xlu0 %5056
      %v5058 = vsel %vm1727, %v5022, 0.0
      %5059 = vadd.xlane.f32.xlu0 %v5058
      %v5060 = vpop.xlane.xlu0 %5059
      %v5061 = vsel %vm1727, %v5024, 0.0
      %5062 = vadd.xlane.f32.xlu0 %v5061
      %v5063 = vpop.xlane.xlu0 %5062
      %v5064 = vsel %vm1727, %v5026, 0.0
      %5065 = vadd.xlane.f32.xlu0 %v5064
      %v5066 = vpop.xlane.xlu0 %5065
      %v5067 = vsel %vm1727, %v5028, 0.0
      %5068 = vadd.xlane.f32.xlu0 %v5067
      %v5069 = vpop.xlane.xlu0 %5068
      %v5070 = vsel %vm1767, %v5030, 0.0
      %5071 = vadd.xlane.f32.xlu0 %v5070
      %v5072 = vpop.xlane.xlu0 %5071
      %v5073 = vrcp.pop %v5033
      %v5074 = vrcp.pop %v5036
      %v5075 = vrcp.pop %v5039
      %v5076 = vrcp.pop %v5042
      %v5077 = vrcp.pop %v5045
      %v5078 = vrcp.pop %v5048
      %v5079 = vrcp.pop %v5051
      %v5080 = vrcp.pop %v5054
      %v5081 = vrcp.pop %v5057
      %v5082 = vrcp.pop %v5060
      %v5083 = vrcp.pop %v5063
      %v5084 = vrcp.pop %v5066
      %v5085 = vrcp.pop %v5069
      %v5086 = vrcp.pop %v5072
      %v5087 = vmul.f32 %v5004, %v5073
      %v5088 = vmul.f32 %v5006, %v5074
      %v5089 = vmul.f32 %v5008, %v5075
      %v5090 = vmul.f32 %v5010, %v5076
      %v5091 = vmul.f32 %v5012, %v5077
      %v5092 = vmul.f32 %v5014, %v5078
      %v5093 = vmul.f32 %v5016, %v5079
      %v5094 = vmul.f32 %v5018, %v5080
      %v5095 = vmul.f32 %v5020, %v5081
      %v5096 = vmul.f32 %v5022, %v5082
      %v5097 = vmul.f32 %v5024, %v5083
      %v5098 = vmul.f32 %v5026, %v5084
      %v5099 = vmul.f32 %v5028, %v5085
      %v5100 = vmul.f32 %v5030, %v5086
      %v5101 = vpack.c.bf16 %v5088, %v5087
      %v5102 = vpack.c.bf16 %v5090, %v5089
      %v5103 = vpack.c.bf16 %v5092, %v5091
      %v5104 = vpack.c.bf16 %v5094, %v5093
      %v5105 = vpack.c.bf16 %v5096, %v5095
      %v5106 = vpack.c.bf16 %v5098, %v5097
      %v5107 = vpack.c.bf16 %v5100, %v5099
      %5108 = vrot.lane.b32.xlu0 %v4788, 64
      %v5109 = vpop.permute.xlu0 %5108
      %5110 = vrot.lane.b32.xlu0 %v4789, 64
      %v5111 = vpop.permute.xlu0 %5110
      %5112 = vrot.lane.b32.xlu0 %v4790, 64
      %v5113 = vpop.permute.xlu0 %5112
      %5114 = vrot.lane.b32.xlu0 %v4791, 64
      %v5115 = vpop.permute.xlu0 %5114
      %5116 = vrot.lane.b32.xlu0 %v4792, 64
      %v5117 = vpop.permute.xlu0 %5116
      %5118 = vrot.lane.b32.xlu0 %v4793, 64
      %v5119 = vpop.permute.xlu0 %5118
      %5120 = vrot.lane.b32.xlu0 %v4794, 64
      %v5121 = vpop.permute.xlu0 %5120
      %v5129 = vsel %vm1727, %v5101, 0
      %v5132 = vsel %vm1727, %v5102, 0
      %v5135 = vsel %vm1727, %v5103, 0
      %v5138 = vsel %vm1727, %v5104, 0
      %v5141 = vsel %vm1727, %v5105, 0
      %v5144 = vsel %vm1727, %v5106, 0
      %v5147 = vsel %vm1727, %v5107, 0
      %v5150 = vsel %vm1931, %v5121, 0
      %5152 = vmatprep.subr.bf16.mxu0 0
      %5153 = vmatpush1.bf16.msra.mxu0 %v5109
      %5154 = vmatprep.subr.bf16.mxu0 0
      %5155 = vmatpush1.bf16.msra.mxu0 %v5111
      %5156 = vmatprep.subr.bf16.mxu0 0
      %5157 = vmatpush1.bf16.msra.mxu0 %v5113
      %5158 = vmatprep.subr.bf16.mxu0 0
      %5159 = vmatpush1.bf16.msra.mxu0 %v5115
      %5160 = vmatprep.subr.bf16.mxu0 0
      %5161 = vmatpush1.bf16.msra.mxu0 %v5117
      %5162 = vmatprep.subr.bf16.mxu0 0
      %5163 = vmatpush1.bf16.msra.mxu0 %v5119
      %5164 = vmatprep.subr.bf16.mxu0 0
      %5165 = vmatpush1.bf16.msra.mxu0 %v5150
      %5166 = vmatprep.subr.bf16.mxu0 0
      %5167 = vmatpush1.bf16.msra.mxu0 0
      %5168 = vmatprep.subr.bf16.mxu0 0
      %5169 = vmatpush1.bf16.msra.mxu0 0
      %5170 = vmatprep.subr.bf16.mxu0 0
      %5171 = vmatpush1.bf16.msra.mxu0 0
      %5172 = vmatprep.subr.bf16.mxu0 0
      %5173 = vmatpush1.bf16.msra.mxu0 0
      %5174 = vmatprep.subr.bf16.mxu0 0
      %5175 = vmatpush1.bf16.msra.mxu0 0
      %5176 = vmatprep.subr.bf16.mxu0 0
      %5177 = vmatpush1.bf16.msra.mxu0 0
      %5178 = vmatprep.subr.bf16.mxu0 0
      %5179 = vmatpush1.bf16.msra.mxu0 0
      %5180 = vmatprep.subr.bf16.mxu0 0
      %5181 = vmatpush1.bf16.msra.mxu0 0
      %5182 = vmatprep.subr.bf16.mxu0 0
      %5183 = vmatpush1.bf16.msra.mxu0 0
      %5184 = vmatprep.mubr.bf16.mxu0 0
      %5185 = vmatmul.mubr.bf16.gmra.mrb[0].mxu0 %v5129
      %v5186 = vpop.f32.mrb[0].mxu0
      %v5187 = vadd.f32 0.0, %v5186
      %v5188 = vpop.f32.mrb[0].mxu0
      %v5189 = vpop.f32.mrb[0].mxu0
      %v5190 = vadd.f32 0.0, %v5189
      %v5191 = vpop.f32.mrb[0].mxu0
      %5192 = vmatprep.mubr.bf16.mxu0 0
      %5193 = vmatmul.mubr.bf16.gmra.mrb[0].mxu0 %v5132
      %v5194 = vpop.f32.mrb[0].mxu0
      %v5195 = vadd.f32 0.0, %v5194
      %v5196 = vpop.f32.mrb[0].mxu0
      %v5197 = vpop.f32.mrb[0].mxu0
      %v5198 = vadd.f32 0.0, %v5197
      %v5199 = vpop.f32.mrb[0].mxu0
      %5200 = vmatprep.mubr.bf16.mxu0 0
      %5201 = vmatmul.mubr.bf16.gmra.mrb[0].mxu0 %v5135
      %v5202 = vpop.f32.mrb[0].mxu0
      %v5203 = vadd.f32 0.0, %v5202
      %v5204 = vpop.f32.mrb[0].mxu0
      %v5205 = vpop.f32.mrb[0].mxu0
      %v5206 = vadd.f32 0.0, %v5205
      %v5207 = vpop.f32.mrb[0].mxu0
      %5208 = vmatprep.mubr.bf16.mxu0 0
      %5209 = vmatmul.mubr.bf16.gmra.mrb[0].mxu0 %v5138
      %v5210 = vpop.f32.mrb[0].mxu0
      %v5211 = vadd.f32 0.0, %v5210
      %v5212 = vpop.f32.mrb[0].mxu0
      %v5213 = vpop.f32.mrb[0].mxu0
      %v5214 = vadd.f32 0.0, %v5213
      %v5215 = vpop.f32.mrb[0].mxu0
      %5216 = vmatprep.mubr.bf16.mxu0 0
      %5217 = vmatmul.mubr.bf16.gmra.mrb[0].mxu0 %v5141
      %v5218 = vpop.f32.mrb[0].mxu0
      %v5219 = vadd.f32 0.0, %v5218
      %v5220 = vpop.f32.mrb[0].mxu0
      %v5221 = vpop.f32.mrb[0].mxu0
      %v5222 = vadd.f32 0.0, %v5221
      %v5223 = vpop.f32.mrb[0].mxu0
      %5224 = vmatprep.mubr.bf16.mxu0 0
      %5225 = vmatmul.mubr.bf16.gmra.mrb[0].mxu0 %v5144
      %v5226 = vpop.f32.mrb[0].mxu0
      %v5227 = vadd.f32 0.0, %v5226
      %v5228 = vpop.f32.mrb[0].mxu0
      %v5229 = vpop.f32.mrb[0].mxu0
      %v5230 = vadd.f32 0.0, %v5229
      %v5231 = vpop.f32.mrb[0].mxu0
      %5232 = vmatprep.mubr.bf16.mxu0 0
      %5233 = vmatmul.mubr.bf16.gmra.mrb[0].mxu0 %v5147
      %v5234 = vpop.f32.mrb[0].mxu0
      %v5235 = vadd.f32 0.0, %v5234
      %v5236 = vpop.f32.mrb[0].mxu0
      %v5237 = vpop.f32.mrb[0].mxu0
      %v5238 = vadd.f32 0.0, %v5237
      %v5239 = vpop.f32.mrb[0].mxu0
      %5240 = vdwg.mxu0
      %5241 = vrot.lane.b32.xlu0 %v4788, 120
      %v5242 = vpop.permute.xlu0 %5241
      %5243 = vrot.lane.b32.xlu0 %v4789, 120
      %v5244 = vpop.permute.xlu0 %5243
      %5245 = vrot.lane.b32.xlu0 %v4790, 120
      %v5246 = vpop.permute.xlu0 %5245
      %5247 = vrot.lane.b32.xlu0 %v4791, 120
      %v5248 = vpop.permute.xlu0 %5247
      %5249 = vrot.lane.b32.xlu0 %v4792, 120
      %v5250 = vpop.permute.xlu0 %5249
      %5251 = vrot.lane.b32.xlu0 %v4793, 120
      %v5252 = vpop.permute.xlu0 %5251
      %5253 = vrot.lane.b32.xlu0 %v4794, 120
      %v5254 = vpop.permute.xlu0 %5253
      %5255 = vrot.lane.b32.xlu0 %v4788, 88
      %v5256 = vpop.permute.xlu0 %5255
      %5257 = vrot.lane.b32.xlu0 %v4789, 88
      %v5258 = vpop.permute.xlu0 %5257
      %5259 = vrot.lane.b32.xlu0 %v4790, 88
      %v5260 = vpop.permute.xlu0 %5259
      %5261 = vrot.lane.b32.xlu0 %v4791, 88
      %v5262 = vpop.permute.xlu0 %5261
      %5263 = vrot.lane.b32.xlu0 %v4792, 88
      %v5264 = vpop.permute.xlu0 %5263
      %5265 = vrot.lane.b32.xlu0 %v4793, 88
      %v5266 = vpop.permute.xlu0 %5265
      %5267 = vrot.lane.b32.xlu0 %v4794, 88
      %v5268 = vpop.permute.xlu0 %5267
      %v5270 = vsel %vm1595, %v5242, 0
      %v5273 = vsel %vm1595, %v5244, 0
      %v5276 = vsel %vm1595, %v5246, 0
      %v5279 = vsel %vm1595, %v5248, 0
      %v5282 = vsel %vm1595, %v5250, 0
      %v5285 = vsel %vm1595, %v5252, 0
      %v5288 = vsel %vm1595, %v5254, 0
      %v5291 = vsel %vm1595, %v5256, 0
      %v5294 = vsel %vm1595, %v5258, 0
      %v5297 = vsel %vm1595, %v5260, 0
      %v5300 = vsel %vm1595, %v5262, 0
      %v5303 = vsel %vm1595, %v5264, 0
      %v5306 = vsel %vm1595, %v5266, 0
      %v5309 = vsel %vm1595, %v5268, 0
      %5311 = vmatprep.subr.bf16.mxu0 0
      %5312 = vmatpush1.bf16.xpose.msra.mxu0 %v5291
      %5313 = vmatprep.subr.bf16.mxu0 0
      %5314 = vmatpush1.bf16.xpose.msra.mxu0 %v5294
      %5315 = vmatprep.subr.bf16.mxu0 0
      %5316 = vmatpush1.bf16.xpose.msra.mxu0 %v5297
      %5317 = vmatprep.subr.bf16.mxu0 0
      %5318 = vmatpush1.bf16.xpose.msra.mxu0 %v5300
      %5319 = vmatprep.subr.bf16.mxu0 0
      %5320 = vmatpush1.bf16.xpose.msra.mxu0 %v5303
      %5321 = vmatprep.subr.bf16.mxu0 0
      %5322 = vmatpush1.bf16.xpose.msra.mxu0 %v5306
      %5323 = vmatprep.subr.bf16.mxu0 0
      %5324 = vmatpush1.bf16.xpose.msra.mxu0 %v5309
      %5325 = vmatprep.subr.bf16.mxu0 0
      %5326 = vmatpush1.bf16.xpose.msra.mxu0 0
      %5327 = vmatprep.subr.bf16.mxu0 0
      %5328 = vmatpush1.bf16.xpose.msra.mxu0 0
      %5329 = vmatprep.subr.bf16.mxu0 0
      %5330 = vmatpush1.bf16.xpose.msra.mxu0 0
      %5331 = vmatprep.subr.bf16.mxu0 0
      %5332 = vmatpush1.bf16.xpose.msra.mxu0 0
      %5333 = vmatprep.subr.bf16.mxu0 0
      %5334 = vmatpush1.bf16.xpose.msra.mxu0 0
      %5335 = vmatprep.subr.bf16.mxu0 0
      %5336 = vmatpush1.bf16.xpose.msra.mxu0 0
      %5337 = vmatprep.subr.bf16.mxu0 0
      %5338 = vmatpush1.bf16.xpose.msra.mxu0 0
      %5339 = vmatprep.subr.bf16.mxu0 0
      %5340 = vmatpush1.bf16.xpose.msra.mxu0 0
      %5341 = vmatprep.subr.bf16.mxu0 0
      %5342 = vmatpush1.bf16.xpose.msra.mxu0 0
      %5343 = vmatprep.mubr.bf16.mxu0 0
      %5344 = vmatmul.mubr.bf16.gmra.mrb[0].mxu0 %v5270
      %v5345 = vpop.f32.mrb[0].mxu0
      %v5346 = vadd.f32 %v884, %v5345
      %v5347 = vpop.f32.mrb[0].mxu0
      %v5348 = vpop.f32.mrb[0].mxu0
      %v5349 = vadd.f32 %v887, %v5348
      %v5350 = vpop.f32.mrb[0].mxu0
      %5351 = vmatprep.mubr.bf16.mxu0 0
      %5352 = vmatmul.mubr.bf16.gmra.mrb[0].mxu0 %v5273
      %v5353 = vpop.f32.mrb[0].mxu0
      %v5354 = vadd.f32 %v892, %v5353
      %v5355 = vpop.f32.mrb[0].mxu0
      %v5356 = vpop.f32.mrb[0].mxu0
      %v5357 = vadd.f32 %v895, %v5356
      %v5358 = vpop.f32.mrb[0].mxu0
      %5359 = vmatprep.mubr.bf16.mxu0 0
      %5360 = vmatmul.mubr.bf16.gmra.mrb[0].mxu0 %v5276
      %v5361 = vpop.f32.mrb[0].mxu0
      %v5362 = vadd.f32 %v900, %v5361
      %v5363 = vpop.f32.mrb[0].mxu0
      %v5364 = vpop.f32.mrb[0].mxu0
      %v5365 = vadd.f32 %v903, %v5364
      %v5366 = vpop.f32.mrb[0].mxu0
      %5367 = vmatprep.mubr.bf16.mxu0 0
      %5368 = vmatmul.mubr.bf16.gmra.mrb[0].mxu0 %v5279
      %v5369 = vpop.f32.mrb[0].mxu0
      %v5370 = vadd.f32 %v908, %v5369
      %v5371 = vpop.f32.mrb[0].mxu0
      %v5372 = vpop.f32.mrb[0].mxu0
      %v5373 = vadd.f32 %v911, %v5372
      %v5374 = vpop.f32.mrb[0].mxu0
      %5375 = vmatprep.mubr.bf16.mxu0 0
      %5376 = vmatmul.mubr.bf16.gmra.mrb[0].mxu0 %v5282
      %v5377 = vpop.f32.mrb[0].mxu0
      %v5378 = vadd.f32 %v916, %v5377
      %v5379 = vpop.f32.mrb[0].mxu0
      %v5380 = vpop.f32.mrb[0].mxu0
      %v5381 = vadd.f32 %v919, %v5380
      %v5382 = vpop.f32.mrb[0].mxu0
      %5383 = vmatprep.mubr.bf16.mxu0 0
      %5384 = vmatmul.mubr.bf16.gmra.mrb[0].mxu0 %v5285
      %v5385 = vpop.f32.mrb[0].mxu0
      %v5386 = vadd.f32 %v924, %v5385
      %v5387 = vpop.f32.mrb[0].mxu0
      %v5388 = vpop.f32.mrb[0].mxu0
      %v5389 = vadd.f32 %v927, %v5388
      %v5390 = vpop.f32.mrb[0].mxu0
      %5391 = vmatprep.mubr.bf16.mxu0 0
      %5392 = vmatmul.mubr.bf16.gmra.mrb[0].mxu0 %v5288
      %v5393 = vpop.f32.mrb[0].mxu0
      %v5394 = vadd.f32 %v932, %v5393
      %v5395 = vpop.f32.mrb[0].mxu0
      %v5396 = vpop.f32.mrb[0].mxu0
      %v5397 = vadd.f32 %v935, %v5396
      %v5398 = vpop.f32.mrb[0].mxu0
      %5399 = vdwg.mxu0
      %v5400 = vsel %vm1727, %v5346, -inf
      %5401 = vmax.xlane.f32.xlu0 %v5400
      %v5402 = vpop.xlane.xlu0 %5401
      %v5403 = vsel %vm1727, %v5349, -inf
      %5404 = vmax.xlane.f32.xlu0 %v5403
      %v5405 = vpop.xlane.xlu0 %5404
      %v5406 = vsel %vm1727, %v5354, -inf
      %5407 = vmax.xlane.f32.xlu0 %v5406
      %v5408 = vpop.xlane.xlu0 %5407
      %v5409 = vsel %vm1727, %v5357, -inf
      %5410 = vmax.xlane.f32.xlu0 %v5409
      %v5411 = vpop.xlane.xlu0 %5410
      %v5412 = vsel %vm1727, %v5362, -inf
      %5413 = vmax.xlane.f32.xlu0 %v5412
      %v5414 = vpop.xlane.xlu0 %5413
      %v5415 = vsel %vm1727, %v5365, -inf
      %5416 = vmax.xlane.f32.xlu0 %v5415
      %v5417 = vpop.xlane.xlu0 %5416
      %v5418 = vsel %vm1727, %v5370, -inf
      %5419 = vmax.xlane.f32.xlu0 %v5418
      %v5420 = vpop.xlane.xlu0 %5419
      %v5421 = vsel %vm1727, %v5373, -inf
      %5422 = vmax.xlane.f32.xlu0 %v5421
      %v5423 = vpop.xlane.xlu0 %5422
      %v5424 = vsel %vm1727, %v5378, -inf
      %5425 = vmax.xlane.f32.xlu0 %v5424
      %v5426 = vpop.xlane.xlu0 %5425
      %v5427 = vsel %vm1727, %v5381, -inf
      %5428 = vmax.xlane.f32.xlu0 %v5427
      %v5429 = vpop.xlane.xlu0 %5428
      %v5430 = vsel %vm1727, %v5386, -inf
      %5431 = vmax.xlane.f32.xlu0 %v5430
      %v5432 = vpop.xlane.xlu0 %5431
      %v5433 = vsel %vm1727, %v5389, -inf
      %5434 = vmax.xlane.f32.xlu0 %v5433
      %v5435 = vpop.xlane.xlu0 %5434
      %v5436 = vsel %vm1727, %v5394, -inf
      %5437 = vmax.xlane.f32.xlu0 %v5436
      %v5438 = vpop.xlane.xlu0 %5437
      %v5439 = vsel %vm1767, %v5397, -inf
      %5440 = vmax.xlane.f32.xlu0 %v5439
      %v5441 = vpop.xlane.xlu0 %5440
      %v5442 = vsub.f32 %v5346, %v5402
      %v5443 = vsub.f32 %v5349, %v5405
      %v5444 = vsub.f32 %v5354, %v5408
      %v5445 = vsub.f32 %v5357, %v5411
      %v5446 = vsub.f32 %v5362, %v5414
      %v5447 = vsub.f32 %v5365, %v5417
      %v5448 = vsub.f32 %v5370, %v5420
      %v5449 = vsub.f32 %v5373, %v5423
      %v5450 = vsub.f32 %v5378, %v5426
      %v5451 = vsub.f32 %v5381, %v5429
      %v5452 = vsub.f32 %v5386, %v5432
      %v5453 = vsub.f32 %v5389, %v5435
      %v5454 = vsub.f32 %v5394, %v5438
      %v5455 = vsub.f32 %v5397, %v5441
      %v5456 = vmul.f32 %v5442, 1.442695
      %v5457 = vpow.pop %v5456
      %v5458 = vmul.f32 %v5443, 1.442695
      %v5459 = vpow.pop %v5458
      %v5460 = vmul.f32 %v5444, 1.442695
      %v5461 = vpow.pop %v5460
      %v5462 = vmul.f32 %v5445, 1.442695
      %v5463 = vpow.pop %v5462
      %v5464 = vmul.f32 %v5446, 1.442695
      %v5465 = vpow.pop %v5464
      %v5466 = vmul.f32 %v5447, 1.442695
      %v5467 = vpow.pop %v5466
      %v5468 = vmul.f32 %v5448, 1.442695
      %v5469 = vpow.pop %v5468
      %v5470 = vmul.f32 %v5449, 1.442695
      %v5471 = vpow.pop %v5470
      %v5472 = vmul.f32 %v5450, 1.442695
      %v5473 = vpow.pop %v5472
      %v5474 = vmul.f32 %v5451, 1.442695
      %v5475 = vpow.pop %v5474
      %v5476 = vmul.f32 %v5452, 1.442695
      %v5477 = vpow.pop %v5476
      %v5478 = vmul.f32 %v5453, 1.442695
      %v5479 = vpow.pop %v5478
      %v5480 = vmul.f32 %v5454, 1.442695
      %v5481 = vpow.pop %v5480
      %v5482 = vmul.f32 %v5455, 1.442695
      %v5483 = vpow.pop %v5482
      %v5484 = vsel %vm1727, %v5457, 0.0
      %5485 = vadd.xlane.f32.xlu0 %v5484
      %v5486 = vpop.xlane.xlu0 %5485
      %v5487 = vsel %vm1727, %v5459, 0.0
      %5488 = vadd.xlane.f32.xlu0 %v5487
      %v5489 = vpop.xlane.xlu0 %5488
      %v5490 = vsel %vm1727, %v5461, 0.0
      %5491 = vadd.xlane.f32.xlu0 %v5490
      %v5492 = vpop.xlane.xlu0 %5491
      %v5493 = vsel %vm1727, %v5463, 0.0
      %5494 = vadd.xlane.f32.xlu0 %v5493
      %v5495 = vpop.xlane.xlu0 %5494
      %v5496 = vsel %vm1727, %v5465, 0.0
      %5497 = vadd.xlane.f32.xlu0 %v5496
      %v5498 = vpop.xlane.xlu0 %5497
      %v5499 = vsel %vm1727, %v5467, 0.0
      %5500 = vadd.xlane.f32.xlu0 %v5499
      %v5501 = vpop.xlane.xlu0 %5500
      %v5502 = vsel %vm1727, %v5469, 0.0
      %5503 = vadd.xlane.f32.xlu0 %v5502
      %v5504 = vpop.xlane.xlu0 %5503
      %v5505 = vsel %vm1727, %v5471, 0.0
      %5506 = vadd.xlane.f32.xlu0 %v5505
      %v5507 = vpop.xlane.xlu0 %5506
      %v5508 = vsel %vm1727, %v5473, 0.0
      %5509 = vadd.xlane.f32.xlu0 %v5508
      %v5510 = vpop.xlane.xlu0 %5509
      %v5511 = vsel %vm1727, %v5475, 0.0
      %5512 = vadd.xlane.f32.xlu0 %v5511
      %v5513 = vpop.xlane.xlu0 %5512
      %v5514 = vsel %vm1727, %v5477, 0.0
      %5515 = vadd.xlane.f32.xlu0 %v5514
      %v5516 = vpop.xlane.xlu0 %5515
      %v5517 = vsel %vm1727, %v5479, 0.0
      %5518 = vadd.xlane.f32.xlu0 %v5517
      %v5519 = vpop.xlane.xlu0 %5518
      %v5520 = vsel %vm1727, %v5481, 0.0
      %5521 = vadd.xlane.f32.xlu0 %v5520
      %v5522 = vpop.xlane.xlu0 %5521
      %v5523 = vsel %vm1767, %v5483, 0.0
      %5524 = vadd.xlane.f32.xlu0 %v5523
      %v5525 = vpop.xlane.xlu0 %5524
      %v5526 = vrcp.pop %v5486
      %v5527 = vrcp.pop %v5489
      %v5528 = vrcp.pop %v5492
      %v5529 = vrcp.pop %v5495
      %v5530 = vrcp.pop %v5498
      %v5531 = vrcp.pop %v5501
      %v5532 = vrcp.pop %v5504
      %v5533 = vrcp.pop %v5507
      %v5534 = vrcp.pop %v5510
      %v5535 = vrcp.pop %v5513
      %v5536 = vrcp.pop %v5516
      %v5537 = vrcp.pop %v5519
      %v5538 = vrcp.pop %v5522
      %v5539 = vrcp.pop %v5525
      %v5540 = vmul.f32 %v5457, %v5526
      %v5541 = vmul.f32 %v5459, %v5527
      %v5542 = vmul.f32 %v5461, %v5528
      %v5543 = vmul.f32 %v5463, %v5529
      %v5544 = vmul.f32 %v5465, %v5530
      %v5545 = vmul.f32 %v5467, %v5531
      %v5546 = vmul.f32 %v5469, %v5532
      %v5547 = vmul.f32 %v5471, %v5533
      %v5548 = vmul.f32 %v5473, %v5534
      %v5549 = vmul.f32 %v5475, %v5535
      %v5550 = vmul.f32 %v5477, %v5536
      %v5551 = vmul.f32 %v5479, %v5537
      %v5552 = vmul.f32 %v5481, %v5538
      %v5553 = vmul.f32 %v5483, %v5539
      %v5554 = vpack.c.bf16 %v5541, %v5540
      %v5555 = vpack.c.bf16 %v5543, %v5542
      %v5556 = vpack.c.bf16 %v5545, %v5544
      %v5557 = vpack.c.bf16 %v5547, %v5546
      %v5558 = vpack.c.bf16 %v5549, %v5548
      %v5559 = vpack.c.bf16 %v5551, %v5550
      %v5560 = vpack.c.bf16 %v5553, %v5552
      %5561 = vrot.lane.b32.xlu0 %v4788, 56
      %v5562 = vpop.permute.xlu0 %5561
      %5563 = vrot.lane.b32.xlu0 %v4789, 56
      %v5564 = vpop.permute.xlu0 %5563
      %5565 = vrot.lane.b32.xlu0 %v4790, 56
      %v5566 = vpop.permute.xlu0 %5565
      %5567 = vrot.lane.b32.xlu0 %v4791, 56
      %v5568 = vpop.permute.xlu0 %5567
      %5569 = vrot.lane.b32.xlu0 %v4792, 56
      %v5570 = vpop.permute.xlu0 %5569
      %5571 = vrot.lane.b32.xlu0 %v4793, 56
      %v5572 = vpop.permute.xlu0 %5571
      %5573 = vrot.lane.b32.xlu0 %v4794, 56
      %v5574 = vpop.permute.xlu0 %5573
      %v5582 = vsel %vm1727, %v5554, 0
      %v5585 = vsel %vm1727, %v5555, 0
      %v5588 = vsel %vm1727, %v5556, 0
      %v5591 = vsel %vm1727, %v5557, 0
      %v5594 = vsel %vm1727, %v5558, 0
      %v5597 = vsel %vm1727, %v5559, 0
      %v5600 = vsel %vm1727, %v5560, 0
      %v5603 = vsel %vm1931, %v5574, 0
      %5605 = vmatprep.subr.bf16.mxu0 0
      %5606 = vmatpush1.bf16.msra.mxu0 %v5562
      %5607 = vmatprep.subr.bf16.mxu0 0
      %5608 = vmatpush1.bf16.msra.mxu0 %v5564
      %5609 = vmatprep.subr.bf16.mxu0 0
      %5610 = vmatpush1.bf16.msra.mxu0 %v5566
      %5611 = vmatprep.subr.bf16.mxu0 0
      %5612 = vmatpush1.bf16.msra.mxu0 %v5568
      %5613 = vmatprep.subr.bf16.mxu0 0
      %5614 = vmatpush1.bf16.msra.mxu0 %v5570
      %5615 = vmatprep.subr.bf16.mxu0 0
      %5616 = vmatpush1.bf16.msra.mxu0 %v5572
      %5617 = vmatprep.subr.bf16.mxu0 0
      %5618 = vmatpush1.bf16.msra.mxu0 %v5603
      %5619 = vmatprep.subr.bf16.mxu0 0
      %5620 = vmatpush1.bf16.msra.mxu0 0
      %5621 = vmatprep.subr.bf16.mxu0 0
      %5622 = vmatpush1.bf16.msra.mxu0 0
      %5623 = vmatprep.subr.bf16.mxu0 0
      %5624 = vmatpush1.bf16.msra.mxu0 0
      %5625 = vmatprep.subr.bf16.mxu0 0
      %5626 = vmatpush1.bf16.msra.mxu0 0
      %5627 = vmatprep.subr.bf16.mxu0 0
      %5628 = vmatpush1.bf16.msra.mxu0 0
      %5629 = vmatprep.subr.bf16.mxu0 0
      %5630 = vmatpush1.bf16.msra.mxu0 0
      %5631 = vmatprep.subr.bf16.mxu0 0
      %5632 = vmatpush1.bf16.msra.mxu0 0
      %5633 = vmatprep.subr.bf16.mxu0 0
      %5634 = vmatpush1.bf16.msra.mxu0 0
      %5635 = vmatprep.subr.bf16.mxu0 0
      %5636 = vmatpush1.bf16.msra.mxu0 0
      %5637 = vmatprep.mubr.bf16.mxu0 0
      %5638 = vmatmul.mubr.bf16.gmra.mrb[0].mxu0 %v5582
      %v5639 = vpop.f32.mrb[0].mxu0
      %v5640 = vadd.f32 0.0, %v5639
      %v5641 = vpop.f32.mrb[0].mxu0
      %v5642 = vpop.f32.mrb[0].mxu0
      %v5643 = vadd.f32 0.0, %v5642
      %v5644 = vpop.f32.mrb[0].mxu0
      %5645 = vmatprep.mubr.bf16.mxu0 0
      %5646 = vmatmul.mubr.bf16.gmra.mrb[0].mxu0 %v5585
      %v5647 = vpop.f32.mrb[0].mxu0
      %v5648 = vadd.f32 0.0, %v5647
      %v5649 = vpop.f32.mrb[0].mxu0
      %v5650 = vpop.f32.mrb[0].mxu0
      %v5651 = vadd.f32 0.0, %v5650
      %v5652 = vpop.f32.mrb[0].mxu0
      %5653 = vmatprep.mubr.bf16.mxu0 0
      %5654 = vmatmul.mubr.bf16.gmra.mrb[0].mxu0 %v5588
      %v5655 = vpop.f32.mrb[0].mxu0
      %v5656 = vadd.f32 0.0, %v5655
      %v5657 = vpop.f32.mrb[0].mxu0
      %v5658 = vpop.f32.mrb[0].mxu0
      %v5659 = vadd.f32 0.0, %v5658
      %v5660 = vpop.f32.mrb[0].mxu0
      %5661 = vmatprep.mubr.bf16.mxu0 0
      %5662 = vmatmul.mubr.bf16.gmra.mrb[0].mxu0 %v5591
      %v5663 = vpop.f32.mrb[0].mxu0
      %v5664 = vadd.f32 0.0, %v5663
      %v5665 = vpop.f32.mrb[0].mxu0
      %v5666 = vpop.f32.mrb[0].mxu0
      %v5667 = vadd.f32 0.0, %v5666
      %v5668 = vpop.f32.mrb[0].mxu0
      %5669 = vmatprep.mubr.bf16.mxu0 0
      %5670 = vmatmul.mubr.bf16.gmra.mrb[0].mxu0 %v5594
      %v5671 = vpop.f32.mrb[0].mxu0
      %v5672 = vadd.f32 0.0, %v5671
      %v5673 = vpop.f32.mrb[0].mxu0
      %v5674 = vpop.f32.mrb[0].mxu0
      %v5675 = vadd.f32 0.0, %v5674
      %v5676 = vpop.f32.mrb[0].mxu0
      %5677 = vmatprep.mubr.bf16.mxu0 0
      %5678 = vmatmul.mubr.bf16.gmra.mrb[0].mxu0 %v5597
      %v5679 = vpop.f32.mrb[0].mxu0
      %v5680 = vadd.f32 0.0, %v5679
      %v5681 = vpop.f32.mrb[0].mxu0
      %v5682 = vpop.f32.mrb[0].mxu0
      %v5683 = vadd.f32 0.0, %v5682
      %v5684 = vpop.f32.mrb[0].mxu0
      %5685 = vmatprep.mubr.bf16.mxu0 0
      %5686 = vmatmul.mubr.bf16.gmra.mrb[0].mxu0 %v5600
      %v5687 = vpop.f32.mrb[0].mxu0
      %v5688 = vadd.f32 0.0, %v5687
      %v5689 = vpop.f32.mrb[0].mxu0
      %v5690 = vpop.f32.mrb[0].mxu0
      %v5691 = vadd.f32 0.0, %v5690
      %v5692 = vpop.f32.mrb[0].mxu0
      %5693 = vdwg.mxu0
      %5694 = vrot.lane.b32.xlu0 %v4788, 112
      %v5695 = vpop.permute.xlu0 %5694
      %5696 = vrot.lane.b32.xlu0 %v4789, 112
      %v5697 = vpop.permute.xlu0 %5696
      %5698 = vrot.lane.b32.xlu0 %v4790, 112
      %v5699 = vpop.permute.xlu0 %5698
      %5700 = vrot.lane.b32.xlu0 %v4791, 112
      %v5701 = vpop.permute.xlu0 %5700
      %5702 = vrot.lane.b32.xlu0 %v4792, 112
      %v5703 = vpop.permute.xlu0 %5702
      %5704 = vrot.lane.b32.xlu0 %v4793, 112
      %v5705 = vpop.permute.xlu0 %5704
      %5706 = vrot.lane.b32.xlu0 %v4794, 112
      %v5707 = vpop.permute.xlu0 %5706
      %5708 = vrot.lane.b32.xlu0 %v4788, 80
      %v5709 = vpop.permute.xlu0 %5708
      %5710 = vrot.lane.b32.xlu0 %v4789, 80
      %v5711 = vpop.permute.xlu0 %5710
      %5712 = vrot.lane.b32.xlu0 %v4790, 80
      %v5713 = vpop.permute.xlu0 %5712
      %5714 = vrot.lane.b32.xlu0 %v4791, 80
      %v5715 = vpop.permute.xlu0 %5714
      %5716 = vrot.lane.b32.xlu0 %v4792, 80
      %v5717 = vpop.permute.xlu0 %5716
      %5718 = vrot.lane.b32.xlu0 %v4793, 80
      %v5719 = vpop.permute.xlu0 %5718
      %5720 = vrot.lane.b32.xlu0 %v4794, 80
      %v5721 = vpop.permute.xlu0 %5720
      %v5723 = vsel %vm1595, %v5695, 0
      %v5726 = vsel %vm1595, %v5697, 0
      %v5729 = vsel %vm1595, %v5699, 0
      %v5732 = vsel %vm1595, %v5701, 0
      %v5735 = vsel %vm1595, %v5703, 0
      %v5738 = vsel %vm1595, %v5705, 0
      %v5741 = vsel %vm1595, %v5707, 0
      %v5744 = vsel %vm1595, %v5709, 0
      %v5747 = vsel %vm1595, %v5711, 0
      %v5750 = vsel %vm1595, %v5713, 0
      %v5753 = vsel %vm1595, %v5715, 0
      %v5756 = vsel %vm1595, %v5717, 0
      %v5759 = vsel %vm1595, %v5719, 0
      %v5762 = vsel %vm1595, %v5721, 0
      %5764 = vmatprep.subr.bf16.mxu0 0
      %5765 = vmatpush1.bf16.xpose.msra.mxu0 %v5744
      %5766 = vmatprep.subr.bf16.mxu0 0
      %5767 = vmatpush1.bf16.xpose.msra.mxu0 %v5747
      %5768 = vmatprep.subr.bf16.mxu0 0
      %5769 = vmatpush1.bf16.xpose.msra.mxu0 %v5750
      %5770 = vmatprep.subr.bf16.mxu0 0
      %5771 = vmatpush1.bf16.xpose.msra.mxu0 %v5753
      %5772 = vmatprep.subr.bf16.mxu0 0
      %5773 = vmatpush1.bf16.xpose.msra.mxu0 %v5756
      %5774 = vmatprep.subr.bf16.mxu0 0
      %5775 = vmatpush1.bf16.xpose.msra.mxu0 %v5759
      %5776 = vmatprep.subr.bf16.mxu0 0
      %5777 = vmatpush1.bf16.xpose.msra.mxu0 %v5762
      %5778 = vmatprep.subr.bf16.mxu0 0
      %5779 = vmatpush1.bf16.xpose.msra.mxu0 0
      %5780 = vmatprep.subr.bf16.mxu0 0
      %5781 = vmatpush1.bf16.xpose.msra.mxu0 0
      %5782 = vmatprep.subr.bf16.mxu0 0
      %5783 = vmatpush1.bf16.xpose.msra.mxu0 0
      %5784 = vmatprep.subr.bf16.mxu0 0
      %5785 = vmatpush1.bf16.xpose.msra.mxu0 0
      %5786 = vmatprep.subr.bf16.mxu0 0
      %5787 = vmatpush1.bf16.xpose.msra.mxu0 0
      %5788 = vmatprep.subr.bf16.mxu0 0
      %5789 = vmatpush1.bf16.xpose.msra.mxu0 0
      %5790 = vmatprep.subr.bf16.mxu0 0
      %5791 = vmatpush1.bf16.xpose.msra.mxu0 0
      %5792 = vmatprep.subr.bf16.mxu0 0
      %5793 = vmatpush1.bf16.xpose.msra.mxu0 0
      %5794 = vmatprep.subr.bf16.mxu0 0
      %5795 = vmatpush1.bf16.xpose.msra.mxu0 0
      %5796 = vmatprep.mubr.bf16.mxu0 0
      %5797 = vmatmul.mubr.bf16.gmra.mrb[0].mxu0 %v5723
      %v5798 = vpop.f32.mrb[0].mxu0
      %v5799 = vadd.f32 %v1008, %v5798
      %v5800 = vpop.f32.mrb[0].mxu0
      %v5801 = vpop.f32.mrb[0].mxu0
      %v5802 = vadd.f32 %v1011, %v5801
      %v5803 = vpop.f32.mrb[0].mxu0
      %5804 = vmatprep.mubr.bf16.mxu0 0
      %5805 = vmatmul.mubr.bf16.gmra.mrb[0].mxu0 %v5726
      %v5806 = vpop.f32.mrb[0].mxu0
      %v5807 = vadd.f32 %v1016, %v5806
      %v5808 = vpop.f32.mrb[0].mxu0
      %v5809 = vpop.f32.mrb[0].mxu0
      %v5810 = vadd.f32 %v1019, %v5809
      %v5811 = vpop.f32.mrb[0].mxu0
      %5812 = vmatprep.mubr.bf16.mxu0 0
      %5813 = vmatmul.mubr.bf16.gmra.mrb[0].mxu0 %v5729
      %v5814 = vpop.f32.mrb[0].mxu0
      %v5815 = vadd.f32 %v1024, %v5814
      %v5816 = vpop.f32.mrb[0].mxu0
      %v5817 = vpop.f32.mrb[0].mxu0
      %v5818 = vadd.f32 %v1027, %v5817
      %v5819 = vpop.f32.mrb[0].mxu0
      %5820 = vmatprep.mubr.bf16.mxu0 0
      %5821 = vmatmul.mubr.bf16.gmra.mrb[0].mxu0 %v5732
      %v5822 = vpop.f32.mrb[0].mxu0
      %v5823 = vadd.f32 %v1032, %v5822
      %v5824 = vpop.f32.mrb[0].mxu0
      %v5825 = vpop.f32.mrb[0].mxu0
      %v5826 = vadd.f32 %v1035, %v5825
      %v5827 = vpop.f32.mrb[0].mxu0
      %5828 = vmatprep.mubr.bf16.mxu0 0
      %5829 = vmatmul.mubr.bf16.gmra.mrb[0].mxu0 %v5735
      %v5830 = vpop.f32.mrb[0].mxu0
      %v5831 = vadd.f32 %v1040, %v5830
      %v5832 = vpop.f32.mrb[0].mxu0
      %v5833 = vpop.f32.mrb[0].mxu0
      %v5834 = vadd.f32 %v1043, %v5833
      %v5835 = vpop.f32.mrb[0].mxu0
      %5836 = vmatprep.mubr.bf16.mxu0 0
      %5837 = vmatmul.mubr.bf16.gmra.mrb[0].mxu0 %v5738
      %v5838 = vpop.f32.mrb[0].mxu0
      %v5839 = vadd.f32 %v1048, %v5838
      %v5840 = vpop.f32.mrb[0].mxu0
      %v5841 = vpop.f32.mrb[0].mxu0
      %v5842 = vadd.f32 %v1051, %v5841
      %v5843 = vpop.f32.mrb[0].mxu0
      %5844 = vmatprep.mubr.bf16.mxu0 0
      %5845 = vmatmul.mubr.bf16.gmra.mrb[0].mxu0 %v5741
      %v5846 = vpop.f32.mrb[0].mxu0
      %v5847 = vadd.f32 %v1056, %v5846
      %v5848 = vpop.f32.mrb[0].mxu0
      %v5849 = vpop.f32.mrb[0].mxu0
      %v5850 = vadd.f32 %v1059, %v5849
      %v5851 = vpop.f32.mrb[0].mxu0
      %5852 = vdwg.mxu0
      %v5853 = vsel %vm1727, %v5799, -inf
      %5854 = vmax.xlane.f32.xlu0 %v5853
      %v5855 = vpop.xlane.xlu0 %5854
      %v5856 = vsel %vm1727, %v5802, -inf
      %5857 = vmax.xlane.f32.xlu0 %v5856
      %v5858 = vpop.xlane.xlu0 %5857
      %v5859 = vsel %vm1727, %v5807, -inf
      %5860 = vmax.xlane.f32.xlu0 %v5859
      %v5861 = vpop.xlane.xlu0 %5860
      %v5862 = vsel %vm1727, %v5810, -inf
      %5863 = vmax.xlane.f32.xlu0 %v5862
      %v5864 = vpop.xlane.xlu0 %5863
      %v5865 = vsel %vm1727, %v5815, -inf
      %5866 = vmax.xlane.f32.xlu0 %v5865
      %v5867 = vpop.xlane.xlu0 %5866
      %v5868 = vsel %vm1727, %v5818, -inf
      %5869 = vmax.xlane.f32.xlu0 %v5868
      %v5870 = vpop.xlane.xlu0 %5869
      %v5871 = vsel %vm1727, %v5823, -inf
      %5872 = vmax.xlane.f32.xlu0 %v5871
      %v5873 = vpop.xlane.xlu0 %5872
      %v5874 = vsel %vm1727, %v5826, -inf
      %5875 = vmax.xlane.f32.xlu0 %v5874
      %v5876 = vpop.xlane.xlu0 %5875
      %v5877 = vsel %vm1727, %v5831, -inf
      %5878 = vmax.xlane.f32.xlu0 %v5877
      %v5879 = vpop.xlane.xlu0 %5878
      %v5880 = vsel %vm1727, %v5834, -inf
      %5881 = vmax.xlane.f32.xlu0 %v5880
      %v5882 = vpop.xlane.xlu0 %5881
      %v5883 = vsel %vm1727, %v5839, -inf
      %5884 = vmax.xlane.f32.xlu0 %v5883
      %v5885 = vpop.xlane.xlu0 %5884
      %v5886 = vsel %vm1727, %v5842, -inf
      %5887 = vmax.xlane.f32.xlu0 %v5886
      %v5888 = vpop.xlane.xlu0 %5887
      %v5889 = vsel %vm1727, %v5847, -inf
      %5890 = vmax.xlane.f32.xlu0 %v5889
      %v5891 = vpop.xlane.xlu0 %5890
      %v5892 = vsel %vm1767, %v5850, -inf
      %5893 = vmax.xlane.f32.xlu0 %v5892
      %v5894 = vpop.xlane.xlu0 %5893
      %v5895 = vsub.f32 %v5799, %v5855
      %v5896 = vsub.f32 %v5802, %v5858
      %v5897 = vsub.f32 %v5807, %v5861
      %v5898 = vsub.f32 %v5810, %v5864
      %v5899 = vsub.f32 %v5815, %v5867
      %v5900 = vsub.f32 %v5818, %v5870
      %v5901 = vsub.f32 %v5823, %v5873
      %v5902 = vsub.f32 %v5826, %v5876
      %v5903 = vsub.f32 %v5831, %v5879
      %v5904 = vsub.f32 %v5834, %v5882
      %v5905 = vsub.f32 %v5839, %v5885
      %v5906 = vsub.f32 %v5842, %v5888
      %v5907 = vsub.f32 %v5847, %v5891
      %v5908 = vsub.f32 %v5850, %v5894
      %v5909 = vmul.f32 %v5895, 1.442695
      %v5910 = vpow.pop %v5909
      %v5911 = vmul.f32 %v5896, 1.442695
      %v5912 = vpow.pop %v5911
      %v5913 = vmul.f32 %v5897, 1.442695
      %v5914 = vpow.pop %v5913
      %v5915 = vmul.f32 %v5898, 1.442695
      %v5916 = vpow.pop %v5915
      %v5917 = vmul.f32 %v5899, 1.442695
      %v5918 = vpow.pop %v5917
      %v5919 = vmul.f32 %v5900, 1.442695
      %v5920 = vpow.pop %v5919
      %v5921 = vmul.f32 %v5901, 1.442695
      %v5922 = vpow.pop %v5921
      %v5923 = vmul.f32 %v5902, 1.442695
      %v5924 = vpow.pop %v5923
      %v5925 = vmul.f32 %v5903, 1.442695
      %v5926 = vpow.pop %v5925
      %v5927 = vmul.f32 %v5904, 1.442695
      %v5928 = vpow.pop %v5927
      %v5929 = vmul.f32 %v5905, 1.442695
      %v5930 = vpow.pop %v5929
      %v5931 = vmul.f32 %v5906, 1.442695
      %v5932 = vpow.pop %v5931
      %v5933 = vmul.f32 %v5907, 1.442695
      %v5934 = vpow.pop %v5933
      %v5935 = vmul.f32 %v5908, 1.442695
      %v5936 = vpow.pop %v5935
      %v5937 = vsel %vm1727, %v5910, 0.0
      %5938 = vadd.xlane.f32.xlu0 %v5937
      %v5939 = vpop.xlane.xlu0 %5938
      %v5940 = vsel %vm1727, %v5912, 0.0
      %5941 = vadd.xlane.f32.xlu0 %v5940
      %v5942 = vpop.xlane.xlu0 %5941
      %v5943 = vsel %vm1727, %v5914, 0.0
      %5944 = vadd.xlane.f32.xlu0 %v5943
      %v5945 = vpop.xlane.xlu0 %5944
      %v5946 = vsel %vm1727, %v5916, 0.0
      %5947 = vadd.xlane.f32.xlu0 %v5946
      %v5948 = vpop.xlane.xlu0 %5947
      %v5949 = vsel %vm1727, %v5918, 0.0
      %5950 = vadd.xlane.f32.xlu0 %v5949
      %v5951 = vpop.xlane.xlu0 %5950
      %v5952 = vsel %vm1727, %v5920, 0.0
      %5953 = vadd.xlane.f32.xlu0 %v5952
      %v5954 = vpop.xlane.xlu0 %5953
      %v5955 = vsel %vm1727, %v5922, 0.0
      %5956 = vadd.xlane.f32.xlu0 %v5955
      %v5957 = vpop.xlane.xlu0 %5956
      %v5958 = vsel %vm1727, %v5924, 0.0
      %5959 = vadd.xlane.f32.xlu0 %v5958
      %v5960 = vpop.xlane.xlu0 %5959
      %v5961 = vsel %vm1727, %v5926, 0.0
      %5962 = vadd.xlane.f32.xlu0 %v5961
      %v5963 = vpop.xlane.xlu0 %5962
      %v5964 = vsel %vm1727, %v5928, 0.0
      %5965 = vadd.xlane.f32.xlu0 %v5964
      %v5966 = vpop.xlane.xlu0 %5965
      %v5967 = vsel %vm1727, %v5930, 0.0
      %5968 = vadd.xlane.f32.xlu0 %v5967
      %v5969 = vpop.xlane.xlu0 %5968
      %v5970 = vsel %vm1727, %v5932, 0.0
      %5971 = vadd.xlane.f32.xlu0 %v5970
      %v5972 = vpop.xlane.xlu0 %5971
      %v5973 = vsel %vm1727, %v5934, 0.0
      %5974 = vadd.xlane.f32.xlu0 %v5973
      %v5975 = vpop.xlane.xlu0 %5974
      %v5976 = vsel %vm1767, %v5936, 0.0
      %5977 = vadd.xlane.f32.xlu0 %v5976
      %v5978 = vpop.xlane.xlu0 %5977
      %v5979 = vrcp.pop %v5939
      %v5980 = vrcp.pop %v5942
      %v5981 = vrcp.pop %v5945
      %v5982 = vrcp.pop %v5948
      %v5983 = vrcp.pop %v5951
      %v5984 = vrcp.pop %v5954
      %v5985 = vrcp.pop %v5957
      %v5986 = vrcp.pop %v5960
      %v5987 = vrcp.pop %v5963
      %v5988 = vrcp.pop %v5966
      %v5989 = vrcp.pop %v5969
      %v5990 = vrcp.pop %v5972
      %v5991 = vrcp.pop %v5975
      %v5992 = vrcp.pop %v5978
      %v5993 = vmul.f32 %v5910, %v5979
      %v5994 = vmul.f32 %v5912, %v5980
      %v5995 = vmul.f32 %v5914, %v5981
      %v5996 = vmul.f32 %v5916, %v5982
      %v5997 = vmul.f32 %v5918, %v5983
      %v5998 = vmul.f32 %v5920, %v5984
      %v5999 = vmul.f32 %v5922, %v5985
      %v6000 = vmul.f32 %v5924, %v5986
      %v6001 = vmul.f32 %v5926, %v5987
      %v6002 = vmul.f32 %v5928, %v5988
      %v6003 = vmul.f32 %v5930, %v5989
      %v6004 = vmul.f32 %v5932, %v5990
      %v6005 = vmul.f32 %v5934, %v5991
      %v6006 = vmul.f32 %v5936, %v5992
      %v6007 = vpack.c.bf16 %v5994, %v5993
      %v6008 = vpack.c.bf16 %v5996, %v5995
      %v6009 = vpack.c.bf16 %v5998, %v5997
      %v6010 = vpack.c.bf16 %v6000, %v5999
      %v6011 = vpack.c.bf16 %v6002, %v6001
      %v6012 = vpack.c.bf16 %v6004, %v6003
      %v6013 = vpack.c.bf16 %v6006, %v6005
      %6014 = vrot.lane.b32.xlu0 %v4788, 48
      %v6015 = vpop.permute.xlu0 %6014
      %6016 = vrot.lane.b32.xlu0 %v4789, 48
      %v6017 = vpop.permute.xlu0 %6016
      %6018 = vrot.lane.b32.xlu0 %v4790, 48
      %v6019 = vpop.permute.xlu0 %6018
      %6020 = vrot.lane.b32.xlu0 %v4791, 48
      %v6021 = vpop.permute.xlu0 %6020
      %6022 = vrot.lane.b32.xlu0 %v4792, 48
      %v6023 = vpop.permute.xlu0 %6022
      %6024 = vrot.lane.b32.xlu0 %v4793, 48
      %v6025 = vpop.permute.xlu0 %6024
      %6026 = vrot.lane.b32.xlu0 %v4794, 48
      %v6027 = vpop.permute.xlu0 %6026
      %v6035 = vsel %vm1727, %v6007, 0
      %v6038 = vsel %vm1727, %v6008, 0
      %v6041 = vsel %vm1727, %v6009, 0
      %v6044 = vsel %vm1727, %v6010, 0
      %v6047 = vsel %vm1727, %v6011, 0
      %v6050 = vsel %vm1727, %v6012, 0
      %v6053 = vsel %vm1727, %v6013, 0
      %v6056 = vsel %vm1931, %v6027, 0
      %6058 = vmatprep.subr.bf16.mxu0 0
      %6059 = vmatpush1.bf16.msra.mxu0 %v6015
      %6060 = vmatprep.subr.bf16.mxu0 0
      %6061 = vmatpush1.bf16.msra.mxu0 %v6017
      %6062 = vmatprep.subr.bf16.mxu0 0
      %6063 = vmatpush1.bf16.msra.mxu0 %v6019
      %6064 = vmatprep.subr.bf16.mxu0 0
      %6065 = vmatpush1.bf16.msra.mxu0 %v6021
      %6066 = vmatprep.subr.bf16.mxu0 0
      %6067 = vmatpush1.bf16.msra.mxu0 %v6023
      %6068 = vmatprep.subr.bf16.mxu0 0
      %6069 = vmatpush1.bf16.msra.mxu0 %v6025
      %6070 = vmatprep.subr.bf16.mxu0 0
      %6071 = vmatpush1.bf16.msra.mxu0 %v6056
      %6072 = vmatprep.subr.bf16.mxu0 0
      %6073 = vmatpush1.bf16.msra.mxu0 0
      %6074 = vmatprep.subr.bf16.mxu0 0
      %6075 = vmatpush1.bf16.msra.mxu0 0
      %6076 = vmatprep.subr.bf16.mxu0 0
      %6077 = vmatpush1.bf16.msra.mxu0 0
      %6078 = vmatprep.subr.bf16.mxu0 0
      %6079 = vmatpush1.bf16.msra.mxu0 0
      %6080 = vmatprep.subr.bf16.mxu0 0
      %6081 = vmatpush1.bf16.msra.mxu0 0
      %6082 = vmatprep.subr.bf16.mxu0 0
      %6083 = vmatpush1.bf16.msra.mxu0 0
      %6084 = vmatprep.subr.bf16.mxu0 0
      %6085 = vmatpush1.bf16.msra.mxu0 0
      %6086 = vmatprep.subr.bf16.mxu0 0
      %6087 = vmatpush1.bf16.msra.mxu0 0
      %6088 = vmatprep.subr.bf16.mxu0 0
      %6089 = vmatpush1.bf16.msra.mxu0 0
      %6090 = vmatprep.mubr.bf16.mxu0 0
      %6091 = vmatmul.mubr.bf16.gmra.mrb[0].mxu0 %v6035
      %v6092 = vpop.f32.mrb[0].mxu0
      %v6093 = vadd.f32 0.0, %v6092
      %v6094 = vpop.f32.mrb[0].mxu0
      %v6095 = vpop.f32.mrb[0].mxu0
      %v6096 = vadd.f32 0.0, %v6095
      %v6097 = vpop.f32.mrb[0].mxu0
      %6098 = vmatprep.mubr.bf16.mxu0 0
      %6099 = vmatmul.mubr.bf16.gmra.mrb[0].mxu0 %v6038
      %v6100 = vpop.f32.mrb[0].mxu0
      %v6101 = vadd.f32 0.0, %v6100
      %v6102 = vpop.f32.mrb[0].mxu0
      %v6103 = vpop.f32.mrb[0].mxu0
      %v6104 = vadd.f32 0.0, %v6103
      %v6105 = vpop.f32.mrb[0].mxu0
      %6106 = vmatprep.mubr.bf16.mxu0 0
      %6107 = vmatmul.mubr.bf16.gmra.mrb[0].mxu0 %v6041
      %v6108 = vpop.f32.mrb[0].mxu0
      %v6109 = vadd.f32 0.0, %v6108
      %v6110 = vpop.f32.mrb[0].mxu0
      %v6111 = vpop.f32.mrb[0].mxu0
      %v6112 = vadd.f32 0.0, %v6111
      %v6113 = vpop.f32.mrb[0].mxu0
      %6114 = vmatprep.mubr.bf16.mxu0 0
      %6115 = vmatmul.mubr.bf16.gmra.mrb[0].mxu0 %v6044
      %v6116 = vpop.f32.mrb[0].mxu0
      %v6117 = vadd.f32 0.0, %v6116
      %v6118 = vpop.f32.mrb[0].mxu0
      %v6119 = vpop.f32.mrb[0].mxu0
      %v6120 = vadd.f32 0.0, %v6119
      %v6121 = vpop.f32.mrb[0].mxu0
      %6122 = vmatprep.mubr.bf16.mxu0 0
      %6123 = vmatmul.mubr.bf16.gmra.mrb[0].mxu0 %v6047
      %v6124 = vpop.f32.mrb[0].mxu0
      %v6125 = vadd.f32 0.0, %v6124
      %v6126 = vpop.f32.mrb[0].mxu0
      %v6127 = vpop.f32.mrb[0].mxu0
      %v6128 = vadd.f32 0.0, %v6127
      %v6129 = vpop.f32.mrb[0].mxu0
      %6130 = vmatprep.mubr.bf16.mxu0 0
      %6131 = vmatmul.mubr.bf16.gmra.mrb[0].mxu0 %v6050
      %v6132 = vpop.f32.mrb[0].mxu0
      %v6133 = vadd.f32 0.0, %v6132
      %v6134 = vpop.f32.mrb[0].mxu0
      %v6135 = vpop.f32.mrb[0].mxu0
      %v6136 = vadd.f32 0.0, %v6135
      %v6137 = vpop.f32.mrb[0].mxu0
      %6138 = vmatprep.mubr.bf16.mxu0 0
      %6139 = vmatmul.mubr.bf16.gmra.mrb[0].mxu0 %v6053
      %v6140 = vpop.f32.mrb[0].mxu0
      %v6141 = vadd.f32 0.0, %v6140
      %v6142 = vpop.f32.mrb[0].mxu0
      %v6143 = vpop.f32.mrb[0].mxu0
      %v6144 = vadd.f32 0.0, %v6143
      %v6145 = vpop.f32.mrb[0].mxu0
      %6146 = vdwg.mxu0
      %6147 = vrot.lane.b32.xlu0 %v4788, 104
      %v6148 = vpop.permute.xlu0 %6147
      %6149 = vrot.lane.b32.xlu0 %v4789, 104
      %v6150 = vpop.permute.xlu0 %6149
      %6151 = vrot.lane.b32.xlu0 %v4790, 104
      %v6152 = vpop.permute.xlu0 %6151
      %6153 = vrot.lane.b32.xlu0 %v4791, 104
      %v6154 = vpop.permute.xlu0 %6153
      %6155 = vrot.lane.b32.xlu0 %v4792, 104
      %v6156 = vpop.permute.xlu0 %6155
      %6157 = vrot.lane.b32.xlu0 %v4793, 104
      %v6158 = vpop.permute.xlu0 %6157
      %6159 = vrot.lane.b32.xlu0 %v4794, 104
      %v6160 = vpop.permute.xlu0 %6159
      %6161 = vrot.lane.b32.xlu0 %v4788, 72
      %v6162 = vpop.permute.xlu0 %6161
      %6163 = vrot.lane.b32.xlu0 %v4789, 72
      %v6164 = vpop.permute.xlu0 %6163
      %6165 = vrot.lane.b32.xlu0 %v4790, 72
      %v6166 = vpop.permute.xlu0 %6165
      %6167 = vrot.lane.b32.xlu0 %v4791, 72
      %v6168 = vpop.permute.xlu0 %6167
      %6169 = vrot.lane.b32.xlu0 %v4792, 72
      %v6170 = vpop.permute.xlu0 %6169
      %6171 = vrot.lane.b32.xlu0 %v4793, 72
      %v6172 = vpop.permute.xlu0 %6171
      %6173 = vrot.lane.b32.xlu0 %v4794, 72
      %v6174 = vpop.permute.xlu0 %6173
      %v6176 = vsel %vm1595, %v6148, 0
      %v6179 = vsel %vm1595, %v6150, 0
      %v6182 = vsel %vm1595, %v6152, 0
      %v6185 = vsel %vm1595, %v6154, 0
      %v6188 = vsel %vm1595, %v6156, 0
      %v6191 = vsel %vm1595, %v6158, 0
      %v6194 = vsel %vm1595, %v6160, 0
      %v6197 = vsel %vm1595, %v6162, 0
      %v6200 = vsel %vm1595, %v6164, 0
      %v6203 = vsel %vm1595, %v6166, 0
      %v6206 = vsel %vm1595, %v6168, 0
      %v6209 = vsel %vm1595, %v6170, 0
      %v6212 = vsel %vm1595, %v6172, 0
      %v6215 = vsel %vm1595, %v6174, 0
      %6217 = vmatprep.subr.bf16.mxu0 0
      %6218 = vmatpush1.bf16.xpose.msra.mxu0 %v6197
      %6219 = vmatprep.subr.bf16.mxu0 0
      %6220 = vmatpush1.bf16.xpose.msra.mxu0 %v6200
      %6221 = vmatprep.subr.bf16.mxu0 0
      %6222 = vmatpush1.bf16.xpose.msra.mxu0 %v6203
      %6223 = vmatprep.subr.bf16.mxu0 0
      %6224 = vmatpush1.bf16.xpose.msra.mxu0 %v6206
      %6225 = vmatprep.subr.bf16.mxu0 0
      %6226 = vmatpush1.bf16.xpose.msra.mxu0 %v6209
      %6227 = vmatprep.subr.bf16.mxu0 0
      %6228 = vmatpush1.bf16.xpose.msra.mxu0 %v6212
      %6229 = vmatprep.subr.bf16.mxu0 0
      %6230 = vmatpush1.bf16.xpose.msra.mxu0 %v6215
      %6231 = vmatprep.subr.bf16.mxu0 0
      %6232 = vmatpush1.bf16.xpose.msra.mxu0 0
      %6233 = vmatprep.subr.bf16.mxu0 0
      %6234 = vmatpush1.bf16.xpose.msra.mxu0 0
      %6235 = vmatprep.subr.bf16.mxu0 0
      %6236 = vmatpush1.bf16.xpose.msra.mxu0 0
      %6237 = vmatprep.subr.bf16.mxu0 0
      %6238 = vmatpush1.bf16.xpose.msra.mxu0 0
      %6239 = vmatprep.subr.bf16.mxu0 0
      %6240 = vmatpush1.bf16.xpose.msra.mxu0 0
      %6241 = vmatprep.subr.bf16.mxu0 0
      %6242 = vmatpush1.bf16.xpose.msra.mxu0 0
      %6243 = vmatprep.subr.bf16.mxu0 0
      %6244 = vmatpush1.bf16.xpose.msra.mxu0 0
      %6245 = vmatprep.subr.bf16.mxu0 0
      %6246 = vmatpush1.bf16.xpose.msra.mxu0 0
      %6247 = vmatprep.subr.bf16.mxu0 0
      %6248 = vmatpush1.bf16.xpose.msra.mxu0 0
      %6249 = vmatprep.mubr.bf16.mxu0 0
      %6250 = vmatmul.mubr.bf16.gmra.mrb[0].mxu0 %v6176
      %v6251 = vpop.f32.mrb[0].mxu0
      %v6252 = vadd.f32 %v1132, %v6251
      %v6253 = vpop.f32.mrb[0].mxu0
      %v6254 = vpop.f32.mrb[0].mxu0
      %v6255 = vadd.f32 %v1135, %v6254
      %v6256 = vpop.f32.mrb[0].mxu0
      %6257 = vmatprep.mubr.bf16.mxu0 0
      %6258 = vmatmul.mubr.bf16.gmra.mrb[0].mxu0 %v6179
      %v6259 = vpop.f32.mrb[0].mxu0
      %v6260 = vadd.f32 %v1140, %v6259
      %v6261 = vpop.f32.mrb[0].mxu0
      %v6262 = vpop.f32.mrb[0].mxu0
      %v6263 = vadd.f32 %v1143, %v6262
      %v6264 = vpop.f32.mrb[0].mxu0
      %6265 = vmatprep.mubr.bf16.mxu0 0
      %6266 = vmatmul.mubr.bf16.gmra.mrb[0].mxu0 %v6182
      %v6267 = vpop.f32.mrb[0].mxu0
      %v6268 = vadd.f32 %v1148, %v6267
      %v6269 = vpop.f32.mrb[0].mxu0
      %v6270 = vpop.f32.mrb[0].mxu0
      %v6271 = vadd.f32 %v1151, %v6270
      %v6272 = vpop.f32.mrb[0].mxu0
      %6273 = vmatprep.mubr.bf16.mxu0 0
      %6274 = vmatmul.mubr.bf16.gmra.mrb[0].mxu0 %v6185
      %v6275 = vpop.f32.mrb[0].mxu0
      %v6276 = vadd.f32 %v1156, %v6275
      %v6277 = vpop.f32.mrb[0].mxu0
      %v6278 = vpop.f32.mrb[0].mxu0
      %v6279 = vadd.f32 %v1159, %v6278
      %v6280 = vpop.f32.mrb[0].mxu0
      %6281 = vmatprep.mubr.bf16.mxu0 0
      %6282 = vmatmul.mubr.bf16.gmra.mrb[0].mxu0 %v6188
      %v6283 = vpop.f32.mrb[0].mxu0
      %v6284 = vadd.f32 %v1164, %v6283
      %v6285 = vpop.f32.mrb[0].mxu0
      %v6286 = vpop.f32.mrb[0].mxu0
      %v6287 = vadd.f32 %v1167, %v6286
      %v6288 = vpop.f32.mrb[0].mxu0
      %6289 = vmatprep.mubr.bf16.mxu0 0
      %6290 = vmatmul.mubr.bf16.gmra.mrb[0].mxu0 %v6191
      %v6291 = vpop.f32.mrb[0].mxu0
      %v6292 = vadd.f32 %v1172, %v6291
      %v6293 = vpop.f32.mrb[0].mxu0
      %v6294 = vpop.f32.mrb[0].mxu0
      %v6295 = vadd.f32 %v1175, %v6294
      %v6296 = vpop.f32.mrb[0].mxu0
      %6297 = vmatprep.mubr.bf16.mxu0 0
      %6298 = vmatmul.mubr.bf16.gmra.mrb[0].mxu0 %v6194
      %v6299 = vpop.f32.mrb[0].mxu0
      %v6300 = vadd.f32 %v1180, %v6299
      %v6301 = vpop.f32.mrb[0].mxu0
      %v6302 = vpop.f32.mrb[0].mxu0
      %v6303 = vadd.f32 %v1183, %v6302
      %v6304 = vpop.f32.mrb[0].mxu0
      %6305 = vdwg.mxu0
      %v6306 = vsel %vm1727, %v6252, -inf
      %6307 = vmax.xlane.f32.xlu0 %v6306
      %v6308 = vpop.xlane.xlu0 %6307
      %v6309 = vsel %vm1727, %v6255, -inf
      %6310 = vmax.xlane.f32.xlu0 %v6309
      %v6311 = vpop.xlane.xlu0 %6310
      %v6312 = vsel %vm1727, %v6260, -inf
      %6313 = vmax.xlane.f32.xlu0 %v6312
      %v6314 = vpop.xlane.xlu0 %6313
      %v6315 = vsel %vm1727, %v6263, -inf
      %6316 = vmax.xlane.f32.xlu0 %v6315
      %v6317 = vpop.xlane.xlu0 %6316
      %v6318 = vsel %vm1727, %v6268, -inf
      %6319 = vmax.xlane.f32.xlu0 %v6318
      %v6320 = vpop.xlane.xlu0 %6319
      %v6321 = vsel %vm1727, %v6271, -inf
      %6322 = vmax.xlane.f32.xlu0 %v6321
      %v6323 = vpop.xlane.xlu0 %6322
      %v6324 = vsel %vm1727, %v6276, -inf
      %6325 = vmax.xlane.f32.xlu0 %v6324
      %v6326 = vpop.xlane.xlu0 %6325
      %v6327 = vsel %vm1727, %v6279, -inf
      %6328 = vmax.xlane.f32.xlu0 %v6327
      %v6329 = vpop.xlane.xlu0 %6328
      %v6330 = vsel %vm1727, %v6284, -inf
      %6331 = vmax.xlane.f32.xlu0 %v6330
      %v6332 = vpop.xlane.xlu0 %6331
      %v6333 = vsel %vm1727, %v6287, -inf
      %6334 = vmax.xlane.f32.xlu0 %v6333
      %v6335 = vpop.xlane.xlu0 %6334
      %v6336 = vsel %vm1727, %v6292, -inf
      %6337 = vmax.xlane.f32.xlu0 %v6336
      %v6338 = vpop.xlane.xlu0 %6337
      %v6339 = vsel %vm1727, %v6295, -inf
      %6340 = vmax.xlane.f32.xlu0 %v6339
      %v6341 = vpop.xlane.xlu0 %6340
      %v6342 = vsel %vm1727, %v6300, -inf
      %6343 = vmax.xlane.f32.xlu0 %v6342
      %v6344 = vpop.xlane.xlu0 %6343
      %v6345 = vsel %vm1767, %v6303, -inf
      %6346 = vmax.xlane.f32.xlu0 %v6345
      %v6347 = vpop.xlane.xlu0 %6346
      %v6348 = vsub.f32 %v6252, %v6308
      %v6349 = vsub.f32 %v6255, %v6311
      %v6350 = vsub.f32 %v6260, %v6314
      %v6351 = vsub.f32 %v6263, %v6317
      %v6352 = vsub.f32 %v6268, %v6320
      %v6353 = vsub.f32 %v6271, %v6323
      %v6354 = vsub.f32 %v6276, %v6326
      %v6355 = vsub.f32 %v6279, %v6329
      %v6356 = vsub.f32 %v6284, %v6332
      %v6357 = vsub.f32 %v6287, %v6335
      %v6358 = vsub.f32 %v6292, %v6338
      %v6359 = vsub.f32 %v6295, %v6341
      %v6360 = vsub.f32 %v6300, %v6344
      %v6361 = vsub.f32 %v6303, %v6347
      %v6362 = vmul.f32 %v6348, 1.442695
      %v6363 = vpow.pop %v6362
      %v6364 = vmul.f32 %v6349, 1.442695
      %v6365 = vpow.pop %v6364
      %v6366 = vmul.f32 %v6350, 1.442695
      %v6367 = vpow.pop %v6366
      %v6368 = vmul.f32 %v6351, 1.442695
      %v6369 = vpow.pop %v6368
      %v6370 = vmul.f32 %v6352, 1.442695
      %v6371 = vpow.pop %v6370
      %v6372 = vmul.f32 %v6353, 1.442695
      %v6373 = vpow.pop %v6372
      %v6374 = vmul.f32 %v6354, 1.442695
      %v6375 = vpow.pop %v6374
      %v6376 = vmul.f32 %v6355, 1.442695
      %v6377 = vpow.pop %v6376
      %v6378 = vmul.f32 %v6356, 1.442695
      %v6379 = vpow.pop %v6378
      %v6380 = vmul.f32 %v6357, 1.442695
      %v6381 = vpow.pop %v6380
      %v6382 = vmul.f32 %v6358, 1.442695
      %v6383 = vpow.pop %v6382
      %v6384 = vmul.f32 %v6359, 1.442695
      %v6385 = vpow.pop %v6384
      %v6386 = vmul.f32 %v6360, 1.442695
      %v6387 = vpow.pop %v6386
      %v6388 = vmul.f32 %v6361, 1.442695
      %v6389 = vpow.pop %v6388
      %v6390 = vsel %vm1727, %v6363, 0.0
      %6391 = vadd.xlane.f32.xlu0 %v6390
      %v6392 = vpop.xlane.xlu0 %6391
      %v6393 = vsel %vm1727, %v6365, 0.0
      %6394 = vadd.xlane.f32.xlu0 %v6393
      %v6395 = vpop.xlane.xlu0 %6394
      %v6396 = vsel %vm1727, %v6367, 0.0
      %6397 = vadd.xlane.f32.xlu0 %v6396
      %v6398 = vpop.xlane.xlu0 %6397
      %v6399 = vsel %vm1727, %v6369, 0.0
      %6400 = vadd.xlane.f32.xlu0 %v6399
      %v6401 = vpop.xlane.xlu0 %6400
      %v6402 = vsel %vm1727, %v6371, 0.0
      %6403 = vadd.xlane.f32.xlu0 %v6402
      %v6404 = vpop.xlane.xlu0 %6403
      %v6405 = vsel %vm1727, %v6373, 0.0
      %6406 = vadd.xlane.f32.xlu0 %v6405
      %v6407 = vpop.xlane.xlu0 %6406
      %v6408 = vsel %vm1727, %v6375, 0.0
      %6409 = vadd.xlane.f32.xlu0 %v6408
      %v6410 = vpop.xlane.xlu0 %6409
      %v6411 = vsel %vm1727, %v6377, 0.0
      %6412 = vadd.xlane.f32.xlu0 %v6411
      %v6413 = vpop.xlane.xlu0 %6412
      %v6414 = vsel %vm1727, %v6379, 0.0
      %6415 = vadd.xlane.f32.xlu0 %v6414
      %v6416 = vpop.xlane.xlu0 %6415
      %v6417 = vsel %vm1727, %v6381, 0.0
      %6418 = vadd.xlane.f32.xlu0 %v6417
      %v6419 = vpop.xlane.xlu0 %6418
      %v6420 = vsel %vm1727, %v6383, 0.0
      %6421 = vadd.xlane.f32.xlu0 %v6420
      %v6422 = vpop.xlane.xlu0 %6421
      %v6423 = vsel %vm1727, %v6385, 0.0
      %6424 = vadd.xlane.f32.xlu0 %v6423
      %v6425 = vpop.xlane.xlu0 %6424
      %v6426 = vsel %vm1727, %v6387, 0.0
      %6427 = vadd.xlane.f32.xlu0 %v6426
      %v6428 = vpop.xlane.xlu0 %6427
      %v6429 = vsel %vm1767, %v6389, 0.0
      %6430 = vadd.xlane.f32.xlu0 %v6429
      %v6431 = vpop.xlane.xlu0 %6430
      %v6432 = vrcp.pop %v6392
      %v6433 = vrcp.pop %v6395
      %v6434 = vrcp.pop %v6398
      %v6435 = vrcp.pop %v6401
      %v6436 = vrcp.pop %v6404
      %v6437 = vrcp.pop %v6407
      %v6438 = vrcp.pop %v6410
      %v6439 = vrcp.pop %v6413
      %v6440 = vrcp.pop %v6416
      %v6441 = vrcp.pop %v6419
      %v6442 = vrcp.pop %v6422
      %v6443 = vrcp.pop %v6425
      %v6444 = vrcp.pop %v6428
      %v6445 = vrcp.pop %v6431
      %v6446 = vmul.f32 %v6363, %v6432
      %v6447 = vmul.f32 %v6365, %v6433
      %v6448 = vmul.f32 %v6367, %v6434
      %v6449 = vmul.f32 %v6369, %v6435
      %v6450 = vmul.f32 %v6371, %v6436
      %v6451 = vmul.f32 %v6373, %v6437
      %v6452 = vmul.f32 %v6375, %v6438
      %v6453 = vmul.f32 %v6377, %v6439
      %v6454 = vmul.f32 %v6379, %v6440
      %v6455 = vmul.f32 %v6381, %v6441
      %v6456 = vmul.f32 %v6383, %v6442
      %v6457 = vmul.f32 %v6385, %v6443
      %v6458 = vmul.f32 %v6387, %v6444
      %v6459 = vmul.f32 %v6389, %v6445
      %v6460 = vpack.c.bf16 %v6447, %v6446
      %v6461 = vpack.c.bf16 %v6449, %v6448
      %v6462 = vpack.c.bf16 %v6451, %v6450
      %v6463 = vpack.c.bf16 %v6453, %v6452
      %v6464 = vpack.c.bf16 %v6455, %v6454
      %v6465 = vpack.c.bf16 %v6457, %v6456
      %v6466 = vpack.c.bf16 %v6459, %v6458
      %6467 = vrot.lane.b32.xlu0 %v4788, 40
      %v6468 = vpop.permute.xlu0 %6467
      %6469 = vrot.lane.b32.xlu0 %v4789, 40
      %v6470 = vpop.permute.xlu0 %6469
      %6471 = vrot.lane.b32.xlu0 %v4790, 40
      %v6472 = vpop.permute.xlu0 %6471
      %6473 = vrot.lane.b32.xlu0 %v4791, 40
      %v6474 = vpop.permute.xlu0 %6473
      %6475 = vrot.lane.b32.xlu0 %v4792, 40
      %v6476 = vpop.permute.xlu0 %6475
      %6477 = vrot.lane.b32.xlu0 %v4793, 40
      %v6478 = vpop.permute.xlu0 %6477
      %6479 = vrot.lane.b32.xlu0 %v4794, 40
      %v6480 = vpop.permute.xlu0 %6479
      %v6488 = vsel %vm1727, %v6460, 0
      %v6491 = vsel %vm1727, %v6461, 0
      %v6494 = vsel %vm1727, %v6462, 0
      %v6497 = vsel %vm1727, %v6463, 0
      %v6500 = vsel %vm1727, %v6464, 0
      %v6503 = vsel %vm1727, %v6465, 0
      %v6506 = vsel %vm1727, %v6466, 0
      %v6509 = vsel %vm1931, %v6480, 0
      %6511 = vmatprep.subr.bf16.mxu0 0
      %6512 = vmatpush1.bf16.msra.mxu0 %v6468
      %6513 = vmatprep.subr.bf16.mxu0 0
      %6514 = vmatpush1.bf16.msra.mxu0 %v6470
      %6515 = vmatprep.subr.bf16.mxu0 0
      %6516 = vmatpush1.bf16.msra.mxu0 %v6472
      %6517 = vmatprep.subr.bf16.mxu0 0
      %6518 = vmatpush1.bf16.msra.mxu0 %v6474
      %6519 = vmatprep.subr.bf16.mxu0 0
      %6520 = vmatpush1.bf16.msra.mxu0 %v6476
      %6521 = vmatprep.subr.bf16.mxu0 0
      %6522 = vmatpush1.bf16.msra.mxu0 %v6478
      %6523 = vmatprep.subr.bf16.mxu0 0
      %6524 = vmatpush1.bf16.msra.mxu0 %v6509
      %6525 = vmatprep.subr.bf16.mxu0 0
      %6526 = vmatpush1.bf16.msra.mxu0 0
      %6527 = vmatprep.subr.bf16.mxu0 0
      %6528 = vmatpush1.bf16.msra.mxu0 0
      %6529 = vmatprep.subr.bf16.mxu0 0
      %6530 = vmatpush1.bf16.msra.mxu0 0
      %6531 = vmatprep.subr.bf16.mxu0 0
      %6532 = vmatpush1.bf16.msra.mxu0 0
      %6533 = vmatprep.subr.bf16.mxu0 0
      %6534 = vmatpush1.bf16.msra.mxu0 0
      %6535 = vmatprep.subr.bf16.mxu0 0
      %6536 = vmatpush1.bf16.msra.mxu0 0
      %6537 = vmatprep.subr.bf16.mxu0 0
      %6538 = vmatpush1.bf16.msra.mxu0 0
      %6539 = vmatprep.subr.bf16.mxu0 0
      %6540 = vmatpush1.bf16.msra.mxu0 0
      %6541 = vmatprep.subr.bf16.mxu0 0
      %6542 = vmatpush1.bf16.msra.mxu0 0
      %6543 = vmatprep.mubr.bf16.mxu0 0
      %6544 = vmatmul.mubr.bf16.gmra.mrb[0].mxu0 %v6488
      %v6545 = vpop.f32.mrb[0].mxu0
      %v6546 = vadd.f32 0.0, %v6545
      %v6547 = vpop.f32.mrb[0].mxu0
      %v6548 = vpop.f32.mrb[0].mxu0
      %v6549 = vadd.f32 0.0, %v6548
      %v6550 = vpop.f32.mrb[0].mxu0
      %6551 = vmatprep.mubr.bf16.mxu0 0
      %6552 = vmatmul.mubr.bf16.gmra.mrb[0].mxu0 %v6491
      %v6553 = vpop.f32.mrb[0].mxu0
      %v6554 = vadd.f32 0.0, %v6553
      %v6555 = vpop.f32.mrb[0].mxu0
      %v6556 = vpop.f32.mrb[0].mxu0
      %v6557 = vadd.f32 0.0, %v6556
      %v6558 = vpop.f32.mrb[0].mxu0
      %6559 = vmatprep.mubr.bf16.mxu0 0
      %6560 = vmatmul.mubr.bf16.gmra.mrb[0].mxu0 %v6494
      %v6561 = vpop.f32.mrb[0].mxu0
      %v6562 = vadd.f32 0.0, %v6561
      %v6563 = vpop.f32.mrb[0].mxu0
      %v6564 = vpop.f32.mrb[0].mxu0
      %v6565 = vadd.f32 0.0, %v6564
      %v6566 = vpop.f32.mrb[0].mxu0
      %6567 = vmatprep.mubr.bf16.mxu0 0
      %6568 = vmatmul.mubr.bf16.gmra.mrb[0].mxu0 %v6497
      %v6569 = vpop.f32.mrb[0].mxu0
      %v6570 = vadd.f32 0.0, %v6569
      %v6571 = vpop.f32.mrb[0].mxu0
      %v6572 = vpop.f32.mrb[0].mxu0
      %v6573 = vadd.f32 0.0, %v6572
      %v6574 = vpop.f32.mrb[0].mxu0
      %6575 = vmatprep.mubr.bf16.mxu0 0
      %6576 = vmatmul.mubr.bf16.gmra.mrb[0].mxu0 %v6500
      %v6577 = vpop.f32.mrb[0].mxu0
      %v6578 = vadd.f32 0.0, %v6577
      %v6579 = vpop.f32.mrb[0].mxu0
      %v6580 = vpop.f32.mrb[0].mxu0
      %v6581 = vadd.f32 0.0, %v6580
      %v6582 = vpop.f32.mrb[0].mxu0
      %6583 = vmatprep.mubr.bf16.mxu0 0
      %6584 = vmatmul.mubr.bf16.gmra.mrb[0].mxu0 %v6503
      %v6585 = vpop.f32.mrb[0].mxu0
      %v6586 = vadd.f32 0.0, %v6585
      %v6587 = vpop.f32.mrb[0].mxu0
      %v6588 = vpop.f32.mrb[0].mxu0
      %v6589 = vadd.f32 0.0, %v6588
      %v6590 = vpop.f32.mrb[0].mxu0
      %6591 = vmatprep.mubr.bf16.mxu0 0
      %6592 = vmatmul.mubr.bf16.gmra.mrb[0].mxu0 %v6506
      %v6593 = vpop.f32.mrb[0].mxu0
      %v6594 = vadd.f32 0.0, %v6593
      %v6595 = vpop.f32.mrb[0].mxu0
      %v6596 = vpop.f32.mrb[0].mxu0
      %v6597 = vadd.f32 0.0, %v6596
      %v6598 = vpop.f32.mrb[0].mxu0
      %6599 = vdwg.mxu0
      %6614 = vrot.lane.b32.xlu0 %v5640, 8
      %v6615 = vpop.permute.xlu0 %6614
      %6616 = vrot.lane.b32.xlu0 %v5643, 8
      %v6617 = vpop.permute.xlu0 %6616
      %6618 = vrot.lane.b32.xlu0 %v5648, 8
      %v6619 = vpop.permute.xlu0 %6618
      %6620 = vrot.lane.b32.xlu0 %v5651, 8
      %v6621 = vpop.permute.xlu0 %6620
      %6622 = vrot.lane.b32.xlu0 %v5656, 8
      %v6623 = vpop.permute.xlu0 %6622
      %6624 = vrot.lane.b32.xlu0 %v5659, 8
      %v6625 = vpop.permute.xlu0 %6624
      %6626 = vrot.lane.b32.xlu0 %v5664, 8
      %v6627 = vpop.permute.xlu0 %6626
      %6628 = vrot.lane.b32.xlu0 %v5667, 8
      %v6629 = vpop.permute.xlu0 %6628
      %6630 = vrot.lane.b32.xlu0 %v5672, 8
      %v6631 = vpop.permute.xlu0 %6630
      %6632 = vrot.lane.b32.xlu0 %v5675, 8
      %v6633 = vpop.permute.xlu0 %6632
      %6634 = vrot.lane.b32.xlu0 %v5680, 8
      %v6635 = vpop.permute.xlu0 %6634
      %6636 = vrot.lane.b32.xlu0 %v5683, 8
      %v6637 = vpop.permute.xlu0 %6636
      %6638 = vrot.lane.b32.xlu0 %v5688, 8
      %v6639 = vpop.permute.xlu0 %6638
      %6640 = vrot.lane.b32.xlu0 %v5691, 8
      %v6641 = vpop.permute.xlu0 %6640
      %6670 = vrot.lane.b32.xlu0 %v6093, 16
      %v6671 = vpop.permute.xlu0 %6670
      %6672 = vrot.lane.b32.xlu0 %v6096, 16
      %v6673 = vpop.permute.xlu0 %6672
      %6674 = vrot.lane.b32.xlu0 %v6101, 16
      %v6675 = vpop.permute.xlu0 %6674
      %6676 = vrot.lane.b32.xlu0 %v6104, 16
      %v6677 = vpop.permute.xlu0 %6676
      %6678 = vrot.lane.b32.xlu0 %v6109, 16
      %v6679 = vpop.permute.xlu0 %6678
      %6680 = vrot.lane.b32.xlu0 %v6112, 16
      %v6681 = vpop.permute.xlu0 %6680
      %6682 = vrot.lane.b32.xlu0 %v6117, 16
      %v6683 = vpop.permute.xlu0 %6682
      %6684 = vrot.lane.b32.xlu0 %v6120, 16
      %v6685 = vpop.permute.xlu0 %6684
      %6686 = vrot.lane.b32.xlu0 %v6125, 16
      %v6687 = vpop.permute.xlu0 %6686
      %6688 = vrot.lane.b32.xlu0 %v6128, 16
      %v6689 = vpop.permute.xlu0 %6688
      %6690 = vrot.lane.b32.xlu0 %v6133, 16
      %v6691 = vpop.permute.xlu0 %6690
      %6692 = vrot.lane.b32.xlu0 %v6136, 16
      %v6693 = vpop.permute.xlu0 %6692
      %6694 = vrot.lane.b32.xlu0 %v6141, 16
      %v6695 = vpop.permute.xlu0 %6694
      %6696 = vrot.lane.b32.xlu0 %v6144, 16
      %v6697 = vpop.permute.xlu0 %6696
      %6726 = vrot.lane.b32.xlu0 %v6546, 24
      %v6727 = vpop.permute.xlu0 %6726
      %6728 = vrot.lane.b32.xlu0 %v6549, 24
      %v6729 = vpop.permute.xlu0 %6728
      %6730 = vrot.lane.b32.xlu0 %v6554, 24
      %v6731 = vpop.permute.xlu0 %6730
      %6732 = vrot.lane.b32.xlu0 %v6557, 24
      %v6733 = vpop.permute.xlu0 %6732
      %6734 = vrot.lane.b32.xlu0 %v6562, 24
      %v6735 = vpop.permute.xlu0 %6734
      %6736 = vrot.lane.b32.xlu0 %v6565, 24
      %v6737 = vpop.permute.xlu0 %6736
      %6738 = vrot.lane.b32.xlu0 %v6570, 24
      %v6739 = vpop.permute.xlu0 %6738
      %6740 = vrot.lane.b32.xlu0 %v6573, 24
      %v6741 = vpop.permute.xlu0 %6740
      %6742 = vrot.lane.b32.xlu0 %v6578, 24
      %v6743 = vpop.permute.xlu0 %6742
      %6744 = vrot.lane.b32.xlu0 %v6581, 24
      %v6745 = vpop.permute.xlu0 %6744
      %6746 = vrot.lane.b32.xlu0 %v6586, 24
      %v6747 = vpop.permute.xlu0 %6746
      %6748 = vrot.lane.b32.xlu0 %v6589, 24
      %v6749 = vpop.permute.xlu0 %6748
      %6750 = vrot.lane.b32.xlu0 %v6594, 24
      %v6751 = vpop.permute.xlu0 %6750
      %6752 = vrot.lane.b32.xlu0 %v6597, 24
      %v6753 = vpop.permute.xlu0 %6752
      %v6768 = vsel %vm1595, %v5187, %v6615
      %v6769 = vsel %vm1595, %v5190, %v6617
      %v6770 = vsel %vm1595, %v5195, %v6619
      %v6771 = vsel %vm1595, %v5198, %v6621
      %v6772 = vsel %vm1595, %v5203, %v6623
      %v6773 = vsel %vm1595, %v5206, %v6625
      %v6774 = vsel %vm1595, %v5211, %v6627
      %v6775 = vsel %vm1595, %v5214, %v6629
      %v6776 = vsel %vm1595, %v5219, %v6631
      %v6777 = vsel %vm1595, %v5222, %v6633
      %v6778 = vsel %vm1595, %v5227, %v6635
      %v6779 = vsel %vm1595, %v5230, %v6637
      %v6780 = vsel %vm1595, %v5235, %v6639
      %v6781 = vsel %vm1595, %v5238, %v6641
      %v6782 = vsel %vm3565, %v6768, %v6671
      %v6783 = vsel %vm3565, %v6769, %v6673
      %v6784 = vsel %vm3565, %v6770, %v6675
      %v6785 = vsel %vm3565, %v6771, %v6677
      %v6786 = vsel %vm3565, %v6772, %v6679
      %v6787 = vsel %vm3565, %v6773, %v6681
      %v6788 = vsel %vm3565, %v6774, %v6683
      %v6789 = vsel %vm3565, %v6775, %v6685
      %v6790 = vsel %vm3565, %v6776, %v6687
      %v6791 = vsel %vm3565, %v6777, %v6689
      %v6792 = vsel %vm3565, %v6778, %v6691
      %v6793 = vsel %vm3565, %v6779, %v6693
      %v6794 = vsel %vm3565, %v6780, %v6695
      %v6795 = vsel %vm3565, %v6781, %v6697
      %v6796 = vsel %vm3580, %v6782, %v6727
      %v6797 = vsel %vm3580, %v6783, %v6729
      %v6798 = vsel %vm3580, %v6784, %v6731
      %v6799 = vsel %vm3580, %v6785, %v6733
      %v6800 = vsel %vm3580, %v6786, %v6735
      %v6801 = vsel %vm3580, %v6787, %v6737
      %v6802 = vsel %vm3580, %v6788, %v6739
      %v6803 = vsel %vm3580, %v6789, %v6741
      %v6804 = vsel %vm3580, %v6790, %v6743
      %v6805 = vsel %vm3580, %v6791, %v6745
      %v6806 = vsel %vm3580, %v6792, %v6747
      %v6807 = vsel %vm3580, %v6793, %v6749
      %v6808 = vsel %vm3580, %v6794, %v6751
      %v6809 = vsel %vm3580, %v6795, %v6753
      %v6810 = vpack.c.bf16 %v6797, %v6796
      %v6811 = vpack.c.bf16 %v6799, %v6798
      %v6812 = vpack.c.bf16 %v6801, %v6800
      %v6813 = vpack.c.bf16 %v6803, %v6802
      %v6814 = vpack.c.bf16 %v6805, %v6804
      %v6815 = vpack.c.bf16 %v6807, %v6806
      %v6816 = vpack.c.bf16 %v6809, %v6808
      %s6817 = scalar_lea.vmem %s7, 16
      %v6818 = vld [vmem:[%s6817] sm:$0xf]
      %v6819 = vld [vmem:[%s6817 + $0x4] sm:$0xf]
      %v6820 = vld [vmem:[%s6817 + $0x8] sm:$0xf]
      %v6821 = vld [vmem:[%s6817 + $0xc] sm:$0xf]
      %s6822 = scalar_lea.vmem %s8, 1
      %v6823 = vld [vmem:[%s6822] sm:$0x1]
      %v6825 = vlaneseq
      %v6826 = vshrl.u32 %v6825, 7
      %v6827 = vsub.s32 0, %v6826
      %v6828 = vrot.slane %v6823, %v6827
      %v6834 = vunpack.c.l.b16 %v6818
      %v6835 = vunpack.c.l.b16 %v6819
      %v6836 = vunpack.c.l.b16 %v6820
      %v6837 = vunpack.c.l.b16 %v6821
      %v6838 = vpack.c.b16 %v6835, %v6834
      %v6839 = vpack.c.b16 %v6837, %v6836
      %v6843 = vsel %vm1202, %v6810, 0
      %v6846 = vsel %vm1202, %v6811, 0
      %v6849 = vsel %vm1202, %v6812, 0
      %v6852 = vsel %vm1202, %v6813, 0
      %v6855 = vsel %vm1202, %v6814, 0
      %v6858 = vsel %vm1202, %v6815, 0
      %v6861 = vsel %vm1202, %v6816, 0
      %6863 = vmatprep.subr.bf16.mxu0 0
      %6864 = vmatpush1.bf16.msra.mxu0 %v6838
      %6865 = vmatprep.subr.bf16.mxu0 0
      %6866 = vmatpush1.bf16.msra.mxu0 %v6839
      %6867 = vmatprep.subr.bf16.mxu0 0
      %6868 = vmatpush1.bf16.msra.mxu0 0
      %6869 = vmatprep.subr.bf16.mxu0 0
      %6870 = vmatpush1.bf16.msra.mxu0 0
      %6871 = vmatprep.subr.bf16.mxu0 0
      %6872 = vmatpush1.bf16.msra.mxu0 0
      %6873 = vmatprep.subr.bf16.mxu0 0
      %6874 = vmatpush1.bf16.msra.mxu0 0
      %6875 = vmatprep.subr.bf16.mxu0 0
      %6876 = vmatpush1.bf16.msra.mxu0 0
      %6877 = vmatprep.subr.bf16.mxu0 0
      %6878 = vmatpush1.bf16.msra.mxu0 0
      %6879 = vmatprep.subr.bf16.mxu0 0
      %6880 = vmatpush1.bf16.msra.mxu0 0
      %6881 = vmatprep.subr.bf16.mxu0 0
      %6882 = vmatpush1.bf16.msra.mxu0 0
      %6883 = vmatprep.subr.bf16.mxu0 0
      %6884 = vmatpush1.bf16.msra.mxu0 0
      %6885 = vmatprep.subr.bf16.mxu0 0
      %6886 = vmatpush1.bf16.msra.mxu0 0
      %6887 = vmatprep.subr.bf16.mxu0 0
      %6888 = vmatpush1.bf16.msra.mxu0 0
      %6889 = vmatprep.subr.bf16.mxu0 0
      %6890 = vmatpush1.bf16.msra.mxu0 0
      %6891 = vmatprep.subr.bf16.mxu0 0
      %6892 = vmatpush1.bf16.msra.mxu0 0
      %6893 = vmatprep.subr.bf16.mxu0 0
      %6894 = vmatpush1.bf16.msra.mxu0 0
      %6895 = vmatprep.mubr.bf16.mxu0 0
      %6896 = vmatmul.mubr.bf16.gmra.mrb[0].mxu0 %v6843
      %v6897 = vpop.f32.mrb[0].mxu0
      %v6898 = vadd.f32 %v6828, %v6897
      %v6899 = vpop.f32.mrb[0].mxu0
      %v6900 = vpop.f32.mrb[0].mxu0
      %v6901 = vadd.f32 %v6828, %v6900
      %v6902 = vpop.f32.mrb[0].mxu0
      %6903 = vmatprep.mubr.bf16.mxu0 0
      %6904 = vmatmul.mubr.bf16.gmra.mrb[0].mxu0 %v6846
      %v6905 = vpop.f32.mrb[0].mxu0
      %v6906 = vadd.f32 %v6828, %v6905
      %v6907 = vpop.f32.mrb[0].mxu0
      %v6908 = vpop.f32.mrb[0].mxu0
      %v6909 = vadd.f32 %v6828, %v6908
      %v6910 = vpop.f32.mrb[0].mxu0
      %6911 = vmatprep.mubr.bf16.mxu0 0
      %6912 = vmatmul.mubr.bf16.gmra.mrb[0].mxu0 %v6849
      %v6913 = vpop.f32.mrb[0].mxu0
      %v6914 = vadd.f32 %v6828, %v6913
      %v6915 = vpop.f32.mrb[0].mxu0
      %v6916 = vpop.f32.mrb[0].mxu0
      %v6917 = vadd.f32 %v6828, %v6916
      %v6918 = vpop.f32.mrb[0].mxu0
      %6919 = vmatprep.mubr.bf16.mxu0 0
      %6920 = vmatmul.mubr.bf16.gmra.mrb[0].mxu0 %v6852
      %v6921 = vpop.f32.mrb[0].mxu0
      %v6922 = vadd.f32 %v6828, %v6921
      %v6923 = vpop.f32.mrb[0].mxu0
      %v6924 = vpop.f32.mrb[0].mxu0
      %v6925 = vadd.f32 %v6828, %v6924
      %v6926 = vpop.f32.mrb[0].mxu0
      %6927 = vmatprep.mubr.bf16.mxu0 0
      %6928 = vmatmul.mubr.bf16.gmra.mrb[0].mxu0 %v6855
      %v6929 = vpop.f32.mrb[0].mxu0
      %v6930 = vadd.f32 %v6828, %v6929
      %v6931 = vpop.f32.mrb[0].mxu0
      %v6932 = vpop.f32.mrb[0].mxu0
      %v6933 = vadd.f32 %v6828, %v6932
      %v6934 = vpop.f32.mrb[0].mxu0
      %6935 = vmatprep.mubr.bf16.mxu0 0
      %6936 = vmatmul.mubr.bf16.gmra.mrb[0].mxu0 %v6858
      %v6937 = vpop.f32.mrb[0].mxu0
      %v6938 = vadd.f32 %v6828, %v6937
      %v6939 = vpop.f32.mrb[0].mxu0
      %v6940 = vpop.f32.mrb[0].mxu0
      %v6941 = vadd.f32 %v6828, %v6940
      %v6942 = vpop.f32.mrb[0].mxu0
      %6943 = vmatprep.mubr.bf16.mxu0 0
      %6944 = vmatmul.mubr.bf16.gmra.mrb[0].mxu0 %v6861
      %v6945 = vpop.f32.mrb[0].mxu0
      %v6946 = vadd.f32 %v6828, %v6945
      %v6947 = vpop.f32.mrb[0].mxu0
      %v6948 = vpop.f32.mrb[0].mxu0
      %v6949 = vadd.f32 %v6828, %v6948
      %v6950 = vpop.f32.mrb[0].mxu0
      %6951 = vdwg.mxu0
      %v6952 = vadd.f32 %v4406, %v6898
      %v6953 = vadd.f32 %v4407, %v6901
      %v6954 = vadd.f32 %v4408, %v6906
      %v6955 = vadd.f32 %v4409, %v6909
      %v6956 = vadd.f32 %v4410, %v6914
      %v6957 = vadd.f32 %v4411, %v6917
      %v6958 = vadd.f32 %v4412, %v6922
      %v6959 = vadd.f32 %v4413, %v6925
      %v6960 = vadd.f32 %v4414, %v6930
      %v6961 = vadd.f32 %v4415, %v6933
      %v6962 = vadd.f32 %v4416, %v6938
      %v6963 = vadd.f32 %v4417, %v6941
      %v6964 = vadd.f32 %v4418, %v6946
      %v6965 = vadd.f32 %v4419, %v6949
      %s6966 = scalar_lea.vmem %s9, 1
      %v6967 = vld [vmem:[%s6966] sm:$0x1]
      %s6968 = scalar_lea.vmem %s10, 1
      %v6969 = vld [vmem:[%s6968] sm:$0x1]
      %v6970 = vsel %vm1202, %v6952, 0.0
      %6971 = vadd.xlane.f32.xlu0 %v6970
      %v6972 = vpop.xlane.xlu0 %6971
      %v6973 = vsel %vm1202, %v6953, 0.0
      %6974 = vadd.xlane.f32.xlu0 %v6973
      %v6975 = vpop.xlane.xlu0 %6974
      %v6976 = vsel %vm1202, %v6954, 0.0
      %6977 = vadd.xlane.f32.xlu0 %v6976
      %v6978 = vpop.xlane.xlu0 %6977
      %v6979 = vsel %vm1202, %v6955, 0.0
      %6980 = vadd.xlane.f32.xlu0 %v6979
      %v6981 = vpop.xlane.xlu0 %6980
      %v6982 = vsel %vm1202, %v6956, 0.0
      %6983 = vadd.xlane.f32.xlu0 %v6982
      %v6984 = vpop.xlane.xlu0 %6983
      %v6985 = vsel %vm1202, %v6957, 0.0
      %6986 = vadd.xlane.f32.xlu0 %v6985
      %v6987 = vpop.xlane.xlu0 %6986
      %v6988 = vsel %vm1202, %v6958, 0.0
      %6989 = vadd.xlane.f32.xlu0 %v6988
      %v6990 = vpop.xlane.xlu0 %6989
      %v6991 = vsel %vm1202, %v6959, 0.0
      %6992 = vadd.xlane.f32.xlu0 %v6991
      %v6993 = vpop.xlane.xlu0 %6992
      %v6994 = vsel %vm1202, %v6960, 0.0
      %6995 = vadd.xlane.f32.xlu0 %v6994
      %v6996 = vpop.xlane.xlu0 %6995
      %v6997 = vsel %vm1202, %v6961, 0.0
      %6998 = vadd.xlane.f32.xlu0 %v6997
      %v6999 = vpop.xlane.xlu0 %6998
      %v7000 = vsel %vm1202, %v6962, 0.0
      %7001 = vadd.xlane.f32.xlu0 %v7000
      %v7002 = vpop.xlane.xlu0 %7001
      %v7003 = vsel %vm1202, %v6963, 0.0
      %7004 = vadd.xlane.f32.xlu0 %v7003
      %v7005 = vpop.xlane.xlu0 %7004
      %v7006 = vsel %vm1202, %v6964, 0.0
      %7007 = vadd.xlane.f32.xlu0 %v7006
      %v7008 = vpop.xlane.xlu0 %7007
      %v7009 = vsel %vm1242, %v6965, 0.0
      %7010 = vadd.xlane.f32.xlu0 %v7009
      %v7011 = vpop.xlane.xlu0 %7010
      %v7012 = vmul.f32 %v6972, %v1246
      %v7013 = vmul.f32 %v6975, %v1246
      %v7014 = vmul.f32 %v6978, %v1246
      %v7015 = vmul.f32 %v6981, %v1246
      %v7016 = vmul.f32 %v6984, %v1246
      %v7017 = vmul.f32 %v6987, %v1246
      %v7018 = vmul.f32 %v6990, %v1246
      %v7019 = vmul.f32 %v6993, %v1246
      %v7020 = vmul.f32 %v6996, %v1246
      %v7021 = vmul.f32 %v6999, %v1246
      %v7022 = vmul.f32 %v7002, %v1246
      %v7023 = vmul.f32 %v7005, %v1246
      %v7024 = vmul.f32 %v7008, %v1246
      %v7025 = vmul.f32 %v7011, %v1246
      %v7026 = vsub.f32 %v6952, %v7012
      %v7027 = vsub.f32 %v6953, %v7013
      %v7028 = vsub.f32 %v6954, %v7014
      %v7029 = vsub.f32 %v6955, %v7015
      %v7030 = vsub.f32 %v6956, %v7016
      %v7031 = vsub.f32 %v6957, %v7017
      %v7032 = vsub.f32 %v6958, %v7018
      %v7033 = vsub.f32 %v6959, %v7019
      %v7034 = vsub.f32 %v6960, %v7020
      %v7035 = vsub.f32 %v6961, %v7021
      %v7036 = vsub.f32 %v6962, %v7022
      %v7037 = vsub.f32 %v6963, %v7023
      %v7038 = vsub.f32 %v6964, %v7024
      %v7039 = vsub.f32 %v6965, %v7025
      %v7040 = vmul.f32 %v7026, %v7026
      %v7041 = vmul.f32 %v7027, %v7027
      %v7042 = vmul.f32 %v7028, %v7028
      %v7043 = vmul.f32 %v7029, %v7029
      %v7044 = vmul.f32 %v7030, %v7030
      %v7045 = vmul.f32 %v7031, %v7031
      %v7046 = vmul.f32 %v7032, %v7032
      %v7047 = vmul.f32 %v7033, %v7033
      %v7048 = vmul.f32 %v7034, %v7034
      %v7049 = vmul.f32 %v7035, %v7035
      %v7050 = vmul.f32 %v7036, %v7036
      %v7051 = vmul.f32 %v7037, %v7037
      %v7052 = vmul.f32 %v7038, %v7038
      %v7053 = vmul.f32 %v7039, %v7039
      %v7054 = vsel %vm1202, %v7040, 0.0
      %7055 = vadd.xlane.f32.xlu0 %v7054
      %v7056 = vpop.xlane.xlu0 %7055
      %v7057 = vsel %vm1202, %v7041, 0.0
      %7058 = vadd.xlane.f32.xlu0 %v7057
      %v7059 = vpop.xlane.xlu0 %7058
      %v7060 = vsel %vm1202, %v7042, 0.0
      %7061 = vadd.xlane.f32.xlu0 %v7060
      %v7062 = vpop.xlane.xlu0 %7061
      %v7063 = vsel %vm1202, %v7043, 0.0
      %7064 = vadd.xlane.f32.xlu0 %v7063
      %v7065 = vpop.xlane.xlu0 %7064
      %v7066 = vsel %vm1202, %v7044, 0.0
      %7067 = vadd.xlane.f32.xlu0 %v7066
      %v7068 = vpop.xlane.xlu0 %7067
      %v7069 = vsel %vm1202, %v7045, 0.0
      %7070 = vadd.xlane.f32.xlu0 %v7069
      %v7071 = vpop.xlane.xlu0 %7070
      %v7072 = vsel %vm1202, %v7046, 0.0
      %7073 = vadd.xlane.f32.xlu0 %v7072
      %v7074 = vpop.xlane.xlu0 %7073
      %v7075 = vsel %vm1202, %v7047, 0.0
      %7076 = vadd.xlane.f32.xlu0 %v7075
      %v7077 = vpop.xlane.xlu0 %7076
      %v7078 = vsel %vm1202, %v7048, 0.0
      %7079 = vadd.xlane.f32.xlu0 %v7078
      %v7080 = vpop.xlane.xlu0 %7079
      %v7081 = vsel %vm1202, %v7049, 0.0
      %7082 = vadd.xlane.f32.xlu0 %v7081
      %v7083 = vpop.xlane.xlu0 %7082
      %v7084 = vsel %vm1202, %v7050, 0.0
      %7085 = vadd.xlane.f32.xlu0 %v7084
      %v7086 = vpop.xlane.xlu0 %7085
      %v7087 = vsel %vm1202, %v7051, 0.0
      %7088 = vadd.xlane.f32.xlu0 %v7087
      %v7089 = vpop.xlane.xlu0 %7088
      %v7090 = vsel %vm1202, %v7052, 0.0
      %7091 = vadd.xlane.f32.xlu0 %v7090
      %v7092 = vpop.xlane.xlu0 %7091
      %v7093 = vsel %vm1242, %v7053, 0.0
      %7094 = vadd.xlane.f32.xlu0 %v7093
      %v7095 = vpop.xlane.xlu0 %7094
      %v7096 = vmul.f32 %v7056, %v1246
      %v7097 = vmul.f32 %v7059, %v1246
      %v7098 = vmul.f32 %v7062, %v1246
      %v7099 = vmul.f32 %v7065, %v1246
      %v7100 = vmul.f32 %v7068, %v1246
      %v7101 = vmul.f32 %v7071, %v1246
      %v7102 = vmul.f32 %v7074, %v1246
      %v7103 = vmul.f32 %v7077, %v1246
      %v7104 = vmul.f32 %v7080, %v1246
      %v7105 = vmul.f32 %v7083, %v1246
      %v7106 = vmul.f32 %v7086, %v1246
      %v7107 = vmul.f32 %v7089, %v1246
      %v7108 = vmul.f32 %v7092, %v1246
      %v7109 = vmul.f32 %v7095, %v1246
      %v7110 = vadd.f32 %v7096, 1e-05
      %v7111 = vadd.f32 %v7097, 1e-05
      %v7112 = vadd.f32 %v7098, 1e-05
      %v7113 = vadd.f32 %v7099, 1e-05
      %v7114 = vadd.f32 %v7100, 1e-05
      %v7115 = vadd.f32 %v7101, 1e-05
      %v7116 = vadd.f32 %v7102, 1e-05
      %v7117 = vadd.f32 %v7103, 1e-05
      %v7118 = vadd.f32 %v7104, 1e-05
      %v7119 = vadd.f32 %v7105, 1e-05
      %v7120 = vadd.f32 %v7106, 1e-05
      %v7121 = vadd.f32 %v7107, 1e-05
      %v7122 = vadd.f32 %v7108, 1e-05
      %v7123 = vadd.f32 %v7109, 1e-05
      %v7124 = vrsqrt.pop %v7110
      %v7125 = vrsqrt.pop %v7111
      %v7126 = vrsqrt.pop %v7112
      %v7127 = vrsqrt.pop %v7113
      %v7128 = vrsqrt.pop %v7114
      %v7129 = vrsqrt.pop %v7115
      %v7130 = vrsqrt.pop %v7116
      %v7131 = vrsqrt.pop %v7117
      %v7132 = vrsqrt.pop %v7118
      %v7133 = vrsqrt.pop %v7119
      %v7134 = vrsqrt.pop %v7120
      %v7135 = vrsqrt.pop %v7121
      %v7136 = vrsqrt.pop %v7122
      %v7137 = vrsqrt.pop %v7123
      %v7138 = vmul.f32 %v7026, %v7124
      %v7139 = vmul.f32 %v7027, %v7125
      %v7140 = vmul.f32 %v7028, %v7126
      %v7141 = vmul.f32 %v7029, %v7127
      %v7142 = vmul.f32 %v7030, %v7128
      %v7143 = vmul.f32 %v7031, %v7129
      %v7144 = vmul.f32 %v7032, %v7130
      %v7145 = vmul.f32 %v7033, %v7131
      %v7146 = vmul.f32 %v7034, %v7132
      %v7147 = vmul.f32 %v7035, %v7133
      %v7148 = vmul.f32 %v7036, %v7134
      %v7149 = vmul.f32 %v7037, %v7135
      %v7150 = vmul.f32 %v7038, %v7136
      %v7151 = vmul.f32 %v7039, %v7137
      %v7153 = vlaneseq
      %v7154 = vshrl.u32 %v7153, 7
      %v7155 = vsub.s32 0, %v7154
      %v7156 = vrot.slane %v6967, %v7155
      %v7158 = vmul.f32 %v7138, %v7156
      %v7159 = vmul.f32 %v7139, %v7156
      %v7160 = vmul.f32 %v7140, %v7156
      %v7161 = vmul.f32 %v7141, %v7156
      %v7162 = vmul.f32 %v7142, %v7156
      %v7163 = vmul.f32 %v7143, %v7156
      %v7164 = vmul.f32 %v7144, %v7156
      %v7165 = vmul.f32 %v7145, %v7156
      %v7166 = vmul.f32 %v7146, %v7156
      %v7167 = vmul.f32 %v7147, %v7156
      %v7168 = vmul.f32 %v7148, %v7156
      %v7169 = vmul.f32 %v7149, %v7156
      %v7170 = vmul.f32 %v7150, %v7156
      %v7171 = vmul.f32 %v7151, %v7156
      %v7173 = vlaneseq
      %v7174 = vshrl.u32 %v7173, 7
      %v7175 = vsub.s32 0, %v7174
      %v7176 = vrot.slane %v6969, %v7175
      %v7178 = vadd.f32 %v7158, %v7176
      %v7179 = vadd.f32 %v7159, %v7176
      %v7180 = vadd.f32 %v7160, %v7176
      %v7181 = vadd.f32 %v7161, %v7176
      %v7182 = vadd.f32 %v7162, %v7176
      %v7183 = vadd.f32 %v7163, %v7176
      %v7184 = vadd.f32 %v7164, %v7176
      %v7185 = vadd.f32 %v7165, %v7176
      %v7186 = vadd.f32 %v7166, %v7176
      %v7187 = vadd.f32 %v7167, %v7176
      %v7188 = vadd.f32 %v7168, %v7176
      %v7189 = vadd.f32 %v7169, %v7176
      %v7190 = vadd.f32 %v7170, %v7176
      %v7191 = vadd.f32 %v7171, %v7176
      %v7192 = vpack.c.bf16 %v7179, %v7178
      %v7193 = vpack.c.bf16 %v7181, %v7180
      %v7194 = vpack.c.bf16 %v7183, %v7182
      %v7195 = vpack.c.bf16 %v7185, %v7184
      %v7196 = vpack.c.bf16 %v7187, %v7186
      %v7197 = vpack.c.bf16 %v7189, %v7188
      %v7198 = vpack.c.bf16 %v7191, %v7190
      %s7199 = scalar_lea.vmem %s11, 16
      %v7200 = vld [vmem:[%s7199] sm:$0xf]
      %v7201 = vld [vmem:[%s7199 + $0x4] sm:$0xf]
      %v7202 = vld [vmem:[%s7199 + $0x8] sm:$0xf]
      %v7203 = vld [vmem:[%s7199 + $0xc] sm:$0xf]
      %s7204 = scalar_lea.vmem %s12, 1
      %v7205 = vld [vmem:[%s7204] sm:$0x1]
      %v7207 = vlaneseq
      %v7208 = vshrl.u32 %v7207, 7
      %v7209 = vsub.s32 0, %v7208
      %v7210 = vrot.slane %v7205, %v7209
      %v7216 = vunpack.c.l.b16 %v7200
      %v7217 = vunpack.c.l.b16 %v7201
      %v7218 = vunpack.c.l.b16 %v7202
      %v7219 = vunpack.c.l.b16 %v7203
      %v7220 = vpack.c.b16 %v7217, %v7216
      %v7221 = vpack.c.b16 %v7219, %v7218
      %v7225 = vsel %vm1202, %v7192, 0
      %v7228 = vsel %vm1202, %v7193, 0
      %v7231 = vsel %vm1202, %v7194, 0
      %v7234 = vsel %vm1202, %v7195, 0
      %v7237 = vsel %vm1202, %v7196, 0
      %v7240 = vsel %vm1202, %v7197, 0
      %v7243 = vsel %vm1202, %v7198, 0
      %7245 = vmatprep.subr.bf16.mxu0 0
      %7246 = vmatpush1.bf16.msra.mxu0 %v7220
      %7247 = vmatprep.subr.bf16.mxu0 0
      %7248 = vmatpush1.bf16.msra.mxu0 %v7221
      %7249 = vmatprep.subr.bf16.mxu0 0
      %7250 = vmatpush1.bf16.msra.mxu0 0
      %7251 = vmatprep.subr.bf16.mxu0 0
      %7252 = vmatpush1.bf16.msra.mxu0 0
      %7253 = vmatprep.subr.bf16.mxu0 0
      %7254 = vmatpush1.bf16.msra.mxu0 0
      %7255 = vmatprep.subr.bf16.mxu0 0
      %7256 = vmatpush1.bf16.msra.mxu0 0
      %7257 = vmatprep.subr.bf16.mxu0 0
      %7258 = vmatpush1.bf16.msra.mxu0 0
      %7259 = vmatprep.subr.bf16.mxu0 0
      %7260 = vmatpush1.bf16.msra.mxu0 0
      %7261 = vmatprep.subr.bf16.mxu0 0
      %7262 = vmatpush1.bf16.msra.mxu0 0
      %7263 = vmatprep.subr.bf16.mxu0 0
      %7264 = vmatpush1.bf16.msra.mxu0 0
      %7265 = vmatprep.subr.bf16.mxu0 0
      %7266 = vmatpush1.bf16.msra.mxu0 0
      %7267 = vmatprep.subr.bf16.mxu0 0
      %7268 = vmatpush1.bf16.msra.mxu0 0
      %7269 = vmatprep.subr.bf16.mxu0 0
      %7270 = vmatpush1.bf16.msra.mxu0 0
      %7271 = vmatprep.subr.bf16.mxu0 0
      %7272 = vmatpush1.bf16.msra.mxu0 0
      %7273 = vmatprep.subr.bf16.mxu0 0
      %7274 = vmatpush1.bf16.msra.mxu0 0
      %7275 = vmatprep.subr.bf16.mxu0 0
      %7276 = vmatpush1.bf16.msra.mxu0 0
      %7277 = vmatprep.mubr.bf16.mxu0 0
      %7278 = vmatmul.mubr.bf16.gmra.mrb[0].mxu0 %v7225
      %v7279 = vpop.f32.mrb[0].mxu0
      %v7280 = vadd.f32 %v7210, %v7279
      %v7281 = vpop.f32.mrb[0].mxu0
      %v7282 = vpop.f32.mrb[0].mxu0
      %v7283 = vadd.f32 %v7210, %v7282
      %v7284 = vpop.f32.mrb[0].mxu0
      %7285 = vmatprep.mubr.bf16.mxu0 0
      %7286 = vmatmul.mubr.bf16.gmra.mrb[0].mxu0 %v7228
      %v7287 = vpop.f32.mrb[0].mxu0
      %v7288 = vadd.f32 %v7210, %v7287
      %v7289 = vpop.f32.mrb[0].mxu0
      %v7290 = vpop.f32.mrb[0].mxu0
      %v7291 = vadd.f32 %v7210, %v7290
      %v7292 = vpop.f32.mrb[0].mxu0
      %7293 = vmatprep.mubr.bf16.mxu0 0
      %7294 = vmatmul.mubr.bf16.gmra.mrb[0].mxu0 %v7231
      %v7295 = vpop.f32.mrb[0].mxu0
      %v7296 = vadd.f32 %v7210, %v7295
      %v7297 = vpop.f32.mrb[0].mxu0
      %v7298 = vpop.f32.mrb[0].mxu0
      %v7299 = vadd.f32 %v7210, %v7298
      %v7300 = vpop.f32.mrb[0].mxu0
      %7301 = vmatprep.mubr.bf16.mxu0 0
      %7302 = vmatmul.mubr.bf16.gmra.mrb[0].mxu0 %v7234
      %v7303 = vpop.f32.mrb[0].mxu0
      %v7304 = vadd.f32 %v7210, %v7303
      %v7305 = vpop.f32.mrb[0].mxu0
      %v7306 = vpop.f32.mrb[0].mxu0
      %v7307 = vadd.f32 %v7210, %v7306
      %v7308 = vpop.f32.mrb[0].mxu0
      %7309 = vmatprep.mubr.bf16.mxu0 0
      %7310 = vmatmul.mubr.bf16.gmra.mrb[0].mxu0 %v7237
      %v7311 = vpop.f32.mrb[0].mxu0
      %v7312 = vadd.f32 %v7210, %v7311
      %v7313 = vpop.f32.mrb[0].mxu0
      %v7314 = vpop.f32.mrb[0].mxu0
      %v7315 = vadd.f32 %v7210, %v7314
      %v7316 = vpop.f32.mrb[0].mxu0
      %7317 = vmatprep.mubr.bf16.mxu0 0
      %7318 = vmatmul.mubr.bf16.gmra.mrb[0].mxu0 %v7240
      %v7319 = vpop.f32.mrb[0].mxu0
      %v7320 = vadd.f32 %v7210, %v7319
      %v7321 = vpop.f32.mrb[0].mxu0
      %v7322 = vpop.f32.mrb[0].mxu0
      %v7323 = vadd.f32 %v7210, %v7322
      %v7324 = vpop.f32.mrb[0].mxu0
      %7325 = vmatprep.mubr.bf16.mxu0 0
      %7326 = vmatmul.mubr.bf16.gmra.mrb[0].mxu0 %v7243
      %v7327 = vpop.f32.mrb[0].mxu0
      %v7328 = vadd.f32 %v7210, %v7327
      %v7329 = vpop.f32.mrb[0].mxu0
      %v7330 = vpop.f32.mrb[0].mxu0
      %v7331 = vadd.f32 %v7210, %v7330
      %v7332 = vpop.f32.mrb[0].mxu0
      %7333 = vdwg.mxu0
      %v7334 = vmul.f32 %v7280, %v7280
      %v7335 = vmul.f32 %v7283, %v7283
      %v7336 = vmul.f32 %v7288, %v7288
      %v7337 = vmul.f32 %v7291, %v7291
      %v7338 = vmul.f32 %v7296, %v7296
      %v7339 = vmul.f32 %v7299, %v7299
      %v7340 = vmul.f32 %v7304, %v7304
      %v7341 = vmul.f32 %v7307, %v7307
      %v7342 = vmul.f32 %v7312, %v7312
      %v7343 = vmul.f32 %v7315, %v7315
      %v7344 = vmul.f32 %v7320, %v7320
      %v7345 = vmul.f32 %v7323, %v7323
      %v7346 = vmul.f32 %v7328, %v7328
      %v7347 = vmul.f32 %v7331, %v7331
      %v7348 = vmul.f32 %v7280, %v7334
      %v7349 = vmul.f32 %v7283, %v7335
      %v7350 = vmul.f32 %v7288, %v7336
      %v7351 = vmul.f32 %v7291, %v7337
      %v7352 = vmul.f32 %v7296, %v7338
      %v7353 = vmul.f32 %v7299, %v7339
      %v7354 = vmul.f32 %v7304, %v7340
      %v7355 = vmul.f32 %v7307, %v7341
      %v7356 = vmul.f32 %v7312, %v7342
      %v7357 = vmul.f32 %v7315, %v7343
      %v7358 = vmul.f32 %v7320, %v7344
      %v7359 = vmul.f32 %v7323, %v7345
      %v7360 = vmul.f32 %v7328, %v7346
      %v7361 = vmul.f32 %v7331, %v7347
      %v7362 = vmul.f32 %v7348, 0.044715
      %v7363 = vmul.f32 %v7349, 0.044715
      %v7364 = vmul.f32 %v7350, 0.044715
      %v7365 = vmul.f32 %v7351, 0.044715
      %v7366 = vmul.f32 %v7352, 0.044715
      %v7367 = vmul.f32 %v7353, 0.044715
      %v7368 = vmul.f32 %v7354, 0.044715
      %v7369 = vmul.f32 %v7355, 0.044715
      %v7370 = vmul.f32 %v7356, 0.044715
      %v7371 = vmul.f32 %v7357, 0.044715
      %v7372 = vmul.f32 %v7358, 0.044715
      %v7373 = vmul.f32 %v7359, 0.044715
      %v7374 = vmul.f32 %v7360, 0.044715
      %v7375 = vmul.f32 %v7361, 0.044715
      %v7376 = vadd.f32 %v7280, %v7362
      %v7377 = vadd.f32 %v7283, %v7363
      %v7378 = vadd.f32 %v7288, %v7364
      %v7379 = vadd.f32 %v7291, %v7365
      %v7380 = vadd.f32 %v7296, %v7366
      %v7381 = vadd.f32 %v7299, %v7367
      %v7382 = vadd.f32 %v7304, %v7368
      %v7383 = vadd.f32 %v7307, %v7369
      %v7384 = vadd.f32 %v7312, %v7370
      %v7385 = vadd.f32 %v7315, %v7371
      %v7386 = vadd.f32 %v7320, %v7372
      %v7387 = vadd.f32 %v7323, %v7373
      %v7388 = vadd.f32 %v7328, %v7374
      %v7389 = vadd.f32 %v7331, %v7375
      %v7390 = vmul.f32 %v7376, 0.7978846
      %v7391 = vmul.f32 %v7377, 0.7978846
      %v7392 = vmul.f32 %v7378, 0.7978846
      %v7393 = vmul.f32 %v7379, 0.7978846
      %v7394 = vmul.f32 %v7380, 0.7978846
      %v7395 = vmul.f32 %v7381, 0.7978846
      %v7396 = vmul.f32 %v7382, 0.7978846
      %v7397 = vmul.f32 %v7383, 0.7978846
      %v7398 = vmul.f32 %v7384, 0.7978846
      %v7399 = vmul.f32 %v7385, 0.7978846
      %v7400 = vmul.f32 %v7386, 0.7978846
      %v7401 = vmul.f32 %v7387, 0.7978846
      %v7402 = vmul.f32 %v7388, 0.7978846
      %v7403 = vmul.f32 %v7389, 0.7978846
      %v7404 = vtanh.pop %v7390
      %v7405 = vtanh.pop %v7391
      %v7406 = vtanh.pop %v7392
      %v7407 = vtanh.pop %v7393
      %v7408 = vtanh.pop %v7394
      %v7409 = vtanh.pop %v7395
      %v7410 = vtanh.pop %v7396
      %v7411 = vtanh.pop %v7397
      %v7412 = vtanh.pop %v7398
      %v7413 = vtanh.pop %v7399
      %v7414 = vtanh.pop %v7400
      %v7415 = vtanh.pop %v7401
      %v7416 = vtanh.pop %v7402
      %v7417 = vtanh.pop %v7403
      %v7418 = vadd.f32 %v7404, 1.0
      %v7419 = vadd.f32 %v7405, 1.0
      %v7420 = vadd.f32 %v7406, 1.0
      %v7421 = vadd.f32 %v7407, 1.0
      %v7422 = vadd.f32 %v7408, 1.0
      %v7423 = vadd.f32 %v7409, 1.0
      %v7424 = vadd.f32 %v7410, 1.0
      %v7425 = vadd.f32 %v7411, 1.0
      %v7426 = vadd.f32 %v7412, 1.0
      %v7427 = vadd.f32 %v7413, 1.0
      %v7428 = vadd.f32 %v7414, 1.0
      %v7429 = vadd.f32 %v7415, 1.0
      %v7430 = vadd.f32 %v7416, 1.0
      %v7431 = vadd.f32 %v7417, 1.0
      %v7432 = vmul.f32 %v7418, 0.5
      %v7433 = vmul.f32 %v7419, 0.5
      %v7434 = vmul.f32 %v7420, 0.5
      %v7435 = vmul.f32 %v7421, 0.5
      %v7436 = vmul.f32 %v7422, 0.5
      %v7437 = vmul.f32 %v7423, 0.5
      %v7438 = vmul.f32 %v7424, 0.5
      %v7439 = vmul.f32 %v7425, 0.5
      %v7440 = vmul.f32 %v7426, 0.5
      %v7441 = vmul.f32 %v7427, 0.5
      %v7442 = vmul.f32 %v7428, 0.5
      %v7443 = vmul.f32 %v7429, 0.5
      %v7444 = vmul.f32 %v7430, 0.5
      %v7445 = vmul.f32 %v7431, 0.5
      %v7446 = vmul.f32 %v7280, %v7432
      %v7447 = vmul.f32 %v7283, %v7433
      %v7448 = vmul.f32 %v7288, %v7434
      %v7449 = vmul.f32 %v7291, %v7435
      %v7450 = vmul.f32 %v7296, %v7436
      %v7451 = vmul.f32 %v7299, %v7437
      %v7452 = vmul.f32 %v7304, %v7438
      %v7453 = vmul.f32 %v7307, %v7439
      %v7454 = vmul.f32 %v7312, %v7440
      %v7455 = vmul.f32 %v7315, %v7441
      %v7456 = vmul.f32 %v7320, %v7442
      %v7457 = vmul.f32 %v7323, %v7443
      %v7458 = vmul.f32 %v7328, %v7444
      %v7459 = vmul.f32 %v7331, %v7445
      %v7460 = vpack.c.bf16 %v7447, %v7446
      %v7461 = vpack.c.bf16 %v7449, %v7448
      %v7462 = vpack.c.bf16 %v7451, %v7450
      %v7463 = vpack.c.bf16 %v7453, %v7452
      %v7464 = vpack.c.bf16 %v7455, %v7454
      %v7465 = vpack.c.bf16 %v7457, %v7456
      %v7466 = vpack.c.bf16 %v7459, %v7458
      %s7467 = scalar_lea.vmem %s13, 64
      %v7468 = vld [vmem:[%s7467] sm:$0xf]
      %v7469 = vld [vmem:[%s7467 + $0x4] sm:$0xf]
      %v7470 = vld [vmem:[%s7467 + $0x8] sm:$0xf]
      %v7471 = vld [vmem:[%s7467 + $0xc] sm:$0xf]
      %v7472 = vld [vmem:[%s7467 + $0x10] sm:$0xf]
      %v7473 = vld [vmem:[%s7467 + $0x14] sm:$0xf]
      %v7474 = vld [vmem:[%s7467 + $0x18] sm:$0xf]
      %v7475 = vld [vmem:[%s7467 + $0x1c] sm:$0xf]
      %v7476 = vld [vmem:[%s7467 + $0x20] sm:$0xf]
      %v7477 = vld [vmem:[%s7467 + $0x24] sm:$0xf]
      %v7478 = vld [vmem:[%s7467 + $0x28] sm:$0xf]
      %v7479 = vld [vmem:[%s7467 + $0x2c] sm:$0xf]
      %v7480 = vld [vmem:[%s7467 + $0x30] sm:$0xf]
      %v7481 = vld [vmem:[%s7467 + $0x34] sm:$0xf]
      %v7482 = vld [vmem:[%s7467 + $0x38] sm:$0xf]
      %v7483 = vld [vmem:[%s7467 + $0x3c] sm:$0xf]
      %s7484 = scalar_lea.vmem %s14, 1
      %v7485 = vld [vmem:[%s7484] sm:$0x1]
      %v7487 = vlaneseq
      %v7488 = vshrl.u32 %v7487, 7
      %v7489 = vsub.s32 0, %v7488
      %v7490 = vrot.slane %v7485, %v7489
      %v7508 = vunpack.c.l.b16 %v7468
      %v7509 = vunpack.c.l.b16 %v7469
      %v7510 = vunpack.c.l.b16 %v7470
      %v7511 = vunpack.c.l.b16 %v7471
      %v7512 = vunpack.c.l.b16 %v7472
      %v7513 = vunpack.c.l.b16 %v7473
      %v7514 = vunpack.c.l.b16 %v7474
      %v7515 = vunpack.c.l.b16 %v7475
      %v7516 = vunpack.c.l.b16 %v7476
      %v7517 = vunpack.c.l.b16 %v7477
      %v7518 = vunpack.c.l.b16 %v7478
      %v7519 = vunpack.c.l.b16 %v7479
      %v7520 = vunpack.c.l.b16 %v7480
      %v7521 = vunpack.c.l.b16 %v7481
      %v7522 = vunpack.c.l.b16 %v7482
      %v7523 = vunpack.c.l.b16 %v7483
      %v7524 = vpack.c.b16 %v7509, %v7508
      %v7525 = vpack.c.b16 %v7511, %v7510
      %v7526 = vpack.c.b16 %v7513, %v7512
      %v7527 = vpack.c.b16 %v7515, %v7514
      %v7528 = vpack.c.b16 %v7517, %v7516
      %v7529 = vpack.c.b16 %v7519, %v7518
      %v7530 = vpack.c.b16 %v7521, %v7520
      %v7531 = vpack.c.b16 %v7523, %v7522
      %7540 = vmatprep.subr.bf16.mxu0 0
      %7541 = vmatpush1.bf16.msra.mxu0 %v7524
      %7542 = vmatprep.subr.bf16.mxu0 0
      %7543 = vmatpush1.bf16.msra.mxu0 %v7525
      %7544 = vmatprep.subr.bf16.mxu0 0
      %7545 = vmatpush1.bf16.msra.mxu0 %v7526
      %7546 = vmatprep.subr.bf16.mxu0 0
      %7547 = vmatpush1.bf16.msra.mxu0 %v7527
      %7548 = vmatprep.subr.bf16.mxu0 0
      %7549 = vmatpush1.bf16.msra.mxu0 %v7528
      %7550 = vmatprep.subr.bf16.mxu0 0
      %7551 = vmatpush1.bf16.msra.mxu0 %v7529
      %7552 = vmatprep.subr.bf16.mxu0 0
      %7553 = vmatpush1.bf16.msra.mxu0 %v7530
      %7554 = vmatprep.subr.bf16.mxu0 0
      %7555 = vmatpush1.bf16.msra.mxu0 %v7531
      %7556 = vmatprep.subr.bf16.mxu0 0
      %7557 = vmatpush1.bf16.msra.mxu0 0
      %7558 = vmatprep.subr.bf16.mxu0 0
      %7559 = vmatpush1.bf16.msra.mxu0 0
      %7560 = vmatprep.subr.bf16.mxu0 0
      %7561 = vmatpush1.bf16.msra.mxu0 0
      %7562 = vmatprep.subr.bf16.mxu0 0
      %7563 = vmatpush1.bf16.msra.mxu0 0
      %7564 = vmatprep.subr.bf16.mxu0 0
      %7565 = vmatpush1.bf16.msra.mxu0 0
      %7566 = vmatprep.subr.bf16.mxu0 0
      %7567 = vmatpush1.bf16.msra.mxu0 0
      %7568 = vmatprep.subr.bf16.mxu0 0
      %7569 = vmatpush1.bf16.msra.mxu0 0
      %7570 = vmatprep.subr.bf16.mxu0 0
      %7571 = vmatpush1.bf16.msra.mxu0 0
      %7572 = vmatprep.mubr.bf16.mxu0 0
      %7573 = vmatmul.mubr.bf16.gmra.mrb[0].mxu0 %v7460
      %v7574 = vpop.f32.mrb[0].mxu0
      %v7575 = vadd.f32 %v7490, %v7574
      %v7576 = vpop.f32.mrb[0].mxu0
      %v7577 = vpop.f32.mrb[0].mxu0
      %v7578 = vadd.f32 %v7490, %v7577
      %v7579 = vpop.f32.mrb[0].mxu0
      %7580 = vmatprep.mubr.bf16.mxu0 0
      %7581 = vmatmul.mubr.bf16.gmra.mrb[0].mxu0 %v7461
      %v7582 = vpop.f32.mrb[0].mxu0
      %v7583 = vadd.f32 %v7490, %v7582
      %v7584 = vpop.f32.mrb[0].mxu0
      %v7585 = vpop.f32.mrb[0].mxu0
      %v7586 = vadd.f32 %v7490, %v7585
      %v7587 = vpop.f32.mrb[0].mxu0
      %7588 = vmatprep.mubr.bf16.mxu0 0
      %7589 = vmatmul.mubr.bf16.gmra.mrb[0].mxu0 %v7462
      %v7590 = vpop.f32.mrb[0].mxu0
      %v7591 = vadd.f32 %v7490, %v7590
      %v7592 = vpop.f32.mrb[0].mxu0
      %v7593 = vpop.f32.mrb[0].mxu0
      %v7594 = vadd.f32 %v7490, %v7593
      %v7595 = vpop.f32.mrb[0].mxu0
      %7596 = vmatprep.mubr.bf16.mxu0 0
      %7597 = vmatmul.mubr.bf16.gmra.mrb[0].mxu0 %v7463
      %v7598 = vpop.f32.mrb[0].mxu0
      %v7599 = vadd.f32 %v7490, %v7598
      %v7600 = vpop.f32.mrb[0].mxu0
      %v7601 = vpop.f32.mrb[0].mxu0
      %v7602 = vadd.f32 %v7490, %v7601
      %v7603 = vpop.f32.mrb[0].mxu0
      %7604 = vmatprep.mubr.bf16.mxu0 0
      %7605 = vmatmul.mubr.bf16.gmra.mrb[0].mxu0 %v7464
      %v7606 = vpop.f32.mrb[0].mxu0
      %v7607 = vadd.f32 %v7490, %v7606
      %v7608 = vpop.f32.mrb[0].mxu0
      %v7609 = vpop.f32.mrb[0].mxu0
      %v7610 = vadd.f32 %v7490, %v7609
      %v7611 = vpop.f32.mrb[0].mxu0
      %7612 = vmatprep.mubr.bf16.mxu0 0
      %7613 = vmatmul.mubr.bf16.gmra.mrb[0].mxu0 %v7465
      %v7614 = vpop.f32.mrb[0].mxu0
      %v7615 = vadd.f32 %v7490, %v7614
      %v7616 = vpop.f32.mrb[0].mxu0
      %v7617 = vpop.f32.mrb[0].mxu0
      %v7618 = vadd.f32 %v7490, %v7617
      %v7619 = vpop.f32.mrb[0].mxu0
      %7620 = vmatprep.mubr.bf16.mxu0 0
      %7621 = vmatmul.mubr.bf16.gmra.mrb[0].mxu0 %v7466
      %v7622 = vpop.f32.mrb[0].mxu0
      %v7623 = vadd.f32 %v7490, %v7622
      %v7624 = vpop.f32.mrb[0].mxu0
      %v7625 = vpop.f32.mrb[0].mxu0
      %v7626 = vadd.f32 %v7490, %v7625
      %v7627 = vpop.f32.mrb[0].mxu0
      %7628 = vdwg.mxu0
      %v7629 = vadd.f32 %v6952, %v7575
      %v7630 = vadd.f32 %v6953, %v7578
      %v7631 = vadd.f32 %v6954, %v7583
      %v7632 = vadd.f32 %v6955, %v7586
      %v7633 = vadd.f32 %v6956, %v7591
      %v7634 = vadd.f32 %v6957, %v7594
      %v7635 = vadd.f32 %v6958, %v7599
      %v7636 = vadd.f32 %v6959, %v7602
      %v7637 = vadd.f32 %v6960, %v7607
      %v7638 = vadd.f32 %v6961, %v7610
      %v7639 = vadd.f32 %v6962, %v7615
      %v7640 = vadd.f32 %v6963, %v7618
      %v7641 = vadd.f32 %v6964, %v7623
      %v7642 = vadd.f32 %v6965, %v7626
      %7643 = vst.msk [vmem:[%s514] sm:$0xff] %vm1202, %v7629
      %7644 = vst.msk [vmem:[%s514 + $0x8] sm:$0xff] %vm1202, %v7630
      %7645 = vst.msk [vmem:[%s514 + $0x10] sm:$0xff] %vm1202, %v7631
      %7646 = vst.msk [vmem:[%s514 + $0x18] sm:$0xff] %vm1202, %v7632
      %7647 = vst.msk [vmem:[%s514 + $0x20] sm:$0xff] %vm1202, %v7633
      %7648 = vst.msk [vmem:[%s514 + $0x28] sm:$0xff] %vm1202, %v7634
      %7649 = vst.msk [vmem:[%s514 + $0x30] sm:$0xff] %vm1202, %v7635
      %7650 = vst.msk [vmem:[%s514 + $0x38] sm:$0xff] %vm1202, %v7636
      %7651 = vst.msk [vmem:[%s514 + $0x40] sm:$0xff] %vm1202, %v7637
      %7652 = vst.msk [vmem:[%s514 + $0x48] sm:$0xff] %vm1202, %v7638
      %7653 = vst.msk [vmem:[%s514 + $0x50] sm:$0xff] %vm1202, %v7639
      %7654 = vst.msk [vmem:[%s514 + $0x58] sm:$0xff] %vm1202, %v7640
      %7655 = vst.msk [vmem:[%s514 + $0x60] sm:$0xff] %vm1202, %v7641
      %7656 = vst.msk [vmem:[%s514 + $0x68] sm:$0xf] %vm1242, %v7642
      %p7657 = scmp.lt.s32.totalorder %s26, 1
      %s7658 = scalar_select %p7657, %s26, 1
      %s7659 = smul.addr %s7658, 14
      %s7660 = smul.addr %s7659, 8
      %s7661 = scalar_lea.vmem %s15, %s7660
      // Predicated region
      $region81: #{graph_encoder_pred_forward.2} parent=79 // pred_check
        %p7662 = pneg %p369
      $region82: #{graph_encoder_pred_forward.2} parent=79 // pred_check_branch
        %7664 = sbr.rel (%p7662) target = $region84
      $region83: #{graph_encoder_pred_forward.2} parent=79 // pred_region
        _
      $region84: #{graph_encoder_pred_forward.2} parent=79 // pred_fallthru
        _
    $region80: #{graph_encoder_pred_forward.2} parent=5 // pred_fallthru
      _
    %p7665 = scmp.le.s32.totalorder 2, %s21
    // Predicated region
    $region85: #{graph_encoder_pred_forward.2} parent=5 // pred_check
      %p7666 = pneg %p7665
    $region86: #{graph_encoder_pred_forward.2} parent=5 // pred_check_branch
      %7668 = sbr.rel (%p7666) target = $region88
    $region87: #{graph_encoder_pred_forward.2} parent=5 // pred_region
      %s7669 = ssub.s32 %s21, 2
      // Predicated region
      $region89: #{graph_encoder_pred_forward.2} parent=87 // pred_check
        %p7670 = pneg %p375
      $region90: #{graph_encoder_pred_forward.2} parent=87 // pred_check_branch
        %7672 = sbr.rel (%p7670) target = $region92
      $region91: #{graph_encoder_pred_forward.2} parent=87 // pred_region
        %p7673 = scmp.lt.s32.totalorder %s27, 1
        %s7674 = scalar_select %p7673, %s27, 1
        %s7675 = smul.addr %s7674, 14
        %s7676 = smul.addr %s7675, 8
        %s7677 = scalar_lea.vmem %s15, %s7676
      $region92: #{graph_encoder_pred_forward.2} parent=87 // pred_fallthru
        _
    $region88: #{graph_encoder_pred_forward.2} parent=5 // pred_fallthru
      _
  $region6: #{graph_encoder_pred_forward.2} parent=0 // loop_footer
    %s25 = sadd.s32 1, %s21
  $region7: #{graph_encoder_pred_forward.2} parent=0 // loop_footer_branch
    %20 = sbr.rel target = $region3
  $region8: #{graph_encoder_pred_forward.2} parent=0 // loop_exit
    _

</llo_original>
